<compile_context>
chip_gen: v6e
topology: v6e:2x2x1
jax: 0.10.0
libtpu: 0.0.40
codegen_flags: <defaults>
</compile_context>

<pallas_src>
import jax
import jax.numpy as jnp
import numpy as np
from jax.experimental import pallas as pl
from jax.experimental.pallas import tpu as pltpu

D_MODEL = 512
D_FF = 2048
LN_EPS = 1e-5            # PyTorch nn.LayerNorm default

ROW_TILE = 512           # row tile for large B*S (small inputs use a single exact tile)


# ------------------------------- kernel -------------------------------------

def ffn_kernel(x_ref, w1_ref, w2_ref, g_ref, b_ref, out_ref):
    """One (TM, d_model) row tile; full FFN + residual + LayerNorm in a single pass."""
    x_f32 = x_ref[...]                                    # (TM, 512) f32
    x_bf = x_f32.astype(jnp.bfloat16)                     # cast only at matmul operand

    # (TM, 2048) f32: first linear + ReLU
    h = jnp.dot(x_bf, w1_ref[...], preferred_element_type=jnp.float32)
    h = jnp.maximum(h, 0.0)

    # (TM, 512) f32: second linear + residual
    y = jnp.dot(h.astype(jnp.bfloat16), w2_ref[...],
                preferred_element_type=jnp.float32) + x_f32

    # LayerNorm over d_model (f32 math, EUP rsqrt)
    mean = jnp.mean(y, axis=-1, keepdims=True)
    var = jnp.mean((y - mean) ** 2, axis=-1, keepdims=True)
    inv = jax.lax.rsqrt(var + LN_EPS)
    out_ref[...] = (y - mean) * inv * g_ref[...] + b_ref[...]


# ------------------------------- wrapper ------------------------------------

def poswise_feed_forward(x, w1_bf16, w2_bf16, gamma, beta):
    """x: (B, S, d_model) f32; w1: (d_model, d_ff) bf16; w2: (d_ff, d_model) bf16."""
    B, S, D = x.shape
    assert D == D_MODEL
    N = B * S

    # Row tiling: sublane dim only needs to be a multiple of 8 (f32).  Small inputs run
    # as one exact tile (no 168->256 padding); large inputs tile at ROW_TILE rows.
    n8 = -(-N // 8) * 8
    if n8 <= ROW_TILE:
        TM = n8
        Np = n8
    else:
        TM = ROW_TILE
        Np = pl.cdiv(N, TM) * TM
    n_row = Np // TM

    x2 = x.reshape(N, D)
    if Np != N:
        # position-wise op: zero-padded rows are computed and then discarded
        x2 = jnp.pad(x2, ((0, Np - N), (0, 0)))

    g2 = gamma.reshape(1, D).astype(jnp.float32)
    b2 = beta.reshape(1, D).astype(jnp.float32)

    # Weight-stream-bound at small N: keep it on one TC.  Shard rows across TCs only
    # when there are multiple row tiles.
    row_sem = "parallel" if n_row > 1 else "arbitrary"

    out = pl.pallas_call(
        ffn_kernel,
        out_shape=jax.ShapeDtypeStruct((Np, D), jnp.float32),
        grid=(n_row,),
        in_specs=[
            pl.BlockSpec((TM, D), lambda i: (i, 0)),        # x row tile
            pl.BlockSpec((D, D_FF), lambda i: (0, 0)),      # W1 (grid-invariant, bf16)
            pl.BlockSpec((D_FF, D), lambda i: (0, 0)),      # W2 (grid-invariant, bf16)
            pl.BlockSpec((1, D), lambda i: (0, 0)),         # LayerNorm gamma
            pl.BlockSpec((1, D), lambda i: (0, 0)),         # LayerNorm beta
        ],
        out_specs=pl.BlockSpec((TM, D), lambda i: (i, 0)),
        compiler_params=pltpu.CompilerParams(
            dimension_semantics=(row_sem,),
            vmem_limit_bytes=32 << 20,      # ~19 MiB worst-case footprint; safe on v7x
        ),
    )(x2, w1_bf16, w2_bf16, g2, b2)

    return out[:N].reshape(B, S, D)


# ------------------------- pure-JAX reference (check) ------------------------

def poswise_feed_forward_ref(x, w1_bf16, w2_bf16, gamma, beta):
    B, S, D = x.shape
    x2 = x.reshape(B * S, D)
    h = jnp.dot(x2.astype(jnp.bfloat16), w1_bf16,
                preferred_element_type=jnp.float32)
    h = jnp.maximum(h, 0.0)
    y = jnp.dot(h.astype(jnp.bfloat16), w2_bf16,
                preferred_element_type=jnp.float32) + x2
    mean = jnp.mean(y, axis=-1, keepdims=True)
    var = jnp.mean((y - mean) ** 2, axis=-1, keepdims=True)
    out = (y - mean) * jax.lax.rsqrt(var + LN_EPS) * gamma[None, :] + beta[None, :]
    return out.reshape(B, S, D)


# --------------------------------- main --------------------------------------

if __name__ == "__main__":
    key = jax.random.PRNGKey(0)
    k_x, k_w1, k_w2 = jax.random.split(key, 3)

    batch, seq = 2, 84        # matches where this FFN is used in the encoder (35 + 49)

    x = jax.random.normal(k_x, (batch, seq, D_MODEL), jnp.float32)
    w1 = (jax.random.normal(k_w1, (D_MODEL, D_FF), jnp.float32) * 0.02
          ).astype(jnp.bfloat16)
    w2 = (jax.random.normal(k_w2, (D_FF, D_MODEL), jnp.float32) * 0.02
          ).astype(jnp.bfloat16)
    gamma = jnp.ones((D_MODEL,), jnp.float32)
    beta = jnp.zeros((D_MODEL,), jnp.float32)

    fwd = jax.jit(poswise_feed_forward)
    out = fwd(x, w1, w2, gamma, beta)
    jax.block_until_ready(out)

    ref = poswise_feed_forward_ref(x, w1, w2, gamma, beta)
    jax.block_until_ready(ref)

    assert out.shape == (batch, seq, D_MODEL)
    assert bool(jnp.all(jnp.isfinite(out)))
    np.testing.assert_allclose(np.asarray(out), np.asarray(ref),
                               rtol=5e-2, atol=5e-2)

    print("KERNEL_OK")
</pallas_src>

<mosaic_0001>
module attributes {stable_mosaic.version = 11 : i64} {
  func.func @ffn_kernel(%arg0: i32, %arg1: memref<168x512xf32, #tpu.memory_space<vmem>>, %arg2: memref<512x2048xbf16, #tpu.memory_space<vmem>>, %arg3: memref<2048x512xbf16, #tpu.memory_space<vmem>>, %arg4: memref<1x512xf32, #tpu.memory_space<vmem>>, %arg5: memref<1x512xf32, #tpu.memory_space<vmem>>, %arg6: memref<168x512xf32, #tpu.memory_space<vmem>>) attributes {dimension_semantics = [#tpu.dimension_semantics<arbitrary>], iteration_bounds = array<i64: 1>, scalar_prefetch = 0 : i64, scratch_operands = 0 : i64, tpu.core_type = #tpu.core_type<tc>, window_params = [{transform_indices = @transform_0, window_bounds = array<i64: 168, 512>}, {pipeline_mode = #tpu.pipeline_mode<synchronous>, transform_indices = @transform_1, window_bounds = array<i64: 512, 2048>}, {pipeline_mode = #tpu.pipeline_mode<synchronous>, transform_indices = @transform_2, window_bounds = array<i64: 2048, 512>}, {pipeline_mode = #tpu.pipeline_mode<synchronous>, transform_indices = @transform_3, window_bounds = array<i64: 1, 512>}, {pipeline_mode = #tpu.pipeline_mode<synchronous>, transform_indices = @transform_4, window_bounds = array<i64: 1, 512>}, {transform_indices = @transform_5, window_bounds = array<i64: 168, 512>}]} {
    %c0 = arith.constant 0 : index
    %c0_0 = arith.constant 0 : index
    %0 = vector.load %arg1[%c0, %c0_0] : memref<168x512xf32, #tpu.memory_space<vmem>>, vector<168x512xf32>
    %1 = arith.truncf %0 : vector<168x512xf32> to vector<168x512xbf16>
    %c0_1 = arith.constant 0 : index
    %c0_2 = arith.constant 0 : index
    %2 = vector.load %arg2[%c0_1, %c0_2] : memref<512x2048xbf16, #tpu.memory_space<vmem>>, vector<512x2048xbf16>
    %cst = arith.constant dense<0.000000e+00> : vector<168x2048xf32>
    %3 = tpu.matmul %1, %2, %cst {dimension_numbers = #tpu.dot_dimension_numbers<[1], [0], [0], [1], [0, 0, 1, 1], [], []>} : vector<168x512xbf16>, vector<512x2048xbf16>, vector<168x2048xf32> -> vector<168x2048xf32>
    %cst_3 = arith.constant 0.000000e+00 : f32
    %4 = vector.broadcast %cst_3 : f32 to vector<168x2048xf32>
    %5 = arith.maximumf %3, %4 : vector<168x2048xf32>
    %6 = arith.truncf %5 : vector<168x2048xf32> to vector<168x2048xbf16>
    %c0_4 = arith.constant 0 : index
    %c0_5 = arith.constant 0 : index
    %7 = vector.load %arg3[%c0_4, %c0_5] : memref<2048x512xbf16, #tpu.memory_space<vmem>>, vector<2048x512xbf16>
    %cst_6 = arith.constant dense<0.000000e+00> : vector<168x512xf32>
    %8 = tpu.matmul %6, %7, %cst_6 {dimension_numbers = #tpu.dot_dimension_numbers<[1], [0], [0], [1], [0, 0, 1, 1], [], []>} : vector<168x2048xbf16>, vector<2048x512xbf16>, vector<168x512xf32> -> vector<168x512xf32>
    %9 = arith.addf %8, %0 : vector<168x512xf32>
    %cst_7 = arith.constant dense<0.000000e+00> : vector<168xf32>
    %10 = vector.multi_reduction <add>, %9, %cst_7 [1] : vector<168x512xf32> to vector<168xf32>
    %11 = vector.shape_cast %10 : vector<168xf32> to vector<168x1xf32>
    %cst_8 = arith.constant 5.120000e+02 : f32
    %12 = vector.broadcast %cst_8 : f32 to vector<168x1xf32>
    %13 = arith.divf %11, %12 : vector<168x1xf32>
    %14 = vector.broadcast %13 : vector<168x1xf32> to vector<168x512xf32>
    %15 = arith.subf %9, %14 : vector<168x512xf32>
    %16 = arith.mulf %15, %15 : vector<168x512xf32>
    %cst_9 = arith.constant dense<0.000000e+00> : vector<168xf32>
    %17 = vector.multi_reduction <add>, %16, %cst_9 [1] : vector<168x512xf32> to vector<168xf32>
    %18 = vector.shape_cast %17 : vector<168xf32> to vector<168x1xf32>
    %cst_10 = arith.constant 5.120000e+02 : f32
    %19 = vector.broadcast %cst_10 : f32 to vector<168x1xf32>
    %20 = arith.divf %18, %19 : vector<168x1xf32>
    %cst_11 = arith.constant 9.99999974E-6 : f32
    %21 = vector.broadcast %cst_11 : f32 to vector<168x1xf32>
    %22 = arith.addf %20, %21 : vector<168x1xf32>
    %23 = math.rsqrt %22 : vector<168x1xf32>
    %24 = vector.broadcast %13 : vector<168x1xf32> to vector<168x512xf32>
    %25 = arith.subf %9, %24 : vector<168x512xf32>
    %26 = vector.broadcast %23 : vector<168x1xf32> to vector<168x512xf32>
    %27 = arith.mulf %25, %26 : vector<168x512xf32>
    %c0_12 = arith.constant 0 : index
    %c0_13 = arith.constant 0 : index
    %28 = vector.load %arg4[%c0_12, %c0_13] : memref<1x512xf32, #tpu.memory_space<vmem>>, vector<1x512xf32>
    %29 = vector.broadcast %28 : vector<1x512xf32> to vector<168x512xf32>
    %30 = arith.mulf %27, %29 : vector<168x512xf32>
    %c0_14 = arith.constant 0 : index
    %c0_15 = arith.constant 0 : index
    %31 = vector.load %arg5[%c0_14, %c0_15] : memref<1x512xf32, #tpu.memory_space<vmem>>, vector<1x512xf32>
    %32 = vector.broadcast %31 : vector<1x512xf32> to vector<168x512xf32>
    %33 = arith.addf %30, %32 : vector<168x512xf32>
    %c0_16 = arith.constant 0 : index
    %c0_17 = arith.constant 0 : index
    %34 = vector.load %arg6[%c0_16, %c0_17] : memref<168x512xf32, #tpu.memory_space<vmem>>, vector<168x512xf32>
    tpu.vector_store %arg6[%c0_16, %c0_17], %33 {strides = array<i32>} : memref<168x512xf32, #tpu.memory_space<vmem>>, vector<168x512xf32>,
    return
  }
  func.func @transform_0(%arg0: i32) -> (i32, i32) {
    %c0_i32 = arith.constant 0 : i32
    %c0_i32_0 = arith.constant 0 : i32
    return %arg0, %c0_i32 : i32, i32
  }
  func.func @transform_1(%arg0: i32) -> (i32, i32) {
    %c0_i32 = arith.constant 0 : i32
    %c0_i32_0 = arith.constant 0 : i32
    %c0_i32_1 = arith.constant 0 : i32
    return %c0_i32, %c0_i32_0 : i32, i32
  }
  func.func @transform_2(%arg0: i32) -> (i32, i32) {
    %c0_i32 = arith.constant 0 : i32
    %c0_i32_0 = arith.constant 0 : i32
    %c0_i32_1 = arith.constant 0 : i32
    return %c0_i32, %c0_i32_0 : i32, i32
  }
  func.func @transform_3(%arg0: i32) -> (i32, i32) {
    %c0_i32 = arith.constant 0 : i32
    %c0_i32_0 = arith.constant 0 : i32
    %c0_i32_1 = arith.constant 0 : i32
    return %c0_i32, %c0_i32_0 : i32, i32
  }
  func.func @transform_4(%arg0: i32) -> (i32, i32) {
    %c0_i32 = arith.constant 0 : i32
    %c0_i32_0 = arith.constant 0 : i32
    %c0_i32_1 = arith.constant 0 : i32
    return %c0_i32, %c0_i32_0 : i32, i32
  }
  func.func @transform_5(%arg0: i32) -> (i32, i32) {
    %c0_i32 = arith.constant 0 : i32
    %c0_i32_0 = arith.constant 0 : i32
    return %arg0, %c0_i32 : i32, i32
  }
}

</mosaic_0001>

<llo_original>
// kernel: poswise_feed_forward.1
$region0: #{poswise_feed_forward.1}
  #allocation0 [shape = 'u32[]', space=smem, size = 0x4, offset = 0x4, fixed_abs, tag = 'smem constant byte address 0x4 - core index']
  #allocation1 [shape = 'u32[144,128]{1,0:T(1,128)}', space=vmem, size = 0x12000, scoped, tag = 'internal scratch']
  %s0 = inlined_call_operand.vmem [shape: f32[168,512], index: 0, kind: input, shape index: {}]
  %s1 = inlined_call_operand.hbm [shape: bf16[512,2048], index: 1, kind: input, shape index: {}]
  %s2 = inlined_call_operand.hbm [shape: bf16[2048,512], index: 2, kind: input, shape index: {}]
  %s3 = inlined_call_operand.hbm [shape: f32[1,512], index: 3, kind: input, shape index: {}]
  %s4 = inlined_call_operand.hbm [shape: f32[1,512], index: 4, kind: input, shape index: {}]
  %s5 = inlined_call_operand.vmem [shape: f32[168,512], index: 5, kind: output, shape index: {}]
  %s6 = sld [smem:[#allocation0]]
  $region46: #{poswise_feed_forward.1} parent=0
    _
  %s8 = ssub.s32 1, %s6
  %s9 = scalar_select 0, %s8, %s6
  $region1: #{poswise_feed_forward.1} parent=0
    #allocation2 [shape = 'u8[2097152]{0}', space=vmem, size = 0x200000, scoped, tag = 'input window, operand 1, single buffered']
    #allocation3 [shape = 's32[1]{0}', space=sflag, size = 0x4, scoped, tag = 'scoped memory for poswise_feed_forward.1']
    #allocation4 [shape = 'u8[2097152]{0}', space=vmem, size = 0x200000, scoped, tag = 'input window, operand 2, single buffered']
    #allocation5 [shape = 's32[1]{0}', space=sflag, size = 0x4, scoped, tag = 'scoped memory for poswise_feed_forward.1']
    #allocation6 [shape = 'u8[2048]{0}', space=vmem, size = 0x800, scoped, tag = 'input window, operand 3, single buffered']
    #allocation7 [shape = 'u8[2048]{0}', space=vmem, size = 0x800, scoped, tag = 'input window, operand 4, single buffered']
    #allocation8 [shape = 's32[1]{0}', space=sflag, size = 0x4, scoped, tag = 'scoped memory for poswise_feed_forward.1']
    %10 = vsyncpa [#allocation3], 0
    %11 = vsyncpa [#allocation5], 0
    %12 = vsyncpa [#allocation8], 0
    // Predicated region
    $region2: #{poswise_feed_forward.1} parent=1 // pred_check
      _
    $region3: #{poswise_feed_forward.1} parent=1 // pred_check_branch
      %14 = sbr.rel (0) target = $region5
    $region4: #{poswise_feed_forward.1} parent=1 // pred_region
      _
    $region5: #{poswise_feed_forward.1} parent=1 // pred_fallthru
      _
    // Predicated region
    $region6: #{poswise_feed_forward.1} parent=1 // pred_check
      _
    $region7: #{poswise_feed_forward.1} parent=1 // pred_check_branch
      %16 = sbr.rel (0) target = $region9
    $region8: #{poswise_feed_forward.1} parent=1 // pred_region
      %s18 = ssub.s32 65536, 65536
      %19 = vsyncadd [#allocation3], %s18
      %s20 = sshll.u32 [#allocation2], 4
      %s21 = int_to_ptr.vmem [resolvable:$true] %s20
      %26 = dma.hbm_to_vmem [thread:$0]  %s1, 65536, %s21, [#allocation3], 1024, 1024, 64
    $region9: #{poswise_feed_forward.1} parent=1 // pred_fallthru
      _
    // Predicated region
    $region10: #{poswise_feed_forward.1} parent=1 // pred_check
      _
    $region11: #{poswise_feed_forward.1} parent=1 // pred_check_branch
      %28 = sbr.rel (0) target = $region13
    $region12: #{poswise_feed_forward.1} parent=1 // pred_region
      %s30 = ssub.s32 65536, 65536
      %31 = vsyncadd [#allocation5], %s30
      %s32 = sshll.u32 [#allocation4], 4
      %s33 = int_to_ptr.vmem [resolvable:$true] %s32
      %38 = dma.hbm_to_vmem [thread:$0]  %s2, 65536, %s33, [#allocation5], 256, 256, 16
    $region13: #{poswise_feed_forward.1} parent=1 // pred_fallthru
      _
    // Predicated region
    $region14: #{poswise_feed_forward.1} parent=1 // pred_check
      _
    $region15: #{poswise_feed_forward.1} parent=1 // pred_check_branch
      %40 = sbr.rel (0) target = $region17
    $region16: #{poswise_feed_forward.1} parent=1 // pred_region
      %s42 = ssub.s32 64, 64
      %43 = vsyncadd [#allocation5], %s42
      %s45 = sshll.u32 [#allocation6], 4
      %s46 = int_to_ptr.vmem [resolvable:$true] %s45
      %48 = dma.hbm_to_vmem [thread:$0]  %s3, 64, %s46, [#allocation5]
    $region17: #{poswise_feed_forward.1} parent=1 // pred_fallthru
      _
    // Predicated region
    $region18: #{poswise_feed_forward.1} parent=1 // pred_check
      _
    $region19: #{poswise_feed_forward.1} parent=1 // pred_check_branch
      %50 = sbr.rel (0) target = $region21
    $region20: #{poswise_feed_forward.1} parent=1 // pred_region
      %s52 = ssub.s32 64, 64
      %53 = vsyncadd [#allocation8], %s52
      %s55 = sshll.u32 [#allocation7], 4
      %s56 = int_to_ptr.vmem [resolvable:$true] %s55
      %58 = dma.hbm_to_vmem [thread:$0]  %s4, 64, %s56, [#allocation8]
    $region21: #{poswise_feed_forward.1} parent=1 // pred_fallthru
      _
    // Predicated region
    $region22: #{poswise_feed_forward.1} parent=1 // pred_check
      _
    $region23: #{poswise_feed_forward.1} parent=1 // pred_check_branch
      %60 = sbr.rel (0) target = $region25
    $region24: #{poswise_feed_forward.1} parent=1 // pred_region
      %61 = dma.done [#allocation3], 65536
    $region25: #{poswise_feed_forward.1} parent=1 // pred_fallthru
      _
    // Predicated region
    $region26: #{poswise_feed_forward.1} parent=1 // pred_check
      _
    $region27: #{poswise_feed_forward.1} parent=1 // pred_check_branch
      %63 = sbr.rel (0) target = $region29
    $region28: #{poswise_feed_forward.1} parent=1 // pred_region
      %64 = dma.done [#allocation5], 65536
    $region29: #{poswise_feed_forward.1} parent=1 // pred_fallthru
      _
    // Predicated region
    $region30: #{poswise_feed_forward.1} parent=1 // pred_check
      _
    $region31: #{poswise_feed_forward.1} parent=1 // pred_check_branch
      %66 = sbr.rel (0) target = $region33
    $region32: #{poswise_feed_forward.1} parent=1 // pred_region
      %67 = dma.done [#allocation5], 64
    $region33: #{poswise_feed_forward.1} parent=1 // pred_fallthru
      _
    // Predicated region
    $region34: #{poswise_feed_forward.1} parent=1 // pred_check
      _
    $region35: #{poswise_feed_forward.1} parent=1 // pred_check_branch
      %69 = sbr.rel (0) target = $region37
    $region36: #{poswise_feed_forward.1} parent=1 // pred_region
      %70 = dma.done [#allocation8], 64
    $region37: #{poswise_feed_forward.1} parent=1 // pred_fallthru
      _
    %v71 = vld [vmem:[%s0] sm:$0xff]
    %v72 = vld [vmem:[%s0 + $0x8] sm:$0xff]
    %v73 = vld [vmem:[%s0 + $0x10] sm:$0xff]
    %v74 = vld [vmem:[%s0 + $0x18] sm:$0xff]
    %v75 = vld [vmem:[%s0 + $0x20] sm:$0xff]
    %v76 = vld [vmem:[%s0 + $0x28] sm:$0xff]
    %v77 = vld [vmem:[%s0 + $0x30] sm:$0xff]
    %v78 = vld [vmem:[%s0 + $0x38] sm:$0xff]
    %v79 = vld [vmem:[%s0 + $0x40] sm:$0xff]
    %v80 = vld [vmem:[%s0 + $0x48] sm:$0xff]
    %v81 = vld [vmem:[%s0 + $0x50] sm:$0xff]
    %v82 = vld [vmem:[%s0 + $0x58] sm:$0xff]
    %v83 = vld [vmem:[%s0 + $0x60] sm:$0xff]
    %v84 = vld [vmem:[%s0 + $0x68] sm:$0xff]
    %v85 = vld [vmem:[%s0 + $0x70] sm:$0xff]
    %v86 = vld [vmem:[%s0 + $0x78] sm:$0xff]
    %v87 = vld [vmem:[%s0 + $0x80] sm:$0xff]
    %v88 = vld [vmem:[%s0 + $0x88] sm:$0xff]
    %v89 = vld [vmem:[%s0 + $0x90] sm:$0xff]
    %v90 = vld [vmem:[%s0 + $0x98] sm:$0xff]
    %v91 = vld [vmem:[%s0 + $0xa0] sm:$0xff]
    %v92 = vld [vmem:[%s0 + $0xa8] sm:$0xff]
    %v93 = vld [vmem:[%s0 + $0xb0] sm:$0xff]
    %v94 = vld [vmem:[%s0 + $0xb8] sm:$0xff]
    %v95 = vld [vmem:[%s0 + $0xc0] sm:$0xff]
    %v96 = vld [vmem:[%s0 + $0xc8] sm:$0xff]
    %v97 = vld [vmem:[%s0 + $0xd0] sm:$0xff]
    %v98 = vld [vmem:[%s0 + $0xd8] sm:$0xff]
    %v99 = vld [vmem:[%s0 + $0xe0] sm:$0xff]
    %v100 = vld [vmem:[%s0 + $0xe8] sm:$0xff]
    %v101 = vld [vmem:[%s0 + $0xf0] sm:$0xff]
    %v102 = vld [vmem:[%s0 + $0xf8] sm:$0xff]
    %v103 = vld [vmem:[%s0 + $0x100] sm:$0xff]
    %v104 = vld [vmem:[%s0 + $0x108] sm:$0xff]
    %v105 = vld [vmem:[%s0 + $0x110] sm:$0xff]
    %v106 = vld [vmem:[%s0 + $0x118] sm:$0xff]
    %v107 = vld [vmem:[%s0 + $0x120] sm:$0xff]
    %v108 = vld [vmem:[%s0 + $0x128] sm:$0xff]
    %v109 = vld [vmem:[%s0 + $0x130] sm:$0xff]
    %v110 = vld [vmem:[%s0 + $0x138] sm:$0xff]
    %v111 = vld [vmem:[%s0 + $0x140] sm:$0xff]
    %v112 = vld [vmem:[%s0 + $0x148] sm:$0xff]
    %v113 = vld [vmem:[%s0 + $0x150] sm:$0xff]
    %v114 = vld [vmem:[%s0 + $0x158] sm:$0xff]
    %v115 = vld [vmem:[%s0 + $0x160] sm:$0xff]
    %v116 = vld [vmem:[%s0 + $0x168] sm:$0xff]
    %v117 = vld [vmem:[%s0 + $0x170] sm:$0xff]
    %v118 = vld [vmem:[%s0 + $0x178] sm:$0xff]
    %v119 = vld [vmem:[%s0 + $0x180] sm:$0xff]
    %v120 = vld [vmem:[%s0 + $0x188] sm:$0xff]
    %v121 = vld [vmem:[%s0 + $0x190] sm:$0xff]
    %v122 = vld [vmem:[%s0 + $0x198] sm:$0xff]
    %v123 = vld [vmem:[%s0 + $0x1a0] sm:$0xff]
    %v124 = vld [vmem:[%s0 + $0x1a8] sm:$0xff]
    %v125 = vld [vmem:[%s0 + $0x1b0] sm:$0xff]
    %v126 = vld [vmem:[%s0 + $0x1b8] sm:$0xff]
    %v127 = vld [vmem:[%s0 + $0x1c0] sm:$0xff]
    %v128 = vld [vmem:[%s0 + $0x1c8] sm:$0xff]
    %v129 = vld [vmem:[%s0 + $0x1d0] sm:$0xff]
    %v130 = vld [vmem:[%s0 + $0x1d8] sm:$0xff]
    %v131 = vld [vmem:[%s0 + $0x1e0] sm:$0xff]
    %v132 = vld [vmem:[%s0 + $0x1e8] sm:$0xff]
    %v133 = vld [vmem:[%s0 + $0x1f0] sm:$0xff]
    %v134 = vld [vmem:[%s0 + $0x1f8] sm:$0xff]
    %v135 = vld [vmem:[%s0 + $0x200] sm:$0xff]
    %v136 = vld [vmem:[%s0 + $0x208] sm:$0xff]
    %v137 = vld [vmem:[%s0 + $0x210] sm:$0xff]
    %v138 = vld [vmem:[%s0 + $0x218] sm:$0xff]
    %v139 = vld [vmem:[%s0 + $0x220] sm:$0xff]
    %v140 = vld [vmem:[%s0 + $0x228] sm:$0xff]
    %v141 = vld [vmem:[%s0 + $0x230] sm:$0xff]
    %v142 = vld [vmem:[%s0 + $0x238] sm:$0xff]
    %v143 = vld [vmem:[%s0 + $0x240] sm:$0xff]
    %v144 = vld [vmem:[%s0 + $0x248] sm:$0xff]
    %v145 = vld [vmem:[%s0 + $0x250] sm:$0xff]
    %v146 = vld [vmem:[%s0 + $0x258] sm:$0xff]
    %v147 = vld [vmem:[%s0 + $0x260] sm:$0xff]
    %v148 = vld [vmem:[%s0 + $0x268] sm:$0xff]
    %v149 = vld [vmem:[%s0 + $0x270] sm:$0xff]
    %v150 = vld [vmem:[%s0 + $0x278] sm:$0xff]
    %v151 = vld [vmem:[%s0 + $0x280] sm:$0xff]
    %v152 = vld [vmem:[%s0 + $0x288] sm:$0xff]
    %v153 = vld [vmem:[%s0 + $0x290] sm:$0xff]
    %v154 = vld [vmem:[%s0 + $0x298] sm:$0xff]
    %v155 = vpack.c.bf16 %v75, %v71
    %v156 = vpack.c.bf16 %v76, %v72
    %v157 = vpack.c.bf16 %v77, %v73
    %v158 = vpack.c.bf16 %v78, %v74
    %v159 = vpack.c.bf16 %v83, %v79
    %v160 = vpack.c.bf16 %v84, %v80
    %v161 = vpack.c.bf16 %v85, %v81
    %v162 = vpack.c.bf16 %v86, %v82
    %v163 = vpack.c.bf16 %v91, %v87
    %v164 = vpack.c.bf16 %v92, %v88
    %v165 = vpack.c.bf16 %v93, %v89
    %v166 = vpack.c.bf16 %v94, %v90
    %v167 = vpack.c.bf16 %v99, %v95
    %v168 = vpack.c.bf16 %v100, %v96
    %v169 = vpack.c.bf16 %v101, %v97
    %v170 = vpack.c.bf16 %v102, %v98
    %v171 = vpack.c.bf16 %v107, %v103
    %v172 = vpack.c.bf16 %v108, %v104
    %v173 = vpack.c.bf16 %v109, %v105
    %v174 = vpack.c.bf16 %v110, %v106
    %v175 = vpack.c.bf16 %v115, %v111
    %v176 = vpack.c.bf16 %v116, %v112
    %v177 = vpack.c.bf16 %v117, %v113
    %v178 = vpack.c.bf16 %v118, %v114
    %v179 = vpack.c.bf16 %v123, %v119
    %v180 = vpack.c.bf16 %v124, %v120
    %v181 = vpack.c.bf16 %v125, %v121
    %v182 = vpack.c.bf16 %v126, %v122
    %v183 = vpack.c.bf16 %v131, %v127
    %v184 = vpack.c.bf16 %v132, %v128
    %v185 = vpack.c.bf16 %v133, %v129
    %v186 = vpack.c.bf16 %v134, %v130
    %v187 = vpack.c.bf16 %v139, %v135
    %v188 = vpack.c.bf16 %v140, %v136
    %v189 = vpack.c.bf16 %v141, %v137
    %v190 = vpack.c.bf16 %v142, %v138
    %v191 = vpack.c.bf16 %v147, %v143
    %v192 = vpack.c.bf16 %v148, %v144
    %v193 = vpack.c.bf16 %v149, %v145
    %v194 = vpack.c.bf16 %v150, %v146
    %v195 = vpack.c.bf16 %v151, %v151
    %v196 = vpack.c.bf16 %v152, %v152
    %v197 = vpack.c.bf16 %v153, %v153
    %v198 = vpack.c.bf16 %v154, %v154
    %v199 = vld [vmem:[#allocation2] sm:$0xff]
    %v200 = vld [vmem:[#allocation2 + $0x8] sm:$0xff]
    %v201 = vld [vmem:[#allocation2 + $0x10] sm:$0xff]
    %v202 = vld [vmem:[#allocation2 + $0x18] sm:$0xff]
    %v203 = vld [vmem:[#allocation2 + $0x20] sm:$0xff]
    %v204 = vld [vmem:[#allocation2 + $0x28] sm:$0xff]
    %v205 = vld [vmem:[#allocation2 + $0x30] sm:$0xff]
    %v206 = vld [vmem:[#allocation2 + $0x38] sm:$0xff]
    %v207 = vld [vmem:[#allocation2 + $0x40] sm:$0xff]
    %v208 = vld [vmem:[#allocation2 + $0x48] sm:$0xff]
    %v209 = vld [vmem:[#allocation2 + $0x50] sm:$0xff]
    %v210 = vld [vmem:[#allocation2 + $0x58] sm:$0xff]
    %v211 = vld [vmem:[#allocation2 + $0x60] sm:$0xff]
    %v212 = vld [vmem:[#allocation2 + $0x68] sm:$0xff]
    %v213 = vld [vmem:[#allocation2 + $0x70] sm:$0xff]
    %v214 = vld [vmem:[#allocation2 + $0x78] sm:$0xff]
    %v215 = vld [vmem:[#allocation2 + $0x80] sm:$0xff]
    %v216 = vld [vmem:[#allocation2 + $0x88] sm:$0xff]
    %v217 = vld [vmem:[#allocation2 + $0x90] sm:$0xff]
    %v218 = vld [vmem:[#allocation2 + $0x98] sm:$0xff]
    %v219 = vld [vmem:[#allocation2 + $0xa0] sm:$0xff]
    %v220 = vld [vmem:[#allocation2 + $0xa8] sm:$0xff]
    %v221 = vld [vmem:[#allocation2 + $0xb0] sm:$0xff]
    %v222 = vld [vmem:[#allocation2 + $0xb8] sm:$0xff]
    %v223 = vld [vmem:[#allocation2 + $0xc0] sm:$0xff]
    %v224 = vld [vmem:[#allocation2 + $0xc8] sm:$0xff]
    %v225 = vld [vmem:[#allocation2 + $0xd0] sm:$0xff]
    %v226 = vld [vmem:[#allocation2 + $0xd8] sm:$0xff]
    %v227 = vld [vmem:[#allocation2 + $0xe0] sm:$0xff]
    %v228 = vld [vmem:[#allocation2 + $0xe8] sm:$0xff]
    %v229 = vld [vmem:[#allocation2 + $0xf0] sm:$0xff]
    %v230 = vld [vmem:[#allocation2 + $0xf8] sm:$0xff]
    %v231 = vld [vmem:[#allocation2 + $0x100] sm:$0xff]
    %v232 = vld [vmem:[#allocation2 + $0x108] sm:$0xff]
    %v233 = vld [vmem:[#allocation2 + $0x110] sm:$0xff]
    %v234 = vld [vmem:[#allocation2 + $0x118] sm:$0xff]
    %v235 = vld [vmem:[#allocation2 + $0x120] sm:$0xff]
    %v236 = vld [vmem:[#allocation2 + $0x128] sm:$0xff]
    %v237 = vld [vmem:[#allocation2 + $0x130] sm:$0xff]
    %v238 = vld [vmem:[#allocation2 + $0x138] sm:$0xff]
    %v239 = vld [vmem:[#allocation2 + $0x140] sm:$0xff]
    %v240 = vld [vmem:[#allocation2 + $0x148] sm:$0xff]
    %v241 = vld [vmem:[#allocation2 + $0x150] sm:$0xff]
    %v242 = vld [vmem:[#allocation2 + $0x158] sm:$0xff]
    %v243 = vld [vmem:[#allocation2 + $0x160] sm:$0xff]
    %v244 = vld [vmem:[#allocation2 + $0x168] sm:$0xff]
    %v245 = vld [vmem:[#allocation2 + $0x170] sm:$0xff]
    %v246 = vld [vmem:[#allocation2 + $0x178] sm:$0xff]
    %v247 = vld [vmem:[#allocation2 + $0x180] sm:$0xff]
    %v248 = vld [vmem:[#allocation2 + $0x188] sm:$0xff]
    %v249 = vld [vmem:[#allocation2 + $0x190] sm:$0xff]
    %v250 = vld [vmem:[#allocation2 + $0x198] sm:$0xff]
    %v251 = vld [vmem:[#allocation2 + $0x1a0] sm:$0xff]
    %v252 = vld [vmem:[#allocation2 + $0x1a8] sm:$0xff]
    %v253 = vld [vmem:[#allocation2 + $0x1b0] sm:$0xff]
    %v254 = vld [vmem:[#allocation2 + $0x1b8] sm:$0xff]
    %v255 = vld [vmem:[#allocation2 + $0x1c0] sm:$0xff]
    %v256 = vld [vmem:[#allocation2 + $0x1c8] sm:$0xff]
    %v257 = vld [vmem:[#allocation2 + $0x1d0] sm:$0xff]
    %v258 = vld [vmem:[#allocation2 + $0x1d8] sm:$0xff]
    %v259 = vld [vmem:[#allocation2 + $0x1e0] sm:$0xff]
    %v260 = vld [vmem:[#allocation2 + $0x1e8] sm:$0xff]
    %v261 = vld [vmem:[#allocation2 + $0x1f0] sm:$0xff]
    %v262 = vld [vmem:[#allocation2 + $0x1f8] sm:$0xff]
    %v263 = vld [vmem:[#allocation2 + $0x200] sm:$0xff]
    %v264 = vld [vmem:[#allocation2 + $0x208] sm:$0xff]
    %v265 = vld [vmem:[#allocation2 + $0x210] sm:$0xff]
    %v266 = vld [vmem:[#allocation2 + $0x218] sm:$0xff]
    %v267 = vld [vmem:[#allocation2 + $0x220] sm:$0xff]
    %v268 = vld [vmem:[#allocation2 + $0x228] sm:$0xff]
    %v269 = vld [vmem:[#allocation2 + $0x230] sm:$0xff]
    %v270 = vld [vmem:[#allocation2 + $0x238] sm:$0xff]
    %v271 = vld [vmem:[#allocation2 + $0x240] sm:$0xff]
    %v272 = vld [vmem:[#allocation2 + $0x248] sm:$0xff]
    %v273 = vld [vmem:[#allocation2 + $0x250] sm:$0xff]
    %v274 = vld [vmem:[#allocation2 + $0x258] sm:$0xff]
    %v275 = vld [vmem:[#allocation2 + $0x260] sm:$0xff]
    %v276 = vld [vmem:[#allocation2 + $0x268] sm:$0xff]
    %v277 = vld [vmem:[#allocation2 + $0x270] sm:$0xff]
    %v278 = vld [vmem:[#allocation2 + $0x278] sm:$0xff]
    %v279 = vld [vmem:[#allocation2 + $0x280] sm:$0xff]
    %v280 = vld [vmem:[#allocation2 + $0x288] sm:$0xff]
    %v281 = vld [vmem:[#allocation2 + $0x290] sm:$0xff]
    %v282 = vld [vmem:[#allocation2 + $0x298] sm:$0xff]
    %v283 = vld [vmem:[#allocation2 + $0x2a0] sm:$0xff]
    %v284 = vld [vmem:[#allocation2 + $0x2a8] sm:$0xff]
    %v285 = vld [vmem:[#allocation2 + $0x2b0] sm:$0xff]
    %v286 = vld [vmem:[#allocation2 + $0x2b8] sm:$0xff]
    %v287 = vld [vmem:[#allocation2 + $0x2c0] sm:$0xff]
    %v288 = vld [vmem:[#allocation2 + $0x2c8] sm:$0xff]
    %v289 = vld [vmem:[#allocation2 + $0x2d0] sm:$0xff]
    %v290 = vld [vmem:[#allocation2 + $0x2d8] sm:$0xff]
    %v291 = vld [vmem:[#allocation2 + $0x2e0] sm:$0xff]
    %v292 = vld [vmem:[#allocation2 + $0x2e8] sm:$0xff]
    %v293 = vld [vmem:[#allocation2 + $0x2f0] sm:$0xff]
    %v294 = vld [vmem:[#allocation2 + $0x2f8] sm:$0xff]
    %v295 = vld [vmem:[#allocation2 + $0x300] sm:$0xff]
    %v296 = vld [vmem:[#allocation2 + $0x308] sm:$0xff]
    %v297 = vld [vmem:[#allocation2 + $0x310] sm:$0xff]
    %v298 = vld [vmem:[#allocation2 + $0x318] sm:$0xff]
    %v299 = vld [vmem:[#allocation2 + $0x320] sm:$0xff]
    %v300 = vld [vmem:[#allocation2 + $0x328] sm:$0xff]
    %v301 = vld [vmem:[#allocation2 + $0x330] sm:$0xff]
    %v302 = vld [vmem:[#allocation2 + $0x338] sm:$0xff]
    %v303 = vld [vmem:[#allocation2 + $0x340] sm:$0xff]
    %v304 = vld [vmem:[#allocation2 + $0x348] sm:$0xff]
    %v305 = vld [vmem:[#allocation2 + $0x350] sm:$0xff]
    %v306 = vld [vmem:[#allocation2 + $0x358] sm:$0xff]
    %v307 = vld [vmem:[#allocation2 + $0x360] sm:$0xff]
    %v308 = vld [vmem:[#allocation2 + $0x368] sm:$0xff]
    %v309 = vld [vmem:[#allocation2 + $0x370] sm:$0xff]
    %v310 = vld [vmem:[#allocation2 + $0x378] sm:$0xff]
    %v311 = vld [vmem:[#allocation2 + $0x380] sm:$0xff]
    %v312 = vld [vmem:[#allocation2 + $0x388] sm:$0xff]
    %v313 = vld [vmem:[#allocation2 + $0x390] sm:$0xff]
    %v314 = vld [vmem:[#allocation2 + $0x398] sm:$0xff]
    %v315 = vld [vmem:[#allocation2 + $0x3a0] sm:$0xff]
    %v316 = vld [vmem:[#allocation2 + $0x3a8] sm:$0xff]
    %v317 = vld [vmem:[#allocation2 + $0x3b0] sm:$0xff]
    %v318 = vld [vmem:[#allocation2 + $0x3b8] sm:$0xff]
    %v319 = vld [vmem:[#allocation2 + $0x3c0] sm:$0xff]
    %v320 = vld [vmem:[#allocation2 + $0x3c8] sm:$0xff]
    %v321 = vld [vmem:[#allocation2 + $0x3d0] sm:$0xff]
    %v322 = vld [vmem:[#allocation2 + $0x3d8] sm:$0xff]
    %v323 = vld [vmem:[#allocation2 + $0x3e0] sm:$0xff]
    %v324 = vld [vmem:[#allocation2 + $0x3e8] sm:$0xff]
    %v325 = vld [vmem:[#allocation2 + $0x3f0] sm:$0xff]
    %v326 = vld [vmem:[#allocation2 + $0x3f8] sm:$0xff]
    %v327 = vld [vmem:[#allocation2 + $0x400] sm:$0xff]
    %v328 = vld [vmem:[#allocation2 + $0x408] sm:$0xff]
    %v329 = vld [vmem:[#allocation2 + $0x410] sm:$0xff]
    %v330 = vld [vmem:[#allocation2 + $0x418] sm:$0xff]
    %v331 = vld [vmem:[#allocation2 + $0x420] sm:$0xff]
    %v332 = vld [vmem:[#allocation2 + $0x428] sm:$0xff]
    %v333 = vld [vmem:[#allocation2 + $0x430] sm:$0xff]
    %v334 = vld [vmem:[#allocation2 + $0x438] sm:$0xff]
    %v335 = vld [vmem:[#allocation2 + $0x440] sm:$0xff]
    %v336 = vld [vmem:[#allocation2 + $0x448] sm:$0xff]
    %v337 = vld [vmem:[#allocation2 + $0x450] sm:$0xff]
    %v338 = vld [vmem:[#allocation2 + $0x458] sm:$0xff]
    %v339 = vld [vmem:[#allocation2 + $0x460] sm:$0xff]
    %v340 = vld [vmem:[#allocation2 + $0x468] sm:$0xff]
    %v341 = vld [vmem:[#allocation2 + $0x470] sm:$0xff]
    %v342 = vld [vmem:[#allocation2 + $0x478] sm:$0xff]
    %v343 = vld [vmem:[#allocation2 + $0x480] sm:$0xff]
    %v344 = vld [vmem:[#allocation2 + $0x488] sm:$0xff]
    %v345 = vld [vmem:[#allocation2 + $0x490] sm:$0xff]
    %v346 = vld [vmem:[#allocation2 + $0x498] sm:$0xff]
    %v347 = vld [vmem:[#allocation2 + $0x4a0] sm:$0xff]
    %v348 = vld [vmem:[#allocation2 + $0x4a8] sm:$0xff]
    %v349 = vld [vmem:[#allocation2 + $0x4b0] sm:$0xff]
    %v350 = vld [vmem:[#allocation2 + $0x4b8] sm:$0xff]
    %v351 = vld [vmem:[#allocation2 + $0x4c0] sm:$0xff]
    %v352 = vld [vmem:[#allocation2 + $0x4c8] sm:$0xff]
    %v353 = vld [vmem:[#allocation2 + $0x4d0] sm:$0xff]
    %v354 = vld [vmem:[#allocation2 + $0x4d8] sm:$0xff]
    %v355 = vld [vmem:[#allocation2 + $0x4e0] sm:$0xff]
    %v356 = vld [vmem:[#allocation2 + $0x4e8] sm:$0xff]
    %v357 = vld [vmem:[#allocation2 + $0x4f0] sm:$0xff]
    %v358 = vld [vmem:[#allocation2 + $0x4f8] sm:$0xff]
    %v359 = vld [vmem:[#allocation2 + $0x500] sm:$0xff]
    %v360 = vld [vmem:[#allocation2 + $0x508] sm:$0xff]
    %v361 = vld [vmem:[#allocation2 + $0x510] sm:$0xff]
    %v362 = vld [vmem:[#allocation2 + $0x518] sm:$0xff]
    %v363 = vld [vmem:[#allocation2 + $0x520] sm:$0xff]
    %v364 = vld [vmem:[#allocation2 + $0x528] sm:$0xff]
    %v365 = vld [vmem:[#allocation2 + $0x530] sm:$0xff]
    %v366 = vld [vmem:[#allocation2 + $0x538] sm:$0xff]
    %v367 = vld [vmem:[#allocation2 + $0x540] sm:$0xff]
    %v368 = vld [vmem:[#allocation2 + $0x548] sm:$0xff]
    %v369 = vld [vmem:[#allocation2 + $0x550] sm:$0xff]
    %v370 = vld [vmem:[#allocation2 + $0x558] sm:$0xff]
    %v371 = vld [vmem:[#allocation2 + $0x560] sm:$0xff]
    %v372 = vld [vmem:[#allocation2 + $0x568] sm:$0xff]
    %v373 = vld [vmem:[#allocation2 + $0x570] sm:$0xff]
    %v374 = vld [vmem:[#allocation2 + $0x578] sm:$0xff]
    %v375 = vld [vmem:[#allocation2 + $0x580] sm:$0xff]
    %v376 = vld [vmem:[#allocation2 + $0x588] sm:$0xff]
    %v377 = vld [vmem:[#allocation2 + $0x590] sm:$0xff]
    %v378 = vld [vmem:[#allocation2 + $0x598] sm:$0xff]
    %v379 = vld [vmem:[#allocation2 + $0x5a0] sm:$0xff]
    %v380 = vld [vmem:[#allocation2 + $0x5a8] sm:$0xff]
    %v381 = vld [vmem:[#allocation2 + $0x5b0] sm:$0xff]
    %v382 = vld [vmem:[#allocation2 + $0x5b8] sm:$0xff]
    %v383 = vld [vmem:[#allocation2 + $0x5c0] sm:$0xff]
    %v384 = vld [vmem:[#allocation2 + $0x5c8] sm:$0xff]
    %v385 = vld [vmem:[#allocation2 + $0x5d0] sm:$0xff]
    %v386 = vld [vmem:[#allocation2 + $0x5d8] sm:$0xff]
    %v387 = vld [vmem:[#allocation2 + $0x5e0] sm:$0xff]
    %v388 = vld [vmem:[#allocation2 + $0x5e8] sm:$0xff]
    %v389 = vld [vmem:[#allocation2 + $0x5f0] sm:$0xff]
    %v390 = vld [vmem:[#allocation2 + $0x5f8] sm:$0xff]
    %v391 = vld [vmem:[#allocation2 + $0x600] sm:$0xff]
    %v392 = vld [vmem:[#allocation2 + $0x608] sm:$0xff]
    %v393 = vld [vmem:[#allocation2 + $0x610] sm:$0xff]
    %v394 = vld [vmem:[#allocation2 + $0x618] sm:$0xff]
    %v395 = vld [vmem:[#allocation2 + $0x620] sm:$0xff]
    %v396 = vld [vmem:[#allocation2 + $0x628] sm:$0xff]
    %v397 = vld [vmem:[#allocation2 + $0x630] sm:$0xff]
    %v398 = vld [vmem:[#allocation2 + $0x638] sm:$0xff]
    %v399 = vld [vmem:[#allocation2 + $0x640] sm:$0xff]
    %v400 = vld [vmem:[#allocation2 + $0x648] sm:$0xff]
    %v401 = vld [vmem:[#allocation2 + $0x650] sm:$0xff]
    %v402 = vld [vmem:[#allocation2 + $0x658] sm:$0xff]
    %v403 = vld [vmem:[#allocation2 + $0x660] sm:$0xff]
    %v404 = vld [vmem:[#allocation2 + $0x668] sm:$0xff]
    %v405 = vld [vmem:[#allocation2 + $0x670] sm:$0xff]
    %v406 = vld [vmem:[#allocation2 + $0x678] sm:$0xff]
    %v407 = vld [vmem:[#allocation2 + $0x680] sm:$0xff]
    %v408 = vld [vmem:[#allocation2 + $0x688] sm:$0xff]
    %v409 = vld [vmem:[#allocation2 + $0x690] sm:$0xff]
    %v410 = vld [vmem:[#allocation2 + $0x698] sm:$0xff]
    %v411 = vld [vmem:[#allocation2 + $0x6a0] sm:$0xff]
    %v412 = vld [vmem:[#allocation2 + $0x6a8] sm:$0xff]
    %v413 = vld [vmem:[#allocation2 + $0x6b0] sm:$0xff]
    %v414 = vld [vmem:[#allocation2 + $0x6b8] sm:$0xff]
    %v415 = vld [vmem:[#allocation2 + $0x6c0] sm:$0xff]
    %v416 = vld [vmem:[#allocation2 + $0x6c8] sm:$0xff]
    %v417 = vld [vmem:[#allocation2 + $0x6d0] sm:$0xff]
    %v418 = vld [vmem:[#allocation2 + $0x6d8] sm:$0xff]
    %v419 = vld [vmem:[#allocation2 + $0x6e0] sm:$0xff]
    %v420 = vld [vmem:[#allocation2 + $0x6e8] sm:$0xff]
    %v421 = vld [vmem:[#allocation2 + $0x6f0] sm:$0xff]
    %v422 = vld [vmem:[#allocation2 + $0x6f8] sm:$0xff]
    %v423 = vld [vmem:[#allocation2 + $0x700] sm:$0xff]
    %v424 = vld [vmem:[#allocation2 + $0x708] sm:$0xff]
    %v425 = vld [vmem:[#allocation2 + $0x710] sm:$0xff]
    %v426 = vld [vmem:[#allocation2 + $0x718] sm:$0xff]
    %v427 = vld [vmem:[#allocation2 + $0x720] sm:$0xff]
    %v428 = vld [vmem:[#allocation2 + $0x728] sm:$0xff]
    %v429 = vld [vmem:[#allocation2 + $0x730] sm:$0xff]
    %v430 = vld [vmem:[#allocation2 + $0x738] sm:$0xff]
    %v431 = vld [vmem:[#allocation2 + $0x740] sm:$0xff]
    %v432 = vld [vmem:[#allocation2 + $0x748] sm:$0xff]
    %v433 = vld [vmem:[#allocation2 + $0x750] sm:$0xff]
    %v434 = vld [vmem:[#allocation2 + $0x758] sm:$0xff]
    %v435 = vld [vmem:[#allocation2 + $0x760] sm:$0xff]
    %v436 = vld [vmem:[#allocation2 + $0x768] sm:$0xff]
    %v437 = vld [vmem:[#allocation2 + $0x770] sm:$0xff]
    %v438 = vld [vmem:[#allocation2 + $0x778] sm:$0xff]
    %v439 = vld [vmem:[#allocation2 + $0x780] sm:$0xff]
    %v440 = vld [vmem:[#allocation2 + $0x788] sm:$0xff]
    %v441 = vld [vmem:[#allocation2 + $0x790] sm:$0xff]
    %v442 = vld [vmem:[#allocation2 + $0x798] sm:$0xff]
    %v443 = vld [vmem:[#allocation2 + $0x7a0] sm:$0xff]
    %v444 = vld [vmem:[#allocation2 + $0x7a8] sm:$0xff]
    %v445 = vld [vmem:[#allocation2 + $0x7b0] sm:$0xff]
    %v446 = vld [vmem:[#allocation2 + $0x7b8] sm:$0xff]
    %v447 = vld [vmem:[#allocation2 + $0x7c0] sm:$0xff]
    %v448 = vld [vmem:[#allocation2 + $0x7c8] sm:$0xff]
    %v449 = vld [vmem:[#allocation2 + $0x7d0] sm:$0xff]
    %v450 = vld [vmem:[#allocation2 + $0x7d8] sm:$0xff]
    %v451 = vld [vmem:[#allocation2 + $0x7e0] sm:$0xff]
    %v452 = vld [vmem:[#allocation2 + $0x7e8] sm:$0xff]
    %v453 = vld [vmem:[#allocation2 + $0x7f0] sm:$0xff]
    %v454 = vld [vmem:[#allocation2 + $0x7f8] sm:$0xff]
    %v455 = vld [vmem:[#allocation2 + $0x800] sm:$0xff]
    %v456 = vld [vmem:[#allocation2 + $0x808] sm:$0xff]
    %v457 = vld [vmem:[#allocation2 + $0x810] sm:$0xff]
    %v458 = vld [vmem:[#allocation2 + $0x818] sm:$0xff]
    %v459 = vld [vmem:[#allocation2 + $0x820] sm:$0xff]
    %v460 = vld [vmem:[#allocation2 + $0x828] sm:$0xff]
    %v461 = vld [vmem:[#allocation2 + $0x830] sm:$0xff]
    %v462 = vld [vmem:[#allocation2 + $0x838] sm:$0xff]
    %v463 = vld [vmem:[#allocation2 + $0x840] sm:$0xff]
    %v464 = vld [vmem:[#allocation2 + $0x848] sm:$0xff]
    %v465 = vld [vmem:[#allocation2 + $0x850] sm:$0xff]
    %v466 = vld [vmem:[#allocation2 + $0x858] sm:$0xff]
    %v467 = vld [vmem:[#allocation2 + $0x860] sm:$0xff]
    %v468 = vld [vmem:[#allocation2 + $0x868] sm:$0xff]
    %v469 = vld [vmem:[#allocation2 + $0x870] sm:$0xff]
    %v470 = vld [vmem:[#allocation2 + $0x878] sm:$0xff]
    %v471 = vld [vmem:[#allocation2 + $0x880] sm:$0xff]
    %v472 = vld [vmem:[#allocation2 + $0x888] sm:$0xff]
    %v473 = vld [vmem:[#allocation2 + $0x890] sm:$0xff]
    %v474 = vld [vmem:[#allocation2 + $0x898] sm:$0xff]
    %v475 = vld [vmem:[#allocation2 + $0x8a0] sm:$0xff]
    %v476 = vld [vmem:[#allocation2 + $0x8a8] sm:$0xff]
    %v477 = vld [vmem:[#allocation2 + $0x8b0] sm:$0xff]
    %v478 = vld [vmem:[#allocation2 + $0x8b8] sm:$0xff]
    %v479 = vld [vmem:[#allocation2 + $0x8c0] sm:$0xff]
    %v480 = vld [vmem:[#allocation2 + $0x8c8] sm:$0xff]
    %v481 = vld [vmem:[#allocation2 + $0x8d0] sm:$0xff]
    %v482 = vld [vmem:[#allocation2 + $0x8d8] sm:$0xff]
    %v483 = vld [vmem:[#allocation2 + $0x8e0] sm:$0xff]
    %v484 = vld [vmem:[#allocation2 + $0x8e8] sm:$0xff]
    %v485 = vld [vmem:[#allocation2 + $0x8f0] sm:$0xff]
    %v486 = vld [vmem:[#allocation2 + $0x8f8] sm:$0xff]
    %v487 = vld [vmem:[#allocation2 + $0x900] sm:$0xff]
    %v488 = vld [vmem:[#allocation2 + $0x908] sm:$0xff]
    %v489 = vld [vmem:[#allocation2 + $0x910] sm:$0xff]
    %v490 = vld [vmem:[#allocation2 + $0x918] sm:$0xff]
    %v491 = vld [vmem:[#allocation2 + $0x920] sm:$0xff]
    %v492 = vld [vmem:[#allocation2 + $0x928] sm:$0xff]
    %v493 = vld [vmem:[#allocation2 + $0x930] sm:$0xff]
    %v494 = vld [vmem:[#allocation2 + $0x938] sm:$0xff]
    %v495 = vld [vmem:[#allocation2 + $0x940] sm:$0xff]
    %v496 = vld [vmem:[#allocation2 + $0x948] sm:$0xff]
    %v497 = vld [vmem:[#allocation2 + $0x950] sm:$0xff]
    %v498 = vld [vmem:[#allocation2 + $0x958] sm:$0xff]
    %v499 = vld [vmem:[#allocation2 + $0x960] sm:$0xff]
    %v500 = vld [vmem:[#allocation2 + $0x968] sm:$0xff]
    %v501 = vld [vmem:[#allocation2 + $0x970] sm:$0xff]
    %v502 = vld [vmem:[#allocation2 + $0x978] sm:$0xff]
    %v503 = vld [vmem:[#allocation2 + $0x980] sm:$0xff]
    %v504 = vld [vmem:[#allocation2 + $0x988] sm:$0xff]
    %v505 = vld [vmem:[#allocation2 + $0x990] sm:$0xff]
    %v506 = vld [vmem:[#allocation2 + $0x998] sm:$0xff]
    %v507 = vld [vmem:[#allocation2 + $0x9a0] sm:$0xff]
    %v508 = vld [vmem:[#allocation2 + $0x9a8] sm:$0xff]
    %v509 = vld [vmem:[#allocation2 + $0x9b0] sm:$0xff]
    %v510 = vld [vmem:[#allocation2 + $0x9b8] sm:$0xff]
    %v511 = vld [vmem:[#allocation2 + $0x9c0] sm:$0xff]
    %v512 = vld [vmem:[#allocation2 + $0x9c8] sm:$0xff]
    %v513 = vld [vmem:[#allocation2 + $0x9d0] sm:$0xff]
    %v514 = vld [vmem:[#allocation2 + $0x9d8] sm:$0xff]
    %v515 = vld [vmem:[#allocation2 + $0x9e0] sm:$0xff]
    %v516 = vld [vmem:[#allocation2 + $0x9e8] sm:$0xff]
    %v517 = vld [vmem:[#allocation2 + $0x9f0] sm:$0xff]
    %v518 = vld [vmem:[#allocation2 + $0x9f8] sm:$0xff]
    %v519 = vld [vmem:[#allocation2 + $0xa00] sm:$0xff]
    %v520 = vld [vmem:[#allocation2 + $0xa08] sm:$0xff]
    %v521 = vld [vmem:[#allocation2 + $0xa10] sm:$0xff]
    %v522 = vld [vmem:[#allocation2 + $0xa18] sm:$0xff]
    %v523 = vld [vmem:[#allocation2 + $0xa20] sm:$0xff]
    %v524 = vld [vmem:[#allocation2 + $0xa28] sm:$0xff]
    %v525 = vld [vmem:[#allocation2 + $0xa30] sm:$0xff]
    %v526 = vld [vmem:[#allocation2 + $0xa38] sm:$0xff]
    %v527 = vld [vmem:[#allocation2 + $0xa40] sm:$0xff]
    %v528 = vld [vmem:[#allocation2 + $0xa48] sm:$0xff]
    %v529 = vld [vmem:[#allocation2 + $0xa50] sm:$0xff]
    %v530 = vld [vmem:[#allocation2 + $0xa58] sm:$0xff]
    %v531 = vld [vmem:[#allocation2 + $0xa60] sm:$0xff]
    %v532 = vld [vmem:[#allocation2 + $0xa68] sm:$0xff]
    %v533 = vld [vmem:[#allocation2 + $0xa70] sm:$0xff]
    %v534 = vld [vmem:[#allocation2 + $0xa78] sm:$0xff]
    %v535 = vld [vmem:[#allocation2 + $0xa80] sm:$0xff]
    %v536 = vld [vmem:[#allocation2 + $0xa88] sm:$0xff]
    %v537 = vld [vmem:[#allocation2 + $0xa90] sm:$0xff]
    %v538 = vld [vmem:[#allocation2 + $0xa98] sm:$0xff]
    %v539 = vld [vmem:[#allocation2 + $0xaa0] sm:$0xff]
    %v540 = vld [vmem:[#allocation2 + $0xaa8] sm:$0xff]
    %v541 = vld [vmem:[#allocation2 + $0xab0] sm:$0xff]
    %v542 = vld [vmem:[#allocation2 + $0xab8] sm:$0xff]
    %v543 = vld [vmem:[#allocation2 + $0xac0] sm:$0xff]
    %v544 = vld [vmem:[#allocation2 + $0xac8] sm:$0xff]
    %v545 = vld [vmem:[#allocation2 + $0xad0] sm:$0xff]
    %v546 = vld [vmem:[#allocation2 + $0xad8] sm:$0xff]
    %v547 = vld [vmem:[#allocation2 + $0xae0] sm:$0xff]
    %v548 = vld [vmem:[#allocation2 + $0xae8] sm:$0xff]
    %v549 = vld [vmem:[#allocation2 + $0xaf0] sm:$0xff]
    %v550 = vld [vmem:[#allocation2 + $0xaf8] sm:$0xff]
    %v551 = vld [vmem:[#allocation2 + $0xb00] sm:$0xff]
    %v552 = vld [vmem:[#allocation2 + $0xb08] sm:$0xff]
    %v553 = vld [vmem:[#allocation2 + $0xb10] sm:$0xff]
    %v554 = vld [vmem:[#allocation2 + $0xb18] sm:$0xff]
    %v555 = vld [vmem:[#allocation2 + $0xb20] sm:$0xff]
    %v556 = vld [vmem:[#allocation2 + $0xb28] sm:$0xff]
    %v557 = vld [vmem:[#allocation2 + $0xb30] sm:$0xff]
    %v558 = vld [vmem:[#allocation2 + $0xb38] sm:$0xff]
    %v559 = vld [vmem:[#allocation2 + $0xb40] sm:$0xff]
    %v560 = vld [vmem:[#allocation2 + $0xb48] sm:$0xff]
    %v561 = vld [vmem:[#allocation2 + $0xb50] sm:$0xff]
    %v562 = vld [vmem:[#allocation2 + $0xb58] sm:$0xff]
    %v563 = vld [vmem:[#allocation2 + $0xb60] sm:$0xff]
    %v564 = vld [vmem:[#allocation2 + $0xb68] sm:$0xff]
    %v565 = vld [vmem:[#allocation2 + $0xb70] sm:$0xff]
    %v566 = vld [vmem:[#allocation2 + $0xb78] sm:$0xff]
    %v567 = vld [vmem:[#allocation2 + $0xb80] sm:$0xff]
    %v568 = vld [vmem:[#allocation2 + $0xb88] sm:$0xff]
    %v569 = vld [vmem:[#allocation2 + $0xb90] sm:$0xff]
    %v570 = vld [vmem:[#allocation2 + $0xb98] sm:$0xff]
    %v571 = vld [vmem:[#allocation2 + $0xba0] sm:$0xff]
    %v572 = vld [vmem:[#allocation2 + $0xba8] sm:$0xff]
    %v573 = vld [vmem:[#allocation2 + $0xbb0] sm:$0xff]
    %v574 = vld [vmem:[#allocation2 + $0xbb8] sm:$0xff]
    %v575 = vld [vmem:[#allocation2 + $0xbc0] sm:$0xff]
    %v576 = vld [vmem:[#allocation2 + $0xbc8] sm:$0xff]
    %v577 = vld [vmem:[#allocation2 + $0xbd0] sm:$0xff]
    %v578 = vld [vmem:[#allocation2 + $0xbd8] sm:$0xff]
    %v579 = vld [vmem:[#allocation2 + $0xbe0] sm:$0xff]
    %v580 = vld [vmem:[#allocation2 + $0xbe8] sm:$0xff]
    %v581 = vld [vmem:[#allocation2 + $0xbf0] sm:$0xff]
    %v582 = vld [vmem:[#allocation2 + $0xbf8] sm:$0xff]
    %v583 = vld [vmem:[#allocation2 + $0xc00] sm:$0xff]
    %v584 = vld [vmem:[#allocation2 + $0xc08] sm:$0xff]
    %v585 = vld [vmem:[#allocation2 + $0xc10] sm:$0xff]
    %v586 = vld [vmem:[#allocation2 + $0xc18] sm:$0xff]
    %v587 = vld [vmem:[#allocation2 + $0xc20] sm:$0xff]
    %v588 = vld [vmem:[#allocation2 + $0xc28] sm:$0xff]
    %v589 = vld [vmem:[#allocation2 + $0xc30] sm:$0xff]
    %v590 = vld [vmem:[#allocation2 + $0xc38] sm:$0xff]
    %v591 = vld [vmem:[#allocation2 + $0xc40] sm:$0xff]
    %v592 = vld [vmem:[#allocation2 + $0xc48] sm:$0xff]
    %v593 = vld [vmem:[#allocation2 + $0xc50] sm:$0xff]
    %v594 = vld [vmem:[#allocation2 + $0xc58] sm:$0xff]
    %v595 = vld [vmem:[#allocation2 + $0xc60] sm:$0xff]
    %v596 = vld [vmem:[#allocation2 + $0xc68] sm:$0xff]
    %v597 = vld [vmem:[#allocation2 + $0xc70] sm:$0xff]
    %v598 = vld [vmem:[#allocation2 + $0xc78] sm:$0xff]
    %v599 = vld [vmem:[#allocation2 + $0xc80] sm:$0xff]
    %v600 = vld [vmem:[#allocation2 + $0xc88] sm:$0xff]
    %v601 = vld [vmem:[#allocation2 + $0xc90] sm:$0xff]
    %v602 = vld [vmem:[#allocation2 + $0xc98] sm:$0xff]
    %v603 = vld [vmem:[#allocation2 + $0xca0] sm:$0xff]
    %v604 = vld [vmem:[#allocation2 + $0xca8] sm:$0xff]
    %v605 = vld [vmem:[#allocation2 + $0xcb0] sm:$0xff]
    %v606 = vld [vmem:[#allocation2 + $0xcb8] sm:$0xff]
    %v607 = vld [vmem:[#allocation2 + $0xcc0] sm:$0xff]
    %v608 = vld [vmem:[#allocation2 + $0xcc8] sm:$0xff]
    %v609 = vld [vmem:[#allocation2 + $0xcd0] sm:$0xff]
    %v610 = vld [vmem:[#allocation2 + $0xcd8] sm:$0xff]
    %v611 = vld [vmem:[#allocation2 + $0xce0] sm:$0xff]
    %v612 = vld [vmem:[#allocation2 + $0xce8] sm:$0xff]
    %v613 = vld [vmem:[#allocation2 + $0xcf0] sm:$0xff]
    %v614 = vld [vmem:[#allocation2 + $0xcf8] sm:$0xff]
    %v615 = vld [vmem:[#allocation2 + $0xd00] sm:$0xff]
    %v616 = vld [vmem:[#allocation2 + $0xd08] sm:$0xff]
    %v617 = vld [vmem:[#allocation2 + $0xd10] sm:$0xff]
    %v618 = vld [vmem:[#allocation2 + $0xd18] sm:$0xff]
    %v619 = vld [vmem:[#allocation2 + $0xd20] sm:$0xff]
    %v620 = vld [vmem:[#allocation2 + $0xd28] sm:$0xff]
    %v621 = vld [vmem:[#allocation2 + $0xd30] sm:$0xff]
    %v622 = vld [vmem:[#allocation2 + $0xd38] sm:$0xff]
    %v623 = vld [vmem:[#allocation2 + $0xd40] sm:$0xff]
    %v624 = vld [vmem:[#allocation2 + $0xd48] sm:$0xff]
    %v625 = vld [vmem:[#allocation2 + $0xd50] sm:$0xff]
    %v626 = vld [vmem:[#allocation2 + $0xd58] sm:$0xff]
    %v627 = vld [vmem:[#allocation2 + $0xd60] sm:$0xff]
    %v628 = vld [vmem:[#allocation2 + $0xd68] sm:$0xff]
    %v629 = vld [vmem:[#allocation2 + $0xd70] sm:$0xff]
    %v630 = vld [vmem:[#allocation2 + $0xd78] sm:$0xff]
    %v631 = vld [vmem:[#allocation2 + $0xd80] sm:$0xff]
    %v632 = vld [vmem:[#allocation2 + $0xd88] sm:$0xff]
    %v633 = vld [vmem:[#allocation2 + $0xd90] sm:$0xff]
    %v634 = vld [vmem:[#allocation2 + $0xd98] sm:$0xff]
    %v635 = vld [vmem:[#allocation2 + $0xda0] sm:$0xff]
    %v636 = vld [vmem:[#allocation2 + $0xda8] sm:$0xff]
    %v637 = vld [vmem:[#allocation2 + $0xdb0] sm:$0xff]
    %v638 = vld [vmem:[#allocation2 + $0xdb8] sm:$0xff]
    %v639 = vld [vmem:[#allocation2 + $0xdc0] sm:$0xff]
    %v640 = vld [vmem:[#allocation2 + $0xdc8] sm:$0xff]
    %v641 = vld [vmem:[#allocation2 + $0xdd0] sm:$0xff]
    %v642 = vld [vmem:[#allocation2 + $0xdd8] sm:$0xff]
    %v643 = vld [vmem:[#allocation2 + $0xde0] sm:$0xff]
    %v644 = vld [vmem:[#allocation2 + $0xde8] sm:$0xff]
    %v645 = vld [vmem:[#allocation2 + $0xdf0] sm:$0xff]
    %v646 = vld [vmem:[#allocation2 + $0xdf8] sm:$0xff]
    %v647 = vld [vmem:[#allocation2 + $0xe00] sm:$0xff]
    %v648 = vld [vmem:[#allocation2 + $0xe08] sm:$0xff]
    %v649 = vld [vmem:[#allocation2 + $0xe10] sm:$0xff]
    %v650 = vld [vmem:[#allocation2 + $0xe18] sm:$0xff]
    %v651 = vld [vmem:[#allocation2 + $0xe20] sm:$0xff]
    %v652 = vld [vmem:[#allocation2 + $0xe28] sm:$0xff]
    %v653 = vld [vmem:[#allocation2 + $0xe30] sm:$0xff]
    %v654 = vld [vmem:[#allocation2 + $0xe38] sm:$0xff]
    %v655 = vld [vmem:[#allocation2 + $0xe40] sm:$0xff]
    %v656 = vld [vmem:[#allocation2 + $0xe48] sm:$0xff]
    %v657 = vld [vmem:[#allocation2 + $0xe50] sm:$0xff]
    %v658 = vld [vmem:[#allocation2 + $0xe58] sm:$0xff]
    %v659 = vld [vmem:[#allocation2 + $0xe60] sm:$0xff]
    %v660 = vld [vmem:[#allocation2 + $0xe68] sm:$0xff]
    %v661 = vld [vmem:[#allocation2 + $0xe70] sm:$0xff]
    %v662 = vld [vmem:[#allocation2 + $0xe78] sm:$0xff]
    %v663 = vld [vmem:[#allocation2 + $0xe80] sm:$0xff]
    %v664 = vld [vmem:[#allocation2 + $0xe88] sm:$0xff]
    %v665 = vld [vmem:[#allocation2 + $0xe90] sm:$0xff]
    %v666 = vld [vmem:[#allocation2 + $0xe98] sm:$0xff]
    %v667 = vld [vmem:[#allocation2 + $0xea0] sm:$0xff]
    %v668 = vld [vmem:[#allocation2 + $0xea8] sm:$0xff]
    %v669 = vld [vmem:[#allocation2 + $0xeb0] sm:$0xff]
    %v670 = vld [vmem:[#allocation2 + $0xeb8] sm:$0xff]
    %v671 = vld [vmem:[#allocation2 + $0xec0] sm:$0xff]
    %v672 = vld [vmem:[#allocation2 + $0xec8] sm:$0xff]
    %v673 = vld [vmem:[#allocation2 + $0xed0] sm:$0xff]
    %v674 = vld [vmem:[#allocation2 + $0xed8] sm:$0xff]
    %v675 = vld [vmem:[#allocation2 + $0xee0] sm:$0xff]
    %v676 = vld [vmem:[#allocation2 + $0xee8] sm:$0xff]
    %v677 = vld [vmem:[#allocation2 + $0xef0] sm:$0xff]
    %v678 = vld [vmem:[#allocation2 + $0xef8] sm:$0xff]
    %v679 = vld [vmem:[#allocation2 + $0xf00] sm:$0xff]
    %v680 = vld [vmem:[#allocation2 + $0xf08] sm:$0xff]
    %v681 = vld [vmem:[#allocation2 + $0xf10] sm:$0xff]
    %v682 = vld [vmem:[#allocation2 + $0xf18] sm:$0xff]
    %v683 = vld [vmem:[#allocation2 + $0xf20] sm:$0xff]
    %v684 = vld [vmem:[#allocation2 + $0xf28] sm:$0xff]
    %v685 = vld [vmem:[#allocation2 + $0xf30] sm:$0xff]
    %v686 = vld [vmem:[#allocation2 + $0xf38] sm:$0xff]
    %v687 = vld [vmem:[#allocation2 + $0xf40] sm:$0xff]
    %v688 = vld [vmem:[#allocation2 + $0xf48] sm:$0xff]
    %v689 = vld [vmem:[#allocation2 + $0xf50] sm:$0xff]
    %v690 = vld [vmem:[#allocation2 + $0xf58] sm:$0xff]
    %v691 = vld [vmem:[#allocation2 + $0xf60] sm:$0xff]
    %v692 = vld [vmem:[#allocation2 + $0xf68] sm:$0xff]
    %v693 = vld [vmem:[#allocation2 + $0xf70] sm:$0xff]
    %v694 = vld [vmem:[#allocation2 + $0xf78] sm:$0xff]
    %v695 = vld [vmem:[#allocation2 + $0xf80] sm:$0xff]
    %v696 = vld [vmem:[#allocation2 + $0xf88] sm:$0xff]
    %v697 = vld [vmem:[#allocation2 + $0xf90] sm:$0xff]
    %v698 = vld [vmem:[#allocation2 + $0xf98] sm:$0xff]
    %v699 = vld [vmem:[#allocation2 + $0xfa0] sm:$0xff]
    %v700 = vld [vmem:[#allocation2 + $0xfa8] sm:$0xff]
    %v701 = vld [vmem:[#allocation2 + $0xfb0] sm:$0xff]
    %v702 = vld [vmem:[#allocation2 + $0xfb8] sm:$0xff]
    %v703 = vld [vmem:[#allocation2 + $0xfc0] sm:$0xff]
    %v704 = vld [vmem:[#allocation2 + $0xfc8] sm:$0xff]
    %v705 = vld [vmem:[#allocation2 + $0xfd0] sm:$0xff]
    %v706 = vld [vmem:[#allocation2 + $0xfd8] sm:$0xff]
    %v707 = vld [vmem:[#allocation2 + $0xfe0] sm:$0xff]
    %v708 = vld [vmem:[#allocation2 + $0xfe8] sm:$0xff]
    %v709 = vld [vmem:[#allocation2 + $0xff0] sm:$0xff]
    %v710 = vld [vmem:[#allocation2 + $0xff8] sm:$0xff]
    %v1223 = vunpack.c.l.b16 %v199
    %v1224 = vunpack.c.h.b16 %v199
    %v1225 = vunpack.c.l.b16 %v200
    %v1226 = vunpack.c.h.b16 %v200
    %v1227 = vunpack.c.l.b16 %v201
    %v1228 = vunpack.c.h.b16 %v201
    %v1229 = vunpack.c.l.b16 %v202
    %v1230 = vunpack.c.h.b16 %v202
    %v1231 = vunpack.c.l.b16 %v203
    %v1232 = vunpack.c.h.b16 %v203
    %v1233 = vunpack.c.l.b16 %v204
    %v1234 = vunpack.c.h.b16 %v204
    %v1235 = vunpack.c.l.b16 %v205
    %v1236 = vunpack.c.h.b16 %v205
    %v1237 = vunpack.c.l.b16 %v206
    %v1238 = vunpack.c.h.b16 %v206
    %v1239 = vunpack.c.l.b16 %v207
    %v1240 = vunpack.c.h.b16 %v207
    %v1241 = vunpack.c.l.b16 %v208
    %v1242 = vunpack.c.h.b16 %v208
    %v1243 = vunpack.c.l.b16 %v209
    %v1244 = vunpack.c.h.b16 %v209
    %v1245 = vunpack.c.l.b16 %v210
    %v1246 = vunpack.c.h.b16 %v210
    %v1247 = vunpack.c.l.b16 %v211
    %v1248 = vunpack.c.h.b16 %v211
    %v1249 = vunpack.c.l.b16 %v212
    %v1250 = vunpack.c.h.b16 %v212
    %v1251 = vunpack.c.l.b16 %v213
    %v1252 = vunpack.c.h.b16 %v213
    %v1253 = vunpack.c.l.b16 %v214
    %v1254 = vunpack.c.h.b16 %v214
    %v1255 = vunpack.c.l.b16 %v215
    %v1256 = vunpack.c.h.b16 %v215
    %v1257 = vunpack.c.l.b16 %v216
    %v1258 = vunpack.c.h.b16 %v216
    %v1259 = vunpack.c.l.b16 %v217
    %v1260 = vunpack.c.h.b16 %v217
    %v1261 = vunpack.c.l.b16 %v218
    %v1262 = vunpack.c.h.b16 %v218
    %v1263 = vunpack.c.l.b16 %v219
    %v1264 = vunpack.c.h.b16 %v219
    %v1265 = vunpack.c.l.b16 %v220
    %v1266 = vunpack.c.h.b16 %v220
    %v1267 = vunpack.c.l.b16 %v221
    %v1268 = vunpack.c.h.b16 %v221
    %v1269 = vunpack.c.l.b16 %v222
    %v1270 = vunpack.c.h.b16 %v222
    %v1271 = vunpack.c.l.b16 %v223
    %v1272 = vunpack.c.h.b16 %v223
    %v1273 = vunpack.c.l.b16 %v224
    %v1274 = vunpack.c.h.b16 %v224
    %v1275 = vunpack.c.l.b16 %v225
    %v1276 = vunpack.c.h.b16 %v225
    %v1277 = vunpack.c.l.b16 %v226
    %v1278 = vunpack.c.h.b16 %v226
    %v1279 = vunpack.c.l.b16 %v227
    %v1280 = vunpack.c.h.b16 %v227
    %v1281 = vunpack.c.l.b16 %v228
    %v1282 = vunpack.c.h.b16 %v228
    %v1283 = vunpack.c.l.b16 %v229
    %v1284 = vunpack.c.h.b16 %v229
    %v1285 = vunpack.c.l.b16 %v230
    %v1286 = vunpack.c.h.b16 %v230
    %v1287 = vunpack.c.l.b16 %v231
    %v1288 = vunpack.c.h.b16 %v231
    %v1289 = vunpack.c.l.b16 %v232
    %v1290 = vunpack.c.h.b16 %v232
    %v1291 = vunpack.c.l.b16 %v233
    %v1292 = vunpack.c.h.b16 %v233
    %v1293 = vunpack.c.l.b16 %v234
    %v1294 = vunpack.c.h.b16 %v234
    %v1295 = vunpack.c.l.b16 %v235
    %v1296 = vunpack.c.h.b16 %v235
    %v1297 = vunpack.c.l.b16 %v236
    %v1298 = vunpack.c.h.b16 %v236
    %v1299 = vunpack.c.l.b16 %v237
    %v1300 = vunpack.c.h.b16 %v237
    %v1301 = vunpack.c.l.b16 %v238
    %v1302 = vunpack.c.h.b16 %v238
    %v1303 = vunpack.c.l.b16 %v239
    %v1304 = vunpack.c.h.b16 %v239
    %v1305 = vunpack.c.l.b16 %v240
    %v1306 = vunpack.c.h.b16 %v240
    %v1307 = vunpack.c.l.b16 %v241
    %v1308 = vunpack.c.h.b16 %v241
    %v1309 = vunpack.c.l.b16 %v242
    %v1310 = vunpack.c.h.b16 %v242
    %v1311 = vunpack.c.l.b16 %v243
    %v1312 = vunpack.c.h.b16 %v243
    %v1313 = vunpack.c.l.b16 %v244
    %v1314 = vunpack.c.h.b16 %v244
    %v1315 = vunpack.c.l.b16 %v245
    %v1316 = vunpack.c.h.b16 %v245
    %v1317 = vunpack.c.l.b16 %v246
    %v1318 = vunpack.c.h.b16 %v246
    %v1319 = vunpack.c.l.b16 %v247
    %v1320 = vunpack.c.h.b16 %v247
    %v1321 = vunpack.c.l.b16 %v248
    %v1322 = vunpack.c.h.b16 %v248
    %v1323 = vunpack.c.l.b16 %v249
    %v1324 = vunpack.c.h.b16 %v249
    %v1325 = vunpack.c.l.b16 %v250
    %v1326 = vunpack.c.h.b16 %v250
    %v1327 = vunpack.c.l.b16 %v251
    %v1328 = vunpack.c.h.b16 %v251
    %v1329 = vunpack.c.l.b16 %v252
    %v1330 = vunpack.c.h.b16 %v252
    %v1331 = vunpack.c.l.b16 %v253
    %v1332 = vunpack.c.h.b16 %v253
    %v1333 = vunpack.c.l.b16 %v254
    %v1334 = vunpack.c.h.b16 %v254
    %v1335 = vunpack.c.l.b16 %v255
    %v1336 = vunpack.c.h.b16 %v255
    %v1337 = vunpack.c.l.b16 %v256
    %v1338 = vunpack.c.h.b16 %v256
    %v1339 = vunpack.c.l.b16 %v257
    %v1340 = vunpack.c.h.b16 %v257
    %v1341 = vunpack.c.l.b16 %v258
    %v1342 = vunpack.c.h.b16 %v258
    %v1343 = vunpack.c.l.b16 %v259
    %v1344 = vunpack.c.h.b16 %v259
    %v1345 = vunpack.c.l.b16 %v260
    %v1346 = vunpack.c.h.b16 %v260
    %v1347 = vunpack.c.l.b16 %v261
    %v1348 = vunpack.c.h.b16 %v261
    %v1349 = vunpack.c.l.b16 %v262
    %v1350 = vunpack.c.h.b16 %v262
    %v1351 = vunpack.c.l.b16 %v263
    %v1352 = vunpack.c.h.b16 %v263
    %v1353 = vunpack.c.l.b16 %v264
    %v1354 = vunpack.c.h.b16 %v264
    %v1355 = vunpack.c.l.b16 %v265
    %v1356 = vunpack.c.h.b16 %v265
    %v1357 = vunpack.c.l.b16 %v266
    %v1358 = vunpack.c.h.b16 %v266
    %v1359 = vunpack.c.l.b16 %v267
    %v1360 = vunpack.c.h.b16 %v267
    %v1361 = vunpack.c.l.b16 %v268
    %v1362 = vunpack.c.h.b16 %v268
    %v1363 = vunpack.c.l.b16 %v269
    %v1364 = vunpack.c.h.b16 %v269
    %v1365 = vunpack.c.l.b16 %v270
    %v1366 = vunpack.c.h.b16 %v270
    %v1367 = vunpack.c.l.b16 %v271
    %v1368 = vunpack.c.h.b16 %v271
    %v1369 = vunpack.c.l.b16 %v272
    %v1370 = vunpack.c.h.b16 %v272
    %v1371 = vunpack.c.l.b16 %v273
    %v1372 = vunpack.c.h.b16 %v273
    %v1373 = vunpack.c.l.b16 %v274
    %v1374 = vunpack.c.h.b16 %v274
    %v1375 = vunpack.c.l.b16 %v275
    %v1376 = vunpack.c.h.b16 %v275
    %v1377 = vunpack.c.l.b16 %v276
    %v1378 = vunpack.c.h.b16 %v276
    %v1379 = vunpack.c.l.b16 %v277
    %v1380 = vunpack.c.h.b16 %v277
    %v1381 = vunpack.c.l.b16 %v278
    %v1382 = vunpack.c.h.b16 %v278
    %v1383 = vunpack.c.l.b16 %v279
    %v1384 = vunpack.c.h.b16 %v279
    %v1385 = vunpack.c.l.b16 %v280
    %v1386 = vunpack.c.h.b16 %v280
    %v1387 = vunpack.c.l.b16 %v281
    %v1388 = vunpack.c.h.b16 %v281
    %v1389 = vunpack.c.l.b16 %v282
    %v1390 = vunpack.c.h.b16 %v282
    %v1391 = vunpack.c.l.b16 %v283
    %v1392 = vunpack.c.h.b16 %v283
    %v1393 = vunpack.c.l.b16 %v284
    %v1394 = vunpack.c.h.b16 %v284
    %v1395 = vunpack.c.l.b16 %v285
    %v1396 = vunpack.c.h.b16 %v285
    %v1397 = vunpack.c.l.b16 %v286
    %v1398 = vunpack.c.h.b16 %v286
    %v1399 = vunpack.c.l.b16 %v287
    %v1400 = vunpack.c.h.b16 %v287
    %v1401 = vunpack.c.l.b16 %v288
    %v1402 = vunpack.c.h.b16 %v288
    %v1403 = vunpack.c.l.b16 %v289
    %v1404 = vunpack.c.h.b16 %v289
    %v1405 = vunpack.c.l.b16 %v290
    %v1406 = vunpack.c.h.b16 %v290
    %v1407 = vunpack.c.l.b16 %v291
    %v1408 = vunpack.c.h.b16 %v291
    %v1409 = vunpack.c.l.b16 %v292
    %v1410 = vunpack.c.h.b16 %v292
    %v1411 = vunpack.c.l.b16 %v293
    %v1412 = vunpack.c.h.b16 %v293
    %v1413 = vunpack.c.l.b16 %v294
    %v1414 = vunpack.c.h.b16 %v294
    %v1415 = vunpack.c.l.b16 %v295
    %v1416 = vunpack.c.h.b16 %v295
    %v1417 = vunpack.c.l.b16 %v296
    %v1418 = vunpack.c.h.b16 %v296
    %v1419 = vunpack.c.l.b16 %v297
    %v1420 = vunpack.c.h.b16 %v297
    %v1421 = vunpack.c.l.b16 %v298
    %v1422 = vunpack.c.h.b16 %v298
    %v1423 = vunpack.c.l.b16 %v299
    %v1424 = vunpack.c.h.b16 %v299
    %v1425 = vunpack.c.l.b16 %v300
    %v1426 = vunpack.c.h.b16 %v300
    %v1427 = vunpack.c.l.b16 %v301
    %v1428 = vunpack.c.h.b16 %v301
    %v1429 = vunpack.c.l.b16 %v302
    %v1430 = vunpack.c.h.b16 %v302
    %v1431 = vunpack.c.l.b16 %v303
    %v1432 = vunpack.c.h.b16 %v303
    %v1433 = vunpack.c.l.b16 %v304
    %v1434 = vunpack.c.h.b16 %v304
    %v1435 = vunpack.c.l.b16 %v305
    %v1436 = vunpack.c.h.b16 %v305
    %v1437 = vunpack.c.l.b16 %v306
    %v1438 = vunpack.c.h.b16 %v306
    %v1439 = vunpack.c.l.b16 %v307
    %v1440 = vunpack.c.h.b16 %v307
    %v1441 = vunpack.c.l.b16 %v308
    %v1442 = vunpack.c.h.b16 %v308
    %v1443 = vunpack.c.l.b16 %v309
    %v1444 = vunpack.c.h.b16 %v309
    %v1445 = vunpack.c.l.b16 %v310
    %v1446 = vunpack.c.h.b16 %v310
    %v1447 = vunpack.c.l.b16 %v311
    %v1448 = vunpack.c.h.b16 %v311
    %v1449 = vunpack.c.l.b16 %v312
    %v1450 = vunpack.c.h.b16 %v312
    %v1451 = vunpack.c.l.b16 %v313
    %v1452 = vunpack.c.h.b16 %v313
    %v1453 = vunpack.c.l.b16 %v314
    %v1454 = vunpack.c.h.b16 %v314
    %v1455 = vunpack.c.l.b16 %v315
    %v1456 = vunpack.c.h.b16 %v315
    %v1457 = vunpack.c.l.b16 %v316
    %v1458 = vunpack.c.h.b16 %v316
    %v1459 = vunpack.c.l.b16 %v317
    %v1460 = vunpack.c.h.b16 %v317
    %v1461 = vunpack.c.l.b16 %v318
    %v1462 = vunpack.c.h.b16 %v318
    %v1463 = vunpack.c.l.b16 %v319
    %v1464 = vunpack.c.h.b16 %v319
    %v1465 = vunpack.c.l.b16 %v320
    %v1466 = vunpack.c.h.b16 %v320
    %v1467 = vunpack.c.l.b16 %v321
    %v1468 = vunpack.c.h.b16 %v321
    %v1469 = vunpack.c.l.b16 %v322
    %v1470 = vunpack.c.h.b16 %v322
    %v1471 = vunpack.c.l.b16 %v323
    %v1472 = vunpack.c.h.b16 %v323
    %v1473 = vunpack.c.l.b16 %v324
    %v1474 = vunpack.c.h.b16 %v324
    %v1475 = vunpack.c.l.b16 %v325
    %v1476 = vunpack.c.h.b16 %v325
    %v1477 = vunpack.c.l.b16 %v326
    %v1478 = vunpack.c.h.b16 %v326
    %v1479 = vunpack.c.l.b16 %v327
    %v1480 = vunpack.c.h.b16 %v327
    %v1481 = vunpack.c.l.b16 %v328
    %v1482 = vunpack.c.h.b16 %v328
    %v1483 = vunpack.c.l.b16 %v329
    %v1484 = vunpack.c.h.b16 %v329
    %v1485 = vunpack.c.l.b16 %v330
    %v1486 = vunpack.c.h.b16 %v330
    %v1487 = vunpack.c.l.b16 %v331
    %v1488 = vunpack.c.h.b16 %v331
    %v1489 = vunpack.c.l.b16 %v332
    %v1490 = vunpack.c.h.b16 %v332
    %v1491 = vunpack.c.l.b16 %v333
    %v1492 = vunpack.c.h.b16 %v333
    %v1493 = vunpack.c.l.b16 %v334
    %v1494 = vunpack.c.h.b16 %v334
    %v1495 = vunpack.c.l.b16 %v335
    %v1496 = vunpack.c.h.b16 %v335
    %v1497 = vunpack.c.l.b16 %v336
    %v1498 = vunpack.c.h.b16 %v336
    %v1499 = vunpack.c.l.b16 %v337
    %v1500 = vunpack.c.h.b16 %v337
    %v1501 = vunpack.c.l.b16 %v338
    %v1502 = vunpack.c.h.b16 %v338
    %v1503 = vunpack.c.l.b16 %v339
    %v1504 = vunpack.c.h.b16 %v339
    %v1505 = vunpack.c.l.b16 %v340
    %v1506 = vunpack.c.h.b16 %v340
    %v1507 = vunpack.c.l.b16 %v341
    %v1508 = vunpack.c.h.b16 %v341
    %v1509 = vunpack.c.l.b16 %v342
    %v1510 = vunpack.c.h.b16 %v342
    %v1511 = vunpack.c.l.b16 %v343
    %v1512 = vunpack.c.h.b16 %v343
    %v1513 = vunpack.c.l.b16 %v344
    %v1514 = vunpack.c.h.b16 %v344
    %v1515 = vunpack.c.l.b16 %v345
    %v1516 = vunpack.c.h.b16 %v345
    %v1517 = vunpack.c.l.b16 %v346
    %v1518 = vunpack.c.h.b16 %v346
    %v1519 = vunpack.c.l.b16 %v347
    %v1520 = vunpack.c.h.b16 %v347
    %v1521 = vunpack.c.l.b16 %v348
    %v1522 = vunpack.c.h.b16 %v348
    %v1523 = vunpack.c.l.b16 %v349
    %v1524 = vunpack.c.h.b16 %v349
    %v1525 = vunpack.c.l.b16 %v350
    %v1526 = vunpack.c.h.b16 %v350
    %v1527 = vunpack.c.l.b16 %v351
    %v1528 = vunpack.c.h.b16 %v351
    %v1529 = vunpack.c.l.b16 %v352
    %v1530 = vunpack.c.h.b16 %v352
    %v1531 = vunpack.c.l.b16 %v353
    %v1532 = vunpack.c.h.b16 %v353
    %v1533 = vunpack.c.l.b16 %v354
    %v1534 = vunpack.c.h.b16 %v354
    %v1535 = vunpack.c.l.b16 %v355
    %v1536 = vunpack.c.h.b16 %v355
    %v1537 = vunpack.c.l.b16 %v356
    %v1538 = vunpack.c.h.b16 %v356
    %v1539 = vunpack.c.l.b16 %v357
    %v1540 = vunpack.c.h.b16 %v357
    %v1541 = vunpack.c.l.b16 %v358
    %v1542 = vunpack.c.h.b16 %v358
    %v1543 = vunpack.c.l.b16 %v359
    %v1544 = vunpack.c.h.b16 %v359
    %v1545 = vunpack.c.l.b16 %v360
    %v1546 = vunpack.c.h.b16 %v360
    %v1547 = vunpack.c.l.b16 %v361
    %v1548 = vunpack.c.h.b16 %v361
    %v1549 = vunpack.c.l.b16 %v362
    %v1550 = vunpack.c.h.b16 %v362
    %v1551 = vunpack.c.l.b16 %v363
    %v1552 = vunpack.c.h.b16 %v363
    %v1553 = vunpack.c.l.b16 %v364
    %v1554 = vunpack.c.h.b16 %v364
    %v1555 = vunpack.c.l.b16 %v365
    %v1556 = vunpack.c.h.b16 %v365
    %v1557 = vunpack.c.l.b16 %v366
    %v1558 = vunpack.c.h.b16 %v366
    %v1559 = vunpack.c.l.b16 %v367
    %v1560 = vunpack.c.h.b16 %v367
    %v1561 = vunpack.c.l.b16 %v368
    %v1562 = vunpack.c.h.b16 %v368
    %v1563 = vunpack.c.l.b16 %v369
    %v1564 = vunpack.c.h.b16 %v369
    %v1565 = vunpack.c.l.b16 %v370
    %v1566 = vunpack.c.h.b16 %v370
    %v1567 = vunpack.c.l.b16 %v371
    %v1568 = vunpack.c.h.b16 %v371
    %v1569 = vunpack.c.l.b16 %v372
    %v1570 = vunpack.c.h.b16 %v372
    %v1571 = vunpack.c.l.b16 %v373
    %v1572 = vunpack.c.h.b16 %v373
    %v1573 = vunpack.c.l.b16 %v374
    %v1574 = vunpack.c.h.b16 %v374
    %v1575 = vunpack.c.l.b16 %v375
    %v1576 = vunpack.c.h.b16 %v375
    %v1577 = vunpack.c.l.b16 %v376
    %v1578 = vunpack.c.h.b16 %v376
    %v1579 = vunpack.c.l.b16 %v377
    %v1580 = vunpack.c.h.b16 %v377
    %v1581 = vunpack.c.l.b16 %v378
    %v1582 = vunpack.c.h.b16 %v378
    %v1583 = vunpack.c.l.b16 %v379
    %v1584 = vunpack.c.h.b16 %v379
    %v1585 = vunpack.c.l.b16 %v380
    %v1586 = vunpack.c.h.b16 %v380
    %v1587 = vunpack.c.l.b16 %v381
    %v1588 = vunpack.c.h.b16 %v381
    %v1589 = vunpack.c.l.b16 %v382
    %v1590 = vunpack.c.h.b16 %v382
    %v1591 = vunpack.c.l.b16 %v383
    %v1592 = vunpack.c.h.b16 %v383
    %v1593 = vunpack.c.l.b16 %v384
    %v1594 = vunpack.c.h.b16 %v384
    %v1595 = vunpack.c.l.b16 %v385
    %v1596 = vunpack.c.h.b16 %v385
    %v1597 = vunpack.c.l.b16 %v386
    %v1598 = vunpack.c.h.b16 %v386
    %v1599 = vunpack.c.l.b16 %v387
    %v1600 = vunpack.c.h.b16 %v387
    %v1601 = vunpack.c.l.b16 %v388
    %v1602 = vunpack.c.h.b16 %v388
    %v1603 = vunpack.c.l.b16 %v389
    %v1604 = vunpack.c.h.b16 %v389
    %v1605 = vunpack.c.l.b16 %v390
    %v1606 = vunpack.c.h.b16 %v390
    %v1607 = vunpack.c.l.b16 %v391
    %v1608 = vunpack.c.h.b16 %v391
    %v1609 = vunpack.c.l.b16 %v392
    %v1610 = vunpack.c.h.b16 %v392
    %v1611 = vunpack.c.l.b16 %v393
    %v1612 = vunpack.c.h.b16 %v393
    %v1613 = vunpack.c.l.b16 %v394
    %v1614 = vunpack.c.h.b16 %v394
    %v1615 = vunpack.c.l.b16 %v395
    %v1616 = vunpack.c.h.b16 %v395
    %v1617 = vunpack.c.l.b16 %v396
    %v1618 = vunpack.c.h.b16 %v396
    %v1619 = vunpack.c.l.b16 %v397
    %v1620 = vunpack.c.h.b16 %v397
    %v1621 = vunpack.c.l.b16 %v398
    %v1622 = vunpack.c.h.b16 %v398
    %v1623 = vunpack.c.l.b16 %v399
    %v1624 = vunpack.c.h.b16 %v399
    %v1625 = vunpack.c.l.b16 %v400
    %v1626 = vunpack.c.h.b16 %v400
    %v1627 = vunpack.c.l.b16 %v401
    %v1628 = vunpack.c.h.b16 %v401
    %v1629 = vunpack.c.l.b16 %v402
    %v1630 = vunpack.c.h.b16 %v402
    %v1631 = vunpack.c.l.b16 %v403
    %v1632 = vunpack.c.h.b16 %v403
    %v1633 = vunpack.c.l.b16 %v404
    %v1634 = vunpack.c.h.b16 %v404
    %v1635 = vunpack.c.l.b16 %v405
    %v1636 = vunpack.c.h.b16 %v405
    %v1637 = vunpack.c.l.b16 %v406
    %v1638 = vunpack.c.h.b16 %v406
    %v1639 = vunpack.c.l.b16 %v407
    %v1640 = vunpack.c.h.b16 %v407
    %v1641 = vunpack.c.l.b16 %v408
    %v1642 = vunpack.c.h.b16 %v408
    %v1643 = vunpack.c.l.b16 %v409
    %v1644 = vunpack.c.h.b16 %v409
    %v1645 = vunpack.c.l.b16 %v410
    %v1646 = vunpack.c.h.b16 %v410
    %v1647 = vunpack.c.l.b16 %v411
    %v1648 = vunpack.c.h.b16 %v411
    %v1649 = vunpack.c.l.b16 %v412
    %v1650 = vunpack.c.h.b16 %v412
    %v1651 = vunpack.c.l.b16 %v413
    %v1652 = vunpack.c.h.b16 %v413
    %v1653 = vunpack.c.l.b16 %v414
    %v1654 = vunpack.c.h.b16 %v414
    %v1655 = vunpack.c.l.b16 %v415
    %v1656 = vunpack.c.h.b16 %v415
    %v1657 = vunpack.c.l.b16 %v416
    %v1658 = vunpack.c.h.b16 %v416
    %v1659 = vunpack.c.l.b16 %v417
    %v1660 = vunpack.c.h.b16 %v417
    %v1661 = vunpack.c.l.b16 %v418
    %v1662 = vunpack.c.h.b16 %v418
    %v1663 = vunpack.c.l.b16 %v419
    %v1664 = vunpack.c.h.b16 %v419
    %v1665 = vunpack.c.l.b16 %v420
    %v1666 = vunpack.c.h.b16 %v420
    %v1667 = vunpack.c.l.b16 %v421
    %v1668 = vunpack.c.h.b16 %v421
    %v1669 = vunpack.c.l.b16 %v422
    %v1670 = vunpack.c.h.b16 %v422
    %v1671 = vunpack.c.l.b16 %v423
    %v1672 = vunpack.c.h.b16 %v423
    %v1673 = vunpack.c.l.b16 %v424
    %v1674 = vunpack.c.h.b16 %v424
    %v1675 = vunpack.c.l.b16 %v425
    %v1676 = vunpack.c.h.b16 %v425
    %v1677 = vunpack.c.l.b16 %v426
    %v1678 = vunpack.c.h.b16 %v426
    %v1679 = vunpack.c.l.b16 %v427
    %v1680 = vunpack.c.h.b16 %v427
    %v1681 = vunpack.c.l.b16 %v428
    %v1682 = vunpack.c.h.b16 %v428
    %v1683 = vunpack.c.l.b16 %v429
    %v1684 = vunpack.c.h.b16 %v429
    %v1685 = vunpack.c.l.b16 %v430
    %v1686 = vunpack.c.h.b16 %v430
    %v1687 = vunpack.c.l.b16 %v431
    %v1688 = vunpack.c.h.b16 %v431
    %v1689 = vunpack.c.l.b16 %v432
    %v1690 = vunpack.c.h.b16 %v432
    %v1691 = vunpack.c.l.b16 %v433
    %v1692 = vunpack.c.h.b16 %v433
    %v1693 = vunpack.c.l.b16 %v434
    %v1694 = vunpack.c.h.b16 %v434
    %v1695 = vunpack.c.l.b16 %v435
    %v1696 = vunpack.c.h.b16 %v435
    %v1697 = vunpack.c.l.b16 %v436
    %v1698 = vunpack.c.h.b16 %v436
    %v1699 = vunpack.c.l.b16 %v437
    %v1700 = vunpack.c.h.b16 %v437
    %v1701 = vunpack.c.l.b16 %v438
    %v1702 = vunpack.c.h.b16 %v438
    %v1703 = vunpack.c.l.b16 %v439
    %v1704 = vunpack.c.h.b16 %v439
    %v1705 = vunpack.c.l.b16 %v440
    %v1706 = vunpack.c.h.b16 %v440
    %v1707 = vunpack.c.l.b16 %v441
    %v1708 = vunpack.c.h.b16 %v441
    %v1709 = vunpack.c.l.b16 %v442
    %v1710 = vunpack.c.h.b16 %v442
    %v1711 = vunpack.c.l.b16 %v443
    %v1712 = vunpack.c.h.b16 %v443
    %v1713 = vunpack.c.l.b16 %v444
    %v1714 = vunpack.c.h.b16 %v444
    %v1715 = vunpack.c.l.b16 %v445
    %v1716 = vunpack.c.h.b16 %v445
    %v1717 = vunpack.c.l.b16 %v446
    %v1718 = vunpack.c.h.b16 %v446
    %v1719 = vunpack.c.l.b16 %v447
    %v1720 = vunpack.c.h.b16 %v447
    %v1721 = vunpack.c.l.b16 %v448
    %v1722 = vunpack.c.h.b16 %v448
    %v1723 = vunpack.c.l.b16 %v449
    %v1724 = vunpack.c.h.b16 %v449
    %v1725 = vunpack.c.l.b16 %v450
    %v1726 = vunpack.c.h.b16 %v450
    %v1727 = vunpack.c.l.b16 %v451
    %v1728 = vunpack.c.h.b16 %v451
    %v1729 = vunpack.c.l.b16 %v452
    %v1730 = vunpack.c.h.b16 %v452
    %v1731 = vunpack.c.l.b16 %v453
    %v1732 = vunpack.c.h.b16 %v453
    %v1733 = vunpack.c.l.b16 %v454
    %v1734 = vunpack.c.h.b16 %v454
    %v1735 = vunpack.c.l.b16 %v455
    %v1736 = vunpack.c.h.b16 %v455
    %v1737 = vunpack.c.l.b16 %v456
    %v1738 = vunpack.c.h.b16 %v456
    %v1739 = vunpack.c.l.b16 %v457
    %v1740 = vunpack.c.h.b16 %v457
    %v1741 = vunpack.c.l.b16 %v458
    %v1742 = vunpack.c.h.b16 %v458
    %v1743 = vunpack.c.l.b16 %v459
    %v1744 = vunpack.c.h.b16 %v459
    %v1745 = vunpack.c.l.b16 %v460
    %v1746 = vunpack.c.h.b16 %v460
    %v1747 = vunpack.c.l.b16 %v461
    %v1748 = vunpack.c.h.b16 %v461
    %v1749 = vunpack.c.l.b16 %v462
    %v1750 = vunpack.c.h.b16 %v462
    %v1751 = vunpack.c.l.b16 %v463
    %v1752 = vunpack.c.h.b16 %v463
    %v1753 = vunpack.c.l.b16 %v464
    %v1754 = vunpack.c.h.b16 %v464
    %v1755 = vunpack.c.l.b16 %v465
    %v1756 = vunpack.c.h.b16 %v465
    %v1757 = vunpack.c.l.b16 %v466
    %v1758 = vunpack.c.h.b16 %v466
    %v1759 = vunpack.c.l.b16 %v467
    %v1760 = vunpack.c.h.b16 %v467
    %v1761 = vunpack.c.l.b16 %v468
    %v1762 = vunpack.c.h.b16 %v468
    %v1763 = vunpack.c.l.b16 %v469
    %v1764 = vunpack.c.h.b16 %v469
    %v1765 = vunpack.c.l.b16 %v470
    %v1766 = vunpack.c.h.b16 %v470
    %v1767 = vunpack.c.l.b16 %v471
    %v1768 = vunpack.c.h.b16 %v471
    %v1769 = vunpack.c.l.b16 %v472
    %v1770 = vunpack.c.h.b16 %v472
    %v1771 = vunpack.c.l.b16 %v473
    %v1772 = vunpack.c.h.b16 %v473
    %v1773 = vunpack.c.l.b16 %v474
    %v1774 = vunpack.c.h.b16 %v474
    %v1775 = vunpack.c.l.b16 %v475
    %v1776 = vunpack.c.h.b16 %v475
    %v1777 = vunpack.c.l.b16 %v476
    %v1778 = vunpack.c.h.b16 %v476
    %v1779 = vunpack.c.l.b16 %v477
    %v1780 = vunpack.c.h.b16 %v477
    %v1781 = vunpack.c.l.b16 %v478
    %v1782 = vunpack.c.h.b16 %v478
    %v1783 = vunpack.c.l.b16 %v479
    %v1784 = vunpack.c.h.b16 %v479
    %v1785 = vunpack.c.l.b16 %v480
    %v1786 = vunpack.c.h.b16 %v480
    %v1787 = vunpack.c.l.b16 %v481
    %v1788 = vunpack.c.h.b16 %v481
    %v1789 = vunpack.c.l.b16 %v482
    %v1790 = vunpack.c.h.b16 %v482
    %v1791 = vunpack.c.l.b16 %v483
    %v1792 = vunpack.c.h.b16 %v483
    %v1793 = vunpack.c.l.b16 %v484
    %v1794 = vunpack.c.h.b16 %v484
    %v1795 = vunpack.c.l.b16 %v485
    %v1796 = vunpack.c.h.b16 %v485
    %v1797 = vunpack.c.l.b16 %v486
    %v1798 = vunpack.c.h.b16 %v486
    %v1799 = vunpack.c.l.b16 %v487
    %v1800 = vunpack.c.h.b16 %v487
    %v1801 = vunpack.c.l.b16 %v488
    %v1802 = vunpack.c.h.b16 %v488
    %v1803 = vunpack.c.l.b16 %v489
    %v1804 = vunpack.c.h.b16 %v489
    %v1805 = vunpack.c.l.b16 %v490
    %v1806 = vunpack.c.h.b16 %v490
    %v1807 = vunpack.c.l.b16 %v491
    %v1808 = vunpack.c.h.b16 %v491
    %v1809 = vunpack.c.l.b16 %v492
    %v1810 = vunpack.c.h.b16 %v492
    %v1811 = vunpack.c.l.b16 %v493
    %v1812 = vunpack.c.h.b16 %v493
    %v1813 = vunpack.c.l.b16 %v494
    %v1814 = vunpack.c.h.b16 %v494
    %v1815 = vunpack.c.l.b16 %v495
    %v1816 = vunpack.c.h.b16 %v495
    %v1817 = vunpack.c.l.b16 %v496
    %v1818 = vunpack.c.h.b16 %v496
    %v1819 = vunpack.c.l.b16 %v497
    %v1820 = vunpack.c.h.b16 %v497
    %v1821 = vunpack.c.l.b16 %v498
    %v1822 = vunpack.c.h.b16 %v498
    %v1823 = vunpack.c.l.b16 %v499
    %v1824 = vunpack.c.h.b16 %v499
    %v1825 = vunpack.c.l.b16 %v500
    %v1826 = vunpack.c.h.b16 %v500
    %v1827 = vunpack.c.l.b16 %v501
    %v1828 = vunpack.c.h.b16 %v501
    %v1829 = vunpack.c.l.b16 %v502
    %v1830 = vunpack.c.h.b16 %v502
    %v1831 = vunpack.c.l.b16 %v503
    %v1832 = vunpack.c.h.b16 %v503
    %v1833 = vunpack.c.l.b16 %v504
    %v1834 = vunpack.c.h.b16 %v504
    %v1835 = vunpack.c.l.b16 %v505
    %v1836 = vunpack.c.h.b16 %v505
    %v1837 = vunpack.c.l.b16 %v506
    %v1838 = vunpack.c.h.b16 %v506
    %v1839 = vunpack.c.l.b16 %v507
    %v1840 = vunpack.c.h.b16 %v507
    %v1841 = vunpack.c.l.b16 %v508
    %v1842 = vunpack.c.h.b16 %v508
    %v1843 = vunpack.c.l.b16 %v509
    %v1844 = vunpack.c.h.b16 %v509
    %v1845 = vunpack.c.l.b16 %v510
    %v1846 = vunpack.c.h.b16 %v510
    %v1847 = vunpack.c.l.b16 %v511
    %v1848 = vunpack.c.h.b16 %v511
    %v1849 = vunpack.c.l.b16 %v512
    %v1850 = vunpack.c.h.b16 %v512
    %v1851 = vunpack.c.l.b16 %v513
    %v1852 = vunpack.c.h.b16 %v513
    %v1853 = vunpack.c.l.b16 %v514
    %v1854 = vunpack.c.h.b16 %v514
    %v1855 = vunpack.c.l.b16 %v515
    %v1856 = vunpack.c.h.b16 %v515
    %v1857 = vunpack.c.l.b16 %v516
    %v1858 = vunpack.c.h.b16 %v516
    %v1859 = vunpack.c.l.b16 %v517
    %v1860 = vunpack.c.h.b16 %v517
    %v1861 = vunpack.c.l.b16 %v518
    %v1862 = vunpack.c.h.b16 %v518
    %v1863 = vunpack.c.l.b16 %v519
    %v1864 = vunpack.c.h.b16 %v519
    %v1865 = vunpack.c.l.b16 %v520
    %v1866 = vunpack.c.h.b16 %v520
    %v1867 = vunpack.c.l.b16 %v521
    %v1868 = vunpack.c.h.b16 %v521
    %v1869 = vunpack.c.l.b16 %v522
    %v1870 = vunpack.c.h.b16 %v522
    %v1871 = vunpack.c.l.b16 %v523
    %v1872 = vunpack.c.h.b16 %v523
    %v1873 = vunpack.c.l.b16 %v524
    %v1874 = vunpack.c.h.b16 %v524
    %v1875 = vunpack.c.l.b16 %v525
    %v1876 = vunpack.c.h.b16 %v525
    %v1877 = vunpack.c.l.b16 %v526
    %v1878 = vunpack.c.h.b16 %v526
    %v1879 = vunpack.c.l.b16 %v527
    %v1880 = vunpack.c.h.b16 %v527
    %v1881 = vunpack.c.l.b16 %v528
    %v1882 = vunpack.c.h.b16 %v528
    %v1883 = vunpack.c.l.b16 %v529
    %v1884 = vunpack.c.h.b16 %v529
    %v1885 = vunpack.c.l.b16 %v530
    %v1886 = vunpack.c.h.b16 %v530
    %v1887 = vunpack.c.l.b16 %v531
    %v1888 = vunpack.c.h.b16 %v531
    %v1889 = vunpack.c.l.b16 %v532
    %v1890 = vunpack.c.h.b16 %v532
    %v1891 = vunpack.c.l.b16 %v533
    %v1892 = vunpack.c.h.b16 %v533
    %v1893 = vunpack.c.l.b16 %v534
    %v1894 = vunpack.c.h.b16 %v534
    %v1895 = vunpack.c.l.b16 %v535
    %v1896 = vunpack.c.h.b16 %v535
    %v1897 = vunpack.c.l.b16 %v536
    %v1898 = vunpack.c.h.b16 %v536
    %v1899 = vunpack.c.l.b16 %v537
    %v1900 = vunpack.c.h.b16 %v537
    %v1901 = vunpack.c.l.b16 %v538
    %v1902 = vunpack.c.h.b16 %v538
    %v1903 = vunpack.c.l.b16 %v539
    %v1904 = vunpack.c.h.b16 %v539
    %v1905 = vunpack.c.l.b16 %v540
    %v1906 = vunpack.c.h.b16 %v540
    %v1907 = vunpack.c.l.b16 %v541
    %v1908 = vunpack.c.h.b16 %v541
    %v1909 = vunpack.c.l.b16 %v542
    %v1910 = vunpack.c.h.b16 %v542
    %v1911 = vunpack.c.l.b16 %v543
    %v1912 = vunpack.c.h.b16 %v543
    %v1913 = vunpack.c.l.b16 %v544
    %v1914 = vunpack.c.h.b16 %v544
    %v1915 = vunpack.c.l.b16 %v545
    %v1916 = vunpack.c.h.b16 %v545
    %v1917 = vunpack.c.l.b16 %v546
    %v1918 = vunpack.c.h.b16 %v546
    %v1919 = vunpack.c.l.b16 %v547
    %v1920 = vunpack.c.h.b16 %v547
    %v1921 = vunpack.c.l.b16 %v548
    %v1922 = vunpack.c.h.b16 %v548
    %v1923 = vunpack.c.l.b16 %v549
    %v1924 = vunpack.c.h.b16 %v549
    %v1925 = vunpack.c.l.b16 %v550
    %v1926 = vunpack.c.h.b16 %v550
    %v1927 = vunpack.c.l.b16 %v551
    %v1928 = vunpack.c.h.b16 %v551
    %v1929 = vunpack.c.l.b16 %v552
    %v1930 = vunpack.c.h.b16 %v552
    %v1931 = vunpack.c.l.b16 %v553
    %v1932 = vunpack.c.h.b16 %v553
    %v1933 = vunpack.c.l.b16 %v554
    %v1934 = vunpack.c.h.b16 %v554
    %v1935 = vunpack.c.l.b16 %v555
    %v1936 = vunpack.c.h.b16 %v555
    %v1937 = vunpack.c.l.b16 %v556
    %v1938 = vunpack.c.h.b16 %v556
    %v1939 = vunpack.c.l.b16 %v557
    %v1940 = vunpack.c.h.b16 %v557
    %v1941 = vunpack.c.l.b16 %v558
    %v1942 = vunpack.c.h.b16 %v558
    %v1943 = vunpack.c.l.b16 %v559
    %v1944 = vunpack.c.h.b16 %v559
    %v1945 = vunpack.c.l.b16 %v560
    %v1946 = vunpack.c.h.b16 %v560
    %v1947 = vunpack.c.l.b16 %v561
    %v1948 = vunpack.c.h.b16 %v561
    %v1949 = vunpack.c.l.b16 %v562
    %v1950 = vunpack.c.h.b16 %v562
    %v1951 = vunpack.c.l.b16 %v563
    %v1952 = vunpack.c.h.b16 %v563
    %v1953 = vunpack.c.l.b16 %v564
    %v1954 = vunpack.c.h.b16 %v564
    %v1955 = vunpack.c.l.b16 %v565
    %v1956 = vunpack.c.h.b16 %v565
    %v1957 = vunpack.c.l.b16 %v566
    %v1958 = vunpack.c.h.b16 %v566
    %v1959 = vunpack.c.l.b16 %v567
    %v1960 = vunpack.c.h.b16 %v567
    %v1961 = vunpack.c.l.b16 %v568
    %v1962 = vunpack.c.h.b16 %v568
    %v1963 = vunpack.c.l.b16 %v569
    %v1964 = vunpack.c.h.b16 %v569
    %v1965 = vunpack.c.l.b16 %v570
    %v1966 = vunpack.c.h.b16 %v570
    %v1967 = vunpack.c.l.b16 %v571
    %v1968 = vunpack.c.h.b16 %v571
    %v1969 = vunpack.c.l.b16 %v572
    %v1970 = vunpack.c.h.b16 %v572
    %v1971 = vunpack.c.l.b16 %v573
    %v1972 = vunpack.c.h.b16 %v573
    %v1973 = vunpack.c.l.b16 %v574
    %v1974 = vunpack.c.h.b16 %v574
    %v1975 = vunpack.c.l.b16 %v575
    %v1976 = vunpack.c.h.b16 %v575
    %v1977 = vunpack.c.l.b16 %v576
    %v1978 = vunpack.c.h.b16 %v576
    %v1979 = vunpack.c.l.b16 %v577
    %v1980 = vunpack.c.h.b16 %v577
    %v1981 = vunpack.c.l.b16 %v578
    %v1982 = vunpack.c.h.b16 %v578
    %v1983 = vunpack.c.l.b16 %v579
    %v1984 = vunpack.c.h.b16 %v579
    %v1985 = vunpack.c.l.b16 %v580
    %v1986 = vunpack.c.h.b16 %v580
    %v1987 = vunpack.c.l.b16 %v581
    %v1988 = vunpack.c.h.b16 %v581
    %v1989 = vunpack.c.l.b16 %v582
    %v1990 = vunpack.c.h.b16 %v582
    %v1991 = vunpack.c.l.b16 %v583
    %v1992 = vunpack.c.h.b16 %v583
    %v1993 = vunpack.c.l.b16 %v584
    %v1994 = vunpack.c.h.b16 %v584
    %v1995 = vunpack.c.l.b16 %v585
    %v1996 = vunpack.c.h.b16 %v585
    %v1997 = vunpack.c.l.b16 %v586
    %v1998 = vunpack.c.h.b16 %v586
    %v1999 = vunpack.c.l.b16 %v587
    %v2000 = vunpack.c.h.b16 %v587
    %v2001 = vunpack.c.l.b16 %v588
    %v2002 = vunpack.c.h.b16 %v588
    %v2003 = vunpack.c.l.b16 %v589
    %v2004 = vunpack.c.h.b16 %v589
    %v2005 = vunpack.c.l.b16 %v590
    %v2006 = vunpack.c.h.b16 %v590
    %v2007 = vunpack.c.l.b16 %v591
    %v2008 = vunpack.c.h.b16 %v591
    %v2009 = vunpack.c.l.b16 %v592
    %v2010 = vunpack.c.h.b16 %v592
    %v2011 = vunpack.c.l.b16 %v593
    %v2012 = vunpack.c.h.b16 %v593
    %v2013 = vunpack.c.l.b16 %v594
    %v2014 = vunpack.c.h.b16 %v594
    %v2015 = vunpack.c.l.b16 %v595
    %v2016 = vunpack.c.h.b16 %v595
    %v2017 = vunpack.c.l.b16 %v596
    %v2018 = vunpack.c.h.b16 %v596
    %v2019 = vunpack.c.l.b16 %v597
    %v2020 = vunpack.c.h.b16 %v597
    %v2021 = vunpack.c.l.b16 %v598
    %v2022 = vunpack.c.h.b16 %v598
    %v2023 = vunpack.c.l.b16 %v599
    %v2024 = vunpack.c.h.b16 %v599
    %v2025 = vunpack.c.l.b16 %v600
    %v2026 = vunpack.c.h.b16 %v600
    %v2027 = vunpack.c.l.b16 %v601
    %v2028 = vunpack.c.h.b16 %v601
    %v2029 = vunpack.c.l.b16 %v602
    %v2030 = vunpack.c.h.b16 %v602
    %v2031 = vunpack.c.l.b16 %v603
    %v2032 = vunpack.c.h.b16 %v603
    %v2033 = vunpack.c.l.b16 %v604
    %v2034 = vunpack.c.h.b16 %v604
    %v2035 = vunpack.c.l.b16 %v605
    %v2036 = vunpack.c.h.b16 %v605
    %v2037 = vunpack.c.l.b16 %v606
    %v2038 = vunpack.c.h.b16 %v606
    %v2039 = vunpack.c.l.b16 %v607
    %v2040 = vunpack.c.h.b16 %v607
    %v2041 = vunpack.c.l.b16 %v608
    %v2042 = vunpack.c.h.b16 %v608
    %v2043 = vunpack.c.l.b16 %v609
    %v2044 = vunpack.c.h.b16 %v609
    %v2045 = vunpack.c.l.b16 %v610
    %v2046 = vunpack.c.h.b16 %v610
    %v2047 = vunpack.c.l.b16 %v611
    %v2048 = vunpack.c.h.b16 %v611
    %v2049 = vunpack.c.l.b16 %v612
    %v2050 = vunpack.c.h.b16 %v612
    %v2051 = vunpack.c.l.b16 %v613
    %v2052 = vunpack.c.h.b16 %v613
    %v2053 = vunpack.c.l.b16 %v614
    %v2054 = vunpack.c.h.b16 %v614
    %v2055 = vunpack.c.l.b16 %v615
    %v2056 = vunpack.c.h.b16 %v615
    %v2057 = vunpack.c.l.b16 %v616
    %v2058 = vunpack.c.h.b16 %v616
    %v2059 = vunpack.c.l.b16 %v617
    %v2060 = vunpack.c.h.b16 %v617
    %v2061 = vunpack.c.l.b16 %v618
    %v2062 = vunpack.c.h.b16 %v618
    %v2063 = vunpack.c.l.b16 %v619
    %v2064 = vunpack.c.h.b16 %v619
    %v2065 = vunpack.c.l.b16 %v620
    %v2066 = vunpack.c.h.b16 %v620
    %v2067 = vunpack.c.l.b16 %v621
    %v2068 = vunpack.c.h.b16 %v621
    %v2069 = vunpack.c.l.b16 %v622
    %v2070 = vunpack.c.h.b16 %v622
    %v2071 = vunpack.c.l.b16 %v623
    %v2072 = vunpack.c.h.b16 %v623
    %v2073 = vunpack.c.l.b16 %v624
    %v2074 = vunpack.c.h.b16 %v624
    %v2075 = vunpack.c.l.b16 %v625
    %v2076 = vunpack.c.h.b16 %v625
    %v2077 = vunpack.c.l.b16 %v626
    %v2078 = vunpack.c.h.b16 %v626
    %v2079 = vunpack.c.l.b16 %v627
    %v2080 = vunpack.c.h.b16 %v627
    %v2081 = vunpack.c.l.b16 %v628
    %v2082 = vunpack.c.h.b16 %v628
    %v2083 = vunpack.c.l.b16 %v629
    %v2084 = vunpack.c.h.b16 %v629
    %v2085 = vunpack.c.l.b16 %v630
    %v2086 = vunpack.c.h.b16 %v630
    %v2087 = vunpack.c.l.b16 %v631
    %v2088 = vunpack.c.h.b16 %v631
    %v2089 = vunpack.c.l.b16 %v632
    %v2090 = vunpack.c.h.b16 %v632
    %v2091 = vunpack.c.l.b16 %v633
    %v2092 = vunpack.c.h.b16 %v633
    %v2093 = vunpack.c.l.b16 %v634
    %v2094 = vunpack.c.h.b16 %v634
    %v2095 = vunpack.c.l.b16 %v635
    %v2096 = vunpack.c.h.b16 %v635
    %v2097 = vunpack.c.l.b16 %v636
    %v2098 = vunpack.c.h.b16 %v636
    %v2099 = vunpack.c.l.b16 %v637
    %v2100 = vunpack.c.h.b16 %v637
    %v2101 = vunpack.c.l.b16 %v638
    %v2102 = vunpack.c.h.b16 %v638
    %v2103 = vunpack.c.l.b16 %v639
    %v2104 = vunpack.c.h.b16 %v639
    %v2105 = vunpack.c.l.b16 %v640
    %v2106 = vunpack.c.h.b16 %v640
    %v2107 = vunpack.c.l.b16 %v641
    %v2108 = vunpack.c.h.b16 %v641
    %v2109 = vunpack.c.l.b16 %v642
    %v2110 = vunpack.c.h.b16 %v642
    %v2111 = vunpack.c.l.b16 %v643
    %v2112 = vunpack.c.h.b16 %v643
    %v2113 = vunpack.c.l.b16 %v644
    %v2114 = vunpack.c.h.b16 %v644
    %v2115 = vunpack.c.l.b16 %v645
    %v2116 = vunpack.c.h.b16 %v645
    %v2117 = vunpack.c.l.b16 %v646
    %v2118 = vunpack.c.h.b16 %v646
    %v2119 = vunpack.c.l.b16 %v647
    %v2120 = vunpack.c.h.b16 %v647
    %v2121 = vunpack.c.l.b16 %v648
    %v2122 = vunpack.c.h.b16 %v648
    %v2123 = vunpack.c.l.b16 %v649
    %v2124 = vunpack.c.h.b16 %v649
    %v2125 = vunpack.c.l.b16 %v650
    %v2126 = vunpack.c.h.b16 %v650
    %v2127 = vunpack.c.l.b16 %v651
    %v2128 = vunpack.c.h.b16 %v651
    %v2129 = vunpack.c.l.b16 %v652
    %v2130 = vunpack.c.h.b16 %v652
    %v2131 = vunpack.c.l.b16 %v653
    %v2132 = vunpack.c.h.b16 %v653
    %v2133 = vunpack.c.l.b16 %v654
    %v2134 = vunpack.c.h.b16 %v654
    %v2135 = vunpack.c.l.b16 %v655
    %v2136 = vunpack.c.h.b16 %v655
    %v2137 = vunpack.c.l.b16 %v656
    %v2138 = vunpack.c.h.b16 %v656
    %v2139 = vunpack.c.l.b16 %v657
    %v2140 = vunpack.c.h.b16 %v657
    %v2141 = vunpack.c.l.b16 %v658
    %v2142 = vunpack.c.h.b16 %v658
    %v2143 = vunpack.c.l.b16 %v659
    %v2144 = vunpack.c.h.b16 %v659
    %v2145 = vunpack.c.l.b16 %v660
    %v2146 = vunpack.c.h.b16 %v660
    %v2147 = vunpack.c.l.b16 %v661
    %v2148 = vunpack.c.h.b16 %v661
    %v2149 = vunpack.c.l.b16 %v662
    %v2150 = vunpack.c.h.b16 %v662
    %v2151 = vunpack.c.l.b16 %v663
    %v2152 = vunpack.c.h.b16 %v663
    %v2153 = vunpack.c.l.b16 %v664
    %v2154 = vunpack.c.h.b16 %v664
    %v2155 = vunpack.c.l.b16 %v665
    %v2156 = vunpack.c.h.b16 %v665
    %v2157 = vunpack.c.l.b16 %v666
    %v2158 = vunpack.c.h.b16 %v666
    %v2159 = vunpack.c.l.b16 %v667
    %v2160 = vunpack.c.h.b16 %v667
    %v2161 = vunpack.c.l.b16 %v668
    %v2162 = vunpack.c.h.b16 %v668
    %v2163 = vunpack.c.l.b16 %v669
    %v2164 = vunpack.c.h.b16 %v669
    %v2165 = vunpack.c.l.b16 %v670
    %v2166 = vunpack.c.h.b16 %v670
    %v2167 = vunpack.c.l.b16 %v671
    %v2168 = vunpack.c.h.b16 %v671
    %v2169 = vunpack.c.l.b16 %v672
    %v2170 = vunpack.c.h.b16 %v672
    %v2171 = vunpack.c.l.b16 %v673
    %v2172 = vunpack.c.h.b16 %v673
    %v2173 = vunpack.c.l.b16 %v674
    %v2174 = vunpack.c.h.b16 %v674
    %v2175 = vunpack.c.l.b16 %v675
    %v2176 = vunpack.c.h.b16 %v675
    %v2177 = vunpack.c.l.b16 %v676
    %v2178 = vunpack.c.h.b16 %v676
    %v2179 = vunpack.c.l.b16 %v677
    %v2180 = vunpack.c.h.b16 %v677
    %v2181 = vunpack.c.l.b16 %v678
    %v2182 = vunpack.c.h.b16 %v678
    %v2183 = vunpack.c.l.b16 %v679
    %v2184 = vunpack.c.h.b16 %v679
    %v2185 = vunpack.c.l.b16 %v680
    %v2186 = vunpack.c.h.b16 %v680
    %v2187 = vunpack.c.l.b16 %v681
    %v2188 = vunpack.c.h.b16 %v681
    %v2189 = vunpack.c.l.b16 %v682
    %v2190 = vunpack.c.h.b16 %v682
    %v2191 = vunpack.c.l.b16 %v683
    %v2192 = vunpack.c.h.b16 %v683
    %v2193 = vunpack.c.l.b16 %v684
    %v2194 = vunpack.c.h.b16 %v684
    %v2195 = vunpack.c.l.b16 %v685
    %v2196 = vunpack.c.h.b16 %v685
    %v2197 = vunpack.c.l.b16 %v686
    %v2198 = vunpack.c.h.b16 %v686
    %v2199 = vunpack.c.l.b16 %v687
    %v2200 = vunpack.c.h.b16 %v687
    %v2201 = vunpack.c.l.b16 %v688
    %v2202 = vunpack.c.h.b16 %v688
    %v2203 = vunpack.c.l.b16 %v689
    %v2204 = vunpack.c.h.b16 %v689
    %v2205 = vunpack.c.l.b16 %v690
    %v2206 = vunpack.c.h.b16 %v690
    %v2207 = vunpack.c.l.b16 %v691
    %v2208 = vunpack.c.h.b16 %v691
    %v2209 = vunpack.c.l.b16 %v692
    %v2210 = vunpack.c.h.b16 %v692
    %v2211 = vunpack.c.l.b16 %v693
    %v2212 = vunpack.c.h.b16 %v693
    %v2213 = vunpack.c.l.b16 %v694
    %v2214 = vunpack.c.h.b16 %v694
    %v2215 = vunpack.c.l.b16 %v695
    %v2216 = vunpack.c.h.b16 %v695
    %v2217 = vunpack.c.l.b16 %v696
    %v2218 = vunpack.c.h.b16 %v696
    %v2219 = vunpack.c.l.b16 %v697
    %v2220 = vunpack.c.h.b16 %v697
    %v2221 = vunpack.c.l.b16 %v698
    %v2222 = vunpack.c.h.b16 %v698
    %v2223 = vunpack.c.l.b16 %v699
    %v2224 = vunpack.c.h.b16 %v699
    %v2225 = vunpack.c.l.b16 %v700
    %v2226 = vunpack.c.h.b16 %v700
    %v2227 = vunpack.c.l.b16 %v701
    %v2228 = vunpack.c.h.b16 %v701
    %v2229 = vunpack.c.l.b16 %v702
    %v2230 = vunpack.c.h.b16 %v702
    %v2231 = vunpack.c.l.b16 %v703
    %v2232 = vunpack.c.h.b16 %v703
    %v2233 = vunpack.c.l.b16 %v704
    %v2234 = vunpack.c.h.b16 %v704
    %v2235 = vunpack.c.l.b16 %v705
    %v2236 = vunpack.c.h.b16 %v705
    %v2237 = vunpack.c.l.b16 %v706
    %v2238 = vunpack.c.h.b16 %v706
    %v2239 = vunpack.c.l.b16 %v707
    %v2240 = vunpack.c.h.b16 %v707
    %v2241 = vunpack.c.l.b16 %v708
    %v2242 = vunpack.c.h.b16 %v708
    %v2243 = vunpack.c.l.b16 %v709
    %v2244 = vunpack.c.h.b16 %v709
    %v2245 = vunpack.c.l.b16 %v710
    %v2246 = vunpack.c.h.b16 %v710
    %v2247 = vpack.c.b16 %v1239, %v1223
    %v2248 = vpack.c.b16 %v1240, %v1224
    %v2249 = vpack.c.b16 %v1241, %v1225
    %v2250 = vpack.c.b16 %v1242, %v1226
    %v2251 = vpack.c.b16 %v1243, %v1227
    %v2252 = vpack.c.b16 %v1244, %v1228
    %v2253 = vpack.c.b16 %v1245, %v1229
    %v2254 = vpack.c.b16 %v1246, %v1230
    %v2255 = vpack.c.b16 %v1247, %v1231
    %v2256 = vpack.c.b16 %v1248, %v1232
    %v2257 = vpack.c.b16 %v1249, %v1233
    %v2258 = vpack.c.b16 %v1250, %v1234
    %v2259 = vpack.c.b16 %v1251, %v1235
    %v2260 = vpack.c.b16 %v1252, %v1236
    %v2261 = vpack.c.b16 %v1253, %v1237
    %v2262 = vpack.c.b16 %v1254, %v1238
    %v2263 = vpack.c.b16 %v1271, %v1255
    %v2264 = vpack.c.b16 %v1272, %v1256
    %v2265 = vpack.c.b16 %v1273, %v1257
    %v2266 = vpack.c.b16 %v1274, %v1258
    %v2267 = vpack.c.b16 %v1275, %v1259
    %v2268 = vpack.c.b16 %v1276, %v1260
    %v2269 = vpack.c.b16 %v1277, %v1261
    %v2270 = vpack.c.b16 %v1278, %v1262
    %v2271 = vpack.c.b16 %v1279, %v1263
    %v2272 = vpack.c.b16 %v1280, %v1264
    %v2273 = vpack.c.b16 %v1281, %v1265
    %v2274 = vpack.c.b16 %v1282, %v1266
    %v2275 = vpack.c.b16 %v1283, %v1267
    %v2276 = vpack.c.b16 %v1284, %v1268
    %v2277 = vpack.c.b16 %v1285, %v1269
    %v2278 = vpack.c.b16 %v1286, %v1270
    %v2279 = vpack.c.b16 %v1303, %v1287
    %v2280 = vpack.c.b16 %v1304, %v1288
    %v2281 = vpack.c.b16 %v1305, %v1289
    %v2282 = vpack.c.b16 %v1306, %v1290
    %v2283 = vpack.c.b16 %v1307, %v1291
    %v2284 = vpack.c.b16 %v1308, %v1292
    %v2285 = vpack.c.b16 %v1309, %v1293
    %v2286 = vpack.c.b16 %v1310, %v1294
    %v2287 = vpack.c.b16 %v1311, %v1295
    %v2288 = vpack.c.b16 %v1312, %v1296
    %v2289 = vpack.c.b16 %v1313, %v1297
    %v2290 = vpack.c.b16 %v1314, %v1298
    %v2291 = vpack.c.b16 %v1315, %v1299
    %v2292 = vpack.c.b16 %v1316, %v1300
    %v2293 = vpack.c.b16 %v1317, %v1301
    %v2294 = vpack.c.b16 %v1318, %v1302
    %v2295 = vpack.c.b16 %v1335, %v1319
    %v2296 = vpack.c.b16 %v1336, %v1320
    %v2297 = vpack.c.b16 %v1337, %v1321
    %v2298 = vpack.c.b16 %v1338, %v1322
    %v2299 = vpack.c.b16 %v1339, %v1323
    %v2300 = vpack.c.b16 %v1340, %v1324
    %v2301 = vpack.c.b16 %v1341, %v1325
    %v2302 = vpack.c.b16 %v1342, %v1326
    %v2303 = vpack.c.b16 %v1343, %v1327
    %v2304 = vpack.c.b16 %v1344, %v1328
    %v2305 = vpack.c.b16 %v1345, %v1329
    %v2306 = vpack.c.b16 %v1346, %v1330
    %v2307 = vpack.c.b16 %v1347, %v1331
    %v2308 = vpack.c.b16 %v1348, %v1332
    %v2309 = vpack.c.b16 %v1349, %v1333
    %v2310 = vpack.c.b16 %v1350, %v1334
    %v2311 = vpack.c.b16 %v1367, %v1351
    %v2312 = vpack.c.b16 %v1368, %v1352
    %v2313 = vpack.c.b16 %v1369, %v1353
    %v2314 = vpack.c.b16 %v1370, %v1354
    %v2315 = vpack.c.b16 %v1371, %v1355
    %v2316 = vpack.c.b16 %v1372, %v1356
    %v2317 = vpack.c.b16 %v1373, %v1357
    %v2318 = vpack.c.b16 %v1374, %v1358
    %v2319 = vpack.c.b16 %v1375, %v1359
    %v2320 = vpack.c.b16 %v1376, %v1360
    %v2321 = vpack.c.b16 %v1377, %v1361
    %v2322 = vpack.c.b16 %v1378, %v1362
    %v2323 = vpack.c.b16 %v1379, %v1363
    %v2324 = vpack.c.b16 %v1380, %v1364
    %v2325 = vpack.c.b16 %v1381, %v1365
    %v2326 = vpack.c.b16 %v1382, %v1366
    %v2327 = vpack.c.b16 %v1399, %v1383
    %v2328 = vpack.c.b16 %v1400, %v1384
    %v2329 = vpack.c.b16 %v1401, %v1385
    %v2330 = vpack.c.b16 %v1402, %v1386
    %v2331 = vpack.c.b16 %v1403, %v1387
    %v2332 = vpack.c.b16 %v1404, %v1388
    %v2333 = vpack.c.b16 %v1405, %v1389
    %v2334 = vpack.c.b16 %v1406, %v1390
    %v2335 = vpack.c.b16 %v1407, %v1391
    %v2336 = vpack.c.b16 %v1408, %v1392
    %v2337 = vpack.c.b16 %v1409, %v1393
    %v2338 = vpack.c.b16 %v1410, %v1394
    %v2339 = vpack.c.b16 %v1411, %v1395
    %v2340 = vpack.c.b16 %v1412, %v1396
    %v2341 = vpack.c.b16 %v1413, %v1397
    %v2342 = vpack.c.b16 %v1414, %v1398
    %v2343 = vpack.c.b16 %v1431, %v1415
    %v2344 = vpack.c.b16 %v1432, %v1416
    %v2345 = vpack.c.b16 %v1433, %v1417
    %v2346 = vpack.c.b16 %v1434, %v1418
    %v2347 = vpack.c.b16 %v1435, %v1419
    %v2348 = vpack.c.b16 %v1436, %v1420
    %v2349 = vpack.c.b16 %v1437, %v1421
    %v2350 = vpack.c.b16 %v1438, %v1422
    %v2351 = vpack.c.b16 %v1439, %v1423
    %v2352 = vpack.c.b16 %v1440, %v1424
    %v2353 = vpack.c.b16 %v1441, %v1425
    %v2354 = vpack.c.b16 %v1442, %v1426
    %v2355 = vpack.c.b16 %v1443, %v1427
    %v2356 = vpack.c.b16 %v1444, %v1428
    %v2357 = vpack.c.b16 %v1445, %v1429
    %v2358 = vpack.c.b16 %v1446, %v1430
    %v2359 = vpack.c.b16 %v1463, %v1447
    %v2360 = vpack.c.b16 %v1464, %v1448
    %v2361 = vpack.c.b16 %v1465, %v1449
    %v2362 = vpack.c.b16 %v1466, %v1450
    %v2363 = vpack.c.b16 %v1467, %v1451
    %v2364 = vpack.c.b16 %v1468, %v1452
    %v2365 = vpack.c.b16 %v1469, %v1453
    %v2366 = vpack.c.b16 %v1470, %v1454
    %v2367 = vpack.c.b16 %v1471, %v1455
    %v2368 = vpack.c.b16 %v1472, %v1456
    %v2369 = vpack.c.b16 %v1473, %v1457
    %v2370 = vpack.c.b16 %v1474, %v1458
    %v2371 = vpack.c.b16 %v1475, %v1459
    %v2372 = vpack.c.b16 %v1476, %v1460
    %v2373 = vpack.c.b16 %v1477, %v1461
    %v2374 = vpack.c.b16 %v1478, %v1462
    %v2375 = vpack.c.b16 %v1495, %v1479
    %v2376 = vpack.c.b16 %v1496, %v1480
    %v2377 = vpack.c.b16 %v1497, %v1481
    %v2378 = vpack.c.b16 %v1498, %v1482
    %v2379 = vpack.c.b16 %v1499, %v1483
    %v2380 = vpack.c.b16 %v1500, %v1484
    %v2381 = vpack.c.b16 %v1501, %v1485
    %v2382 = vpack.c.b16 %v1502, %v1486
    %v2383 = vpack.c.b16 %v1503, %v1487
    %v2384 = vpack.c.b16 %v1504, %v1488
    %v2385 = vpack.c.b16 %v1505, %v1489
    %v2386 = vpack.c.b16 %v1506, %v1490
    %v2387 = vpack.c.b16 %v1507, %v1491
    %v2388 = vpack.c.b16 %v1508, %v1492
    %v2389 = vpack.c.b16 %v1509, %v1493
    %v2390 = vpack.c.b16 %v1510, %v1494
    %v2391 = vpack.c.b16 %v1527, %v1511
    %v2392 = vpack.c.b16 %v1528, %v1512
    %v2393 = vpack.c.b16 %v1529, %v1513
    %v2394 = vpack.c.b16 %v1530, %v1514
    %v2395 = vpack.c.b16 %v1531, %v1515
    %v2396 = vpack.c.b16 %v1532, %v1516
    %v2397 = vpack.c.b16 %v1533, %v1517
    %v2398 = vpack.c.b16 %v1534, %v1518
    %v2399 = vpack.c.b16 %v1535, %v1519
    %v2400 = vpack.c.b16 %v1536, %v1520
    %v2401 = vpack.c.b16 %v1537, %v1521
    %v2402 = vpack.c.b16 %v1538, %v1522
    %v2403 = vpack.c.b16 %v1539, %v1523
    %v2404 = vpack.c.b16 %v1540, %v1524
    %v2405 = vpack.c.b16 %v1541, %v1525
    %v2406 = vpack.c.b16 %v1542, %v1526
    %v2407 = vpack.c.b16 %v1559, %v1543
    %v2408 = vpack.c.b16 %v1560, %v1544
    %v2409 = vpack.c.b16 %v1561, %v1545
    %v2410 = vpack.c.b16 %v1562, %v1546
    %v2411 = vpack.c.b16 %v1563, %v1547
    %v2412 = vpack.c.b16 %v1564, %v1548
    %v2413 = vpack.c.b16 %v1565, %v1549
    %v2414 = vpack.c.b16 %v1566, %v1550
    %v2415 = vpack.c.b16 %v1567, %v1551
    %v2416 = vpack.c.b16 %v1568, %v1552
    %v2417 = vpack.c.b16 %v1569, %v1553
    %v2418 = vpack.c.b16 %v1570, %v1554
    %v2419 = vpack.c.b16 %v1571, %v1555
    %v2420 = vpack.c.b16 %v1572, %v1556
    %v2421 = vpack.c.b16 %v1573, %v1557
    %v2422 = vpack.c.b16 %v1574, %v1558
    %v2423 = vpack.c.b16 %v1591, %v1575
    %v2424 = vpack.c.b16 %v1592, %v1576
    %v2425 = vpack.c.b16 %v1593, %v1577
    %v2426 = vpack.c.b16 %v1594, %v1578
    %v2427 = vpack.c.b16 %v1595, %v1579
    %v2428 = vpack.c.b16 %v1596, %v1580
    %v2429 = vpack.c.b16 %v1597, %v1581
    %v2430 = vpack.c.b16 %v1598, %v1582
    %v2431 = vpack.c.b16 %v1599, %v1583
    %v2432 = vpack.c.b16 %v1600, %v1584
    %v2433 = vpack.c.b16 %v1601, %v1585
    %v2434 = vpack.c.b16 %v1602, %v1586
    %v2435 = vpack.c.b16 %v1603, %v1587
    %v2436 = vpack.c.b16 %v1604, %v1588
    %v2437 = vpack.c.b16 %v1605, %v1589
    %v2438 = vpack.c.b16 %v1606, %v1590
    %v2439 = vpack.c.b16 %v1623, %v1607
    %v2440 = vpack.c.b16 %v1624, %v1608
    %v2441 = vpack.c.b16 %v1625, %v1609
    %v2442 = vpack.c.b16 %v1626, %v1610
    %v2443 = vpack.c.b16 %v1627, %v1611
    %v2444 = vpack.c.b16 %v1628, %v1612
    %v2445 = vpack.c.b16 %v1629, %v1613
    %v2446 = vpack.c.b16 %v1630, %v1614
    %v2447 = vpack.c.b16 %v1631, %v1615
    %v2448 = vpack.c.b16 %v1632, %v1616
    %v2449 = vpack.c.b16 %v1633, %v1617
    %v2450 = vpack.c.b16 %v1634, %v1618
    %v2451 = vpack.c.b16 %v1635, %v1619
    %v2452 = vpack.c.b16 %v1636, %v1620
    %v2453 = vpack.c.b16 %v1637, %v1621
    %v2454 = vpack.c.b16 %v1638, %v1622
    %v2455 = vpack.c.b16 %v1655, %v1639
    %v2456 = vpack.c.b16 %v1656, %v1640
    %v2457 = vpack.c.b16 %v1657, %v1641
    %v2458 = vpack.c.b16 %v1658, %v1642
    %v2459 = vpack.c.b16 %v1659, %v1643
    %v2460 = vpack.c.b16 %v1660, %v1644
    %v2461 = vpack.c.b16 %v1661, %v1645
    %v2462 = vpack.c.b16 %v1662, %v1646
    %v2463 = vpack.c.b16 %v1663, %v1647
    %v2464 = vpack.c.b16 %v1664, %v1648
    %v2465 = vpack.c.b16 %v1665, %v1649
    %v2466 = vpack.c.b16 %v1666, %v1650
    %v2467 = vpack.c.b16 %v1667, %v1651
    %v2468 = vpack.c.b16 %v1668, %v1652
    %v2469 = vpack.c.b16 %v1669, %v1653
    %v2470 = vpack.c.b16 %v1670, %v1654
    %v2471 = vpack.c.b16 %v1687, %v1671
    %v2472 = vpack.c.b16 %v1688, %v1672
    %v2473 = vpack.c.b16 %v1689, %v1673
    %v2474 = vpack.c.b16 %v1690, %v1674
    %v2475 = vpack.c.b16 %v1691, %v1675
    %v2476 = vpack.c.b16 %v1692, %v1676
    %v2477 = vpack.c.b16 %v1693, %v1677
    %v2478 = vpack.c.b16 %v1694, %v1678
    %v2479 = vpack.c.b16 %v1695, %v1679
    %v2480 = vpack.c.b16 %v1696, %v1680
    %v2481 = vpack.c.b16 %v1697, %v1681
    %v2482 = vpack.c.b16 %v1698, %v1682
    %v2483 = vpack.c.b16 %v1699, %v1683
    %v2484 = vpack.c.b16 %v1700, %v1684
    %v2485 = vpack.c.b16 %v1701, %v1685
    %v2486 = vpack.c.b16 %v1702, %v1686
    %v2487 = vpack.c.b16 %v1719, %v1703
    %v2488 = vpack.c.b16 %v1720, %v1704
    %v2489 = vpack.c.b16 %v1721, %v1705
    %v2490 = vpack.c.b16 %v1722, %v1706
    %v2491 = vpack.c.b16 %v1723, %v1707
    %v2492 = vpack.c.b16 %v1724, %v1708
    %v2493 = vpack.c.b16 %v1725, %v1709
    %v2494 = vpack.c.b16 %v1726, %v1710
    %v2495 = vpack.c.b16 %v1727, %v1711
    %v2496 = vpack.c.b16 %v1728, %v1712
    %v2497 = vpack.c.b16 %v1729, %v1713
    %v2498 = vpack.c.b16 %v1730, %v1714
    %v2499 = vpack.c.b16 %v1731, %v1715
    %v2500 = vpack.c.b16 %v1732, %v1716
    %v2501 = vpack.c.b16 %v1733, %v1717
    %v2502 = vpack.c.b16 %v1734, %v1718
    %v2503 = vpack.c.b16 %v1751, %v1735
    %v2504 = vpack.c.b16 %v1752, %v1736
    %v2505 = vpack.c.b16 %v1753, %v1737
    %v2506 = vpack.c.b16 %v1754, %v1738
    %v2507 = vpack.c.b16 %v1755, %v1739
    %v2508 = vpack.c.b16 %v1756, %v1740
    %v2509 = vpack.c.b16 %v1757, %v1741
    %v2510 = vpack.c.b16 %v1758, %v1742
    %v2511 = vpack.c.b16 %v1759, %v1743
    %v2512 = vpack.c.b16 %v1760, %v1744
    %v2513 = vpack.c.b16 %v1761, %v1745
    %v2514 = vpack.c.b16 %v1762, %v1746
    %v2515 = vpack.c.b16 %v1763, %v1747
    %v2516 = vpack.c.b16 %v1764, %v1748
    %v2517 = vpack.c.b16 %v1765, %v1749
    %v2518 = vpack.c.b16 %v1766, %v1750
    %v2519 = vpack.c.b16 %v1783, %v1767
    %v2520 = vpack.c.b16 %v1784, %v1768
    %v2521 = vpack.c.b16 %v1785, %v1769
    %v2522 = vpack.c.b16 %v1786, %v1770
    %v2523 = vpack.c.b16 %v1787, %v1771
    %v2524 = vpack.c.b16 %v1788, %v1772
    %v2525 = vpack.c.b16 %v1789, %v1773
    %v2526 = vpack.c.b16 %v1790, %v1774
    %v2527 = vpack.c.b16 %v1791, %v1775
    %v2528 = vpack.c.b16 %v1792, %v1776
    %v2529 = vpack.c.b16 %v1793, %v1777
    %v2530 = vpack.c.b16 %v1794, %v1778
    %v2531 = vpack.c.b16 %v1795, %v1779
    %v2532 = vpack.c.b16 %v1796, %v1780
    %v2533 = vpack.c.b16 %v1797, %v1781
    %v2534 = vpack.c.b16 %v1798, %v1782
    %v2535 = vpack.c.b16 %v1815, %v1799
    %v2536 = vpack.c.b16 %v1816, %v1800
    %v2537 = vpack.c.b16 %v1817, %v1801
    %v2538 = vpack.c.b16 %v1818, %v1802
    %v2539 = vpack.c.b16 %v1819, %v1803
    %v2540 = vpack.c.b16 %v1820, %v1804
    %v2541 = vpack.c.b16 %v1821, %v1805
    %v2542 = vpack.c.b16 %v1822, %v1806
    %v2543 = vpack.c.b16 %v1823, %v1807
    %v2544 = vpack.c.b16 %v1824, %v1808
    %v2545 = vpack.c.b16 %v1825, %v1809
    %v2546 = vpack.c.b16 %v1826, %v1810
    %v2547 = vpack.c.b16 %v1827, %v1811
    %v2548 = vpack.c.b16 %v1828, %v1812
    %v2549 = vpack.c.b16 %v1829, %v1813
    %v2550 = vpack.c.b16 %v1830, %v1814
    %v2551 = vpack.c.b16 %v1847, %v1831
    %v2552 = vpack.c.b16 %v1848, %v1832
    %v2553 = vpack.c.b16 %v1849, %v1833
    %v2554 = vpack.c.b16 %v1850, %v1834
    %v2555 = vpack.c.b16 %v1851, %v1835
    %v2556 = vpack.c.b16 %v1852, %v1836
    %v2557 = vpack.c.b16 %v1853, %v1837
    %v2558 = vpack.c.b16 %v1854, %v1838
    %v2559 = vpack.c.b16 %v1855, %v1839
    %v2560 = vpack.c.b16 %v1856, %v1840
    %v2561 = vpack.c.b16 %v1857, %v1841
    %v2562 = vpack.c.b16 %v1858, %v1842
    %v2563 = vpack.c.b16 %v1859, %v1843
    %v2564 = vpack.c.b16 %v1860, %v1844
    %v2565 = vpack.c.b16 %v1861, %v1845
    %v2566 = vpack.c.b16 %v1862, %v1846
    %v2567 = vpack.c.b16 %v1879, %v1863
    %v2568 = vpack.c.b16 %v1880, %v1864
    %v2569 = vpack.c.b16 %v1881, %v1865
    %v2570 = vpack.c.b16 %v1882, %v1866
    %v2571 = vpack.c.b16 %v1883, %v1867
    %v2572 = vpack.c.b16 %v1884, %v1868
    %v2573 = vpack.c.b16 %v1885, %v1869
    %v2574 = vpack.c.b16 %v1886, %v1870
    %v2575 = vpack.c.b16 %v1887, %v1871
    %v2576 = vpack.c.b16 %v1888, %v1872
    %v2577 = vpack.c.b16 %v1889, %v1873
    %v2578 = vpack.c.b16 %v1890, %v1874
    %v2579 = vpack.c.b16 %v1891, %v1875
    %v2580 = vpack.c.b16 %v1892, %v1876
    %v2581 = vpack.c.b16 %v1893, %v1877
    %v2582 = vpack.c.b16 %v1894, %v1878
    %v2583 = vpack.c.b16 %v1911, %v1895
    %v2584 = vpack.c.b16 %v1912, %v1896
    %v2585 = vpack.c.b16 %v1913, %v1897
    %v2586 = vpack.c.b16 %v1914, %v1898
    %v2587 = vpack.c.b16 %v1915, %v1899
    %v2588 = vpack.c.b16 %v1916, %v1900
    %v2589 = vpack.c.b16 %v1917, %v1901
    %v2590 = vpack.c.b16 %v1918, %v1902
    %v2591 = vpack.c.b16 %v1919, %v1903
    %v2592 = vpack.c.b16 %v1920, %v1904
    %v2593 = vpack.c.b16 %v1921, %v1905
    %v2594 = vpack.c.b16 %v1922, %v1906
    %v2595 = vpack.c.b16 %v1923, %v1907
    %v2596 = vpack.c.b16 %v1924, %v1908
    %v2597 = vpack.c.b16 %v1925, %v1909
    %v2598 = vpack.c.b16 %v1926, %v1910
    %v2599 = vpack.c.b16 %v1943, %v1927
    %v2600 = vpack.c.b16 %v1944, %v1928
    %v2601 = vpack.c.b16 %v1945, %v1929
    %v2602 = vpack.c.b16 %v1946, %v1930
    %v2603 = vpack.c.b16 %v1947, %v1931
    %v2604 = vpack.c.b16 %v1948, %v1932
    %v2605 = vpack.c.b16 %v1949, %v1933
    %v2606 = vpack.c.b16 %v1950, %v1934
    %v2607 = vpack.c.b16 %v1951, %v1935
    %v2608 = vpack.c.b16 %v1952, %v1936
    %v2609 = vpack.c.b16 %v1953, %v1937
    %v2610 = vpack.c.b16 %v1954, %v1938
    %v2611 = vpack.c.b16 %v1955, %v1939
    %v2612 = vpack.c.b16 %v1956, %v1940
    %v2613 = vpack.c.b16 %v1957, %v1941
    %v2614 = vpack.c.b16 %v1958, %v1942
    %v2615 = vpack.c.b16 %v1975, %v1959
    %v2616 = vpack.c.b16 %v1976, %v1960
    %v2617 = vpack.c.b16 %v1977, %v1961
    %v2618 = vpack.c.b16 %v1978, %v1962
    %v2619 = vpack.c.b16 %v1979, %v1963
    %v2620 = vpack.c.b16 %v1980, %v1964
    %v2621 = vpack.c.b16 %v1981, %v1965
    %v2622 = vpack.c.b16 %v1982, %v1966
    %v2623 = vpack.c.b16 %v1983, %v1967
    %v2624 = vpack.c.b16 %v1984, %v1968
    %v2625 = vpack.c.b16 %v1985, %v1969
    %v2626 = vpack.c.b16 %v1986, %v1970
    %v2627 = vpack.c.b16 %v1987, %v1971
    %v2628 = vpack.c.b16 %v1988, %v1972
    %v2629 = vpack.c.b16 %v1989, %v1973
    %v2630 = vpack.c.b16 %v1990, %v1974
    %v2631 = vpack.c.b16 %v2007, %v1991
    %v2632 = vpack.c.b16 %v2008, %v1992
    %v2633 = vpack.c.b16 %v2009, %v1993
    %v2634 = vpack.c.b16 %v2010, %v1994
    %v2635 = vpack.c.b16 %v2011, %v1995
    %v2636 = vpack.c.b16 %v2012, %v1996
    %v2637 = vpack.c.b16 %v2013, %v1997
    %v2638 = vpack.c.b16 %v2014, %v1998
    %v2639 = vpack.c.b16 %v2015, %v1999
    %v2640 = vpack.c.b16 %v2016, %v2000
    %v2641 = vpack.c.b16 %v2017, %v2001
    %v2642 = vpack.c.b16 %v2018, %v2002
    %v2643 = vpack.c.b16 %v2019, %v2003
    %v2644 = vpack.c.b16 %v2020, %v2004
    %v2645 = vpack.c.b16 %v2021, %v2005
    %v2646 = vpack.c.b16 %v2022, %v2006
    %v2647 = vpack.c.b16 %v2039, %v2023
    %v2648 = vpack.c.b16 %v2040, %v2024
    %v2649 = vpack.c.b16 %v2041, %v2025
    %v2650 = vpack.c.b16 %v2042, %v2026
    %v2651 = vpack.c.b16 %v2043, %v2027
    %v2652 = vpack.c.b16 %v2044, %v2028
    %v2653 = vpack.c.b16 %v2045, %v2029
    %v2654 = vpack.c.b16 %v2046, %v2030
    %v2655 = vpack.c.b16 %v2047, %v2031
    %v2656 = vpack.c.b16 %v2048, %v2032
    %v2657 = vpack.c.b16 %v2049, %v2033
    %v2658 = vpack.c.b16 %v2050, %v2034
    %v2659 = vpack.c.b16 %v2051, %v2035
    %v2660 = vpack.c.b16 %v2052, %v2036
    %v2661 = vpack.c.b16 %v2053, %v2037
    %v2662 = vpack.c.b16 %v2054, %v2038
    %v2663 = vpack.c.b16 %v2071, %v2055
    %v2664 = vpack.c.b16 %v2072, %v2056
    %v2665 = vpack.c.b16 %v2073, %v2057
    %v2666 = vpack.c.b16 %v2074, %v2058
    %v2667 = vpack.c.b16 %v2075, %v2059
    %v2668 = vpack.c.b16 %v2076, %v2060
    %v2669 = vpack.c.b16 %v2077, %v2061
    %v2670 = vpack.c.b16 %v2078, %v2062
    %v2671 = vpack.c.b16 %v2079, %v2063
    %v2672 = vpack.c.b16 %v2080, %v2064
    %v2673 = vpack.c.b16 %v2081, %v2065
    %v2674 = vpack.c.b16 %v2082, %v2066
    %v2675 = vpack.c.b16 %v2083, %v2067
    %v2676 = vpack.c.b16 %v2084, %v2068
    %v2677 = vpack.c.b16 %v2085, %v2069
    %v2678 = vpack.c.b16 %v2086, %v2070
    %v2679 = vpack.c.b16 %v2103, %v2087
    %v2680 = vpack.c.b16 %v2104, %v2088
    %v2681 = vpack.c.b16 %v2105, %v2089
    %v2682 = vpack.c.b16 %v2106, %v2090
    %v2683 = vpack.c.b16 %v2107, %v2091
    %v2684 = vpack.c.b16 %v2108, %v2092
    %v2685 = vpack.c.b16 %v2109, %v2093
    %v2686 = vpack.c.b16 %v2110, %v2094
    %v2687 = vpack.c.b16 %v2111, %v2095
    %v2688 = vpack.c.b16 %v2112, %v2096
    %v2689 = vpack.c.b16 %v2113, %v2097
    %v2690 = vpack.c.b16 %v2114, %v2098
    %v2691 = vpack.c.b16 %v2115, %v2099
    %v2692 = vpack.c.b16 %v2116, %v2100
    %v2693 = vpack.c.b16 %v2117, %v2101
    %v2694 = vpack.c.b16 %v2118, %v2102
    %v2695 = vpack.c.b16 %v2135, %v2119
    %v2696 = vpack.c.b16 %v2136, %v2120
    %v2697 = vpack.c.b16 %v2137, %v2121
    %v2698 = vpack.c.b16 %v2138, %v2122
    %v2699 = vpack.c.b16 %v2139, %v2123
    %v2700 = vpack.c.b16 %v2140, %v2124
    %v2701 = vpack.c.b16 %v2141, %v2125
    %v2702 = vpack.c.b16 %v2142, %v2126
    %v2703 = vpack.c.b16 %v2143, %v2127
    %v2704 = vpack.c.b16 %v2144, %v2128
    %v2705 = vpack.c.b16 %v2145, %v2129
    %v2706 = vpack.c.b16 %v2146, %v2130
    %v2707 = vpack.c.b16 %v2147, %v2131
    %v2708 = vpack.c.b16 %v2148, %v2132
    %v2709 = vpack.c.b16 %v2149, %v2133
    %v2710 = vpack.c.b16 %v2150, %v2134
    %v2711 = vpack.c.b16 %v2167, %v2151
    %v2712 = vpack.c.b16 %v2168, %v2152
    %v2713 = vpack.c.b16 %v2169, %v2153
    %v2714 = vpack.c.b16 %v2170, %v2154
    %v2715 = vpack.c.b16 %v2171, %v2155
    %v2716 = vpack.c.b16 %v2172, %v2156
    %v2717 = vpack.c.b16 %v2173, %v2157
    %v2718 = vpack.c.b16 %v2174, %v2158
    %v2719 = vpack.c.b16 %v2175, %v2159
    %v2720 = vpack.c.b16 %v2176, %v2160
    %v2721 = vpack.c.b16 %v2177, %v2161
    %v2722 = vpack.c.b16 %v2178, %v2162
    %v2723 = vpack.c.b16 %v2179, %v2163
    %v2724 = vpack.c.b16 %v2180, %v2164
    %v2725 = vpack.c.b16 %v2181, %v2165
    %v2726 = vpack.c.b16 %v2182, %v2166
    %v2727 = vpack.c.b16 %v2199, %v2183
    %v2728 = vpack.c.b16 %v2200, %v2184
    %v2729 = vpack.c.b16 %v2201, %v2185
    %v2730 = vpack.c.b16 %v2202, %v2186
    %v2731 = vpack.c.b16 %v2203, %v2187
    %v2732 = vpack.c.b16 %v2204, %v2188
    %v2733 = vpack.c.b16 %v2205, %v2189
    %v2734 = vpack.c.b16 %v2206, %v2190
    %v2735 = vpack.c.b16 %v2207, %v2191
    %v2736 = vpack.c.b16 %v2208, %v2192
    %v2737 = vpack.c.b16 %v2209, %v2193
    %v2738 = vpack.c.b16 %v2210, %v2194
    %v2739 = vpack.c.b16 %v2211, %v2195
    %v2740 = vpack.c.b16 %v2212, %v2196
    %v2741 = vpack.c.b16 %v2213, %v2197
    %v2742 = vpack.c.b16 %v2214, %v2198
    %v2743 = vpack.c.b16 %v2231, %v2215
    %v2744 = vpack.c.b16 %v2232, %v2216
    %v2745 = vpack.c.b16 %v2233, %v2217
    %v2746 = vpack.c.b16 %v2234, %v2218
    %v2747 = vpack.c.b16 %v2235, %v2219
    %v2748 = vpack.c.b16 %v2236, %v2220
    %v2749 = vpack.c.b16 %v2237, %v2221
    %v2750 = vpack.c.b16 %v2238, %v2222
    %v2751 = vpack.c.b16 %v2239, %v2223
    %v2752 = vpack.c.b16 %v2240, %v2224
    %v2753 = vpack.c.b16 %v2241, %v2225
    %v2754 = vpack.c.b16 %v2242, %v2226
    %v2755 = vpack.c.b16 %v2243, %v2227
    %v2756 = vpack.c.b16 %v2244, %v2228
    %v2757 = vpack.c.b16 %v2245, %v2229
    %v2758 = vpack.c.b16 %v2246, %v2230
    %3271 = vmatprep.subr.bf16.mxu0 %v2360
    %3272 = vmatpush1.bf16.msra.mxu0 %v2359
    %3273 = vmatprep.subr.bf16.mxu0 %v2344
    %3274 = vmatpush1.bf16.msra.mxu0 %v2343
    %3275 = vmatprep.subr.bf16.mxu0 %v2328
    %3276 = vmatpush1.bf16.msra.mxu0 %v2327
    %3277 = vmatprep.subr.bf16.mxu0 %v2312
    %3278 = vmatpush1.bf16.msra.mxu0 %v2311
    %3279 = vmatprep.subr.bf16.mxu0 %v2296
    %3280 = vmatpush1.bf16.msra.mxu0 %v2295
    %3281 = vmatprep.subr.bf16.mxu0 %v2280
    %3282 = vmatpush1.bf16.msra.mxu0 %v2279
    %3283 = vmatprep.subr.bf16.mxu0 %v2264
    %3284 = vmatpush1.bf16.msra.mxu0 %v2263
    %3285 = vmatprep.subr.bf16.mxu0 %v2248
    %3286 = vmatpush1.bf16.msra.mxu0 %v2247
    %3287 = vmatprep.subr.bf16.mxu0 %v2488
    %3288 = vmatpush2.bf16.msra.mxu0 %v2487
    %3289 = vmatprep.subr.bf16.mxu0 %v2472
    %3290 = vmatpush2.bf16.msra.mxu0 %v2471
    %3291 = vmatprep.subr.bf16.mxu0 %v2456
    %3292 = vmatpush2.bf16.msra.mxu0 %v2455
    %3293 = vmatprep.subr.bf16.mxu0 %v2440
    %3294 = vmatpush2.bf16.msra.mxu0 %v2439
    %3295 = vmatprep.subr.bf16.mxu0 %v2424
    %3296 = vmatpush2.bf16.msra.mxu0 %v2423
    %3297 = vmatprep.subr.bf16.mxu0 %v2408
    %3298 = vmatpush2.bf16.msra.mxu0 %v2407
    %3299 = vmatprep.subr.bf16.mxu0 %v2392
    %3300 = vmatpush2.bf16.msra.mxu0 %v2391
    %3301 = vmatprep.subr.bf16.mxu0 %v2376
    %3302 = vmatpush2.bf16.msra.mxu0 %v2375
    %3303 = vmatprep.mubr.bf16.mxu0 %v156
    %3304 = vmatmul.mubr.bf16.gmra.mxu0 %v155
    %v3305 = vpop.f32.mrf.mxu0
    %v3306 = vadd.f32 0.0, %v3305
    %v3307 = vpop.f32.mrf.mxu0
    %v3308 = vadd.f32 0.0, %v3307
    %v3309 = vpop.f32.mrf.mxu0
    %v3310 = vadd.f32 0.0, %v3309
    %v3311 = vpop.f32.mrf.mxu0
    %v3312 = vadd.f32 0.0, %v3311
    %3313 = vmatprep.mubr.bf16.mxu0 %v160
    %3314 = vmatmul.mubr.bf16.gmra.mxu0 %v159
    %v3315 = vpop.f32.mrf.mxu0
    %v3316 = vadd.f32 0.0, %v3315
    %v3317 = vpop.f32.mrf.mxu0
    %v3318 = vadd.f32 0.0, %v3317
    %v3319 = vpop.f32.mrf.mxu0
    %v3320 = vadd.f32 0.0, %v3319
    %v3321 = vpop.f32.mrf.mxu0
    %v3322 = vadd.f32 0.0, %v3321
    %3323 = vmatprep.mubr.bf16.mxu0 %v164
    %3324 = vmatmul.mubr.bf16.gmra.mxu0 %v163
    %v3325 = vpop.f32.mrf.mxu0
    %v3326 = vadd.f32 0.0, %v3325
    %v3327 = vpop.f32.mrf.mxu0
    %v3328 = vadd.f32 0.0, %v3327
    %v3329 = vpop.f32.mrf.mxu0
    %v3330 = vadd.f32 0.0, %v3329
    %v3331 = vpop.f32.mrf.mxu0
    %v3332 = vadd.f32 0.0, %v3331
    %3333 = vmatprep.mubr.bf16.mxu0 %v168
    %3334 = vmatmul.mubr.bf16.gmra.mxu0 %v167
    %v3335 = vpop.f32.mrf.mxu0
    %v3336 = vadd.f32 0.0, %v3335
    %v3337 = vpop.f32.mrf.mxu0
    %v3338 = vadd.f32 0.0, %v3337
    %v3339 = vpop.f32.mrf.mxu0
    %v3340 = vadd.f32 0.0, %v3339
    %v3341 = vpop.f32.mrf.mxu0
    %v3342 = vadd.f32 0.0, %v3341
    %3343 = vmatprep.mubr.bf16.mxu0 %v172
    %3344 = vmatmul.mubr.bf16.gmra.mxu0 %v171
    %v3345 = vpop.f32.mrf.mxu0
    %v3346 = vadd.f32 0.0, %v3345
    %v3347 = vpop.f32.mrf.mxu0
    %v3348 = vadd.f32 0.0, %v3347
    %v3349 = vpop.f32.mrf.mxu0
    %v3350 = vadd.f32 0.0, %v3349
    %v3351 = vpop.f32.mrf.mxu0
    %v3352 = vadd.f32 0.0, %v3351
    %3353 = vmatprep.mubr.bf16.mxu0 %v176
    %3354 = vmatmul.mubr.bf16.gmra.mxu0 %v175
    %v3355 = vpop.f32.mrf.mxu0
    %v3356 = vadd.f32 0.0, %v3355
    %v3357 = vpop.f32.mrf.mxu0
    %v3358 = vadd.f32 0.0, %v3357
    %v3359 = vpop.f32.mrf.mxu0
    %v3360 = vadd.f32 0.0, %v3359
    %v3361 = vpop.f32.mrf.mxu0
    %v3362 = vadd.f32 0.0, %v3361
    %3363 = vmatprep.mubr.bf16.mxu0 %v180
    %3364 = vmatmul.mubr.bf16.gmra.mxu0 %v179
    %v3365 = vpop.f32.mrf.mxu0
    %v3366 = vadd.f32 0.0, %v3365
    %v3367 = vpop.f32.mrf.mxu0
    %v3368 = vadd.f32 0.0, %v3367
    %v3369 = vpop.f32.mrf.mxu0
    %v3370 = vadd.f32 0.0, %v3369
    %v3371 = vpop.f32.mrf.mxu0
    %v3372 = vadd.f32 0.0, %v3371
    %3373 = vmatprep.mubr.bf16.mxu0 %v184
    %3374 = vmatmul.mubr.bf16.gmra.mxu0 %v183
    %v3375 = vpop.f32.mrf.mxu0
    %v3376 = vadd.f32 0.0, %v3375
    %v3377 = vpop.f32.mrf.mxu0
    %v3378 = vadd.f32 0.0, %v3377
    %v3379 = vpop.f32.mrf.mxu0
    %v3380 = vadd.f32 0.0, %v3379
    %v3381 = vpop.f32.mrf.mxu0
    %v3382 = vadd.f32 0.0, %v3381
    %3383 = vmatprep.mubr.bf16.mxu0 %v188
    %3384 = vmatmul.mubr.bf16.gmra.mxu0 %v187
    %v3385 = vpop.f32.mrf.mxu0
    %v3386 = vadd.f32 0.0, %v3385
    %v3387 = vpop.f32.mrf.mxu0
    %v3388 = vadd.f32 0.0, %v3387
    %v3389 = vpop.f32.mrf.mxu0
    %v3390 = vadd.f32 0.0, %v3389
    %v3391 = vpop.f32.mrf.mxu0
    %v3392 = vadd.f32 0.0, %v3391
    %3393 = vmatprep.mubr.bf16.mxu0 %v192
    %3394 = vmatmul.mubr.bf16.gmra.mxu0 %v191
    %v3395 = vpop.f32.mrf.mxu0
    %v3396 = vadd.f32 0.0, %v3395
    %v3397 = vpop.f32.mrf.mxu0
    %v3398 = vadd.f32 0.0, %v3397
    %v3399 = vpop.f32.mrf.mxu0
    %v3400 = vadd.f32 0.0, %v3399
    %v3401 = vpop.f32.mrf.mxu0
    %v3402 = vadd.f32 0.0, %v3401
    %3403 = vmatprep.mubr.bf16.mxu0 %v196
    %3404 = vmatmul.mubr.bf16.gmra.mxu0 %v195
    %v3405 = vpop.f32.mrf.mxu0
    %v3406 = vadd.f32 0.0, %v3405
    %v3407 = vpop.f32.mrf.mxu0
    %v3408 = vadd.f32 0.0, %v3407
    %v3409 = vpop.f32.mrf.mxu0
    %v3410 = vpop.f32.mrf.mxu0
    %3411 = vdwg.mxu0
    %3412 = vmatprep.subr.bf16.mxu0 %v2616
    %3413 = vmatpush1.bf16.msra.mxu0 %v2615
    %3414 = vmatprep.subr.bf16.mxu0 %v2600
    %3415 = vmatpush1.bf16.msra.mxu0 %v2599
    %3416 = vmatprep.subr.bf16.mxu0 %v2584
    %3417 = vmatpush1.bf16.msra.mxu0 %v2583
    %3418 = vmatprep.subr.bf16.mxu0 %v2568
    %3419 = vmatpush1.bf16.msra.mxu0 %v2567
    %3420 = vmatprep.subr.bf16.mxu0 %v2552
    %3421 = vmatpush1.bf16.msra.mxu0 %v2551
    %3422 = vmatprep.subr.bf16.mxu0 %v2536
    %3423 = vmatpush1.bf16.msra.mxu0 %v2535
    %3424 = vmatprep.subr.bf16.mxu0 %v2520
    %3425 = vmatpush1.bf16.msra.mxu0 %v2519
    %3426 = vmatprep.subr.bf16.mxu0 %v2504
    %3427 = vmatpush1.bf16.msra.mxu0 %v2503
    %3428 = vmatprep.subr.bf16.mxu0 %v2744
    %3429 = vmatpush2.bf16.msra.mxu0 %v2743
    %3430 = vmatprep.subr.bf16.mxu0 %v2728
    %3431 = vmatpush2.bf16.msra.mxu0 %v2727
    %3432 = vmatprep.subr.bf16.mxu0 %v2712
    %3433 = vmatpush2.bf16.msra.mxu0 %v2711
    %3434 = vmatprep.subr.bf16.mxu0 %v2696
    %3435 = vmatpush2.bf16.msra.mxu0 %v2695
    %3436 = vmatprep.subr.bf16.mxu0 %v2680
    %3437 = vmatpush2.bf16.msra.mxu0 %v2679
    %3438 = vmatprep.subr.bf16.mxu0 %v2664
    %3439 = vmatpush2.bf16.msra.mxu0 %v2663
    %3440 = vmatprep.subr.bf16.mxu0 %v2648
    %3441 = vmatpush2.bf16.msra.mxu0 %v2647
    %3442 = vmatprep.subr.bf16.mxu0 %v2632
    %3443 = vmatpush2.bf16.msra.mxu0 %v2631
    %3444 = vmatprep.mubr.bf16.mxu0 %v158
    %3445 = vmatmul.mubr.bf16.gmra.mxu0 %v157
    %v3446 = vpop.f32.mrf.mxu0
    %v3447 = vadd.f32 %v3306, %v3446
    %v3448 = vpop.f32.mrf.mxu0
    %v3449 = vadd.f32 %v3308, %v3448
    %v3450 = vpop.f32.mrf.mxu0
    %v3451 = vadd.f32 %v3310, %v3450
    %v3452 = vpop.f32.mrf.mxu0
    %v3453 = vadd.f32 %v3312, %v3452
    %3454 = vmatprep.mubr.bf16.mxu0 %v162
    %3455 = vmatmul.mubr.bf16.gmra.mxu0 %v161
    %v3456 = vpop.f32.mrf.mxu0
    %v3457 = vadd.f32 %v3316, %v3456
    %v3458 = vpop.f32.mrf.mxu0
    %v3459 = vadd.f32 %v3318, %v3458
    %v3460 = vpop.f32.mrf.mxu0
    %v3461 = vadd.f32 %v3320, %v3460
    %v3462 = vpop.f32.mrf.mxu0
    %v3463 = vadd.f32 %v3322, %v3462
    %3464 = vmatprep.mubr.bf16.mxu0 %v166
    %3465 = vmatmul.mubr.bf16.gmra.mxu0 %v165
    %v3466 = vpop.f32.mrf.mxu0
    %v3467 = vadd.f32 %v3326, %v3466
    %v3468 = vpop.f32.mrf.mxu0
    %v3469 = vadd.f32 %v3328, %v3468
    %v3470 = vpop.f32.mrf.mxu0
    %v3471 = vadd.f32 %v3330, %v3470
    %v3472 = vpop.f32.mrf.mxu0
    %v3473 = vadd.f32 %v3332, %v3472
    %3474 = vmatprep.mubr.bf16.mxu0 %v170
    %3475 = vmatmul.mubr.bf16.gmra.mxu0 %v169
    %v3476 = vpop.f32.mrf.mxu0
    %v3477 = vadd.f32 %v3336, %v3476
    %v3478 = vpop.f32.mrf.mxu0
    %v3479 = vadd.f32 %v3338, %v3478
    %v3480 = vpop.f32.mrf.mxu0
    %v3481 = vadd.f32 %v3340, %v3480
    %v3482 = vpop.f32.mrf.mxu0
    %v3483 = vadd.f32 %v3342, %v3482
    %3484 = vmatprep.mubr.bf16.mxu0 %v174
    %3485 = vmatmul.mubr.bf16.gmra.mxu0 %v173
    %v3486 = vpop.f32.mrf.mxu0
    %v3487 = vadd.f32 %v3346, %v3486
    %v3488 = vpop.f32.mrf.mxu0
    %v3489 = vadd.f32 %v3348, %v3488
    %v3490 = vpop.f32.mrf.mxu0
    %v3491 = vadd.f32 %v3350, %v3490
    %v3492 = vpop.f32.mrf.mxu0
    %v3493 = vadd.f32 %v3352, %v3492
    %3494 = vmatprep.mubr.bf16.mxu0 %v178
    %3495 = vmatmul.mubr.bf16.gmra.mxu0 %v177
    %v3496 = vpop.f32.mrf.mxu0
    %v3497 = vadd.f32 %v3356, %v3496
    %v3498 = vpop.f32.mrf.mxu0
    %v3499 = vadd.f32 %v3358, %v3498
    %v3500 = vpop.f32.mrf.mxu0
    %v3501 = vadd.f32 %v3360, %v3500
    %v3502 = vpop.f32.mrf.mxu0
    %v3503 = vadd.f32 %v3362, %v3502
    %3504 = vmatprep.mubr.bf16.mxu0 %v182
    %3505 = vmatmul.mubr.bf16.gmra.mxu0 %v181
    %v3506 = vpop.f32.mrf.mxu0
    %v3507 = vadd.f32 %v3366, %v3506
    %v3508 = vpop.f32.mrf.mxu0
    %v3509 = vadd.f32 %v3368, %v3508
    %v3510 = vpop.f32.mrf.mxu0
    %v3511 = vadd.f32 %v3370, %v3510
    %v3512 = vpop.f32.mrf.mxu0
    %v3513 = vadd.f32 %v3372, %v3512
    %3514 = vmatprep.mubr.bf16.mxu0 %v186
    %3515 = vmatmul.mubr.bf16.gmra.mxu0 %v185
    %v3516 = vpop.f32.mrf.mxu0
    %v3517 = vadd.f32 %v3376, %v3516
    %v3518 = vpop.f32.mrf.mxu0
    %v3519 = vadd.f32 %v3378, %v3518
    %v3520 = vpop.f32.mrf.mxu0
    %v3521 = vadd.f32 %v3380, %v3520
    %v3522 = vpop.f32.mrf.mxu0
    %v3523 = vadd.f32 %v3382, %v3522
    %3524 = vmatprep.mubr.bf16.mxu0 %v190
    %3525 = vmatmul.mubr.bf16.gmra.mxu0 %v189
    %v3526 = vpop.f32.mrf.mxu0
    %v3527 = vadd.f32 %v3386, %v3526
    %v3528 = vpop.f32.mrf.mxu0
    %v3529 = vadd.f32 %v3388, %v3528
    %v3530 = vpop.f32.mrf.mxu0
    %v3531 = vadd.f32 %v3390, %v3530
    %v3532 = vpop.f32.mrf.mxu0
    %v3533 = vadd.f32 %v3392, %v3532
    %3534 = vmatprep.mubr.bf16.mxu0 %v194
    %3535 = vmatmul.mubr.bf16.gmra.mxu0 %v193
    %v3536 = vpop.f32.mrf.mxu0
    %v3537 = vadd.f32 %v3396, %v3536
    %v3538 = vpop.f32.mrf.mxu0
    %v3539 = vadd.f32 %v3398, %v3538
    %v3540 = vpop.f32.mrf.mxu0
    %v3541 = vadd.f32 %v3400, %v3540
    %v3542 = vpop.f32.mrf.mxu0
    %v3543 = vadd.f32 %v3402, %v3542
    %3544 = vmatprep.mubr.bf16.mxu0 %v198
    %3545 = vmatmul.mubr.bf16.gmra.mxu0 %v197
    %v3546 = vpop.f32.mrf.mxu0
    %v3547 = vadd.f32 %v3406, %v3546
    %v3548 = vpop.f32.mrf.mxu0
    %v3549 = vadd.f32 %v3408, %v3548
    %v3550 = vpop.f32.mrf.mxu0
    %v3551 = vpop.f32.mrf.mxu0
    %3552 = vdwg.mxu0
    %3553 = vmatprep.subr.bf16.mxu0 %v2362
    %3554 = vmatpush1.bf16.msra.mxu0 %v2361
    %3555 = vmatprep.subr.bf16.mxu0 %v2346
    %3556 = vmatpush1.bf16.msra.mxu0 %v2345
    %3557 = vmatprep.subr.bf16.mxu0 %v2330
    %3558 = vmatpush1.bf16.msra.mxu0 %v2329
    %3559 = vmatprep.subr.bf16.mxu0 %v2314
    %3560 = vmatpush1.bf16.msra.mxu0 %v2313
    %3561 = vmatprep.subr.bf16.mxu0 %v2298
    %3562 = vmatpush1.bf16.msra.mxu0 %v2297
    %3563 = vmatprep.subr.bf16.mxu0 %v2282
    %3564 = vmatpush1.bf16.msra.mxu0 %v2281
    %3565 = vmatprep.subr.bf16.mxu0 %v2266
    %3566 = vmatpush1.bf16.msra.mxu0 %v2265
    %3567 = vmatprep.subr.bf16.mxu0 %v2250
    %3568 = vmatpush1.bf16.msra.mxu0 %v2249
    %3569 = vmatprep.subr.bf16.mxu0 %v2490
    %3570 = vmatpush2.bf16.msra.mxu0 %v2489
    %3571 = vmatprep.subr.bf16.mxu0 %v2474
    %3572 = vmatpush2.bf16.msra.mxu0 %v2473
    %3573 = vmatprep.subr.bf16.mxu0 %v2458
    %3574 = vmatpush2.bf16.msra.mxu0 %v2457
    %3575 = vmatprep.subr.bf16.mxu0 %v2442
    %3576 = vmatpush2.bf16.msra.mxu0 %v2441
    %3577 = vmatprep.subr.bf16.mxu0 %v2426
    %3578 = vmatpush2.bf16.msra.mxu0 %v2425
    %3579 = vmatprep.subr.bf16.mxu0 %v2410
    %3580 = vmatpush2.bf16.msra.mxu0 %v2409
    %3581 = vmatprep.subr.bf16.mxu0 %v2394
    %3582 = vmatpush2.bf16.msra.mxu0 %v2393
    %3583 = vmatprep.subr.bf16.mxu0 %v2378
    %3584 = vmatpush2.bf16.msra.mxu0 %v2377
    %3585 = vmatprep.mubr.bf16.mxu0 %v156
    %3586 = vmatmul.mubr.bf16.gmra.mxu0 %v155
    %v3587 = vpop.f32.mrf.mxu0
    %v3588 = vadd.f32 0.0, %v3587
    %v3589 = vpop.f32.mrf.mxu0
    %v3590 = vadd.f32 0.0, %v3589
    %v3591 = vpop.f32.mrf.mxu0
    %v3592 = vadd.f32 0.0, %v3591
    %v3593 = vpop.f32.mrf.mxu0
    %v3594 = vadd.f32 0.0, %v3593
    %3595 = vmatprep.mubr.bf16.mxu0 %v160
    %3596 = vmatmul.mubr.bf16.gmra.mxu0 %v159
    %v3597 = vpop.f32.mrf.mxu0
    %v3598 = vadd.f32 0.0, %v3597
    %v3599 = vpop.f32.mrf.mxu0
    %v3600 = vadd.f32 0.0, %v3599
    %v3601 = vpop.f32.mrf.mxu0
    %v3602 = vadd.f32 0.0, %v3601
    %v3603 = vpop.f32.mrf.mxu0
    %v3604 = vadd.f32 0.0, %v3603
    %3605 = vmatprep.mubr.bf16.mxu0 %v164
    %3606 = vmatmul.mubr.bf16.gmra.mxu0 %v163
    %v3607 = vpop.f32.mrf.mxu0
    %v3608 = vadd.f32 0.0, %v3607
    %v3609 = vpop.f32.mrf.mxu0
    %v3610 = vadd.f32 0.0, %v3609
    %v3611 = vpop.f32.mrf.mxu0
    %v3612 = vadd.f32 0.0, %v3611
    %v3613 = vpop.f32.mrf.mxu0
    %v3614 = vadd.f32 0.0, %v3613
    %3615 = vmatprep.mubr.bf16.mxu0 %v168
    %3616 = vmatmul.mubr.bf16.gmra.mxu0 %v167
    %v3617 = vpop.f32.mrf.mxu0
    %v3618 = vadd.f32 0.0, %v3617
    %v3619 = vpop.f32.mrf.mxu0
    %v3620 = vadd.f32 0.0, %v3619
    %v3621 = vpop.f32.mrf.mxu0
    %v3622 = vadd.f32 0.0, %v3621
    %v3623 = vpop.f32.mrf.mxu0
    %v3624 = vadd.f32 0.0, %v3623
    %3625 = vmatprep.mubr.bf16.mxu0 %v172
    %3626 = vmatmul.mubr.bf16.gmra.mxu0 %v171
    %v3627 = vpop.f32.mrf.mxu0
    %v3628 = vadd.f32 0.0, %v3627
    %v3629 = vpop.f32.mrf.mxu0
    %v3630 = vadd.f32 0.0, %v3629
    %v3631 = vpop.f32.mrf.mxu0
    %v3632 = vadd.f32 0.0, %v3631
    %v3633 = vpop.f32.mrf.mxu0
    %v3634 = vadd.f32 0.0, %v3633
    %3635 = vmatprep.mubr.bf16.mxu0 %v176
    %3636 = vmatmul.mubr.bf16.gmra.mxu0 %v175
    %v3637 = vpop.f32.mrf.mxu0
    %v3638 = vadd.f32 0.0, %v3637
    %v3639 = vpop.f32.mrf.mxu0
    %v3640 = vadd.f32 0.0, %v3639
    %v3641 = vpop.f32.mrf.mxu0
    %v3642 = vadd.f32 0.0, %v3641
    %v3643 = vpop.f32.mrf.mxu0
    %v3644 = vadd.f32 0.0, %v3643
    %3645 = vmatprep.mubr.bf16.mxu0 %v180
    %3646 = vmatmul.mubr.bf16.gmra.mxu0 %v179
    %v3647 = vpop.f32.mrf.mxu0
    %v3648 = vadd.f32 0.0, %v3647
    %v3649 = vpop.f32.mrf.mxu0
    %v3650 = vadd.f32 0.0, %v3649
    %v3651 = vpop.f32.mrf.mxu0
    %v3652 = vadd.f32 0.0, %v3651
    %v3653 = vpop.f32.mrf.mxu0
    %v3654 = vadd.f32 0.0, %v3653
    %3655 = vmatprep.mubr.bf16.mxu0 %v184
    %3656 = vmatmul.mubr.bf16.gmra.mxu0 %v183
    %v3657 = vpop.f32.mrf.mxu0
    %v3658 = vadd.f32 0.0, %v3657
    %v3659 = vpop.f32.mrf.mxu0
    %v3660 = vadd.f32 0.0, %v3659
    %v3661 = vpop.f32.mrf.mxu0
    %v3662 = vadd.f32 0.0, %v3661
    %v3663 = vpop.f32.mrf.mxu0
    %v3664 = vadd.f32 0.0, %v3663
    %3665 = vmatprep.mubr.bf16.mxu0 %v188
    %3666 = vmatmul.mubr.bf16.gmra.mxu0 %v187
    %v3667 = vpop.f32.mrf.mxu0
    %v3668 = vadd.f32 0.0, %v3667
    %v3669 = vpop.f32.mrf.mxu0
    %v3670 = vadd.f32 0.0, %v3669
    %v3671 = vpop.f32.mrf.mxu0
    %v3672 = vadd.f32 0.0, %v3671
    %v3673 = vpop.f32.mrf.mxu0
    %v3674 = vadd.f32 0.0, %v3673
    %3675 = vmatprep.mubr.bf16.mxu0 %v192
    %3676 = vmatmul.mubr.bf16.gmra.mxu0 %v191
    %v3677 = vpop.f32.mrf.mxu0
    %v3678 = vadd.f32 0.0, %v3677
    %v3679 = vpop.f32.mrf.mxu0
    %v3680 = vadd.f32 0.0, %v3679
    %v3681 = vpop.f32.mrf.mxu0
    %v3682 = vadd.f32 0.0, %v3681
    %v3683 = vpop.f32.mrf.mxu0
    %v3684 = vadd.f32 0.0, %v3683
    %3685 = vmatprep.mubr.bf16.mxu0 %v196
    %3686 = vmatmul.mubr.bf16.gmra.mxu0 %v195
    %v3687 = vpop.f32.mrf.mxu0
    %v3688 = vadd.f32 0.0, %v3687
    %v3689 = vpop.f32.mrf.mxu0
    %v3690 = vadd.f32 0.0, %v3689
    %v3691 = vpop.f32.mrf.mxu0
    %v3692 = vpop.f32.mrf.mxu0
    %3693 = vdwg.mxu0
    %3694 = vmatprep.subr.bf16.mxu0 %v2618
    %3695 = vmatpush1.bf16.msra.mxu0 %v2617
    %3696 = vmatprep.subr.bf16.mxu0 %v2602
    %3697 = vmatpush1.bf16.msra.mxu0 %v2601
    %3698 = vmatprep.subr.bf16.mxu0 %v2586
    %3699 = vmatpush1.bf16.msra.mxu0 %v2585
    %3700 = vmatprep.subr.bf16.mxu0 %v2570
    %3701 = vmatpush1.bf16.msra.mxu0 %v2569
    %3702 = vmatprep.subr.bf16.mxu0 %v2554
    %3703 = vmatpush1.bf16.msra.mxu0 %v2553
    %3704 = vmatprep.subr.bf16.mxu0 %v2538
    %3705 = vmatpush1.bf16.msra.mxu0 %v2537
    %3706 = vmatprep.subr.bf16.mxu0 %v2522
    %3707 = vmatpush1.bf16.msra.mxu0 %v2521
    %3708 = vmatprep.subr.bf16.mxu0 %v2506
    %3709 = vmatpush1.bf16.msra.mxu0 %v2505
    %3710 = vmatprep.subr.bf16.mxu0 %v2746
    %3711 = vmatpush2.bf16.msra.mxu0 %v2745
    %3712 = vmatprep.subr.bf16.mxu0 %v2730
    %3713 = vmatpush2.bf16.msra.mxu0 %v2729
    %3714 = vmatprep.subr.bf16.mxu0 %v2714
    %3715 = vmatpush2.bf16.msra.mxu0 %v2713
    %3716 = vmatprep.subr.bf16.mxu0 %v2698
    %3717 = vmatpush2.bf16.msra.mxu0 %v2697
    %3718 = vmatprep.subr.bf16.mxu0 %v2682
    %3719 = vmatpush2.bf16.msra.mxu0 %v2681
    %3720 = vmatprep.subr.bf16.mxu0 %v2666
    %3721 = vmatpush2.bf16.msra.mxu0 %v2665
    %3722 = vmatprep.subr.bf16.mxu0 %v2650
    %3723 = vmatpush2.bf16.msra.mxu0 %v2649
    %3724 = vmatprep.subr.bf16.mxu0 %v2634
    %3725 = vmatpush2.bf16.msra.mxu0 %v2633
    %3726 = vmatprep.mubr.bf16.mxu0 %v158
    %3727 = vmatmul.mubr.bf16.gmra.mxu0 %v157
    %v3728 = vpop.f32.mrf.mxu0
    %v3729 = vadd.f32 %v3588, %v3728
    %v3730 = vpop.f32.mrf.mxu0
    %v3731 = vadd.f32 %v3590, %v3730
    %v3732 = vpop.f32.mrf.mxu0
    %v3733 = vadd.f32 %v3592, %v3732
    %v3734 = vpop.f32.mrf.mxu0
    %v3735 = vadd.f32 %v3594, %v3734
    %3736 = vmatprep.mubr.bf16.mxu0 %v162
    %3737 = vmatmul.mubr.bf16.gmra.mxu0 %v161
    %v3738 = vpop.f32.mrf.mxu0
    %v3739 = vadd.f32 %v3598, %v3738
    %v3740 = vpop.f32.mrf.mxu0
    %v3741 = vadd.f32 %v3600, %v3740
    %v3742 = vpop.f32.mrf.mxu0
    %v3743 = vadd.f32 %v3602, %v3742
    %v3744 = vpop.f32.mrf.mxu0
    %v3745 = vadd.f32 %v3604, %v3744
    %3746 = vmatprep.mubr.bf16.mxu0 %v166
    %3747 = vmatmul.mubr.bf16.gmra.mxu0 %v165
    %v3748 = vpop.f32.mrf.mxu0
    %v3749 = vadd.f32 %v3608, %v3748
    %v3750 = vpop.f32.mrf.mxu0
    %v3751 = vadd.f32 %v3610, %v3750
    %v3752 = vpop.f32.mrf.mxu0
    %v3753 = vadd.f32 %v3612, %v3752
    %v3754 = vpop.f32.mrf.mxu0
    %v3755 = vadd.f32 %v3614, %v3754
    %3756 = vmatprep.mubr.bf16.mxu0 %v170
    %3757 = vmatmul.mubr.bf16.gmra.mxu0 %v169
    %v3758 = vpop.f32.mrf.mxu0
    %v3759 = vadd.f32 %v3618, %v3758
    %v3760 = vpop.f32.mrf.mxu0
    %v3761 = vadd.f32 %v3620, %v3760
    %v3762 = vpop.f32.mrf.mxu0
    %v3763 = vadd.f32 %v3622, %v3762
    %v3764 = vpop.f32.mrf.mxu0
    %v3765 = vadd.f32 %v3624, %v3764
    %3766 = vmatprep.mubr.bf16.mxu0 %v174
    %3767 = vmatmul.mubr.bf16.gmra.mxu0 %v173
    %v3768 = vpop.f32.mrf.mxu0
    %v3769 = vadd.f32 %v3628, %v3768
    %v3770 = vpop.f32.mrf.mxu0
    %v3771 = vadd.f32 %v3630, %v3770
    %v3772 = vpop.f32.mrf.mxu0
    %v3773 = vadd.f32 %v3632, %v3772
    %v3774 = vpop.f32.mrf.mxu0
    %v3775 = vadd.f32 %v3634, %v3774
    %3776 = vmatprep.mubr.bf16.mxu0 %v178
    %3777 = vmatmul.mubr.bf16.gmra.mxu0 %v177
    %v3778 = vpop.f32.mrf.mxu0
    %v3779 = vadd.f32 %v3638, %v3778
    %v3780 = vpop.f32.mrf.mxu0
    %v3781 = vadd.f32 %v3640, %v3780
    %v3782 = vpop.f32.mrf.mxu0
    %v3783 = vadd.f32 %v3642, %v3782
    %v3784 = vpop.f32.mrf.mxu0
    %v3785 = vadd.f32 %v3644, %v3784
    %3786 = vmatprep.mubr.bf16.mxu0 %v182
    %3787 = vmatmul.mubr.bf16.gmra.mxu0 %v181
    %v3788 = vpop.f32.mrf.mxu0
    %v3789 = vadd.f32 %v3648, %v3788
    %v3790 = vpop.f32.mrf.mxu0
    %v3791 = vadd.f32 %v3650, %v3790
    %v3792 = vpop.f32.mrf.mxu0
    %v3793 = vadd.f32 %v3652, %v3792
    %v3794 = vpop.f32.mrf.mxu0
    %v3795 = vadd.f32 %v3654, %v3794
    %3796 = vmatprep.mubr.bf16.mxu0 %v186
    %3797 = vmatmul.mubr.bf16.gmra.mxu0 %v185
    %v3798 = vpop.f32.mrf.mxu0
    %v3799 = vadd.f32 %v3658, %v3798
    %v3800 = vpop.f32.mrf.mxu0
    %v3801 = vadd.f32 %v3660, %v3800
    %v3802 = vpop.f32.mrf.mxu0
    %v3803 = vadd.f32 %v3662, %v3802
    %v3804 = vpop.f32.mrf.mxu0
    %v3805 = vadd.f32 %v3664, %v3804
    %3806 = vmatprep.mubr.bf16.mxu0 %v190
    %3807 = vmatmul.mubr.bf16.gmra.mxu0 %v189
    %v3808 = vpop.f32.mrf.mxu0
    %v3809 = vadd.f32 %v3668, %v3808
    %v3810 = vpop.f32.mrf.mxu0
    %v3811 = vadd.f32 %v3670, %v3810
    %v3812 = vpop.f32.mrf.mxu0
    %v3813 = vadd.f32 %v3672, %v3812
    %v3814 = vpop.f32.mrf.mxu0
    %v3815 = vadd.f32 %v3674, %v3814
    %3816 = vmatprep.mubr.bf16.mxu0 %v194
    %3817 = vmatmul.mubr.bf16.gmra.mxu0 %v193
    %v3818 = vpop.f32.mrf.mxu0
    %v3819 = vadd.f32 %v3678, %v3818
    %v3820 = vpop.f32.mrf.mxu0
    %v3821 = vadd.f32 %v3680, %v3820
    %v3822 = vpop.f32.mrf.mxu0
    %v3823 = vadd.f32 %v3682, %v3822
    %v3824 = vpop.f32.mrf.mxu0
    %v3825 = vadd.f32 %v3684, %v3824
    %3826 = vmatprep.mubr.bf16.mxu0 %v198
    %3827 = vmatmul.mubr.bf16.gmra.mxu0 %v197
    %v3828 = vpop.f32.mrf.mxu0
    %v3829 = vadd.f32 %v3688, %v3828
    %v3830 = vpop.f32.mrf.mxu0
    %v3831 = vadd.f32 %v3690, %v3830
    %v3832 = vpop.f32.mrf.mxu0
    %v3833 = vpop.f32.mrf.mxu0
    %3834 = vdwg.mxu0
    %3835 = vmatprep.subr.bf16.mxu0 %v2364
    %3836 = vmatpush1.bf16.msra.mxu0 %v2363
    %3837 = vmatprep.subr.bf16.mxu0 %v2348
    %3838 = vmatpush1.bf16.msra.mxu0 %v2347
    %3839 = vmatprep.subr.bf16.mxu0 %v2332
    %3840 = vmatpush1.bf16.msra.mxu0 %v2331
    %3841 = vmatprep.subr.bf16.mxu0 %v2316
    %3842 = vmatpush1.bf16.msra.mxu0 %v2315
    %3843 = vmatprep.subr.bf16.mxu0 %v2300
    %3844 = vmatpush1.bf16.msra.mxu0 %v2299
    %3845 = vmatprep.subr.bf16.mxu0 %v2284
    %3846 = vmatpush1.bf16.msra.mxu0 %v2283
    %3847 = vmatprep.subr.bf16.mxu0 %v2268
    %3848 = vmatpush1.bf16.msra.mxu0 %v2267
    %3849 = vmatprep.subr.bf16.mxu0 %v2252
    %3850 = vmatpush1.bf16.msra.mxu0 %v2251
    %3851 = vmatprep.subr.bf16.mxu0 %v2492
    %3852 = vmatpush2.bf16.msra.mxu0 %v2491
    %3853 = vmatprep.subr.bf16.mxu0 %v2476
    %3854 = vmatpush2.bf16.msra.mxu0 %v2475
    %3855 = vmatprep.subr.bf16.mxu0 %v2460
    %3856 = vmatpush2.bf16.msra.mxu0 %v2459
    %3857 = vmatprep.subr.bf16.mxu0 %v2444
    %3858 = vmatpush2.bf16.msra.mxu0 %v2443
    %3859 = vmatprep.subr.bf16.mxu0 %v2428
    %3860 = vmatpush2.bf16.msra.mxu0 %v2427
    %3861 = vmatprep.subr.bf16.mxu0 %v2412
    %3862 = vmatpush2.bf16.msra.mxu0 %v2411
    %3863 = vmatprep.subr.bf16.mxu0 %v2396
    %3864 = vmatpush2.bf16.msra.mxu0 %v2395
    %3865 = vmatprep.subr.bf16.mxu0 %v2380
    %3866 = vmatpush2.bf16.msra.mxu0 %v2379
    %3867 = vmatprep.mubr.bf16.mxu0 %v156
    %3868 = vmatmul.mubr.bf16.gmra.mxu0 %v155
    %v3869 = vpop.f32.mrf.mxu0
    %v3870 = vadd.f32 0.0, %v3869
    %v3871 = vpop.f32.mrf.mxu0
    %v3872 = vadd.f32 0.0, %v3871
    %v3873 = vpop.f32.mrf.mxu0
    %v3874 = vadd.f32 0.0, %v3873
    %v3875 = vpop.f32.mrf.mxu0
    %v3876 = vadd.f32 0.0, %v3875
    %3877 = vmatprep.mubr.bf16.mxu0 %v160
    %3878 = vmatmul.mubr.bf16.gmra.mxu0 %v159
    %v3879 = vpop.f32.mrf.mxu0
    %v3880 = vadd.f32 0.0, %v3879
    %v3881 = vpop.f32.mrf.mxu0
    %v3882 = vadd.f32 0.0, %v3881
    %v3883 = vpop.f32.mrf.mxu0
    %v3884 = vadd.f32 0.0, %v3883
    %v3885 = vpop.f32.mrf.mxu0
    %v3886 = vadd.f32 0.0, %v3885
    %3887 = vmatprep.mubr.bf16.mxu0 %v164
    %3888 = vmatmul.mubr.bf16.gmra.mxu0 %v163
    %v3889 = vpop.f32.mrf.mxu0
    %v3890 = vadd.f32 0.0, %v3889
    %v3891 = vpop.f32.mrf.mxu0
    %v3892 = vadd.f32 0.0, %v3891
    %v3893 = vpop.f32.mrf.mxu0
    %v3894 = vadd.f32 0.0, %v3893
    %v3895 = vpop.f32.mrf.mxu0
    %v3896 = vadd.f32 0.0, %v3895
    %3897 = vmatprep.mubr.bf16.mxu0 %v168
    %3898 = vmatmul.mubr.bf16.gmra.mxu0 %v167
    %v3899 = vpop.f32.mrf.mxu0
    %v3900 = vadd.f32 0.0, %v3899
    %v3901 = vpop.f32.mrf.mxu0
    %v3902 = vadd.f32 0.0, %v3901
    %v3903 = vpop.f32.mrf.mxu0
    %v3904 = vadd.f32 0.0, %v3903
    %v3905 = vpop.f32.mrf.mxu0
    %v3906 = vadd.f32 0.0, %v3905
    %3907 = vmatprep.mubr.bf16.mxu0 %v172
    %3908 = vmatmul.mubr.bf16.gmra.mxu0 %v171
    %v3909 = vpop.f32.mrf.mxu0
    %v3910 = vadd.f32 0.0, %v3909
    %v3911 = vpop.f32.mrf.mxu0
    %v3912 = vadd.f32 0.0, %v3911
    %v3913 = vpop.f32.mrf.mxu0
    %v3914 = vadd.f32 0.0, %v3913
    %v3915 = vpop.f32.mrf.mxu0
    %v3916 = vadd.f32 0.0, %v3915
    %3917 = vmatprep.mubr.bf16.mxu0 %v176
    %3918 = vmatmul.mubr.bf16.gmra.mxu0 %v175
    %v3919 = vpop.f32.mrf.mxu0
    %v3920 = vadd.f32 0.0, %v3919
    %v3921 = vpop.f32.mrf.mxu0
    %v3922 = vadd.f32 0.0, %v3921
    %v3923 = vpop.f32.mrf.mxu0
    %v3924 = vadd.f32 0.0, %v3923
    %v3925 = vpop.f32.mrf.mxu0
    %v3926 = vadd.f32 0.0, %v3925
    %3927 = vmatprep.mubr.bf16.mxu0 %v180
    %3928 = vmatmul.mubr.bf16.gmra.mxu0 %v179
    %v3929 = vpop.f32.mrf.mxu0
    %v3930 = vadd.f32 0.0, %v3929
    %v3931 = vpop.f32.mrf.mxu0
    %v3932 = vadd.f32 0.0, %v3931
    %v3933 = vpop.f32.mrf.mxu0
    %v3934 = vadd.f32 0.0, %v3933
    %v3935 = vpop.f32.mrf.mxu0
    %v3936 = vadd.f32 0.0, %v3935
    %3937 = vmatprep.mubr.bf16.mxu0 %v184
    %3938 = vmatmul.mubr.bf16.gmra.mxu0 %v183
    %v3939 = vpop.f32.mrf.mxu0
    %v3940 = vadd.f32 0.0, %v3939
    %v3941 = vpop.f32.mrf.mxu0
    %v3942 = vadd.f32 0.0, %v3941
    %v3943 = vpop.f32.mrf.mxu0
    %v3944 = vadd.f32 0.0, %v3943
    %v3945 = vpop.f32.mrf.mxu0
    %v3946 = vadd.f32 0.0, %v3945
    %3947 = vmatprep.mubr.bf16.mxu0 %v188
    %3948 = vmatmul.mubr.bf16.gmra.mxu0 %v187
    %v3949 = vpop.f32.mrf.mxu0
    %v3950 = vadd.f32 0.0, %v3949
    %v3951 = vpop.f32.mrf.mxu0
    %v3952 = vadd.f32 0.0, %v3951
    %v3953 = vpop.f32.mrf.mxu0
    %v3954 = vadd.f32 0.0, %v3953
    %v3955 = vpop.f32.mrf.mxu0
    %v3956 = vadd.f32 0.0, %v3955
    %3957 = vmatprep.mubr.bf16.mxu0 %v192
    %3958 = vmatmul.mubr.bf16.gmra.mxu0 %v191
    %v3959 = vpop.f32.mrf.mxu0
    %v3960 = vadd.f32 0.0, %v3959
    %v3961 = vpop.f32.mrf.mxu0
    %v3962 = vadd.f32 0.0, %v3961
    %v3963 = vpop.f32.mrf.mxu0
    %v3964 = vadd.f32 0.0, %v3963
    %v3965 = vpop.f32.mrf.mxu0
    %v3966 = vadd.f32 0.0, %v3965
    %3967 = vmatprep.mubr.bf16.mxu0 %v196
    %3968 = vmatmul.mubr.bf16.gmra.mxu0 %v195
    %v3969 = vpop.f32.mrf.mxu0
    %v3970 = vadd.f32 0.0, %v3969
    %v3971 = vpop.f32.mrf.mxu0
    %v3972 = vadd.f32 0.0, %v3971
    %v3973 = vpop.f32.mrf.mxu0
    %v3974 = vpop.f32.mrf.mxu0
    %3975 = vdwg.mxu0
    %3976 = vmatprep.subr.bf16.mxu0 %v2620
    %3977 = vmatpush1.bf16.msra.mxu0 %v2619
    %3978 = vmatprep.subr.bf16.mxu0 %v2604
    %3979 = vmatpush1.bf16.msra.mxu0 %v2603
    %3980 = vmatprep.subr.bf16.mxu0 %v2588
    %3981 = vmatpush1.bf16.msra.mxu0 %v2587
    %3982 = vmatprep.subr.bf16.mxu0 %v2572
    %3983 = vmatpush1.bf16.msra.mxu0 %v2571
    %3984 = vmatprep.subr.bf16.mxu0 %v2556
    %3985 = vmatpush1.bf16.msra.mxu0 %v2555
    %3986 = vmatprep.subr.bf16.mxu0 %v2540
    %3987 = vmatpush1.bf16.msra.mxu0 %v2539
    %3988 = vmatprep.subr.bf16.mxu0 %v2524
    %3989 = vmatpush1.bf16.msra.mxu0 %v2523
    %3990 = vmatprep.subr.bf16.mxu0 %v2508
    %3991 = vmatpush1.bf16.msra.mxu0 %v2507
    %3992 = vmatprep.subr.bf16.mxu0 %v2748
    %3993 = vmatpush2.bf16.msra.mxu0 %v2747
    %3994 = vmatprep.subr.bf16.mxu0 %v2732
    %3995 = vmatpush2.bf16.msra.mxu0 %v2731
    %3996 = vmatprep.subr.bf16.mxu0 %v2716
    %3997 = vmatpush2.bf16.msra.mxu0 %v2715
    %3998 = vmatprep.subr.bf16.mxu0 %v2700
    %3999 = vmatpush2.bf16.msra.mxu0 %v2699
    %4000 = vmatprep.subr.bf16.mxu0 %v2684
    %4001 = vmatpush2.bf16.msra.mxu0 %v2683
    %4002 = vmatprep.subr.bf16.mxu0 %v2668
    %4003 = vmatpush2.bf16.msra.mxu0 %v2667
    %4004 = vmatprep.subr.bf16.mxu0 %v2652
    %4005 = vmatpush2.bf16.msra.mxu0 %v2651
    %4006 = vmatprep.subr.bf16.mxu0 %v2636
    %4007 = vmatpush2.bf16.msra.mxu0 %v2635
    %4008 = vmatprep.mubr.bf16.mxu0 %v158
    %4009 = vmatmul.mubr.bf16.gmra.mxu0 %v157
    %v4010 = vpop.f32.mrf.mxu0
    %v4011 = vadd.f32 %v3870, %v4010
    %v4012 = vpop.f32.mrf.mxu0
    %v4013 = vadd.f32 %v3872, %v4012
    %v4014 = vpop.f32.mrf.mxu0
    %v4015 = vadd.f32 %v3874, %v4014
    %v4016 = vpop.f32.mrf.mxu0
    %v4017 = vadd.f32 %v3876, %v4016
    %4018 = vmatprep.mubr.bf16.mxu0 %v162
    %4019 = vmatmul.mubr.bf16.gmra.mxu0 %v161
    %v4020 = vpop.f32.mrf.mxu0
    %v4021 = vadd.f32 %v3880, %v4020
    %v4022 = vpop.f32.mrf.mxu0
    %v4023 = vadd.f32 %v3882, %v4022
    %v4024 = vpop.f32.mrf.mxu0
    %v4025 = vadd.f32 %v3884, %v4024
    %v4026 = vpop.f32.mrf.mxu0
    %v4027 = vadd.f32 %v3886, %v4026
    %4028 = vmatprep.mubr.bf16.mxu0 %v166
    %4029 = vmatmul.mubr.bf16.gmra.mxu0 %v165
    %v4030 = vpop.f32.mrf.mxu0
    %v4031 = vadd.f32 %v3890, %v4030
    %v4032 = vpop.f32.mrf.mxu0
    %v4033 = vadd.f32 %v3892, %v4032
    %v4034 = vpop.f32.mrf.mxu0
    %v4035 = vadd.f32 %v3894, %v4034
    %v4036 = vpop.f32.mrf.mxu0
    %v4037 = vadd.f32 %v3896, %v4036
    %4038 = vmatprep.mubr.bf16.mxu0 %v170
    %4039 = vmatmul.mubr.bf16.gmra.mxu0 %v169
    %v4040 = vpop.f32.mrf.mxu0
    %v4041 = vadd.f32 %v3900, %v4040
    %v4042 = vpop.f32.mrf.mxu0
    %v4043 = vadd.f32 %v3902, %v4042
    %v4044 = vpop.f32.mrf.mxu0
    %v4045 = vadd.f32 %v3904, %v4044
    %v4046 = vpop.f32.mrf.mxu0
    %v4047 = vadd.f32 %v3906, %v4046
    %4048 = vmatprep.mubr.bf16.mxu0 %v174
    %4049 = vmatmul.mubr.bf16.gmra.mxu0 %v173
    %v4050 = vpop.f32.mrf.mxu0
    %v4051 = vadd.f32 %v3910, %v4050
    %v4052 = vpop.f32.mrf.mxu0
    %v4053 = vadd.f32 %v3912, %v4052
    %v4054 = vpop.f32.mrf.mxu0
    %v4055 = vadd.f32 %v3914, %v4054
    %v4056 = vpop.f32.mrf.mxu0
    %v4057 = vadd.f32 %v3916, %v4056
    %4058 = vmatprep.mubr.bf16.mxu0 %v178
    %4059 = vmatmul.mubr.bf16.gmra.mxu0 %v177
    %v4060 = vpop.f32.mrf.mxu0
    %v4061 = vadd.f32 %v3920, %v4060
    %v4062 = vpop.f32.mrf.mxu0
    %v4063 = vadd.f32 %v3922, %v4062
    %v4064 = vpop.f32.mrf.mxu0
    %v4065 = vadd.f32 %v3924, %v4064
    %v4066 = vpop.f32.mrf.mxu0
    %v4067 = vadd.f32 %v3926, %v4066
    %4068 = vmatprep.mubr.bf16.mxu0 %v182
    %4069 = vmatmul.mubr.bf16.gmra.mxu0 %v181
    %v4070 = vpop.f32.mrf.mxu0
    %v4071 = vadd.f32 %v3930, %v4070
    %v4072 = vpop.f32.mrf.mxu0
    %v4073 = vadd.f32 %v3932, %v4072
    %v4074 = vpop.f32.mrf.mxu0
    %v4075 = vadd.f32 %v3934, %v4074
    %v4076 = vpop.f32.mrf.mxu0
    %v4077 = vadd.f32 %v3936, %v4076
    %4078 = vmatprep.mubr.bf16.mxu0 %v186
    %4079 = vmatmul.mubr.bf16.gmra.mxu0 %v185
    %v4080 = vpop.f32.mrf.mxu0
    %v4081 = vadd.f32 %v3940, %v4080
    %v4082 = vpop.f32.mrf.mxu0
    %v4083 = vadd.f32 %v3942, %v4082
    %v4084 = vpop.f32.mrf.mxu0
    %v4085 = vadd.f32 %v3944, %v4084
    %v4086 = vpop.f32.mrf.mxu0
    %v4087 = vadd.f32 %v3946, %v4086
    %4088 = vmatprep.mubr.bf16.mxu0 %v190
    %4089 = vmatmul.mubr.bf16.gmra.mxu0 %v189
    %v4090 = vpop.f32.mrf.mxu0
    %v4091 = vadd.f32 %v3950, %v4090
    %v4092 = vpop.f32.mrf.mxu0
    %v4093 = vadd.f32 %v3952, %v4092
    %v4094 = vpop.f32.mrf.mxu0
    %v4095 = vadd.f32 %v3954, %v4094
    %v4096 = vpop.f32.mrf.mxu0
    %v4097 = vadd.f32 %v3956, %v4096
    %4098 = vmatprep.mubr.bf16.mxu0 %v194
    %4099 = vmatmul.mubr.bf16.gmra.mxu0 %v193
    %v4100 = vpop.f32.mrf.mxu0
    %v4101 = vadd.f32 %v3960, %v4100
    %v4102 = vpop.f32.mrf.mxu0
    %v4103 = vadd.f32 %v3962, %v4102
    %v4104 = vpop.f32.mrf.mxu0
    %v4105 = vadd.f32 %v3964, %v4104
    %v4106 = vpop.f32.mrf.mxu0
    %v4107 = vadd.f32 %v3966, %v4106
    %4108 = vmatprep.mubr.bf16.mxu0 %v198
    %4109 = vmatmul.mubr.bf16.gmra.mxu0 %v197
    %v4110 = vpop.f32.mrf.mxu0
    %v4111 = vadd.f32 %v3970, %v4110
    %v4112 = vpop.f32.mrf.mxu0
    %v4113 = vadd.f32 %v3972, %v4112
    %v4114 = vpop.f32.mrf.mxu0
    %v4115 = vpop.f32.mrf.mxu0
    %4116 = vdwg.mxu0
    %4117 = vmatprep.subr.bf16.mxu0 %v2366
    %4118 = vmatpush1.bf16.msra.mxu0 %v2365
    %4119 = vmatprep.subr.bf16.mxu0 %v2350
    %4120 = vmatpush1.bf16.msra.mxu0 %v2349
    %4121 = vmatprep.subr.bf16.mxu0 %v2334
    %4122 = vmatpush1.bf16.msra.mxu0 %v2333
    %4123 = vmatprep.subr.bf16.mxu0 %v2318
    %4124 = vmatpush1.bf16.msra.mxu0 %v2317
    %4125 = vmatprep.subr.bf16.mxu0 %v2302
    %4126 = vmatpush1.bf16.msra.mxu0 %v2301
    %4127 = vmatprep.subr.bf16.mxu0 %v2286
    %4128 = vmatpush1.bf16.msra.mxu0 %v2285
    %4129 = vmatprep.subr.bf16.mxu0 %v2270
    %4130 = vmatpush1.bf16.msra.mxu0 %v2269
    %4131 = vmatprep.subr.bf16.mxu0 %v2254
    %4132 = vmatpush1.bf16.msra.mxu0 %v2253
    %4133 = vmatprep.subr.bf16.mxu0 %v2494
    %4134 = vmatpush2.bf16.msra.mxu0 %v2493
    %4135 = vmatprep.subr.bf16.mxu0 %v2478
    %4136 = vmatpush2.bf16.msra.mxu0 %v2477
    %4137 = vmatprep.subr.bf16.mxu0 %v2462
    %4138 = vmatpush2.bf16.msra.mxu0 %v2461
    %4139 = vmatprep.subr.bf16.mxu0 %v2446
    %4140 = vmatpush2.bf16.msra.mxu0 %v2445
    %4141 = vmatprep.subr.bf16.mxu0 %v2430
    %4142 = vmatpush2.bf16.msra.mxu0 %v2429
    %4143 = vmatprep.subr.bf16.mxu0 %v2414
    %4144 = vmatpush2.bf16.msra.mxu0 %v2413
    %4145 = vmatprep.subr.bf16.mxu0 %v2398
    %4146 = vmatpush2.bf16.msra.mxu0 %v2397
    %4147 = vmatprep.subr.bf16.mxu0 %v2382
    %4148 = vmatpush2.bf16.msra.mxu0 %v2381
    %4149 = vmatprep.mubr.bf16.mxu0 %v156
    %4150 = vmatmul.mubr.bf16.gmra.mxu0 %v155
    %v4151 = vpop.f32.mrf.mxu0
    %v4152 = vadd.f32 0.0, %v4151
    %v4153 = vpop.f32.mrf.mxu0
    %v4154 = vadd.f32 0.0, %v4153
    %v4155 = vpop.f32.mrf.mxu0
    %v4156 = vadd.f32 0.0, %v4155
    %v4157 = vpop.f32.mrf.mxu0
    %v4158 = vadd.f32 0.0, %v4157
    %4159 = vmatprep.mubr.bf16.mxu0 %v160
    %4160 = vmatmul.mubr.bf16.gmra.mxu0 %v159
    %v4161 = vpop.f32.mrf.mxu0
    %v4162 = vadd.f32 0.0, %v4161
    %v4163 = vpop.f32.mrf.mxu0
    %v4164 = vadd.f32 0.0, %v4163
    %v4165 = vpop.f32.mrf.mxu0
    %v4166 = vadd.f32 0.0, %v4165
    %v4167 = vpop.f32.mrf.mxu0
    %v4168 = vadd.f32 0.0, %v4167
    %4169 = vmatprep.mubr.bf16.mxu0 %v164
    %4170 = vmatmul.mubr.bf16.gmra.mxu0 %v163
    %v4171 = vpop.f32.mrf.mxu0
    %v4172 = vadd.f32 0.0, %v4171
    %v4173 = vpop.f32.mrf.mxu0
    %v4174 = vadd.f32 0.0, %v4173
    %v4175 = vpop.f32.mrf.mxu0
    %v4176 = vadd.f32 0.0, %v4175
    %v4177 = vpop.f32.mrf.mxu0
    %v4178 = vadd.f32 0.0, %v4177
    %4179 = vmatprep.mubr.bf16.mxu0 %v168
    %4180 = vmatmul.mubr.bf16.gmra.mxu0 %v167
    %v4181 = vpop.f32.mrf.mxu0
    %v4182 = vadd.f32 0.0, %v4181
    %v4183 = vpop.f32.mrf.mxu0
    %v4184 = vadd.f32 0.0, %v4183
    %v4185 = vpop.f32.mrf.mxu0
    %v4186 = vadd.f32 0.0, %v4185
    %v4187 = vpop.f32.mrf.mxu0
    %v4188 = vadd.f32 0.0, %v4187
    %4189 = vmatprep.mubr.bf16.mxu0 %v172
    %4190 = vmatmul.mubr.bf16.gmra.mxu0 %v171
    %v4191 = vpop.f32.mrf.mxu0
    %v4192 = vadd.f32 0.0, %v4191
    %v4193 = vpop.f32.mrf.mxu0
    %v4194 = vadd.f32 0.0, %v4193
    %v4195 = vpop.f32.mrf.mxu0
    %v4196 = vadd.f32 0.0, %v4195
    %v4197 = vpop.f32.mrf.mxu0
    %v4198 = vadd.f32 0.0, %v4197
    %4199 = vmatprep.mubr.bf16.mxu0 %v176
    %4200 = vmatmul.mubr.bf16.gmra.mxu0 %v175
    %v4201 = vpop.f32.mrf.mxu0
    %v4202 = vadd.f32 0.0, %v4201
    %v4203 = vpop.f32.mrf.mxu0
    %v4204 = vadd.f32 0.0, %v4203
    %v4205 = vpop.f32.mrf.mxu0
    %v4206 = vadd.f32 0.0, %v4205
    %v4207 = vpop.f32.mrf.mxu0
    %v4208 = vadd.f32 0.0, %v4207
    %4209 = vmatprep.mubr.bf16.mxu0 %v180
    %4210 = vmatmul.mubr.bf16.gmra.mxu0 %v179
    %v4211 = vpop.f32.mrf.mxu0
    %v4212 = vadd.f32 0.0, %v4211
    %v4213 = vpop.f32.mrf.mxu0
    %v4214 = vadd.f32 0.0, %v4213
    %v4215 = vpop.f32.mrf.mxu0
    %v4216 = vadd.f32 0.0, %v4215
    %v4217 = vpop.f32.mrf.mxu0
    %v4218 = vadd.f32 0.0, %v4217
    %4219 = vmatprep.mubr.bf16.mxu0 %v184
    %4220 = vmatmul.mubr.bf16.gmra.mxu0 %v183
    %v4221 = vpop.f32.mrf.mxu0
    %v4222 = vadd.f32 0.0, %v4221
    %v4223 = vpop.f32.mrf.mxu0
    %v4224 = vadd.f32 0.0, %v4223
    %v4225 = vpop.f32.mrf.mxu0
    %v4226 = vadd.f32 0.0, %v4225
    %v4227 = vpop.f32.mrf.mxu0
    %v4228 = vadd.f32 0.0, %v4227
    %4229 = vmatprep.mubr.bf16.mxu0 %v188
    %4230 = vmatmul.mubr.bf16.gmra.mxu0 %v187
    %v4231 = vpop.f32.mrf.mxu0
    %v4232 = vadd.f32 0.0, %v4231
    %v4233 = vpop.f32.mrf.mxu0
    %v4234 = vadd.f32 0.0, %v4233
    %v4235 = vpop.f32.mrf.mxu0
    %v4236 = vadd.f32 0.0, %v4235
    %v4237 = vpop.f32.mrf.mxu0
    %v4238 = vadd.f32 0.0, %v4237
    %4239 = vmatprep.mubr.bf16.mxu0 %v192
    %4240 = vmatmul.mubr.bf16.gmra.mxu0 %v191
    %v4241 = vpop.f32.mrf.mxu0
    %v4242 = vadd.f32 0.0, %v4241
    %v4243 = vpop.f32.mrf.mxu0
    %v4244 = vadd.f32 0.0, %v4243
    %v4245 = vpop.f32.mrf.mxu0
    %v4246 = vadd.f32 0.0, %v4245
    %v4247 = vpop.f32.mrf.mxu0
    %v4248 = vadd.f32 0.0, %v4247
    %4249 = vmatprep.mubr.bf16.mxu0 %v196
    %4250 = vmatmul.mubr.bf16.gmra.mxu0 %v195
    %v4251 = vpop.f32.mrf.mxu0
    %v4252 = vadd.f32 0.0, %v4251
    %v4253 = vpop.f32.mrf.mxu0
    %v4254 = vadd.f32 0.0, %v4253
    %v4255 = vpop.f32.mrf.mxu0
    %v4256 = vpop.f32.mrf.mxu0
    %4257 = vdwg.mxu0
    %4258 = vmatprep.subr.bf16.mxu0 %v2622
    %4259 = vmatpush1.bf16.msra.mxu0 %v2621
    %4260 = vmatprep.subr.bf16.mxu0 %v2606
    %4261 = vmatpush1.bf16.msra.mxu0 %v2605
    %4262 = vmatprep.subr.bf16.mxu0 %v2590
    %4263 = vmatpush1.bf16.msra.mxu0 %v2589
    %4264 = vmatprep.subr.bf16.mxu0 %v2574
    %4265 = vmatpush1.bf16.msra.mxu0 %v2573
    %4266 = vmatprep.subr.bf16.mxu0 %v2558
    %4267 = vmatpush1.bf16.msra.mxu0 %v2557
    %4268 = vmatprep.subr.bf16.mxu0 %v2542
    %4269 = vmatpush1.bf16.msra.mxu0 %v2541
    %4270 = vmatprep.subr.bf16.mxu0 %v2526
    %4271 = vmatpush1.bf16.msra.mxu0 %v2525
    %4272 = vmatprep.subr.bf16.mxu0 %v2510
    %4273 = vmatpush1.bf16.msra.mxu0 %v2509
    %4274 = vmatprep.subr.bf16.mxu0 %v2750
    %4275 = vmatpush2.bf16.msra.mxu0 %v2749
    %4276 = vmatprep.subr.bf16.mxu0 %v2734
    %4277 = vmatpush2.bf16.msra.mxu0 %v2733
    %4278 = vmatprep.subr.bf16.mxu0 %v2718
    %4279 = vmatpush2.bf16.msra.mxu0 %v2717
    %4280 = vmatprep.subr.bf16.mxu0 %v2702
    %4281 = vmatpush2.bf16.msra.mxu0 %v2701
    %4282 = vmatprep.subr.bf16.mxu0 %v2686
    %4283 = vmatpush2.bf16.msra.mxu0 %v2685
    %4284 = vmatprep.subr.bf16.mxu0 %v2670
    %4285 = vmatpush2.bf16.msra.mxu0 %v2669
    %4286 = vmatprep.subr.bf16.mxu0 %v2654
    %4287 = vmatpush2.bf16.msra.mxu0 %v2653
    %4288 = vmatprep.subr.bf16.mxu0 %v2638
    %4289 = vmatpush2.bf16.msra.mxu0 %v2637
    %4290 = vmatprep.mubr.bf16.mxu0 %v158
    %4291 = vmatmul.mubr.bf16.gmra.mxu0 %v157
    %v4292 = vpop.f32.mrf.mxu0
    %v4293 = vadd.f32 %v4152, %v4292
    %v4294 = vpop.f32.mrf.mxu0
    %v4295 = vadd.f32 %v4154, %v4294
    %v4296 = vpop.f32.mrf.mxu0
    %v4297 = vadd.f32 %v4156, %v4296
    %v4298 = vpop.f32.mrf.mxu0
    %v4299 = vadd.f32 %v4158, %v4298
    %4300 = vmatprep.mubr.bf16.mxu0 %v162
    %4301 = vmatmul.mubr.bf16.gmra.mxu0 %v161
    %v4302 = vpop.f32.mrf.mxu0
    %v4303 = vadd.f32 %v4162, %v4302
    %v4304 = vpop.f32.mrf.mxu0
    %v4305 = vadd.f32 %v4164, %v4304
    %v4306 = vpop.f32.mrf.mxu0
    %v4307 = vadd.f32 %v4166, %v4306
    %v4308 = vpop.f32.mrf.mxu0
    %v4309 = vadd.f32 %v4168, %v4308
    %4310 = vmatprep.mubr.bf16.mxu0 %v166
    %4311 = vmatmul.mubr.bf16.gmra.mxu0 %v165
    %v4312 = vpop.f32.mrf.mxu0
    %v4313 = vadd.f32 %v4172, %v4312
    %v4314 = vpop.f32.mrf.mxu0
    %v4315 = vadd.f32 %v4174, %v4314
    %v4316 = vpop.f32.mrf.mxu0
    %v4317 = vadd.f32 %v4176, %v4316
    %v4318 = vpop.f32.mrf.mxu0
    %v4319 = vadd.f32 %v4178, %v4318
    %4320 = vmatprep.mubr.bf16.mxu0 %v170
    %4321 = vmatmul.mubr.bf16.gmra.mxu0 %v169
    %v4322 = vpop.f32.mrf.mxu0
    %v4323 = vadd.f32 %v4182, %v4322
    %v4324 = vpop.f32.mrf.mxu0
    %v4325 = vadd.f32 %v4184, %v4324
    %v4326 = vpop.f32.mrf.mxu0
    %v4327 = vadd.f32 %v4186, %v4326
    %v4328 = vpop.f32.mrf.mxu0
    %v4329 = vadd.f32 %v4188, %v4328
    %4330 = vmatprep.mubr.bf16.mxu0 %v174
    %4331 = vmatmul.mubr.bf16.gmra.mxu0 %v173
    %v4332 = vpop.f32.mrf.mxu0
    %v4333 = vadd.f32 %v4192, %v4332
    %v4334 = vpop.f32.mrf.mxu0
    %v4335 = vadd.f32 %v4194, %v4334
    %v4336 = vpop.f32.mrf.mxu0
    %v4337 = vadd.f32 %v4196, %v4336
    %v4338 = vpop.f32.mrf.mxu0
    %v4339 = vadd.f32 %v4198, %v4338
    %4340 = vmatprep.mubr.bf16.mxu0 %v178
    %4341 = vmatmul.mubr.bf16.gmra.mxu0 %v177
    %v4342 = vpop.f32.mrf.mxu0
    %v4343 = vadd.f32 %v4202, %v4342
    %v4344 = vpop.f32.mrf.mxu0
    %v4345 = vadd.f32 %v4204, %v4344
    %v4346 = vpop.f32.mrf.mxu0
    %v4347 = vadd.f32 %v4206, %v4346
    %v4348 = vpop.f32.mrf.mxu0
    %v4349 = vadd.f32 %v4208, %v4348
    %4350 = vmatprep.mubr.bf16.mxu0 %v182
    %4351 = vmatmul.mubr.bf16.gmra.mxu0 %v181
    %v4352 = vpop.f32.mrf.mxu0
    %v4353 = vadd.f32 %v4212, %v4352
    %v4354 = vpop.f32.mrf.mxu0
    %v4355 = vadd.f32 %v4214, %v4354
    %v4356 = vpop.f32.mrf.mxu0
    %v4357 = vadd.f32 %v4216, %v4356
    %v4358 = vpop.f32.mrf.mxu0
    %v4359 = vadd.f32 %v4218, %v4358
    %4360 = vmatprep.mubr.bf16.mxu0 %v186
    %4361 = vmatmul.mubr.bf16.gmra.mxu0 %v185
    %v4362 = vpop.f32.mrf.mxu0
    %v4363 = vadd.f32 %v4222, %v4362
    %v4364 = vpop.f32.mrf.mxu0
    %v4365 = vadd.f32 %v4224, %v4364
    %v4366 = vpop.f32.mrf.mxu0
    %v4367 = vadd.f32 %v4226, %v4366
    %v4368 = vpop.f32.mrf.mxu0
    %v4369 = vadd.f32 %v4228, %v4368
    %4370 = vmatprep.mubr.bf16.mxu0 %v190
    %4371 = vmatmul.mubr.bf16.gmra.mxu0 %v189
    %v4372 = vpop.f32.mrf.mxu0
    %v4373 = vadd.f32 %v4232, %v4372
    %v4374 = vpop.f32.mrf.mxu0
    %v4375 = vadd.f32 %v4234, %v4374
    %v4376 = vpop.f32.mrf.mxu0
    %v4377 = vadd.f32 %v4236, %v4376
    %v4378 = vpop.f32.mrf.mxu0
    %v4379 = vadd.f32 %v4238, %v4378
    %4380 = vmatprep.mubr.bf16.mxu0 %v194
    %4381 = vmatmul.mubr.bf16.gmra.mxu0 %v193
    %v4382 = vpop.f32.mrf.mxu0
    %v4383 = vadd.f32 %v4242, %v4382
    %v4384 = vpop.f32.mrf.mxu0
    %v4385 = vadd.f32 %v4244, %v4384
    %v4386 = vpop.f32.mrf.mxu0
    %v4387 = vadd.f32 %v4246, %v4386
    %v4388 = vpop.f32.mrf.mxu0
    %v4389 = vadd.f32 %v4248, %v4388
    %4390 = vmatprep.mubr.bf16.mxu0 %v198
    %4391 = vmatmul.mubr.bf16.gmra.mxu0 %v197
    %v4392 = vpop.f32.mrf.mxu0
    %v4393 = vadd.f32 %v4252, %v4392
    %v4394 = vpop.f32.mrf.mxu0
    %v4395 = vadd.f32 %v4254, %v4394
    %v4396 = vpop.f32.mrf.mxu0
    %v4397 = vpop.f32.mrf.mxu0
    %4398 = vdwg.mxu0
    %4399 = vmatprep.subr.bf16.mxu0 %v2368
    %4400 = vmatpush1.bf16.msra.mxu0 %v2367
    %4401 = vmatprep.subr.bf16.mxu0 %v2352
    %4402 = vmatpush1.bf16.msra.mxu0 %v2351
    %4403 = vmatprep.subr.bf16.mxu0 %v2336
    %4404 = vmatpush1.bf16.msra.mxu0 %v2335
    %4405 = vmatprep.subr.bf16.mxu0 %v2320
    %4406 = vmatpush1.bf16.msra.mxu0 %v2319
    %4407 = vmatprep.subr.bf16.mxu0 %v2304
    %4408 = vmatpush1.bf16.msra.mxu0 %v2303
    %4409 = vmatprep.subr.bf16.mxu0 %v2288
    %4410 = vmatpush1.bf16.msra.mxu0 %v2287
    %4411 = vmatprep.subr.bf16.mxu0 %v2272
    %4412 = vmatpush1.bf16.msra.mxu0 %v2271
    %4413 = vmatprep.subr.bf16.mxu0 %v2256
    %4414 = vmatpush1.bf16.msra.mxu0 %v2255
    %4415 = vmatprep.subr.bf16.mxu0 %v2496
    %4416 = vmatpush2.bf16.msra.mxu0 %v2495
    %4417 = vmatprep.subr.bf16.mxu0 %v2480
    %4418 = vmatpush2.bf16.msra.mxu0 %v2479
    %4419 = vmatprep.subr.bf16.mxu0 %v2464
    %4420 = vmatpush2.bf16.msra.mxu0 %v2463
    %4421 = vmatprep.subr.bf16.mxu0 %v2448
    %4422 = vmatpush2.bf16.msra.mxu0 %v2447
    %4423 = vmatprep.subr.bf16.mxu0 %v2432
    %4424 = vmatpush2.bf16.msra.mxu0 %v2431
    %4425 = vmatprep.subr.bf16.mxu0 %v2416
    %4426 = vmatpush2.bf16.msra.mxu0 %v2415
    %4427 = vmatprep.subr.bf16.mxu0 %v2400
    %4428 = vmatpush2.bf16.msra.mxu0 %v2399
    %4429 = vmatprep.subr.bf16.mxu0 %v2384
    %4430 = vmatpush2.bf16.msra.mxu0 %v2383
    %4431 = vmatprep.mubr.bf16.mxu0 %v156
    %4432 = vmatmul.mubr.bf16.gmra.mxu0 %v155
    %v4433 = vpop.f32.mrf.mxu0
    %v4434 = vadd.f32 0.0, %v4433
    %v4435 = vpop.f32.mrf.mxu0
    %v4436 = vadd.f32 0.0, %v4435
    %v4437 = vpop.f32.mrf.mxu0
    %v4438 = vadd.f32 0.0, %v4437
    %v4439 = vpop.f32.mrf.mxu0
    %v4440 = vadd.f32 0.0, %v4439
    %4441 = vmatprep.mubr.bf16.mxu0 %v160
    %4442 = vmatmul.mubr.bf16.gmra.mxu0 %v159
    %v4443 = vpop.f32.mrf.mxu0
    %v4444 = vadd.f32 0.0, %v4443
    %v4445 = vpop.f32.mrf.mxu0
    %v4446 = vadd.f32 0.0, %v4445
    %v4447 = vpop.f32.mrf.mxu0
    %v4448 = vadd.f32 0.0, %v4447
    %v4449 = vpop.f32.mrf.mxu0
    %v4450 = vadd.f32 0.0, %v4449
    %4451 = vmatprep.mubr.bf16.mxu0 %v164
    %4452 = vmatmul.mubr.bf16.gmra.mxu0 %v163
    %v4453 = vpop.f32.mrf.mxu0
    %v4454 = vadd.f32 0.0, %v4453
    %v4455 = vpop.f32.mrf.mxu0
    %v4456 = vadd.f32 0.0, %v4455
    %v4457 = vpop.f32.mrf.mxu0
    %v4458 = vadd.f32 0.0, %v4457
    %v4459 = vpop.f32.mrf.mxu0
    %v4460 = vadd.f32 0.0, %v4459
    %4461 = vmatprep.mubr.bf16.mxu0 %v168
    %4462 = vmatmul.mubr.bf16.gmra.mxu0 %v167
    %v4463 = vpop.f32.mrf.mxu0
    %v4464 = vadd.f32 0.0, %v4463
    %v4465 = vpop.f32.mrf.mxu0
    %v4466 = vadd.f32 0.0, %v4465
    %v4467 = vpop.f32.mrf.mxu0
    %v4468 = vadd.f32 0.0, %v4467
    %v4469 = vpop.f32.mrf.mxu0
    %v4470 = vadd.f32 0.0, %v4469
    %4471 = vmatprep.mubr.bf16.mxu0 %v172
    %4472 = vmatmul.mubr.bf16.gmra.mxu0 %v171
    %v4473 = vpop.f32.mrf.mxu0
    %v4474 = vadd.f32 0.0, %v4473
    %v4475 = vpop.f32.mrf.mxu0
    %v4476 = vadd.f32 0.0, %v4475
    %v4477 = vpop.f32.mrf.mxu0
    %v4478 = vadd.f32 0.0, %v4477
    %v4479 = vpop.f32.mrf.mxu0
    %v4480 = vadd.f32 0.0, %v4479
    %4481 = vmatprep.mubr.bf16.mxu0 %v176
    %4482 = vmatmul.mubr.bf16.gmra.mxu0 %v175
    %v4483 = vpop.f32.mrf.mxu0
    %v4484 = vadd.f32 0.0, %v4483
    %v4485 = vpop.f32.mrf.mxu0
    %v4486 = vadd.f32 0.0, %v4485
    %v4487 = vpop.f32.mrf.mxu0
    %v4488 = vadd.f32 0.0, %v4487
    %v4489 = vpop.f32.mrf.mxu0
    %v4490 = vadd.f32 0.0, %v4489
    %4491 = vmatprep.mubr.bf16.mxu0 %v180
    %4492 = vmatmul.mubr.bf16.gmra.mxu0 %v179
    %v4493 = vpop.f32.mrf.mxu0
    %v4494 = vadd.f32 0.0, %v4493
    %v4495 = vpop.f32.mrf.mxu0
    %v4496 = vadd.f32 0.0, %v4495
    %v4497 = vpop.f32.mrf.mxu0
    %v4498 = vadd.f32 0.0, %v4497
    %v4499 = vpop.f32.mrf.mxu0
    %v4500 = vadd.f32 0.0, %v4499
    %4501 = vmatprep.mubr.bf16.mxu0 %v184
    %4502 = vmatmul.mubr.bf16.gmra.mxu0 %v183
    %v4503 = vpop.f32.mrf.mxu0
    %v4504 = vadd.f32 0.0, %v4503
    %v4505 = vpop.f32.mrf.mxu0
    %v4506 = vadd.f32 0.0, %v4505
    %v4507 = vpop.f32.mrf.mxu0
    %v4508 = vadd.f32 0.0, %v4507
    %v4509 = vpop.f32.mrf.mxu0
    %v4510 = vadd.f32 0.0, %v4509
    %4511 = vmatprep.mubr.bf16.mxu0 %v188
    %4512 = vmatmul.mubr.bf16.gmra.mxu0 %v187
    %v4513 = vpop.f32.mrf.mxu0
    %v4514 = vadd.f32 0.0, %v4513
    %v4515 = vpop.f32.mrf.mxu0
    %v4516 = vadd.f32 0.0, %v4515
    %v4517 = vpop.f32.mrf.mxu0
    %v4518 = vadd.f32 0.0, %v4517
    %v4519 = vpop.f32.mrf.mxu0
    %v4520 = vadd.f32 0.0, %v4519
    %4521 = vmatprep.mubr.bf16.mxu0 %v192
    %4522 = vmatmul.mubr.bf16.gmra.mxu0 %v191
    %v4523 = vpop.f32.mrf.mxu0
    %v4524 = vadd.f32 0.0, %v4523
    %v4525 = vpop.f32.mrf.mxu0
    %v4526 = vadd.f32 0.0, %v4525
    %v4527 = vpop.f32.mrf.mxu0
    %v4528 = vadd.f32 0.0, %v4527
    %v4529 = vpop.f32.mrf.mxu0
    %v4530 = vadd.f32 0.0, %v4529
    %4531 = vmatprep.mubr.bf16.mxu0 %v196
    %4532 = vmatmul.mubr.bf16.gmra.mxu0 %v195
    %v4533 = vpop.f32.mrf.mxu0
    %v4534 = vadd.f32 0.0, %v4533
    %v4535 = vpop.f32.mrf.mxu0
    %v4536 = vadd.f32 0.0, %v4535
    %v4537 = vpop.f32.mrf.mxu0
    %v4538 = vpop.f32.mrf.mxu0
    %4539 = vdwg.mxu0
    %4540 = vmatprep.subr.bf16.mxu0 %v2624
    %4541 = vmatpush1.bf16.msra.mxu0 %v2623
    %4542 = vmatprep.subr.bf16.mxu0 %v2608
    %4543 = vmatpush1.bf16.msra.mxu0 %v2607
    %4544 = vmatprep.subr.bf16.mxu0 %v2592
    %4545 = vmatpush1.bf16.msra.mxu0 %v2591
    %4546 = vmatprep.subr.bf16.mxu0 %v2576
    %4547 = vmatpush1.bf16.msra.mxu0 %v2575
    %4548 = vmatprep.subr.bf16.mxu0 %v2560
    %4549 = vmatpush1.bf16.msra.mxu0 %v2559
    %4550 = vmatprep.subr.bf16.mxu0 %v2544
    %4551 = vmatpush1.bf16.msra.mxu0 %v2543
    %4552 = vmatprep.subr.bf16.mxu0 %v2528
    %4553 = vmatpush1.bf16.msra.mxu0 %v2527
    %4554 = vmatprep.subr.bf16.mxu0 %v2512
    %4555 = vmatpush1.bf16.msra.mxu0 %v2511
    %4556 = vmatprep.subr.bf16.mxu0 %v2752
    %4557 = vmatpush2.bf16.msra.mxu0 %v2751
    %4558 = vmatprep.subr.bf16.mxu0 %v2736
    %4559 = vmatpush2.bf16.msra.mxu0 %v2735
    %4560 = vmatprep.subr.bf16.mxu0 %v2720
    %4561 = vmatpush2.bf16.msra.mxu0 %v2719
    %4562 = vmatprep.subr.bf16.mxu0 %v2704
    %4563 = vmatpush2.bf16.msra.mxu0 %v2703
    %4564 = vmatprep.subr.bf16.mxu0 %v2688
    %4565 = vmatpush2.bf16.msra.mxu0 %v2687
    %4566 = vmatprep.subr.bf16.mxu0 %v2672
    %4567 = vmatpush2.bf16.msra.mxu0 %v2671
    %4568 = vmatprep.subr.bf16.mxu0 %v2656
    %4569 = vmatpush2.bf16.msra.mxu0 %v2655
    %4570 = vmatprep.subr.bf16.mxu0 %v2640
    %4571 = vmatpush2.bf16.msra.mxu0 %v2639
    %4572 = vmatprep.mubr.bf16.mxu0 %v158
    %4573 = vmatmul.mubr.bf16.gmra.mxu0 %v157
    %v4574 = vpop.f32.mrf.mxu0
    %v4575 = vadd.f32 %v4434, %v4574
    %v4576 = vpop.f32.mrf.mxu0
    %v4577 = vadd.f32 %v4436, %v4576
    %v4578 = vpop.f32.mrf.mxu0
    %v4579 = vadd.f32 %v4438, %v4578
    %v4580 = vpop.f32.mrf.mxu0
    %v4581 = vadd.f32 %v4440, %v4580
    %4582 = vmatprep.mubr.bf16.mxu0 %v162
    %4583 = vmatmul.mubr.bf16.gmra.mxu0 %v161
    %v4584 = vpop.f32.mrf.mxu0
    %v4585 = vadd.f32 %v4444, %v4584
    %v4586 = vpop.f32.mrf.mxu0
    %v4587 = vadd.f32 %v4446, %v4586
    %v4588 = vpop.f32.mrf.mxu0
    %v4589 = vadd.f32 %v4448, %v4588
    %v4590 = vpop.f32.mrf.mxu0
    %v4591 = vadd.f32 %v4450, %v4590
    %4592 = vmatprep.mubr.bf16.mxu0 %v166
    %4593 = vmatmul.mubr.bf16.gmra.mxu0 %v165
    %v4594 = vpop.f32.mrf.mxu0
    %v4595 = vadd.f32 %v4454, %v4594
    %v4596 = vpop.f32.mrf.mxu0
    %v4597 = vadd.f32 %v4456, %v4596
    %v4598 = vpop.f32.mrf.mxu0
    %v4599 = vadd.f32 %v4458, %v4598
    %v4600 = vpop.f32.mrf.mxu0
    %v4601 = vadd.f32 %v4460, %v4600
    %4602 = vmatprep.mubr.bf16.mxu0 %v170
    %4603 = vmatmul.mubr.bf16.gmra.mxu0 %v169
    %v4604 = vpop.f32.mrf.mxu0
    %v4605 = vadd.f32 %v4464, %v4604
    %v4606 = vpop.f32.mrf.mxu0
    %v4607 = vadd.f32 %v4466, %v4606
    %v4608 = vpop.f32.mrf.mxu0
    %v4609 = vadd.f32 %v4468, %v4608
    %v4610 = vpop.f32.mrf.mxu0
    %v4611 = vadd.f32 %v4470, %v4610
    %4612 = vmatprep.mubr.bf16.mxu0 %v174
    %4613 = vmatmul.mubr.bf16.gmra.mxu0 %v173
    %v4614 = vpop.f32.mrf.mxu0
    %v4615 = vadd.f32 %v4474, %v4614
    %v4616 = vpop.f32.mrf.mxu0
    %v4617 = vadd.f32 %v4476, %v4616
    %v4618 = vpop.f32.mrf.mxu0
    %v4619 = vadd.f32 %v4478, %v4618
    %v4620 = vpop.f32.mrf.mxu0
    %v4621 = vadd.f32 %v4480, %v4620
    %4622 = vmatprep.mubr.bf16.mxu0 %v178
    %4623 = vmatmul.mubr.bf16.gmra.mxu0 %v177
    %v4624 = vpop.f32.mrf.mxu0
    %v4625 = vadd.f32 %v4484, %v4624
    %v4626 = vpop.f32.mrf.mxu0
    %v4627 = vadd.f32 %v4486, %v4626
    %v4628 = vpop.f32.mrf.mxu0
    %v4629 = vadd.f32 %v4488, %v4628
    %v4630 = vpop.f32.mrf.mxu0
    %v4631 = vadd.f32 %v4490, %v4630
    %4632 = vmatprep.mubr.bf16.mxu0 %v182
    %4633 = vmatmul.mubr.bf16.gmra.mxu0 %v181
    %v4634 = vpop.f32.mrf.mxu0
    %v4635 = vadd.f32 %v4494, %v4634
    %v4636 = vpop.f32.mrf.mxu0
    %v4637 = vadd.f32 %v4496, %v4636
    %v4638 = vpop.f32.mrf.mxu0
    %v4639 = vadd.f32 %v4498, %v4638
    %v4640 = vpop.f32.mrf.mxu0
    %v4641 = vadd.f32 %v4500, %v4640
    %4642 = vmatprep.mubr.bf16.mxu0 %v186
    %4643 = vmatmul.mubr.bf16.gmra.mxu0 %v185
    %v4644 = vpop.f32.mrf.mxu0
    %v4645 = vadd.f32 %v4504, %v4644
    %v4646 = vpop.f32.mrf.mxu0
    %v4647 = vadd.f32 %v4506, %v4646
    %v4648 = vpop.f32.mrf.mxu0
    %v4649 = vadd.f32 %v4508, %v4648
    %v4650 = vpop.f32.mrf.mxu0
    %v4651 = vadd.f32 %v4510, %v4650
    %4652 = vmatprep.mubr.bf16.mxu0 %v190
    %4653 = vmatmul.mubr.bf16.gmra.mxu0 %v189
    %v4654 = vpop.f32.mrf.mxu0
    %v4655 = vadd.f32 %v4514, %v4654
    %v4656 = vpop.f32.mrf.mxu0
    %v4657 = vadd.f32 %v4516, %v4656
    %v4658 = vpop.f32.mrf.mxu0
    %v4659 = vadd.f32 %v4518, %v4658
    %v4660 = vpop.f32.mrf.mxu0
    %v4661 = vadd.f32 %v4520, %v4660
    %4662 = vmatprep.mubr.bf16.mxu0 %v194
    %4663 = vmatmul.mubr.bf16.gmra.mxu0 %v193
    %v4664 = vpop.f32.mrf.mxu0
    %v4665 = vadd.f32 %v4524, %v4664
    %v4666 = vpop.f32.mrf.mxu0
    %v4667 = vadd.f32 %v4526, %v4666
    %v4668 = vpop.f32.mrf.mxu0
    %v4669 = vadd.f32 %v4528, %v4668
    %v4670 = vpop.f32.mrf.mxu0
    %v4671 = vadd.f32 %v4530, %v4670
    %4672 = vmatprep.mubr.bf16.mxu0 %v198
    %4673 = vmatmul.mubr.bf16.gmra.mxu0 %v197
    %v4674 = vpop.f32.mrf.mxu0
    %v4675 = vadd.f32 %v4534, %v4674
    %v4676 = vpop.f32.mrf.mxu0
    %v4677 = vadd.f32 %v4536, %v4676
    %v4678 = vpop.f32.mrf.mxu0
    %v4679 = vpop.f32.mrf.mxu0
    %4680 = vdwg.mxu0
    %4681 = vmatprep.subr.bf16.mxu0 %v2370
    %4682 = vmatpush1.bf16.msra.mxu0 %v2369
    %4683 = vmatprep.subr.bf16.mxu0 %v2354
    %4684 = vmatpush1.bf16.msra.mxu0 %v2353
    %4685 = vmatprep.subr.bf16.mxu0 %v2338
    %4686 = vmatpush1.bf16.msra.mxu0 %v2337
    %4687 = vmatprep.subr.bf16.mxu0 %v2322
    %4688 = vmatpush1.bf16.msra.mxu0 %v2321
    %4689 = vmatprep.subr.bf16.mxu0 %v2306
    %4690 = vmatpush1.bf16.msra.mxu0 %v2305
    %4691 = vmatprep.subr.bf16.mxu0 %v2290
    %4692 = vmatpush1.bf16.msra.mxu0 %v2289
    %4693 = vmatprep.subr.bf16.mxu0 %v2274
    %4694 = vmatpush1.bf16.msra.mxu0 %v2273
    %4695 = vmatprep.subr.bf16.mxu0 %v2258
    %4696 = vmatpush1.bf16.msra.mxu0 %v2257
    %4697 = vmatprep.subr.bf16.mxu0 %v2498
    %4698 = vmatpush2.bf16.msra.mxu0 %v2497
    %4699 = vmatprep.subr.bf16.mxu0 %v2482
    %4700 = vmatpush2.bf16.msra.mxu0 %v2481
    %4701 = vmatprep.subr.bf16.mxu0 %v2466
    %4702 = vmatpush2.bf16.msra.mxu0 %v2465
    %4703 = vmatprep.subr.bf16.mxu0 %v2450
    %4704 = vmatpush2.bf16.msra.mxu0 %v2449
    %4705 = vmatprep.subr.bf16.mxu0 %v2434
    %4706 = vmatpush2.bf16.msra.mxu0 %v2433
    %4707 = vmatprep.subr.bf16.mxu0 %v2418
    %4708 = vmatpush2.bf16.msra.mxu0 %v2417
    %4709 = vmatprep.subr.bf16.mxu0 %v2402
    %4710 = vmatpush2.bf16.msra.mxu0 %v2401
    %4711 = vmatprep.subr.bf16.mxu0 %v2386
    %4712 = vmatpush2.bf16.msra.mxu0 %v2385
    %4713 = vmatprep.mubr.bf16.mxu0 %v156
    %4714 = vmatmul.mubr.bf16.gmra.mxu0 %v155
    %v4715 = vpop.f32.mrf.mxu0
    %v4716 = vadd.f32 0.0, %v4715
    %v4717 = vpop.f32.mrf.mxu0
    %v4718 = vadd.f32 0.0, %v4717
    %v4719 = vpop.f32.mrf.mxu0
    %v4720 = vadd.f32 0.0, %v4719
    %v4721 = vpop.f32.mrf.mxu0
    %v4722 = vadd.f32 0.0, %v4721
    %4723 = vmatprep.mubr.bf16.mxu0 %v160
    %4724 = vmatmul.mubr.bf16.gmra.mxu0 %v159
    %v4725 = vpop.f32.mrf.mxu0
    %v4726 = vadd.f32 0.0, %v4725
    %v4727 = vpop.f32.mrf.mxu0
    %v4728 = vadd.f32 0.0, %v4727
    %v4729 = vpop.f32.mrf.mxu0
    %v4730 = vadd.f32 0.0, %v4729
    %v4731 = vpop.f32.mrf.mxu0
    %v4732 = vadd.f32 0.0, %v4731
    %4733 = vmatprep.mubr.bf16.mxu0 %v164
    %4734 = vmatmul.mubr.bf16.gmra.mxu0 %v163
    %v4735 = vpop.f32.mrf.mxu0
    %v4736 = vadd.f32 0.0, %v4735
    %v4737 = vpop.f32.mrf.mxu0
    %v4738 = vadd.f32 0.0, %v4737
    %v4739 = vpop.f32.mrf.mxu0
    %v4740 = vadd.f32 0.0, %v4739
    %v4741 = vpop.f32.mrf.mxu0
    %v4742 = vadd.f32 0.0, %v4741
    %4743 = vmatprep.mubr.bf16.mxu0 %v168
    %4744 = vmatmul.mubr.bf16.gmra.mxu0 %v167
    %v4745 = vpop.f32.mrf.mxu0
    %v4746 = vadd.f32 0.0, %v4745
    %v4747 = vpop.f32.mrf.mxu0
    %v4748 = vadd.f32 0.0, %v4747
    %v4749 = vpop.f32.mrf.mxu0
    %v4750 = vadd.f32 0.0, %v4749
    %v4751 = vpop.f32.mrf.mxu0
    %v4752 = vadd.f32 0.0, %v4751
    %4753 = vmatprep.mubr.bf16.mxu0 %v172
    %4754 = vmatmul.mubr.bf16.gmra.mxu0 %v171
    %v4755 = vpop.f32.mrf.mxu0
    %v4756 = vadd.f32 0.0, %v4755
    %v4757 = vpop.f32.mrf.mxu0
    %v4758 = vadd.f32 0.0, %v4757
    %v4759 = vpop.f32.mrf.mxu0
    %v4760 = vadd.f32 0.0, %v4759
    %v4761 = vpop.f32.mrf.mxu0
    %v4762 = vadd.f32 0.0, %v4761
    %4763 = vmatprep.mubr.bf16.mxu0 %v176
    %4764 = vmatmul.mubr.bf16.gmra.mxu0 %v175
    %v4765 = vpop.f32.mrf.mxu0
    %v4766 = vadd.f32 0.0, %v4765
    %v4767 = vpop.f32.mrf.mxu0
    %v4768 = vadd.f32 0.0, %v4767
    %v4769 = vpop.f32.mrf.mxu0
    %v4770 = vadd.f32 0.0, %v4769
    %v4771 = vpop.f32.mrf.mxu0
    %v4772 = vadd.f32 0.0, %v4771
    %4773 = vmatprep.mubr.bf16.mxu0 %v180
    %4774 = vmatmul.mubr.bf16.gmra.mxu0 %v179
    %v4775 = vpop.f32.mrf.mxu0
    %v4776 = vadd.f32 0.0, %v4775
    %v4777 = vpop.f32.mrf.mxu0
    %v4778 = vadd.f32 0.0, %v4777
    %v4779 = vpop.f32.mrf.mxu0
    %v4780 = vadd.f32 0.0, %v4779
    %v4781 = vpop.f32.mrf.mxu0
    %v4782 = vadd.f32 0.0, %v4781
    %4783 = vmatprep.mubr.bf16.mxu0 %v184
    %4784 = vmatmul.mubr.bf16.gmra.mxu0 %v183
    %v4785 = vpop.f32.mrf.mxu0
    %v4786 = vadd.f32 0.0, %v4785
    %v4787 = vpop.f32.mrf.mxu0
    %v4788 = vadd.f32 0.0, %v4787
    %v4789 = vpop.f32.mrf.mxu0
    %v4790 = vadd.f32 0.0, %v4789
    %v4791 = vpop.f32.mrf.mxu0
    %v4792 = vadd.f32 0.0, %v4791
    %4793 = vmatprep.mubr.bf16.mxu0 %v188
    %4794 = vmatmul.mubr.bf16.gmra.mxu0 %v187
    %v4795 = vpop.f32.mrf.mxu0
    %v4796 = vadd.f32 0.0, %v4795
    %v4797 = vpop.f32.mrf.mxu0
    %v4798 = vadd.f32 0.0, %v4797
    %v4799 = vpop.f32.mrf.mxu0
    %v4800 = vadd.f32 0.0, %v4799
    %v4801 = vpop.f32.mrf.mxu0
    %v4802 = vadd.f32 0.0, %v4801
    %4803 = vmatprep.mubr.bf16.mxu0 %v192
    %4804 = vmatmul.mubr.bf16.gmra.mxu0 %v191
    %v4805 = vpop.f32.mrf.mxu0
    %v4806 = vadd.f32 0.0, %v4805
    %v4807 = vpop.f32.mrf.mxu0
    %v4808 = vadd.f32 0.0, %v4807
    %v4809 = vpop.f32.mrf.mxu0
    %v4810 = vadd.f32 0.0, %v4809
    %v4811 = vpop.f32.mrf.mxu0
    %v4812 = vadd.f32 0.0, %v4811
    %4813 = vmatprep.mubr.bf16.mxu0 %v196
    %4814 = vmatmul.mubr.bf16.gmra.mxu0 %v195
    %v4815 = vpop.f32.mrf.mxu0
    %v4816 = vadd.f32 0.0, %v4815
    %v4817 = vpop.f32.mrf.mxu0
    %v4818 = vadd.f32 0.0, %v4817
    %v4819 = vpop.f32.mrf.mxu0
    %v4820 = vpop.f32.mrf.mxu0
    %4821 = vdwg.mxu0
    %4822 = vmatprep.subr.bf16.mxu0 %v2626
    %4823 = vmatpush1.bf16.msra.mxu0 %v2625
    %4824 = vmatprep.subr.bf16.mxu0 %v2610
    %4825 = vmatpush1.bf16.msra.mxu0 %v2609
    %4826 = vmatprep.subr.bf16.mxu0 %v2594
    %4827 = vmatpush1.bf16.msra.mxu0 %v2593
    %4828 = vmatprep.subr.bf16.mxu0 %v2578
    %4829 = vmatpush1.bf16.msra.mxu0 %v2577
    %4830 = vmatprep.subr.bf16.mxu0 %v2562
    %4831 = vmatpush1.bf16.msra.mxu0 %v2561
    %4832 = vmatprep.subr.bf16.mxu0 %v2546
    %4833 = vmatpush1.bf16.msra.mxu0 %v2545
    %4834 = vmatprep.subr.bf16.mxu0 %v2530
    %4835 = vmatpush1.bf16.msra.mxu0 %v2529
    %4836 = vmatprep.subr.bf16.mxu0 %v2514
    %4837 = vmatpush1.bf16.msra.mxu0 %v2513
    %4838 = vmatprep.subr.bf16.mxu0 %v2754
    %4839 = vmatpush2.bf16.msra.mxu0 %v2753
    %4840 = vmatprep.subr.bf16.mxu0 %v2738
    %4841 = vmatpush2.bf16.msra.mxu0 %v2737
    %4842 = vmatprep.subr.bf16.mxu0 %v2722
    %4843 = vmatpush2.bf16.msra.mxu0 %v2721
    %4844 = vmatprep.subr.bf16.mxu0 %v2706
    %4845 = vmatpush2.bf16.msra.mxu0 %v2705
    %4846 = vmatprep.subr.bf16.mxu0 %v2690
    %4847 = vmatpush2.bf16.msra.mxu0 %v2689
    %4848 = vmatprep.subr.bf16.mxu0 %v2674
    %4849 = vmatpush2.bf16.msra.mxu0 %v2673
    %4850 = vmatprep.subr.bf16.mxu0 %v2658
    %4851 = vmatpush2.bf16.msra.mxu0 %v2657
    %4852 = vmatprep.subr.bf16.mxu0 %v2642
    %4853 = vmatpush2.bf16.msra.mxu0 %v2641
    %4854 = vmatprep.mubr.bf16.mxu0 %v158
    %4855 = vmatmul.mubr.bf16.gmra.mxu0 %v157
    %v4856 = vpop.f32.mrf.mxu0
    %v4857 = vadd.f32 %v4716, %v4856
    %v4858 = vpop.f32.mrf.mxu0
    %v4859 = vadd.f32 %v4718, %v4858
    %v4860 = vpop.f32.mrf.mxu0
    %v4861 = vadd.f32 %v4720, %v4860
    %v4862 = vpop.f32.mrf.mxu0
    %v4863 = vadd.f32 %v4722, %v4862
    %4864 = vmatprep.mubr.bf16.mxu0 %v162
    %4865 = vmatmul.mubr.bf16.gmra.mxu0 %v161
    %v4866 = vpop.f32.mrf.mxu0
    %v4867 = vadd.f32 %v4726, %v4866
    %v4868 = vpop.f32.mrf.mxu0
    %v4869 = vadd.f32 %v4728, %v4868
    %v4870 = vpop.f32.mrf.mxu0
    %v4871 = vadd.f32 %v4730, %v4870
    %v4872 = vpop.f32.mrf.mxu0
    %v4873 = vadd.f32 %v4732, %v4872
    %4874 = vmatprep.mubr.bf16.mxu0 %v166
    %4875 = vmatmul.mubr.bf16.gmra.mxu0 %v165
    %v4876 = vpop.f32.mrf.mxu0
    %v4877 = vadd.f32 %v4736, %v4876
    %v4878 = vpop.f32.mrf.mxu0
    %v4879 = vadd.f32 %v4738, %v4878
    %v4880 = vpop.f32.mrf.mxu0
    %v4881 = vadd.f32 %v4740, %v4880
    %v4882 = vpop.f32.mrf.mxu0
    %v4883 = vadd.f32 %v4742, %v4882
    %4884 = vmatprep.mubr.bf16.mxu0 %v170
    %4885 = vmatmul.mubr.bf16.gmra.mxu0 %v169
    %v4886 = vpop.f32.mrf.mxu0
    %v4887 = vadd.f32 %v4746, %v4886
    %v4888 = vpop.f32.mrf.mxu0
    %v4889 = vadd.f32 %v4748, %v4888
    %v4890 = vpop.f32.mrf.mxu0
    %v4891 = vadd.f32 %v4750, %v4890
    %v4892 = vpop.f32.mrf.mxu0
    %v4893 = vadd.f32 %v4752, %v4892
    %4894 = vmatprep.mubr.bf16.mxu0 %v174
    %4895 = vmatmul.mubr.bf16.gmra.mxu0 %v173
    %v4896 = vpop.f32.mrf.mxu0
    %v4897 = vadd.f32 %v4756, %v4896
    %v4898 = vpop.f32.mrf.mxu0
    %v4899 = vadd.f32 %v4758, %v4898
    %v4900 = vpop.f32.mrf.mxu0
    %v4901 = vadd.f32 %v4760, %v4900
    %v4902 = vpop.f32.mrf.mxu0
    %v4903 = vadd.f32 %v4762, %v4902
    %4904 = vmatprep.mubr.bf16.mxu0 %v178
    %4905 = vmatmul.mubr.bf16.gmra.mxu0 %v177
    %v4906 = vpop.f32.mrf.mxu0
    %v4907 = vadd.f32 %v4766, %v4906
    %v4908 = vpop.f32.mrf.mxu0
    %v4909 = vadd.f32 %v4768, %v4908
    %v4910 = vpop.f32.mrf.mxu0
    %v4911 = vadd.f32 %v4770, %v4910
    %v4912 = vpop.f32.mrf.mxu0
    %v4913 = vadd.f32 %v4772, %v4912
    %4914 = vmatprep.mubr.bf16.mxu0 %v182
    %4915 = vmatmul.mubr.bf16.gmra.mxu0 %v181
    %v4916 = vpop.f32.mrf.mxu0
    %v4917 = vadd.f32 %v4776, %v4916
    %v4918 = vpop.f32.mrf.mxu0
    %v4919 = vadd.f32 %v4778, %v4918
    %v4920 = vpop.f32.mrf.mxu0
    %v4921 = vadd.f32 %v4780, %v4920
    %v4922 = vpop.f32.mrf.mxu0
    %v4923 = vadd.f32 %v4782, %v4922
    %4924 = vmatprep.mubr.bf16.mxu0 %v186
    %4925 = vmatmul.mubr.bf16.gmra.mxu0 %v185
    %v4926 = vpop.f32.mrf.mxu0
    %v4927 = vadd.f32 %v4786, %v4926
    %v4928 = vpop.f32.mrf.mxu0
    %v4929 = vadd.f32 %v4788, %v4928
    %v4930 = vpop.f32.mrf.mxu0
    %v4931 = vadd.f32 %v4790, %v4930
    %v4932 = vpop.f32.mrf.mxu0
    %v4933 = vadd.f32 %v4792, %v4932
    %4934 = vmatprep.mubr.bf16.mxu0 %v190
    %4935 = vmatmul.mubr.bf16.gmra.mxu0 %v189
    %v4936 = vpop.f32.mrf.mxu0
    %v4937 = vadd.f32 %v4796, %v4936
    %v4938 = vpop.f32.mrf.mxu0
    %v4939 = vadd.f32 %v4798, %v4938
    %v4940 = vpop.f32.mrf.mxu0
    %v4941 = vadd.f32 %v4800, %v4940
    %v4942 = vpop.f32.mrf.mxu0
    %v4943 = vadd.f32 %v4802, %v4942
    %4944 = vmatprep.mubr.bf16.mxu0 %v194
    %4945 = vmatmul.mubr.bf16.gmra.mxu0 %v193
    %v4946 = vpop.f32.mrf.mxu0
    %v4947 = vadd.f32 %v4806, %v4946
    %v4948 = vpop.f32.mrf.mxu0
    %v4949 = vadd.f32 %v4808, %v4948
    %v4950 = vpop.f32.mrf.mxu0
    %v4951 = vadd.f32 %v4810, %v4950
    %v4952 = vpop.f32.mrf.mxu0
    %v4953 = vadd.f32 %v4812, %v4952
    %4954 = vmatprep.mubr.bf16.mxu0 %v198
    %4955 = vmatmul.mubr.bf16.gmra.mxu0 %v197
    %v4956 = vpop.f32.mrf.mxu0
    %v4957 = vadd.f32 %v4816, %v4956
    %v4958 = vpop.f32.mrf.mxu0
    %v4959 = vadd.f32 %v4818, %v4958
    %v4960 = vpop.f32.mrf.mxu0
    %v4961 = vpop.f32.mrf.mxu0
    %4962 = vdwg.mxu0
    %4963 = vmatprep.subr.bf16.mxu0 %v2372
    %4964 = vmatpush1.bf16.msra.mxu0 %v2371
    %4965 = vmatprep.subr.bf16.mxu0 %v2356
    %4966 = vmatpush1.bf16.msra.mxu0 %v2355
    %4967 = vmatprep.subr.bf16.mxu0 %v2340
    %4968 = vmatpush1.bf16.msra.mxu0 %v2339
    %4969 = vmatprep.subr.bf16.mxu0 %v2324
    %4970 = vmatpush1.bf16.msra.mxu0 %v2323
    %4971 = vmatprep.subr.bf16.mxu0 %v2308
    %4972 = vmatpush1.bf16.msra.mxu0 %v2307
    %4973 = vmatprep.subr.bf16.mxu0 %v2292
    %4974 = vmatpush1.bf16.msra.mxu0 %v2291
    %4975 = vmatprep.subr.bf16.mxu0 %v2276
    %4976 = vmatpush1.bf16.msra.mxu0 %v2275
    %4977 = vmatprep.subr.bf16.mxu0 %v2260
    %4978 = vmatpush1.bf16.msra.mxu0 %v2259
    %4979 = vmatprep.subr.bf16.mxu0 %v2500
    %4980 = vmatpush2.bf16.msra.mxu0 %v2499
    %4981 = vmatprep.subr.bf16.mxu0 %v2484
    %4982 = vmatpush2.bf16.msra.mxu0 %v2483
    %4983 = vmatprep.subr.bf16.mxu0 %v2468
    %4984 = vmatpush2.bf16.msra.mxu0 %v2467
    %4985 = vmatprep.subr.bf16.mxu0 %v2452
    %4986 = vmatpush2.bf16.msra.mxu0 %v2451
    %4987 = vmatprep.subr.bf16.mxu0 %v2436
    %4988 = vmatpush2.bf16.msra.mxu0 %v2435
    %4989 = vmatprep.subr.bf16.mxu0 %v2420
    %4990 = vmatpush2.bf16.msra.mxu0 %v2419
    %4991 = vmatprep.subr.bf16.mxu0 %v2404
    %4992 = vmatpush2.bf16.msra.mxu0 %v2403
    %4993 = vmatprep.subr.bf16.mxu0 %v2388
    %4994 = vmatpush2.bf16.msra.mxu0 %v2387
    %4995 = vmatprep.mubr.bf16.mxu0 %v156
    %4996 = vmatmul.mubr.bf16.gmra.mxu0 %v155
    %v4997 = vpop.f32.mrf.mxu0
    %v4998 = vadd.f32 0.0, %v4997
    %v4999 = vpop.f32.mrf.mxu0
    %v5000 = vadd.f32 0.0, %v4999
    %v5001 = vpop.f32.mrf.mxu0
    %v5002 = vadd.f32 0.0, %v5001
    %v5003 = vpop.f32.mrf.mxu0
    %v5004 = vadd.f32 0.0, %v5003
    %5005 = vmatprep.mubr.bf16.mxu0 %v160
    %5006 = vmatmul.mubr.bf16.gmra.mxu0 %v159
    %v5007 = vpop.f32.mrf.mxu0
    %v5008 = vadd.f32 0.0, %v5007
    %v5009 = vpop.f32.mrf.mxu0
    %v5010 = vadd.f32 0.0, %v5009
    %v5011 = vpop.f32.mrf.mxu0
    %v5012 = vadd.f32 0.0, %v5011
    %v5013 = vpop.f32.mrf.mxu0
    %v5014 = vadd.f32 0.0, %v5013
    %5015 = vmatprep.mubr.bf16.mxu0 %v164
    %5016 = vmatmul.mubr.bf16.gmra.mxu0 %v163
    %v5017 = vpop.f32.mrf.mxu0
    %v5018 = vadd.f32 0.0, %v5017
    %v5019 = vpop.f32.mrf.mxu0
    %v5020 = vadd.f32 0.0, %v5019
    %v5021 = vpop.f32.mrf.mxu0
    %v5022 = vadd.f32 0.0, %v5021
    %v5023 = vpop.f32.mrf.mxu0
    %v5024 = vadd.f32 0.0, %v5023
    %5025 = vmatprep.mubr.bf16.mxu0 %v168
    %5026 = vmatmul.mubr.bf16.gmra.mxu0 %v167
    %v5027 = vpop.f32.mrf.mxu0
    %v5028 = vadd.f32 0.0, %v5027
    %v5029 = vpop.f32.mrf.mxu0
    %v5030 = vadd.f32 0.0, %v5029
    %v5031 = vpop.f32.mrf.mxu0
    %v5032 = vadd.f32 0.0, %v5031
    %v5033 = vpop.f32.mrf.mxu0
    %v5034 = vadd.f32 0.0, %v5033
    %5035 = vmatprep.mubr.bf16.mxu0 %v172
    %5036 = vmatmul.mubr.bf16.gmra.mxu0 %v171
    %v5037 = vpop.f32.mrf.mxu0
    %v5038 = vadd.f32 0.0, %v5037
    %v5039 = vpop.f32.mrf.mxu0
    %v5040 = vadd.f32 0.0, %v5039
    %v5041 = vpop.f32.mrf.mxu0
    %v5042 = vadd.f32 0.0, %v5041
    %v5043 = vpop.f32.mrf.mxu0
    %v5044 = vadd.f32 0.0, %v5043
    %5045 = vmatprep.mubr.bf16.mxu0 %v176
    %5046 = vmatmul.mubr.bf16.gmra.mxu0 %v175
    %v5047 = vpop.f32.mrf.mxu0
    %v5048 = vadd.f32 0.0, %v5047
    %v5049 = vpop.f32.mrf.mxu0
    %v5050 = vadd.f32 0.0, %v5049
    %v5051 = vpop.f32.mrf.mxu0
    %v5052 = vadd.f32 0.0, %v5051
    %v5053 = vpop.f32.mrf.mxu0
    %v5054 = vadd.f32 0.0, %v5053
    %5055 = vmatprep.mubr.bf16.mxu0 %v180
    %5056 = vmatmul.mubr.bf16.gmra.mxu0 %v179
    %v5057 = vpop.f32.mrf.mxu0
    %v5058 = vadd.f32 0.0, %v5057
    %v5059 = vpop.f32.mrf.mxu0
    %v5060 = vadd.f32 0.0, %v5059
    %v5061 = vpop.f32.mrf.mxu0
    %v5062 = vadd.f32 0.0, %v5061
    %v5063 = vpop.f32.mrf.mxu0
    %v5064 = vadd.f32 0.0, %v5063
    %5065 = vmatprep.mubr.bf16.mxu0 %v184
    %5066 = vmatmul.mubr.bf16.gmra.mxu0 %v183
    %v5067 = vpop.f32.mrf.mxu0
    %v5068 = vadd.f32 0.0, %v5067
    %v5069 = vpop.f32.mrf.mxu0
    %v5070 = vadd.f32 0.0, %v5069
    %v5071 = vpop.f32.mrf.mxu0
    %v5072 = vadd.f32 0.0, %v5071
    %v5073 = vpop.f32.mrf.mxu0
    %v5074 = vadd.f32 0.0, %v5073
    %5075 = vmatprep.mubr.bf16.mxu0 %v188
    %5076 = vmatmul.mubr.bf16.gmra.mxu0 %v187
    %v5077 = vpop.f32.mrf.mxu0
    %v5078 = vadd.f32 0.0, %v5077
    %v5079 = vpop.f32.mrf.mxu0
    %v5080 = vadd.f32 0.0, %v5079
    %v5081 = vpop.f32.mrf.mxu0
    %v5082 = vadd.f32 0.0, %v5081
    %v5083 = vpop.f32.mrf.mxu0
    %v5084 = vadd.f32 0.0, %v5083
    %5085 = vmatprep.mubr.bf16.mxu0 %v192
    %5086 = vmatmul.mubr.bf16.gmra.mxu0 %v191
    %v5087 = vpop.f32.mrf.mxu0
    %v5088 = vadd.f32 0.0, %v5087
    %v5089 = vpop.f32.mrf.mxu0
    %v5090 = vadd.f32 0.0, %v5089
    %v5091 = vpop.f32.mrf.mxu0
    %v5092 = vadd.f32 0.0, %v5091
    %v5093 = vpop.f32.mrf.mxu0
    %v5094 = vadd.f32 0.0, %v5093
    %5095 = vmatprep.mubr.bf16.mxu0 %v196
    %5096 = vmatmul.mubr.bf16.gmra.mxu0 %v195
    %v5097 = vpop.f32.mrf.mxu0
    %v5098 = vadd.f32 0.0, %v5097
    %v5099 = vpop.f32.mrf.mxu0
    %v5100 = vadd.f32 0.0, %v5099
    %v5101 = vpop.f32.mrf.mxu0
    %v5102 = vpop.f32.mrf.mxu0
    %5103 = vdwg.mxu0
    %5104 = vmatprep.subr.bf16.mxu0 %v2628
    %5105 = vmatpush1.bf16.msra.mxu0 %v2627
    %5106 = vmatprep.subr.bf16.mxu0 %v2612
    %5107 = vmatpush1.bf16.msra.mxu0 %v2611
    %5108 = vmatprep.subr.bf16.mxu0 %v2596
    %5109 = vmatpush1.bf16.msra.mxu0 %v2595
    %5110 = vmatprep.subr.bf16.mxu0 %v2580
    %5111 = vmatpush1.bf16.msra.mxu0 %v2579
    %5112 = vmatprep.subr.bf16.mxu0 %v2564
    %5113 = vmatpush1.bf16.msra.mxu0 %v2563
    %5114 = vmatprep.subr.bf16.mxu0 %v2548
    %5115 = vmatpush1.bf16.msra.mxu0 %v2547
    %5116 = vmatprep.subr.bf16.mxu0 %v2532
    %5117 = vmatpush1.bf16.msra.mxu0 %v2531
    %5118 = vmatprep.subr.bf16.mxu0 %v2516
    %5119 = vmatpush1.bf16.msra.mxu0 %v2515
    %5120 = vmatprep.subr.bf16.mxu0 %v2756
    %5121 = vmatpush2.bf16.msra.mxu0 %v2755
    %5122 = vmatprep.subr.bf16.mxu0 %v2740
    %5123 = vmatpush2.bf16.msra.mxu0 %v2739
    %5124 = vmatprep.subr.bf16.mxu0 %v2724
    %5125 = vmatpush2.bf16.msra.mxu0 %v2723
    %5126 = vmatprep.subr.bf16.mxu0 %v2708
    %5127 = vmatpush2.bf16.msra.mxu0 %v2707
    %5128 = vmatprep.subr.bf16.mxu0 %v2692
    %5129 = vmatpush2.bf16.msra.mxu0 %v2691
    %5130 = vmatprep.subr.bf16.mxu0 %v2676
    %5131 = vmatpush2.bf16.msra.mxu0 %v2675
    %5132 = vmatprep.subr.bf16.mxu0 %v2660
    %5133 = vmatpush2.bf16.msra.mxu0 %v2659
    %5134 = vmatprep.subr.bf16.mxu0 %v2644
    %5135 = vmatpush2.bf16.msra.mxu0 %v2643
    %5136 = vmatprep.mubr.bf16.mxu0 %v158
    %5137 = vmatmul.mubr.bf16.gmra.mxu0 %v157
    %v5138 = vpop.f32.mrf.mxu0
    %v5139 = vadd.f32 %v4998, %v5138
    %v5140 = vpop.f32.mrf.mxu0
    %v5141 = vadd.f32 %v5000, %v5140
    %v5142 = vpop.f32.mrf.mxu0
    %v5143 = vadd.f32 %v5002, %v5142
    %v5144 = vpop.f32.mrf.mxu0
    %v5145 = vadd.f32 %v5004, %v5144
    %5146 = vmatprep.mubr.bf16.mxu0 %v162
    %5147 = vmatmul.mubr.bf16.gmra.mxu0 %v161
    %v5148 = vpop.f32.mrf.mxu0
    %v5149 = vadd.f32 %v5008, %v5148
    %v5150 = vpop.f32.mrf.mxu0
    %v5151 = vadd.f32 %v5010, %v5150
    %v5152 = vpop.f32.mrf.mxu0
    %v5153 = vadd.f32 %v5012, %v5152
    %v5154 = vpop.f32.mrf.mxu0
    %v5155 = vadd.f32 %v5014, %v5154
    %5156 = vmatprep.mubr.bf16.mxu0 %v166
    %5157 = vmatmul.mubr.bf16.gmra.mxu0 %v165
    %v5158 = vpop.f32.mrf.mxu0
    %v5159 = vadd.f32 %v5018, %v5158
    %v5160 = vpop.f32.mrf.mxu0
    %v5161 = vadd.f32 %v5020, %v5160
    %v5162 = vpop.f32.mrf.mxu0
    %v5163 = vadd.f32 %v5022, %v5162
    %v5164 = vpop.f32.mrf.mxu0
    %v5165 = vadd.f32 %v5024, %v5164
    %5166 = vmatprep.mubr.bf16.mxu0 %v170
    %5167 = vmatmul.mubr.bf16.gmra.mxu0 %v169
    %v5168 = vpop.f32.mrf.mxu0
    %v5169 = vadd.f32 %v5028, %v5168
    %v5170 = vpop.f32.mrf.mxu0
    %v5171 = vadd.f32 %v5030, %v5170
    %v5172 = vpop.f32.mrf.mxu0
    %v5173 = vadd.f32 %v5032, %v5172
    %v5174 = vpop.f32.mrf.mxu0
    %v5175 = vadd.f32 %v5034, %v5174
    %5176 = vmatprep.mubr.bf16.mxu0 %v174
    %5177 = vmatmul.mubr.bf16.gmra.mxu0 %v173
    %v5178 = vpop.f32.mrf.mxu0
    %v5179 = vadd.f32 %v5038, %v5178
    %v5180 = vpop.f32.mrf.mxu0
    %v5181 = vadd.f32 %v5040, %v5180
    %v5182 = vpop.f32.mrf.mxu0
    %v5183 = vadd.f32 %v5042, %v5182
    %v5184 = vpop.f32.mrf.mxu0
    %v5185 = vadd.f32 %v5044, %v5184
    %5186 = vmatprep.mubr.bf16.mxu0 %v178
    %5187 = vmatmul.mubr.bf16.gmra.mxu0 %v177
    %v5188 = vpop.f32.mrf.mxu0
    %v5189 = vadd.f32 %v5048, %v5188
    %v5190 = vpop.f32.mrf.mxu0
    %v5191 = vadd.f32 %v5050, %v5190
    %v5192 = vpop.f32.mrf.mxu0
    %v5193 = vadd.f32 %v5052, %v5192
    %v5194 = vpop.f32.mrf.mxu0
    %v5195 = vadd.f32 %v5054, %v5194
    %5196 = vmatprep.mubr.bf16.mxu0 %v182
    %5197 = vmatmul.mubr.bf16.gmra.mxu0 %v181
    %v5198 = vpop.f32.mrf.mxu0
    %v5199 = vadd.f32 %v5058, %v5198
    %v5200 = vpop.f32.mrf.mxu0
    %v5201 = vadd.f32 %v5060, %v5200
    %v5202 = vpop.f32.mrf.mxu0
    %v5203 = vadd.f32 %v5062, %v5202
    %v5204 = vpop.f32.mrf.mxu0
    %v5205 = vadd.f32 %v5064, %v5204
    %5206 = vmatprep.mubr.bf16.mxu0 %v186
    %5207 = vmatmul.mubr.bf16.gmra.mxu0 %v185
    %v5208 = vpop.f32.mrf.mxu0
    %v5209 = vadd.f32 %v5068, %v5208
    %v5210 = vpop.f32.mrf.mxu0
    %v5211 = vadd.f32 %v5070, %v5210
    %v5212 = vpop.f32.mrf.mxu0
    %v5213 = vadd.f32 %v5072, %v5212
    %v5214 = vpop.f32.mrf.mxu0
    %v5215 = vadd.f32 %v5074, %v5214
    %5216 = vmatprep.mubr.bf16.mxu0 %v190
    %5217 = vmatmul.mubr.bf16.gmra.mxu0 %v189
    %v5218 = vpop.f32.mrf.mxu0
    %v5219 = vadd.f32 %v5078, %v5218
    %v5220 = vpop.f32.mrf.mxu0
    %v5221 = vadd.f32 %v5080, %v5220
    %v5222 = vpop.f32.mrf.mxu0
    %v5223 = vadd.f32 %v5082, %v5222
    %v5224 = vpop.f32.mrf.mxu0
    %v5225 = vadd.f32 %v5084, %v5224
    %5226 = vmatprep.mubr.bf16.mxu0 %v194
    %5227 = vmatmul.mubr.bf16.gmra.mxu0 %v193
    %v5228 = vpop.f32.mrf.mxu0
    %v5229 = vadd.f32 %v5088, %v5228
    %v5230 = vpop.f32.mrf.mxu0
    %v5231 = vadd.f32 %v5090, %v5230
    %v5232 = vpop.f32.mrf.mxu0
    %v5233 = vadd.f32 %v5092, %v5232
    %v5234 = vpop.f32.mrf.mxu0
    %v5235 = vadd.f32 %v5094, %v5234
    %5236 = vmatprep.mubr.bf16.mxu0 %v198
    %5237 = vmatmul.mubr.bf16.gmra.mxu0 %v197
    %v5238 = vpop.f32.mrf.mxu0
    %v5239 = vadd.f32 %v5098, %v5238
    %v5240 = vpop.f32.mrf.mxu0
    %v5241 = vadd.f32 %v5100, %v5240
    %v5242 = vpop.f32.mrf.mxu0
    %v5243 = vpop.f32.mrf.mxu0
    %5244 = vdwg.mxu0
    %5245 = vmatprep.subr.bf16.mxu0 %v2374
    %5246 = vmatpush1.bf16.msra.mxu0 %v2373
    %5247 = vmatprep.subr.bf16.mxu0 %v2358
    %5248 = vmatpush1.bf16.msra.mxu0 %v2357
    %5249 = vmatprep.subr.bf16.mxu0 %v2342
    %5250 = vmatpush1.bf16.msra.mxu0 %v2341
    %5251 = vmatprep.subr.bf16.mxu0 %v2326
    %5252 = vmatpush1.bf16.msra.mxu0 %v2325
    %5253 = vmatprep.subr.bf16.mxu0 %v2310
    %5254 = vmatpush1.bf16.msra.mxu0 %v2309
    %5255 = vmatprep.subr.bf16.mxu0 %v2294
    %5256 = vmatpush1.bf16.msra.mxu0 %v2293
    %5257 = vmatprep.subr.bf16.mxu0 %v2278
    %5258 = vmatpush1.bf16.msra.mxu0 %v2277
    %5259 = vmatprep.subr.bf16.mxu0 %v2262
    %5260 = vmatpush1.bf16.msra.mxu0 %v2261
    %5261 = vmatprep.subr.bf16.mxu0 %v2502
    %5262 = vmatpush2.bf16.msra.mxu0 %v2501
    %5263 = vmatprep.subr.bf16.mxu0 %v2486
    %5264 = vmatpush2.bf16.msra.mxu0 %v2485
    %5265 = vmatprep.subr.bf16.mxu0 %v2470
    %5266 = vmatpush2.bf16.msra.mxu0 %v2469
    %5267 = vmatprep.subr.bf16.mxu0 %v2454
    %5268 = vmatpush2.bf16.msra.mxu0 %v2453
    %5269 = vmatprep.subr.bf16.mxu0 %v2438
    %5270 = vmatpush2.bf16.msra.mxu0 %v2437
    %5271 = vmatprep.subr.bf16.mxu0 %v2422
    %5272 = vmatpush2.bf16.msra.mxu0 %v2421
    %5273 = vmatprep.subr.bf16.mxu0 %v2406
    %5274 = vmatpush2.bf16.msra.mxu0 %v2405
    %5275 = vmatprep.subr.bf16.mxu0 %v2390
    %5276 = vmatpush2.bf16.msra.mxu0 %v2389
    %5277 = vmatprep.mubr.bf16.mxu0 %v156
    %5278 = vmatmul.mubr.bf16.gmra.mxu0 %v155
    %v5279 = vpop.f32.mrf.mxu0
    %v5280 = vadd.f32 0.0, %v5279
    %v5281 = vpop.f32.mrf.mxu0
    %v5282 = vadd.f32 0.0, %v5281
    %v5283 = vpop.f32.mrf.mxu0
    %v5284 = vadd.f32 0.0, %v5283
    %v5285 = vpop.f32.mrf.mxu0
    %v5286 = vadd.f32 0.0, %v5285
    %5287 = vmatprep.mubr.bf16.mxu0 %v160
    %5288 = vmatmul.mubr.bf16.gmra.mxu0 %v159
    %v5289 = vpop.f32.mrf.mxu0
    %v5290 = vadd.f32 0.0, %v5289
    %v5291 = vpop.f32.mrf.mxu0
    %v5292 = vadd.f32 0.0, %v5291
    %v5293 = vpop.f32.mrf.mxu0
    %v5294 = vadd.f32 0.0, %v5293
    %v5295 = vpop.f32.mrf.mxu0
    %v5296 = vadd.f32 0.0, %v5295
    %5297 = vmatprep.mubr.bf16.mxu0 %v164
    %5298 = vmatmul.mubr.bf16.gmra.mxu0 %v163
    %v5299 = vpop.f32.mrf.mxu0
    %v5300 = vadd.f32 0.0, %v5299
    %v5301 = vpop.f32.mrf.mxu0
    %v5302 = vadd.f32 0.0, %v5301
    %v5303 = vpop.f32.mrf.mxu0
    %v5304 = vadd.f32 0.0, %v5303
    %v5305 = vpop.f32.mrf.mxu0
    %v5306 = vadd.f32 0.0, %v5305
    %5307 = vmatprep.mubr.bf16.mxu0 %v168
    %5308 = vmatmul.mubr.bf16.gmra.mxu0 %v167
    %v5309 = vpop.f32.mrf.mxu0
    %v5310 = vadd.f32 0.0, %v5309
    %v5311 = vpop.f32.mrf.mxu0
    %v5312 = vadd.f32 0.0, %v5311
    %v5313 = vpop.f32.mrf.mxu0
    %v5314 = vadd.f32 0.0, %v5313
    %v5315 = vpop.f32.mrf.mxu0
    %v5316 = vadd.f32 0.0, %v5315
    %5317 = vmatprep.mubr.bf16.mxu0 %v172
    %5318 = vmatmul.mubr.bf16.gmra.mxu0 %v171
    %v5319 = vpop.f32.mrf.mxu0
    %v5320 = vadd.f32 0.0, %v5319
    %v5321 = vpop.f32.mrf.mxu0
    %v5322 = vadd.f32 0.0, %v5321
    %v5323 = vpop.f32.mrf.mxu0
    %v5324 = vadd.f32 0.0, %v5323
    %v5325 = vpop.f32.mrf.mxu0
    %v5326 = vadd.f32 0.0, %v5325
    %5327 = vmatprep.mubr.bf16.mxu0 %v176
    %5328 = vmatmul.mubr.bf16.gmra.mxu0 %v175
    %v5329 = vpop.f32.mrf.mxu0
    %v5330 = vadd.f32 0.0, %v5329
    %v5331 = vpop.f32.mrf.mxu0
    %v5332 = vadd.f32 0.0, %v5331
    %v5333 = vpop.f32.mrf.mxu0
    %v5334 = vadd.f32 0.0, %v5333
    %v5335 = vpop.f32.mrf.mxu0
    %v5336 = vadd.f32 0.0, %v5335
    %5337 = vmatprep.mubr.bf16.mxu0 %v180
    %5338 = vmatmul.mubr.bf16.gmra.mxu0 %v179
    %v5339 = vpop.f32.mrf.mxu0
    %v5340 = vadd.f32 0.0, %v5339
    %v5341 = vpop.f32.mrf.mxu0
    %v5342 = vadd.f32 0.0, %v5341
    %v5343 = vpop.f32.mrf.mxu0
    %v5344 = vadd.f32 0.0, %v5343
    %v5345 = vpop.f32.mrf.mxu0
    %v5346 = vadd.f32 0.0, %v5345
    %5347 = vmatprep.mubr.bf16.mxu0 %v184
    %5348 = vmatmul.mubr.bf16.gmra.mxu0 %v183
    %v5349 = vpop.f32.mrf.mxu0
    %v5350 = vadd.f32 0.0, %v5349
    %v5351 = vpop.f32.mrf.mxu0
    %v5352 = vadd.f32 0.0, %v5351
    %v5353 = vpop.f32.mrf.mxu0
    %v5354 = vadd.f32 0.0, %v5353
    %v5355 = vpop.f32.mrf.mxu0
    %v5356 = vadd.f32 0.0, %v5355
    %5357 = vmatprep.mubr.bf16.mxu0 %v188
    %5358 = vmatmul.mubr.bf16.gmra.mxu0 %v187
    %v5359 = vpop.f32.mrf.mxu0
    %v5360 = vadd.f32 0.0, %v5359
    %v5361 = vpop.f32.mrf.mxu0
    %v5362 = vadd.f32 0.0, %v5361
    %v5363 = vpop.f32.mrf.mxu0
    %v5364 = vadd.f32 0.0, %v5363
    %v5365 = vpop.f32.mrf.mxu0
    %v5366 = vadd.f32 0.0, %v5365
    %5367 = vmatprep.mubr.bf16.mxu0 %v192
    %5368 = vmatmul.mubr.bf16.gmra.mxu0 %v191
    %v5369 = vpop.f32.mrf.mxu0
    %v5370 = vadd.f32 0.0, %v5369
    %v5371 = vpop.f32.mrf.mxu0
    %v5372 = vadd.f32 0.0, %v5371
    %v5373 = vpop.f32.mrf.mxu0
    %v5374 = vadd.f32 0.0, %v5373
    %v5375 = vpop.f32.mrf.mxu0
    %v5376 = vadd.f32 0.0, %v5375
    %5377 = vmatprep.mubr.bf16.mxu0 %v196
    %5378 = vmatmul.mubr.bf16.gmra.mxu0 %v195
    %v5379 = vpop.f32.mrf.mxu0
    %v5380 = vadd.f32 0.0, %v5379
    %v5381 = vpop.f32.mrf.mxu0
    %v5382 = vadd.f32 0.0, %v5381
    %v5383 = vpop.f32.mrf.mxu0
    %v5384 = vpop.f32.mrf.mxu0
    %5385 = vdwg.mxu0
    %5386 = vmatprep.subr.bf16.mxu0 %v2630
    %5387 = vmatpush1.bf16.msra.mxu0 %v2629
    %5388 = vmatprep.subr.bf16.mxu0 %v2614
    %5389 = vmatpush1.bf16.msra.mxu0 %v2613
    %5390 = vmatprep.subr.bf16.mxu0 %v2598
    %5391 = vmatpush1.bf16.msra.mxu0 %v2597
    %5392 = vmatprep.subr.bf16.mxu0 %v2582
    %5393 = vmatpush1.bf16.msra.mxu0 %v2581
    %5394 = vmatprep.subr.bf16.mxu0 %v2566
    %5395 = vmatpush1.bf16.msra.mxu0 %v2565
    %5396 = vmatprep.subr.bf16.mxu0 %v2550
    %5397 = vmatpush1.bf16.msra.mxu0 %v2549
    %5398 = vmatprep.subr.bf16.mxu0 %v2534
    %5399 = vmatpush1.bf16.msra.mxu0 %v2533
    %5400 = vmatprep.subr.bf16.mxu0 %v2518
    %5401 = vmatpush1.bf16.msra.mxu0 %v2517
    %5402 = vmatprep.subr.bf16.mxu0 %v2758
    %5403 = vmatpush2.bf16.msra.mxu0 %v2757
    %5404 = vmatprep.subr.bf16.mxu0 %v2742
    %5405 = vmatpush2.bf16.msra.mxu0 %v2741
    %5406 = vmatprep.subr.bf16.mxu0 %v2726
    %5407 = vmatpush2.bf16.msra.mxu0 %v2725
    %5408 = vmatprep.subr.bf16.mxu0 %v2710
    %5409 = vmatpush2.bf16.msra.mxu0 %v2709
    %5410 = vmatprep.subr.bf16.mxu0 %v2694
    %5411 = vmatpush2.bf16.msra.mxu0 %v2693
    %5412 = vmatprep.subr.bf16.mxu0 %v2678
    %5413 = vmatpush2.bf16.msra.mxu0 %v2677
    %5414 = vmatprep.subr.bf16.mxu0 %v2662
    %5415 = vmatpush2.bf16.msra.mxu0 %v2661
    %5416 = vmatprep.subr.bf16.mxu0 %v2646
    %5417 = vmatpush2.bf16.msra.mxu0 %v2645
    %5418 = vmatprep.mubr.bf16.mxu0 %v158
    %5419 = vmatmul.mubr.bf16.gmra.mxu0 %v157
    %v5420 = vpop.f32.mrf.mxu0
    %v5421 = vadd.f32 %v5280, %v5420
    %v5422 = vpop.f32.mrf.mxu0
    %v5423 = vadd.f32 %v5282, %v5422
    %v5424 = vpop.f32.mrf.mxu0
    %v5425 = vadd.f32 %v5284, %v5424
    %v5426 = vpop.f32.mrf.mxu0
    %v5427 = vadd.f32 %v5286, %v5426
    %5428 = vmatprep.mubr.bf16.mxu0 %v162
    %5429 = vmatmul.mubr.bf16.gmra.mxu0 %v161
    %v5430 = vpop.f32.mrf.mxu0
    %v5431 = vadd.f32 %v5290, %v5430
    %v5432 = vpop.f32.mrf.mxu0
    %v5433 = vadd.f32 %v5292, %v5432
    %v5434 = vpop.f32.mrf.mxu0
    %v5435 = vadd.f32 %v5294, %v5434
    %v5436 = vpop.f32.mrf.mxu0
    %v5437 = vadd.f32 %v5296, %v5436
    %5438 = vmatprep.mubr.bf16.mxu0 %v166
    %5439 = vmatmul.mubr.bf16.gmra.mxu0 %v165
    %v5440 = vpop.f32.mrf.mxu0
    %v5441 = vadd.f32 %v5300, %v5440
    %v5442 = vpop.f32.mrf.mxu0
    %v5443 = vadd.f32 %v5302, %v5442
    %v5444 = vpop.f32.mrf.mxu0
    %v5445 = vadd.f32 %v5304, %v5444
    %v5446 = vpop.f32.mrf.mxu0
    %v5447 = vadd.f32 %v5306, %v5446
    %5448 = vmatprep.mubr.bf16.mxu0 %v170
    %5449 = vmatmul.mubr.bf16.gmra.mxu0 %v169
    %v5450 = vpop.f32.mrf.mxu0
    %v5451 = vadd.f32 %v5310, %v5450
    %v5452 = vpop.f32.mrf.mxu0
    %v5453 = vadd.f32 %v5312, %v5452
    %v5454 = vpop.f32.mrf.mxu0
    %v5455 = vadd.f32 %v5314, %v5454
    %v5456 = vpop.f32.mrf.mxu0
    %v5457 = vadd.f32 %v5316, %v5456
    %5458 = vmatprep.mubr.bf16.mxu0 %v174
    %5459 = vmatmul.mubr.bf16.gmra.mxu0 %v173
    %v5460 = vpop.f32.mrf.mxu0
    %v5461 = vadd.f32 %v5320, %v5460
    %v5462 = vpop.f32.mrf.mxu0
    %v5463 = vadd.f32 %v5322, %v5462
    %v5464 = vpop.f32.mrf.mxu0
    %v5465 = vadd.f32 %v5324, %v5464
    %v5466 = vpop.f32.mrf.mxu0
    %v5467 = vadd.f32 %v5326, %v5466
    %5468 = vmatprep.mubr.bf16.mxu0 %v178
    %5469 = vmatmul.mubr.bf16.gmra.mxu0 %v177
    %v5470 = vpop.f32.mrf.mxu0
    %v5471 = vadd.f32 %v5330, %v5470
    %v5472 = vpop.f32.mrf.mxu0
    %v5473 = vadd.f32 %v5332, %v5472
    %v5474 = vpop.f32.mrf.mxu0
    %v5475 = vadd.f32 %v5334, %v5474
    %v5476 = vpop.f32.mrf.mxu0
    %v5477 = vadd.f32 %v5336, %v5476
    %5478 = vmatprep.mubr.bf16.mxu0 %v182
    %5479 = vmatmul.mubr.bf16.gmra.mxu0 %v181
    %v5480 = vpop.f32.mrf.mxu0
    %v5481 = vadd.f32 %v5340, %v5480
    %v5482 = vpop.f32.mrf.mxu0
    %v5483 = vadd.f32 %v5342, %v5482
    %v5484 = vpop.f32.mrf.mxu0
    %v5485 = vadd.f32 %v5344, %v5484
    %v5486 = vpop.f32.mrf.mxu0
    %v5487 = vadd.f32 %v5346, %v5486
    %5488 = vmatprep.mubr.bf16.mxu0 %v186
    %5489 = vmatmul.mubr.bf16.gmra.mxu0 %v185
    %v5490 = vpop.f32.mrf.mxu0
    %v5491 = vadd.f32 %v5350, %v5490
    %v5492 = vpop.f32.mrf.mxu0
    %v5493 = vadd.f32 %v5352, %v5492
    %v5494 = vpop.f32.mrf.mxu0
    %v5495 = vadd.f32 %v5354, %v5494
    %v5496 = vpop.f32.mrf.mxu0
    %v5497 = vadd.f32 %v5356, %v5496
    %5498 = vmatprep.mubr.bf16.mxu0 %v190
    %5499 = vmatmul.mubr.bf16.gmra.mxu0 %v189
    %v5500 = vpop.f32.mrf.mxu0
    %v5501 = vadd.f32 %v5360, %v5500
    %v5502 = vpop.f32.mrf.mxu0
    %v5503 = vadd.f32 %v5362, %v5502
    %v5504 = vpop.f32.mrf.mxu0
    %v5505 = vadd.f32 %v5364, %v5504
    %v5506 = vpop.f32.mrf.mxu0
    %v5507 = vadd.f32 %v5366, %v5506
    %5508 = vmatprep.mubr.bf16.mxu0 %v194
    %5509 = vmatmul.mubr.bf16.gmra.mxu0 %v193
    %v5510 = vpop.f32.mrf.mxu0
    %v5511 = vadd.f32 %v5370, %v5510
    %v5512 = vpop.f32.mrf.mxu0
    %v5513 = vadd.f32 %v5372, %v5512
    %v5514 = vpop.f32.mrf.mxu0
    %v5515 = vadd.f32 %v5374, %v5514
    %v5516 = vpop.f32.mrf.mxu0
    %v5517 = vadd.f32 %v5376, %v5516
    %5518 = vmatprep.mubr.bf16.mxu0 %v198
    %5519 = vmatmul.mubr.bf16.gmra.mxu0 %v197
    %v5520 = vpop.f32.mrf.mxu0
    %v5521 = vadd.f32 %v5380, %v5520
    %v5522 = vpop.f32.mrf.mxu0
    %v5523 = vadd.f32 %v5382, %v5522
    %v5524 = vpop.f32.mrf.mxu0
    %v5525 = vpop.f32.mrf.mxu0
    %5526 = vdwg.mxu0
    %v5527 = vmax.f32 %v3447, 0.0
    %v5528 = vmax.f32 %v3449, 0.0
    %v5529 = vmax.f32 %v3729, 0.0
    %v5530 = vmax.f32 %v3731, 0.0
    %v5531 = vmax.f32 %v4011, 0.0
    %v5532 = vmax.f32 %v4013, 0.0
    %v5533 = vmax.f32 %v4293, 0.0
    %v5534 = vmax.f32 %v4295, 0.0
    %v5535 = vmax.f32 %v4575, 0.0
    %v5536 = vmax.f32 %v4577, 0.0
    %v5537 = vmax.f32 %v4857, 0.0
    %v5538 = vmax.f32 %v4859, 0.0
    %v5539 = vmax.f32 %v5139, 0.0
    %v5540 = vmax.f32 %v5141, 0.0
    %v5541 = vmax.f32 %v5421, 0.0
    %v5542 = vmax.f32 %v5423, 0.0
    %v5543 = vmax.f32 %v3451, 0.0
    %v5544 = vmax.f32 %v3453, 0.0
    %v5545 = vmax.f32 %v3733, 0.0
    %v5546 = vmax.f32 %v3735, 0.0
    %v5547 = vmax.f32 %v4015, 0.0
    %v5548 = vmax.f32 %v4017, 0.0
    %v5549 = vmax.f32 %v4297, 0.0
    %v5550 = vmax.f32 %v4299, 0.0
    %v5551 = vmax.f32 %v4579, 0.0
    %v5552 = vmax.f32 %v4581, 0.0
    %v5553 = vmax.f32 %v4861, 0.0
    %v5554 = vmax.f32 %v4863, 0.0
    %v5555 = vmax.f32 %v5143, 0.0
    %v5556 = vmax.f32 %v5145, 0.0
    %v5557 = vmax.f32 %v5425, 0.0
    %v5558 = vmax.f32 %v5427, 0.0
    %v5559 = vmax.f32 %v3457, 0.0
    %v5560 = vmax.f32 %v3459, 0.0
    %v5561 = vmax.f32 %v3739, 0.0
    %v5562 = vmax.f32 %v3741, 0.0
    %v5563 = vmax.f32 %v4021, 0.0
    %v5564 = vmax.f32 %v4023, 0.0
    %v5565 = vmax.f32 %v4303, 0.0
    %v5566 = vmax.f32 %v4305, 0.0
    %v5567 = vmax.f32 %v4585, 0.0
    %v5568 = vmax.f32 %v4587, 0.0
    %v5569 = vmax.f32 %v4867, 0.0
    %v5570 = vmax.f32 %v4869, 0.0
    %v5571 = vmax.f32 %v5149, 0.0
    %v5572 = vmax.f32 %v5151, 0.0
    %v5573 = vmax.f32 %v5431, 0.0
    %v5574 = vmax.f32 %v5433, 0.0
    %v5575 = vmax.f32 %v3461, 0.0
    %v5576 = vmax.f32 %v3463, 0.0
    %v5577 = vmax.f32 %v3743, 0.0
    %v5578 = vmax.f32 %v3745, 0.0
    %v5579 = vmax.f32 %v4025, 0.0
    %v5580 = vmax.f32 %v4027, 0.0
    %v5581 = vmax.f32 %v4307, 0.0
    %v5582 = vmax.f32 %v4309, 0.0
    %v5583 = vmax.f32 %v4589, 0.0
    %v5584 = vmax.f32 %v4591, 0.0
    %v5585 = vmax.f32 %v4871, 0.0
    %v5586 = vmax.f32 %v4873, 0.0
    %v5587 = vmax.f32 %v5153, 0.0
    %v5588 = vmax.f32 %v5155, 0.0
    %v5589 = vmax.f32 %v5435, 0.0
    %v5590 = vmax.f32 %v5437, 0.0
    %v5591 = vmax.f32 %v3467, 0.0
    %v5592 = vmax.f32 %v3469, 0.0
    %v5593 = vmax.f32 %v3749, 0.0
    %v5594 = vmax.f32 %v3751, 0.0
    %v5595 = vmax.f32 %v4031, 0.0
    %v5596 = vmax.f32 %v4033, 0.0
    %v5597 = vmax.f32 %v4313, 0.0
    %v5598 = vmax.f32 %v4315, 0.0
    %v5599 = vmax.f32 %v4595, 0.0
    %v5600 = vmax.f32 %v4597, 0.0
    %v5601 = vmax.f32 %v4877, 0.0
    %v5602 = vmax.f32 %v4879, 0.0
    %v5603 = vmax.f32 %v5159, 0.0
    %v5604 = vmax.f32 %v5161, 0.0
    %v5605 = vmax.f32 %v5441, 0.0
    %v5606 = vmax.f32 %v5443, 0.0
    %v5607 = vmax.f32 %v3471, 0.0
    %v5608 = vmax.f32 %v3473, 0.0
    %v5609 = vmax.f32 %v3753, 0.0
    %v5610 = vmax.f32 %v3755, 0.0
    %v5611 = vmax.f32 %v4035, 0.0
    %v5612 = vmax.f32 %v4037, 0.0
    %v5613 = vmax.f32 %v4317, 0.0
    %v5614 = vmax.f32 %v4319, 0.0
    %v5615 = vmax.f32 %v4599, 0.0
    %v5616 = vmax.f32 %v4601, 0.0
    %v5617 = vmax.f32 %v4881, 0.0
    %v5618 = vmax.f32 %v4883, 0.0
    %v5619 = vmax.f32 %v5163, 0.0
    %v5620 = vmax.f32 %v5165, 0.0
    %v5621 = vmax.f32 %v5445, 0.0
    %v5622 = vmax.f32 %v5447, 0.0
    %v5623 = vmax.f32 %v3477, 0.0
    %v5624 = vmax.f32 %v3479, 0.0
    %v5625 = vmax.f32 %v3759, 0.0
    %v5626 = vmax.f32 %v3761, 0.0
    %v5627 = vmax.f32 %v4041, 0.0
    %v5628 = vmax.f32 %v4043, 0.0
    %v5629 = vmax.f32 %v4323, 0.0
    %v5630 = vmax.f32 %v4325, 0.0
    %v5631 = vmax.f32 %v4605, 0.0
    %v5632 = vmax.f32 %v4607, 0.0
    %v5633 = vmax.f32 %v4887, 0.0
    %v5634 = vmax.f32 %v4889, 0.0
    %v5635 = vmax.f32 %v5169, 0.0
    %v5636 = vmax.f32 %v5171, 0.0
    %v5637 = vmax.f32 %v5451, 0.0
    %v5638 = vmax.f32 %v5453, 0.0
    %v5639 = vmax.f32 %v3481, 0.0
    %v5640 = vmax.f32 %v3483, 0.0
    %v5641 = vmax.f32 %v3763, 0.0
    %v5642 = vmax.f32 %v3765, 0.0
    %v5643 = vmax.f32 %v4045, 0.0
    %v5644 = vmax.f32 %v4047, 0.0
    %v5645 = vmax.f32 %v4327, 0.0
    %v5646 = vmax.f32 %v4329, 0.0
    %v5647 = vmax.f32 %v4609, 0.0
    %v5648 = vmax.f32 %v4611, 0.0
    %v5649 = vmax.f32 %v4891, 0.0
    %v5650 = vmax.f32 %v4893, 0.0
    %v5651 = vmax.f32 %v5173, 0.0
    %v5652 = vmax.f32 %v5175, 0.0
    %v5653 = vmax.f32 %v5455, 0.0
    %v5654 = vmax.f32 %v5457, 0.0
    %v5655 = vmax.f32 %v3487, 0.0
    %v5656 = vmax.f32 %v3489, 0.0
    %v5657 = vmax.f32 %v3769, 0.0
    %v5658 = vmax.f32 %v3771, 0.0
    %v5659 = vmax.f32 %v4051, 0.0
    %v5660 = vmax.f32 %v4053, 0.0
    %v5661 = vmax.f32 %v4333, 0.0
    %v5662 = vmax.f32 %v4335, 0.0
    %v5663 = vmax.f32 %v4615, 0.0
    %v5664 = vmax.f32 %v4617, 0.0
    %v5665 = vmax.f32 %v4897, 0.0
    %v5666 = vmax.f32 %v4899, 0.0
    %v5667 = vmax.f32 %v5179, 0.0
    %v5668 = vmax.f32 %v5181, 0.0
    %v5669 = vmax.f32 %v5461, 0.0
    %v5670 = vmax.f32 %v5463, 0.0
    %v5671 = vmax.f32 %v3491, 0.0
    %v5672 = vmax.f32 %v3493, 0.0
    %v5673 = vmax.f32 %v3773, 0.0
    %v5674 = vmax.f32 %v3775, 0.0
    %v5675 = vmax.f32 %v4055, 0.0
    %v5676 = vmax.f32 %v4057, 0.0
    %v5677 = vmax.f32 %v4337, 0.0
    %v5678 = vmax.f32 %v4339, 0.0
    %v5679 = vmax.f32 %v4619, 0.0
    %v5680 = vmax.f32 %v4621, 0.0
    %v5681 = vmax.f32 %v4901, 0.0
    %v5682 = vmax.f32 %v4903, 0.0
    %v5683 = vmax.f32 %v5183, 0.0
    %v5684 = vmax.f32 %v5185, 0.0
    %v5685 = vmax.f32 %v5465, 0.0
    %v5686 = vmax.f32 %v5467, 0.0
    %v5687 = vmax.f32 %v3497, 0.0
    %v5688 = vmax.f32 %v3499, 0.0
    %v5689 = vmax.f32 %v3779, 0.0
    %v5690 = vmax.f32 %v3781, 0.0
    %v5691 = vmax.f32 %v4061, 0.0
    %v5692 = vmax.f32 %v4063, 0.0
    %v5693 = vmax.f32 %v4343, 0.0
    %v5694 = vmax.f32 %v4345, 0.0
    %v5695 = vmax.f32 %v4625, 0.0
    %v5696 = vmax.f32 %v4627, 0.0
    %v5697 = vmax.f32 %v4907, 0.0
    %v5698 = vmax.f32 %v4909, 0.0
    %v5699 = vmax.f32 %v5189, 0.0
    %v5700 = vmax.f32 %v5191, 0.0
    %v5701 = vmax.f32 %v5471, 0.0
    %v5702 = vmax.f32 %v5473, 0.0
    %v5703 = vmax.f32 %v3501, 0.0
    %v5704 = vmax.f32 %v3503, 0.0
    %v5705 = vmax.f32 %v3783, 0.0
    %v5706 = vmax.f32 %v3785, 0.0
    %v5707 = vmax.f32 %v4065, 0.0
    %v5708 = vmax.f32 %v4067, 0.0
    %v5709 = vmax.f32 %v4347, 0.0
    %v5710 = vmax.f32 %v4349, 0.0
    %v5711 = vmax.f32 %v4629, 0.0
    %v5712 = vmax.f32 %v4631, 0.0
    %v5713 = vmax.f32 %v4911, 0.0
    %v5714 = vmax.f32 %v4913, 0.0
    %v5715 = vmax.f32 %v5193, 0.0
    %v5716 = vmax.f32 %v5195, 0.0
    %v5717 = vmax.f32 %v5475, 0.0
    %v5718 = vmax.f32 %v5477, 0.0
    %v5719 = vmax.f32 %v3507, 0.0
    %v5720 = vmax.f32 %v3509, 0.0
    %v5721 = vmax.f32 %v3789, 0.0
    %v5722 = vmax.f32 %v3791, 0.0
    %v5723 = vmax.f32 %v4071, 0.0
    %v5724 = vmax.f32 %v4073, 0.0
    %v5725 = vmax.f32 %v4353, 0.0
    %v5726 = vmax.f32 %v4355, 0.0
    %v5727 = vmax.f32 %v4635, 0.0
    %v5728 = vmax.f32 %v4637, 0.0
    %v5729 = vmax.f32 %v4917, 0.0
    %v5730 = vmax.f32 %v4919, 0.0
    %v5731 = vmax.f32 %v5199, 0.0
    %v5732 = vmax.f32 %v5201, 0.0
    %v5733 = vmax.f32 %v5481, 0.0
    %v5734 = vmax.f32 %v5483, 0.0
    %v5735 = vmax.f32 %v3511, 0.0
    %v5736 = vmax.f32 %v3513, 0.0
    %v5737 = vmax.f32 %v3793, 0.0
    %v5738 = vmax.f32 %v3795, 0.0
    %v5739 = vmax.f32 %v4075, 0.0
    %v5740 = vmax.f32 %v4077, 0.0
    %v5741 = vmax.f32 %v4357, 0.0
    %v5742 = vmax.f32 %v4359, 0.0
    %v5743 = vmax.f32 %v4639, 0.0
    %v5744 = vmax.f32 %v4641, 0.0
    %v5745 = vmax.f32 %v4921, 0.0
    %v5746 = vmax.f32 %v4923, 0.0
    %v5747 = vmax.f32 %v5203, 0.0
    %v5748 = vmax.f32 %v5205, 0.0
    %v5749 = vmax.f32 %v5485, 0.0
    %v5750 = vmax.f32 %v5487, 0.0
    %v5751 = vmax.f32 %v3517, 0.0
    %v5752 = vmax.f32 %v3519, 0.0
    %v5753 = vmax.f32 %v3799, 0.0
    %v5754 = vmax.f32 %v3801, 0.0
    %v5755 = vmax.f32 %v4081, 0.0
    %v5756 = vmax.f32 %v4083, 0.0
    %v5757 = vmax.f32 %v4363, 0.0
    %v5758 = vmax.f32 %v4365, 0.0
    %v5759 = vmax.f32 %v4645, 0.0
    %v5760 = vmax.f32 %v4647, 0.0
    %v5761 = vmax.f32 %v4927, 0.0
    %v5762 = vmax.f32 %v4929, 0.0
    %v5763 = vmax.f32 %v5209, 0.0
    %v5764 = vmax.f32 %v5211, 0.0
    %v5765 = vmax.f32 %v5491, 0.0
    %v5766 = vmax.f32 %v5493, 0.0
    %v5767 = vmax.f32 %v3521, 0.0
    %v5768 = vmax.f32 %v3523, 0.0
    %v5769 = vmax.f32 %v3803, 0.0
    %v5770 = vmax.f32 %v3805, 0.0
    %v5771 = vmax.f32 %v4085, 0.0
    %v5772 = vmax.f32 %v4087, 0.0
    %v5773 = vmax.f32 %v4367, 0.0
    %v5774 = vmax.f32 %v4369, 0.0
    %v5775 = vmax.f32 %v4649, 0.0
    %v5776 = vmax.f32 %v4651, 0.0
    %v5777 = vmax.f32 %v4931, 0.0
    %v5778 = vmax.f32 %v4933, 0.0
    %v5779 = vmax.f32 %v5213, 0.0
    %v5780 = vmax.f32 %v5215, 0.0
    %v5781 = vmax.f32 %v5495, 0.0
    %v5782 = vmax.f32 %v5497, 0.0
    %v5783 = vmax.f32 %v3527, 0.0
    %v5784 = vmax.f32 %v3529, 0.0
    %v5785 = vmax.f32 %v3809, 0.0
    %v5786 = vmax.f32 %v3811, 0.0
    %v5787 = vmax.f32 %v4091, 0.0
    %v5788 = vmax.f32 %v4093, 0.0
    %v5789 = vmax.f32 %v4373, 0.0
    %v5790 = vmax.f32 %v4375, 0.0
    %v5791 = vmax.f32 %v4655, 0.0
    %v5792 = vmax.f32 %v4657, 0.0
    %v5793 = vmax.f32 %v4937, 0.0
    %v5794 = vmax.f32 %v4939, 0.0
    %v5795 = vmax.f32 %v5219, 0.0
    %v5796 = vmax.f32 %v5221, 0.0
    %v5797 = vmax.f32 %v5501, 0.0
    %v5798 = vmax.f32 %v5503, 0.0
    %v5799 = vmax.f32 %v3531, 0.0
    %v5800 = vmax.f32 %v3533, 0.0
    %v5801 = vmax.f32 %v3813, 0.0
    %v5802 = vmax.f32 %v3815, 0.0
    %v5803 = vmax.f32 %v4095, 0.0
    %v5804 = vmax.f32 %v4097, 0.0
    %v5805 = vmax.f32 %v4377, 0.0
    %v5806 = vmax.f32 %v4379, 0.0
    %v5807 = vmax.f32 %v4659, 0.0
    %v5808 = vmax.f32 %v4661, 0.0
    %v5809 = vmax.f32 %v4941, 0.0
    %v5810 = vmax.f32 %v4943, 0.0
    %v5811 = vmax.f32 %v5223, 0.0
    %v5812 = vmax.f32 %v5225, 0.0
    %v5813 = vmax.f32 %v5505, 0.0
    %v5814 = vmax.f32 %v5507, 0.0
    %v5815 = vmax.f32 %v3537, 0.0
    %v5816 = vmax.f32 %v3539, 0.0
    %v5817 = vmax.f32 %v3819, 0.0
    %v5818 = vmax.f32 %v3821, 0.0
    %v5819 = vmax.f32 %v4101, 0.0
    %v5820 = vmax.f32 %v4103, 0.0
    %v5821 = vmax.f32 %v4383, 0.0
    %v5822 = vmax.f32 %v4385, 0.0
    %v5823 = vmax.f32 %v4665, 0.0
    %v5824 = vmax.f32 %v4667, 0.0
    %v5825 = vmax.f32 %v4947, 0.0
    %v5826 = vmax.f32 %v4949, 0.0
    %v5827 = vmax.f32 %v5229, 0.0
    %v5828 = vmax.f32 %v5231, 0.0
    %v5829 = vmax.f32 %v5511, 0.0
    %v5830 = vmax.f32 %v5513, 0.0
    %v5831 = vmax.f32 %v3541, 0.0
    %v5832 = vmax.f32 %v3543, 0.0
    %v5833 = vmax.f32 %v3823, 0.0
    %v5834 = vmax.f32 %v3825, 0.0
    %v5835 = vmax.f32 %v4105, 0.0
    %v5836 = vmax.f32 %v4107, 0.0
    %v5837 = vmax.f32 %v4387, 0.0
    %v5838 = vmax.f32 %v4389, 0.0
    %v5839 = vmax.f32 %v4669, 0.0
    %v5840 = vmax.f32 %v4671, 0.0
    %v5841 = vmax.f32 %v4951, 0.0
    %v5842 = vmax.f32 %v4953, 0.0
    %v5843 = vmax.f32 %v5233, 0.0
    %v5844 = vmax.f32 %v5235, 0.0
    %v5845 = vmax.f32 %v5515, 0.0
    %v5846 = vmax.f32 %v5517, 0.0
    %v5847 = vmax.f32 %v3547, 0.0
    %v5848 = vmax.f32 %v3549, 0.0
    %v5849 = vmax.f32 %v3829, 0.0
    %v5850 = vmax.f32 %v3831, 0.0
    %v5851 = vmax.f32 %v4111, 0.0
    %v5852 = vmax.f32 %v4113, 0.0
    %v5853 = vmax.f32 %v4393, 0.0
    %v5854 = vmax.f32 %v4395, 0.0
    %v5855 = vmax.f32 %v4675, 0.0
    %v5856 = vmax.f32 %v4677, 0.0
    %v5857 = vmax.f32 %v4957, 0.0
    %v5858 = vmax.f32 %v4959, 0.0
    %v5859 = vmax.f32 %v5239, 0.0
    %v5860 = vmax.f32 %v5241, 0.0
    %v5861 = vmax.f32 %v5521, 0.0
    %v5862 = vmax.f32 %v5523, 0.0
    %v5863 = vpack.c.bf16 %v5543, %v5527
    %v5864 = vpack.c.bf16 %v5544, %v5528
    %v5865 = vpack.c.bf16 %v5545, %v5529
    %v5866 = vpack.c.bf16 %v5546, %v5530
    %v5867 = vpack.c.bf16 %v5547, %v5531
    %v5868 = vpack.c.bf16 %v5548, %v5532
    %v5869 = vpack.c.bf16 %v5549, %v5533
    %v5870 = vpack.c.bf16 %v5550, %v5534
    %v5871 = vpack.c.bf16 %v5551, %v5535
    %v5872 = vpack.c.bf16 %v5552, %v5536
    %v5873 = vpack.c.bf16 %v5553, %v5537
    %v5874 = vpack.c.bf16 %v5554, %v5538
    %v5875 = vpack.c.bf16 %v5555, %v5539
    %v5876 = vpack.c.bf16 %v5556, %v5540
    %v5877 = vpack.c.bf16 %v5557, %v5541
    %v5878 = vpack.c.bf16 %v5558, %v5542
    %v5879 = vpack.c.bf16 %v5575, %v5559
    %v5880 = vpack.c.bf16 %v5576, %v5560
    %v5881 = vpack.c.bf16 %v5577, %v5561
    %v5882 = vpack.c.bf16 %v5578, %v5562
    %v5883 = vpack.c.bf16 %v5579, %v5563
    %v5884 = vpack.c.bf16 %v5580, %v5564
    %v5885 = vpack.c.bf16 %v5581, %v5565
    %v5886 = vpack.c.bf16 %v5582, %v5566
    %v5887 = vpack.c.bf16 %v5583, %v5567
    %v5888 = vpack.c.bf16 %v5584, %v5568
    %v5889 = vpack.c.bf16 %v5585, %v5569
    %v5890 = vpack.c.bf16 %v5586, %v5570
    %v5891 = vpack.c.bf16 %v5587, %v5571
    %v5892 = vpack.c.bf16 %v5588, %v5572
    %v5893 = vpack.c.bf16 %v5589, %v5573
    %v5894 = vpack.c.bf16 %v5590, %v5574
    %v5895 = vpack.c.bf16 %v5607, %v5591
    %v5896 = vpack.c.bf16 %v5608, %v5592
    %v5897 = vpack.c.bf16 %v5609, %v5593
    %v5898 = vpack.c.bf16 %v5610, %v5594
    %v5899 = vpack.c.bf16 %v5611, %v5595
    %v5900 = vpack.c.bf16 %v5612, %v5596
    %v5901 = vpack.c.bf16 %v5613, %v5597
    %v5902 = vpack.c.bf16 %v5614, %v5598
    %v5903 = vpack.c.bf16 %v5615, %v5599
    %v5904 = vpack.c.bf16 %v5616, %v5600
    %v5905 = vpack.c.bf16 %v5617, %v5601
    %v5906 = vpack.c.bf16 %v5618, %v5602
    %v5907 = vpack.c.bf16 %v5619, %v5603
    %v5908 = vpack.c.bf16 %v5620, %v5604
    %v5909 = vpack.c.bf16 %v5621, %v5605
    %v5910 = vpack.c.bf16 %v5622, %v5606
    %v5911 = vpack.c.bf16 %v5639, %v5623
    %v5912 = vpack.c.bf16 %v5640, %v5624
    %v5913 = vpack.c.bf16 %v5641, %v5625
    %v5914 = vpack.c.bf16 %v5642, %v5626
    %v5915 = vpack.c.bf16 %v5643, %v5627
    %v5916 = vpack.c.bf16 %v5644, %v5628
    %v5917 = vpack.c.bf16 %v5645, %v5629
    %v5918 = vpack.c.bf16 %v5646, %v5630
    %v5919 = vpack.c.bf16 %v5647, %v5631
    %v5920 = vpack.c.bf16 %v5648, %v5632
    %v5921 = vpack.c.bf16 %v5649, %v5633
    %v5922 = vpack.c.bf16 %v5650, %v5634
    %v5923 = vpack.c.bf16 %v5651, %v5635
    %v5924 = vpack.c.bf16 %v5652, %v5636
    %v5925 = vpack.c.bf16 %v5653, %v5637
    %v5926 = vpack.c.bf16 %v5654, %v5638
    %v5927 = vpack.c.bf16 %v5671, %v5655
    %v5928 = vpack.c.bf16 %v5672, %v5656
    %v5929 = vpack.c.bf16 %v5673, %v5657
    %v5930 = vpack.c.bf16 %v5674, %v5658
    %v5931 = vpack.c.bf16 %v5675, %v5659
    %v5932 = vpack.c.bf16 %v5676, %v5660
    %v5933 = vpack.c.bf16 %v5677, %v5661
    %v5934 = vpack.c.bf16 %v5678, %v5662
    %v5935 = vpack.c.bf16 %v5679, %v5663
    %v5936 = vpack.c.bf16 %v5680, %v5664
    %v5937 = vpack.c.bf16 %v5681, %v5665
    %v5938 = vpack.c.bf16 %v5682, %v5666
    %v5939 = vpack.c.bf16 %v5683, %v5667
    %v5940 = vpack.c.bf16 %v5684, %v5668
    %v5941 = vpack.c.bf16 %v5685, %v5669
    %v5942 = vpack.c.bf16 %v5686, %v5670
    %v5943 = vpack.c.bf16 %v5703, %v5687
    %v5944 = vpack.c.bf16 %v5704, %v5688
    %v5945 = vpack.c.bf16 %v5705, %v5689
    %v5946 = vpack.c.bf16 %v5706, %v5690
    %v5947 = vpack.c.bf16 %v5707, %v5691
    %v5948 = vpack.c.bf16 %v5708, %v5692
    %v5949 = vpack.c.bf16 %v5709, %v5693
    %v5950 = vpack.c.bf16 %v5710, %v5694
    %v5951 = vpack.c.bf16 %v5711, %v5695
    %v5952 = vpack.c.bf16 %v5712, %v5696
    %v5953 = vpack.c.bf16 %v5713, %v5697
    %v5954 = vpack.c.bf16 %v5714, %v5698
    %v5955 = vpack.c.bf16 %v5715, %v5699
    %v5956 = vpack.c.bf16 %v5716, %v5700
    %v5957 = vpack.c.bf16 %v5717, %v5701
    %v5958 = vpack.c.bf16 %v5718, %v5702
    %v5959 = vpack.c.bf16 %v5735, %v5719
    %v5960 = vpack.c.bf16 %v5736, %v5720
    %v5961 = vpack.c.bf16 %v5737, %v5721
    %v5962 = vpack.c.bf16 %v5738, %v5722
    %v5963 = vpack.c.bf16 %v5739, %v5723
    %v5964 = vpack.c.bf16 %v5740, %v5724
    %v5965 = vpack.c.bf16 %v5741, %v5725
    %v5966 = vpack.c.bf16 %v5742, %v5726
    %v5967 = vpack.c.bf16 %v5743, %v5727
    %v5968 = vpack.c.bf16 %v5744, %v5728
    %v5969 = vpack.c.bf16 %v5745, %v5729
    %v5970 = vpack.c.bf16 %v5746, %v5730
    %v5971 = vpack.c.bf16 %v5747, %v5731
    %v5972 = vpack.c.bf16 %v5748, %v5732
    %v5973 = vpack.c.bf16 %v5749, %v5733
    %v5974 = vpack.c.bf16 %v5750, %v5734
    %v5975 = vpack.c.bf16 %v5767, %v5751
    %v5976 = vpack.c.bf16 %v5768, %v5752
    %v5977 = vpack.c.bf16 %v5769, %v5753
    %v5978 = vpack.c.bf16 %v5770, %v5754
    %v5979 = vpack.c.bf16 %v5771, %v5755
    %v5980 = vpack.c.bf16 %v5772, %v5756
    %v5981 = vpack.c.bf16 %v5773, %v5757
    %v5982 = vpack.c.bf16 %v5774, %v5758
    %v5983 = vpack.c.bf16 %v5775, %v5759
    %v5984 = vpack.c.bf16 %v5776, %v5760
    %v5985 = vpack.c.bf16 %v5777, %v5761
    %v5986 = vpack.c.bf16 %v5778, %v5762
    %v5987 = vpack.c.bf16 %v5779, %v5763
    %v5988 = vpack.c.bf16 %v5780, %v5764
    %v5989 = vpack.c.bf16 %v5781, %v5765
    %v5990 = vpack.c.bf16 %v5782, %v5766
    %v5991 = vpack.c.bf16 %v5799, %v5783
    %v5992 = vpack.c.bf16 %v5800, %v5784
    %v5993 = vpack.c.bf16 %v5801, %v5785
    %v5994 = vpack.c.bf16 %v5802, %v5786
    %v5995 = vpack.c.bf16 %v5803, %v5787
    %v5996 = vpack.c.bf16 %v5804, %v5788
    %v5997 = vpack.c.bf16 %v5805, %v5789
    %v5998 = vpack.c.bf16 %v5806, %v5790
    %v5999 = vpack.c.bf16 %v5807, %v5791
    %v6000 = vpack.c.bf16 %v5808, %v5792
    %v6001 = vpack.c.bf16 %v5809, %v5793
    %v6002 = vpack.c.bf16 %v5810, %v5794
    %v6003 = vpack.c.bf16 %v5811, %v5795
    %v6004 = vpack.c.bf16 %v5812, %v5796
    %v6005 = vpack.c.bf16 %v5813, %v5797
    %v6006 = vpack.c.bf16 %v5814, %v5798
    %v6007 = vpack.c.bf16 %v5831, %v5815
    %v6008 = vpack.c.bf16 %v5832, %v5816
    %v6009 = vpack.c.bf16 %v5833, %v5817
    %v6010 = vpack.c.bf16 %v5834, %v5818
    %v6011 = vpack.c.bf16 %v5835, %v5819
    %v6012 = vpack.c.bf16 %v5836, %v5820
    %v6013 = vpack.c.bf16 %v5837, %v5821
    %v6014 = vpack.c.bf16 %v5838, %v5822
    %v6015 = vpack.c.bf16 %v5839, %v5823
    %v6016 = vpack.c.bf16 %v5840, %v5824
    %v6017 = vpack.c.bf16 %v5841, %v5825
    %v6018 = vpack.c.bf16 %v5842, %v5826
    %v6019 = vpack.c.bf16 %v5843, %v5827
    %v6020 = vpack.c.bf16 %v5844, %v5828
    %v6021 = vpack.c.bf16 %v5845, %v5829
    %v6022 = vpack.c.bf16 %v5846, %v5830
    %v6023 = vpack.c.bf16 %v5847, %v5847
    %v6024 = vpack.c.bf16 %v5848, %v5848
    %v6025 = vpack.c.bf16 %v5849, %v5849
    %v6026 = vpack.c.bf16 %v5850, %v5850
    %v6027 = vpack.c.bf16 %v5851, %v5851
    %v6028 = vpack.c.bf16 %v5852, %v5852
    %v6029 = vpack.c.bf16 %v5853, %v5853
    %v6030 = vpack.c.bf16 %v5854, %v5854
    %v6031 = vpack.c.bf16 %v5855, %v5855
    %v6032 = vpack.c.bf16 %v5856, %v5856
    %v6033 = vpack.c.bf16 %v5857, %v5857
    %v6034 = vpack.c.bf16 %v5858, %v5858
    %v6035 = vpack.c.bf16 %v5859, %v5859
    %v6036 = vpack.c.bf16 %v5860, %v5860
    %v6037 = vpack.c.bf16 %v5861, %v5861
    %v6038 = vpack.c.bf16 %v5862, %v5862
    %v6039 = vld [vmem:[#allocation4] sm:$0xff]
    %v6040 = vld [vmem:[#allocation4 + $0x8] sm:$0xff]
    %v6041 = vld [vmem:[#allocation4 + $0x10] sm:$0xff]
    %v6042 = vld [vmem:[#allocation4 + $0x18] sm:$0xff]
    %v6043 = vld [vmem:[#allocation4 + $0x20] sm:$0xff]
    %v6044 = vld [vmem:[#allocation4 + $0x28] sm:$0xff]
    %v6045 = vld [vmem:[#allocation4 + $0x30] sm:$0xff]
    %v6046 = vld [vmem:[#allocation4 + $0x38] sm:$0xff]
    %v6047 = vld [vmem:[#allocation4 + $0x40] sm:$0xff]
    %v6048 = vld [vmem:[#allocation4 + $0x48] sm:$0xff]
    %v6049 = vld [vmem:[#allocation4 + $0x50] sm:$0xff]
    %v6050 = vld [vmem:[#allocation4 + $0x58] sm:$0xff]
    %v6051 = vld [vmem:[#allocation4 + $0x60] sm:$0xff]
    %v6052 = vld [vmem:[#allocation4 + $0x68] sm:$0xff]
    %v6053 = vld [vmem:[#allocation4 + $0x70] sm:$0xff]
    %v6054 = vld [vmem:[#allocation4 + $0x78] sm:$0xff]
    %v6055 = vld [vmem:[#allocation4 + $0x80] sm:$0xff]
    %v6056 = vld [vmem:[#allocation4 + $0x88] sm:$0xff]
    %v6057 = vld [vmem:[#allocation4 + $0x90] sm:$0xff]
    %v6058 = vld [vmem:[#allocation4 + $0x98] sm:$0xff]
    %v6059 = vld [vmem:[#allocation4 + $0xa0] sm:$0xff]
    %v6060 = vld [vmem:[#allocation4 + $0xa8] sm:$0xff]
    %v6061 = vld [vmem:[#allocation4 + $0xb0] sm:$0xff]
    %v6062 = vld [vmem:[#allocation4 + $0xb8] sm:$0xff]
    %v6063 = vld [vmem:[#allocation4 + $0xc0] sm:$0xff]
    %v6064 = vld [vmem:[#allocation4 + $0xc8] sm:$0xff]
    %v6065 = vld [vmem:[#allocation4 + $0xd0] sm:$0xff]
    %v6066 = vld [vmem:[#allocation4 + $0xd8] sm:$0xff]
    %v6067 = vld [vmem:[#allocation4 + $0xe0] sm:$0xff]
    %v6068 = vld [vmem:[#allocation4 + $0xe8] sm:$0xff]
    %v6069 = vld [vmem:[#allocation4 + $0xf0] sm:$0xff]
    %v6070 = vld [vmem:[#allocation4 + $0xf8] sm:$0xff]
    %v6071 = vld [vmem:[#allocation4 + $0x100] sm:$0xff]
    %v6072 = vld [vmem:[#allocation4 + $0x108] sm:$0xff]
    %v6073 = vld [vmem:[#allocation4 + $0x110] sm:$0xff]
    %v6074 = vld [vmem:[#allocation4 + $0x118] sm:$0xff]
    %v6075 = vld [vmem:[#allocation4 + $0x120] sm:$0xff]
    %v6076 = vld [vmem:[#allocation4 + $0x128] sm:$0xff]
    %v6077 = vld [vmem:[#allocation4 + $0x130] sm:$0xff]
    %v6078 = vld [vmem:[#allocation4 + $0x138] sm:$0xff]
    %v6079 = vld [vmem:[#allocation4 + $0x140] sm:$0xff]
    %v6080 = vld [vmem:[#allocation4 + $0x148] sm:$0xff]
    %v6081 = vld [vmem:[#allocation4 + $0x150] sm:$0xff]
    %v6082 = vld [vmem:[#allocation4 + $0x158] sm:$0xff]
    %v6083 = vld [vmem:[#allocation4 + $0x160] sm:$0xff]
    %v6084 = vld [vmem:[#allocation4 + $0x168] sm:$0xff]
    %v6085 = vld [vmem:[#allocation4 + $0x170] sm:$0xff]
    %v6086 = vld [vmem:[#allocation4 + $0x178] sm:$0xff]
    %v6087 = vld [vmem:[#allocation4 + $0x180] sm:$0xff]
    %v6088 = vld [vmem:[#allocation4 + $0x188] sm:$0xff]
    %v6089 = vld [vmem:[#allocation4 + $0x190] sm:$0xff]
    %v6090 = vld [vmem:[#allocation4 + $0x198] sm:$0xff]
    %v6091 = vld [vmem:[#allocation4 + $0x1a0] sm:$0xff]
    %v6092 = vld [vmem:[#allocation4 + $0x1a8] sm:$0xff]
    %v6093 = vld [vmem:[#allocation4 + $0x1b0] sm:$0xff]
    %v6094 = vld [vmem:[#allocation4 + $0x1b8] sm:$0xff]
    %v6095 = vld [vmem:[#allocation4 + $0x1c0] sm:$0xff]
    %v6096 = vld [vmem:[#allocation4 + $0x1c8] sm:$0xff]
    %v6097 = vld [vmem:[#allocation4 + $0x1d0] sm:$0xff]
    %v6098 = vld [vmem:[#allocation4 + $0x1d8] sm:$0xff]
    %v6099 = vld [vmem:[#allocation4 + $0x1e0] sm:$0xff]
    %v6100 = vld [vmem:[#allocation4 + $0x1e8] sm:$0xff]
    %v6101 = vld [vmem:[#allocation4 + $0x1f0] sm:$0xff]
    %v6102 = vld [vmem:[#allocation4 + $0x1f8] sm:$0xff]
    %v6103 = vld [vmem:[#allocation4 + $0x200] sm:$0xff]
    %v6104 = vld [vmem:[#allocation4 + $0x208] sm:$0xff]
    %v6105 = vld [vmem:[#allocation4 + $0x210] sm:$0xff]
    %v6106 = vld [vmem:[#allocation4 + $0x218] sm:$0xff]
    %v6107 = vld [vmem:[#allocation4 + $0x220] sm:$0xff]
    %v6108 = vld [vmem:[#allocation4 + $0x228] sm:$0xff]
    %v6109 = vld [vmem:[#allocation4 + $0x230] sm:$0xff]
    %v6110 = vld [vmem:[#allocation4 + $0x238] sm:$0xff]
    %v6111 = vld [vmem:[#allocation4 + $0x240] sm:$0xff]
    %v6112 = vld [vmem:[#allocation4 + $0x248] sm:$0xff]
    %v6113 = vld [vmem:[#allocation4 + $0x250] sm:$0xff]
    %v6114 = vld [vmem:[#allocation4 + $0x258] sm:$0xff]
    %v6115 = vld [vmem:[#allocation4 + $0x260] sm:$0xff]
    %v6116 = vld [vmem:[#allocation4 + $0x268] sm:$0xff]
    %v6117 = vld [vmem:[#allocation4 + $0x270] sm:$0xff]
    %v6118 = vld [vmem:[#allocation4 + $0x278] sm:$0xff]
    %v6119 = vld [vmem:[#allocation4 + $0x280] sm:$0xff]
    %v6120 = vld [vmem:[#allocation4 + $0x288] sm:$0xff]
    %v6121 = vld [vmem:[#allocation4 + $0x290] sm:$0xff]
    %v6122 = vld [vmem:[#allocation4 + $0x298] sm:$0xff]
    %v6123 = vld [vmem:[#allocation4 + $0x2a0] sm:$0xff]
    %v6124 = vld [vmem:[#allocation4 + $0x2a8] sm:$0xff]
    %v6125 = vld [vmem:[#allocation4 + $0x2b0] sm:$0xff]
    %v6126 = vld [vmem:[#allocation4 + $0x2b8] sm:$0xff]
    %v6127 = vld [vmem:[#allocation4 + $0x2c0] sm:$0xff]
    %v6128 = vld [vmem:[#allocation4 + $0x2c8] sm:$0xff]
    %v6129 = vld [vmem:[#allocation4 + $0x2d0] sm:$0xff]
    %v6130 = vld [vmem:[#allocation4 + $0x2d8] sm:$0xff]
    %v6131 = vld [vmem:[#allocation4 + $0x2e0] sm:$0xff]
    %v6132 = vld [vmem:[#allocation4 + $0x2e8] sm:$0xff]
    %v6133 = vld [vmem:[#allocation4 + $0x2f0] sm:$0xff]
    %v6134 = vld [vmem:[#allocation4 + $0x2f8] sm:$0xff]
    %v6135 = vld [vmem:[#allocation4 + $0x300] sm:$0xff]
    %v6136 = vld [vmem:[#allocation4 + $0x308] sm:$0xff]
    %v6137 = vld [vmem:[#allocation4 + $0x310] sm:$0xff]
    %v6138 = vld [vmem:[#allocation4 + $0x318] sm:$0xff]
    %v6139 = vld [vmem:[#allocation4 + $0x320] sm:$0xff]
    %v6140 = vld [vmem:[#allocation4 + $0x328] sm:$0xff]
    %v6141 = vld [vmem:[#allocation4 + $0x330] sm:$0xff]
    %v6142 = vld [vmem:[#allocation4 + $0x338] sm:$0xff]
    %v6143 = vld [vmem:[#allocation4 + $0x340] sm:$0xff]
    %v6144 = vld [vmem:[#allocation4 + $0x348] sm:$0xff]
    %v6145 = vld [vmem:[#allocation4 + $0x350] sm:$0xff]
    %v6146 = vld [vmem:[#allocation4 + $0x358] sm:$0xff]
    %v6147 = vld [vmem:[#allocation4 + $0x360] sm:$0xff]
    %v6148 = vld [vmem:[#allocation4 + $0x368] sm:$0xff]
    %v6149 = vld [vmem:[#allocation4 + $0x370] sm:$0xff]
    %v6150 = vld [vmem:[#allocation4 + $0x378] sm:$0xff]
    %v6151 = vld [vmem:[#allocation4 + $0x380] sm:$0xff]
    %v6152 = vld [vmem:[#allocation4 + $0x388] sm:$0xff]
    %v6153 = vld [vmem:[#allocation4 + $0x390] sm:$0xff]
    %v6154 = vld [vmem:[#allocation4 + $0x398] sm:$0xff]
    %v6155 = vld [vmem:[#allocation4 + $0x3a0] sm:$0xff]
    %v6156 = vld [vmem:[#allocation4 + $0x3a8] sm:$0xff]
    %v6157 = vld [vmem:[#allocation4 + $0x3b0] sm:$0xff]
    %v6158 = vld [vmem:[#allocation4 + $0x3b8] sm:$0xff]
    %v6159 = vld [vmem:[#allocation4 + $0x3c0] sm:$0xff]
    %v6160 = vld [vmem:[#allocation4 + $0x3c8] sm:$0xff]
    %v6161 = vld [vmem:[#allocation4 + $0x3d0] sm:$0xff]
    %v6162 = vld [vmem:[#allocation4 + $0x3d8] sm:$0xff]
    %v6163 = vld [vmem:[#allocation4 + $0x3e0] sm:$0xff]
    %v6164 = vld [vmem:[#allocation4 + $0x3e8] sm:$0xff]
    %v6165 = vld [vmem:[#allocation4 + $0x3f0] sm:$0xff]
    %v6166 = vld [vmem:[#allocation4 + $0x3f8] sm:$0xff]
    %v6167 = vld [vmem:[#allocation4 + $0x400] sm:$0xff]
    %v6168 = vld [vmem:[#allocation4 + $0x408] sm:$0xff]
    %v6169 = vld [vmem:[#allocation4 + $0x410] sm:$0xff]
    %v6170 = vld [vmem:[#allocation4 + $0x418] sm:$0xff]
    %v6171 = vld [vmem:[#allocation4 + $0x420] sm:$0xff]
    %v6172 = vld [vmem:[#allocation4 + $0x428] sm:$0xff]
    %v6173 = vld [vmem:[#allocation4 + $0x430] sm:$0xff]
    %v6174 = vld [vmem:[#allocation4 + $0x438] sm:$0xff]
    %v6175 = vld [vmem:[#allocation4 + $0x440] sm:$0xff]
    %v6176 = vld [vmem:[#allocation4 + $0x448] sm:$0xff]
    %v6177 = vld [vmem:[#allocation4 + $0x450] sm:$0xff]
    %v6178 = vld [vmem:[#allocation4 + $0x458] sm:$0xff]
    %v6179 = vld [vmem:[#allocation4 + $0x460] sm:$0xff]
    %v6180 = vld [vmem:[#allocation4 + $0x468] sm:$0xff]
    %v6181 = vld [vmem:[#allocation4 + $0x470] sm:$0xff]
    %v6182 = vld [vmem:[#allocation4 + $0x478] sm:$0xff]
    %v6183 = vld [vmem:[#allocation4 + $0x480] sm:$0xff]
    %v6184 = vld [vmem:[#allocation4 + $0x488] sm:$0xff]
    %v6185 = vld [vmem:[#allocation4 + $0x490] sm:$0xff]
    %v6186 = vld [vmem:[#allocation4 + $0x498] sm:$0xff]
    %v6187 = vld [vmem:[#allocation4 + $0x4a0] sm:$0xff]
    %v6188 = vld [vmem:[#allocation4 + $0x4a8] sm:$0xff]
    %v6189 = vld [vmem:[#allocation4 + $0x4b0] sm:$0xff]
    %v6190 = vld [vmem:[#allocation4 + $0x4b8] sm:$0xff]
    %v6191 = vld [vmem:[#allocation4 + $0x4c0] sm:$0xff]
    %v6192 = vld [vmem:[#allocation4 + $0x4c8] sm:$0xff]
    %v6193 = vld [vmem:[#allocation4 + $0x4d0] sm:$0xff]
    %v6194 = vld [vmem:[#allocation4 + $0x4d8] sm:$0xff]
    %v6195 = vld [vmem:[#allocation4 + $0x4e0] sm:$0xff]
    %v6196 = vld [vmem:[#allocation4 + $0x4e8] sm:$0xff]
    %v6197 = vld [vmem:[#allocation4 + $0x4f0] sm:$0xff]
    %v6198 = vld [vmem:[#allocation4 + $0x4f8] sm:$0xff]
    %v6199 = vld [vmem:[#allocation4 + $0x500] sm:$0xff]
    %v6200 = vld [vmem:[#allocation4 + $0x508] sm:$0xff]
    %v6201 = vld [vmem:[#allocation4 + $0x510] sm:$0xff]
    %v6202 = vld [vmem:[#allocation4 + $0x518] sm:$0xff]
    %v6203 = vld [vmem:[#allocation4 + $0x520] sm:$0xff]
    %v6204 = vld [vmem:[#allocation4 + $0x528] sm:$0xff]
    %v6205 = vld [vmem:[#allocation4 + $0x530] sm:$0xff]
    %v6206 = vld [vmem:[#allocation4 + $0x538] sm:$0xff]
    %v6207 = vld [vmem:[#allocation4 + $0x540] sm:$0xff]
    %v6208 = vld [vmem:[#allocation4 + $0x548] sm:$0xff]
    %v6209 = vld [vmem:[#allocation4 + $0x550] sm:$0xff]
    %v6210 = vld [vmem:[#allocation4 + $0x558] sm:$0xff]
    %v6211 = vld [vmem:[#allocation4 + $0x560] sm:$0xff]
    %v6212 = vld [vmem:[#allocation4 + $0x568] sm:$0xff]
    %v6213 = vld [vmem:[#allocation4 + $0x570] sm:$0xff]
    %v6214 = vld [vmem:[#allocation4 + $0x578] sm:$0xff]
    %v6215 = vld [vmem:[#allocation4 + $0x580] sm:$0xff]
    %v6216 = vld [vmem:[#allocation4 + $0x588] sm:$0xff]
    %v6217 = vld [vmem:[#allocation4 + $0x590] sm:$0xff]
    %v6218 = vld [vmem:[#allocation4 + $0x598] sm:$0xff]
    %v6219 = vld [vmem:[#allocation4 + $0x5a0] sm:$0xff]
    %v6220 = vld [vmem:[#allocation4 + $0x5a8] sm:$0xff]
    %v6221 = vld [vmem:[#allocation4 + $0x5b0] sm:$0xff]
    %v6222 = vld [vmem:[#allocation4 + $0x5b8] sm:$0xff]
    %v6223 = vld [vmem:[#allocation4 + $0x5c0] sm:$0xff]
    %v6224 = vld [vmem:[#allocation4 + $0x5c8] sm:$0xff]
    %v6225 = vld [vmem:[#allocation4 + $0x5d0] sm:$0xff]
    %v6226 = vld [vmem:[#allocation4 + $0x5d8] sm:$0xff]
    %v6227 = vld [vmem:[#allocation4 + $0x5e0] sm:$0xff]
    %v6228 = vld [vmem:[#allocation4 + $0x5e8] sm:$0xff]
    %v6229 = vld [vmem:[#allocation4 + $0x5f0] sm:$0xff]
    %v6230 = vld [vmem:[#allocation4 + $0x5f8] sm:$0xff]
    %v6231 = vld [vmem:[#allocation4 + $0x600] sm:$0xff]
    %v6232 = vld [vmem:[#allocation4 + $0x608] sm:$0xff]
    %v6233 = vld [vmem:[#allocation4 + $0x610] sm:$0xff]
    %v6234 = vld [vmem:[#allocation4 + $0x618] sm:$0xff]
    %v6235 = vld [vmem:[#allocation4 + $0x620] sm:$0xff]
    %v6236 = vld [vmem:[#allocation4 + $0x628] sm:$0xff]
    %v6237 = vld [vmem:[#allocation4 + $0x630] sm:$0xff]
    %v6238 = vld [vmem:[#allocation4 + $0x638] sm:$0xff]
    %v6239 = vld [vmem:[#allocation4 + $0x640] sm:$0xff]
    %v6240 = vld [vmem:[#allocation4 + $0x648] sm:$0xff]
    %v6241 = vld [vmem:[#allocation4 + $0x650] sm:$0xff]
    %v6242 = vld [vmem:[#allocation4 + $0x658] sm:$0xff]
    %v6243 = vld [vmem:[#allocation4 + $0x660] sm:$0xff]
    %v6244 = vld [vmem:[#allocation4 + $0x668] sm:$0xff]
    %v6245 = vld [vmem:[#allocation4 + $0x670] sm:$0xff]
    %v6246 = vld [vmem:[#allocation4 + $0x678] sm:$0xff]
    %v6247 = vld [vmem:[#allocation4 + $0x680] sm:$0xff]
    %v6248 = vld [vmem:[#allocation4 + $0x688] sm:$0xff]
    %v6249 = vld [vmem:[#allocation4 + $0x690] sm:$0xff]
    %v6250 = vld [vmem:[#allocation4 + $0x698] sm:$0xff]
    %v6251 = vld [vmem:[#allocation4 + $0x6a0] sm:$0xff]
    %v6252 = vld [vmem:[#allocation4 + $0x6a8] sm:$0xff]
    %v6253 = vld [vmem:[#allocation4 + $0x6b0] sm:$0xff]
    %v6254 = vld [vmem:[#allocation4 + $0x6b8] sm:$0xff]
    %v6255 = vld [vmem:[#allocation4 + $0x6c0] sm:$0xff]
    %v6256 = vld [vmem:[#allocation4 + $0x6c8] sm:$0xff]
    %v6257 = vld [vmem:[#allocation4 + $0x6d0] sm:$0xff]
    %v6258 = vld [vmem:[#allocation4 + $0x6d8] sm:$0xff]
    %v6259 = vld [vmem:[#allocation4 + $0x6e0] sm:$0xff]
    %v6260 = vld [vmem:[#allocation4 + $0x6e8] sm:$0xff]
    %v6261 = vld [vmem:[#allocation4 + $0x6f0] sm:$0xff]
    %v6262 = vld [vmem:[#allocation4 + $0x6f8] sm:$0xff]
    %v6263 = vld [vmem:[#allocation4 + $0x700] sm:$0xff]
    %v6264 = vld [vmem:[#allocation4 + $0x708] sm:$0xff]
    %v6265 = vld [vmem:[#allocation4 + $0x710] sm:$0xff]
    %v6266 = vld [vmem:[#allocation4 + $0x718] sm:$0xff]
    %v6267 = vld [vmem:[#allocation4 + $0x720] sm:$0xff]
    %v6268 = vld [vmem:[#allocation4 + $0x728] sm:$0xff]
    %v6269 = vld [vmem:[#allocation4 + $0x730] sm:$0xff]
    %v6270 = vld [vmem:[#allocation4 + $0x738] sm:$0xff]
    %v6271 = vld [vmem:[#allocation4 + $0x740] sm:$0xff]
    %v6272 = vld [vmem:[#allocation4 + $0x748] sm:$0xff]
    %v6273 = vld [vmem:[#allocation4 + $0x750] sm:$0xff]
    %v6274 = vld [vmem:[#allocation4 + $0x758] sm:$0xff]
    %v6275 = vld [vmem:[#allocation4 + $0x760] sm:$0xff]
    %v6276 = vld [vmem:[#allocation4 + $0x768] sm:$0xff]
    %v6277 = vld [vmem:[#allocation4 + $0x770] sm:$0xff]
    %v6278 = vld [vmem:[#allocation4 + $0x778] sm:$0xff]
    %v6279 = vld [vmem:[#allocation4 + $0x780] sm:$0xff]
    %v6280 = vld [vmem:[#allocation4 + $0x788] sm:$0xff]
    %v6281 = vld [vmem:[#allocation4 + $0x790] sm:$0xff]
    %v6282 = vld [vmem:[#allocation4 + $0x798] sm:$0xff]
    %v6283 = vld [vmem:[#allocation4 + $0x7a0] sm:$0xff]
    %v6284 = vld [vmem:[#allocation4 + $0x7a8] sm:$0xff]
    %v6285 = vld [vmem:[#allocation4 + $0x7b0] sm:$0xff]
    %v6286 = vld [vmem:[#allocation4 + $0x7b8] sm:$0xff]
    %v6287 = vld [vmem:[#allocation4 + $0x7c0] sm:$0xff]
    %v6288 = vld [vmem:[#allocation4 + $0x7c8] sm:$0xff]
    %v6289 = vld [vmem:[#allocation4 + $0x7d0] sm:$0xff]
    %v6290 = vld [vmem:[#allocation4 + $0x7d8] sm:$0xff]
    %v6291 = vld [vmem:[#allocation4 + $0x7e0] sm:$0xff]
    %v6292 = vld [vmem:[#allocation4 + $0x7e8] sm:$0xff]
    %v6293 = vld [vmem:[#allocation4 + $0x7f0] sm:$0xff]
    %v6294 = vld [vmem:[#allocation4 + $0x7f8] sm:$0xff]
    %v6295 = vld [vmem:[#allocation4 + $0x800] sm:$0xff]
    %v6296 = vld [vmem:[#allocation4 + $0x808] sm:$0xff]
    %v6297 = vld [vmem:[#allocation4 + $0x810] sm:$0xff]
    %v6298 = vld [vmem:[#allocation4 + $0x818] sm:$0xff]
    %v6299 = vld [vmem:[#allocation4 + $0x820] sm:$0xff]
    %v6300 = vld [vmem:[#allocation4 + $0x828] sm:$0xff]
    %v6301 = vld [vmem:[#allocation4 + $0x830] sm:$0xff]
    %v6302 = vld [vmem:[#allocation4 + $0x838] sm:$0xff]
    %v6303 = vld [vmem:[#allocation4 + $0x840] sm:$0xff]
    %v6304 = vld [vmem:[#allocation4 + $0x848] sm:$0xff]
    %v6305 = vld [vmem:[#allocation4 + $0x850] sm:$0xff]
    %v6306 = vld [vmem:[#allocation4 + $0x858] sm:$0xff]
    %v6307 = vld [vmem:[#allocation4 + $0x860] sm:$0xff]
    %v6308 = vld [vmem:[#allocation4 + $0x868] sm:$0xff]
    %v6309 = vld [vmem:[#allocation4 + $0x870] sm:$0xff]
    %v6310 = vld [vmem:[#allocation4 + $0x878] sm:$0xff]
    %v6311 = vld [vmem:[#allocation4 + $0x880] sm:$0xff]
    %v6312 = vld [vmem:[#allocation4 + $0x888] sm:$0xff]
    %v6313 = vld [vmem:[#allocation4 + $0x890] sm:$0xff]
    %v6314 = vld [vmem:[#allocation4 + $0x898] sm:$0xff]
    %v6315 = vld [vmem:[#allocation4 + $0x8a0] sm:$0xff]
    %v6316 = vld [vmem:[#allocation4 + $0x8a8] sm:$0xff]
    %v6317 = vld [vmem:[#allocation4 + $0x8b0] sm:$0xff]
    %v6318 = vld [vmem:[#allocation4 + $0x8b8] sm:$0xff]
    %v6319 = vld [vmem:[#allocation4 + $0x8c0] sm:$0xff]
    %v6320 = vld [vmem:[#allocation4 + $0x8c8] sm:$0xff]
    %v6321 = vld [vmem:[#allocation4 + $0x8d0] sm:$0xff]
    %v6322 = vld [vmem:[#allocation4 + $0x8d8] sm:$0xff]
    %v6323 = vld [vmem:[#allocation4 + $0x8e0] sm:$0xff]
    %v6324 = vld [vmem:[#allocation4 + $0x8e8] sm:$0xff]
    %v6325 = vld [vmem:[#allocation4 + $0x8f0] sm:$0xff]
    %v6326 = vld [vmem:[#allocation4 + $0x8f8] sm:$0xff]
    %v6327 = vld [vmem:[#allocation4 + $0x900] sm:$0xff]
    %v6328 = vld [vmem:[#allocation4 + $0x908] sm:$0xff]
    %v6329 = vld [vmem:[#allocation4 + $0x910] sm:$0xff]
    %v6330 = vld [vmem:[#allocation4 + $0x918] sm:$0xff]
    %v6331 = vld [vmem:[#allocation4 + $0x920] sm:$0xff]
    %v6332 = vld [vmem:[#allocation4 + $0x928] sm:$0xff]
    %v6333 = vld [vmem:[#allocation4 + $0x930] sm:$0xff]
    %v6334 = vld [vmem:[#allocation4 + $0x938] sm:$0xff]
    %v6335 = vld [vmem:[#allocation4 + $0x940] sm:$0xff]
    %v6336 = vld [vmem:[#allocation4 + $0x948] sm:$0xff]
    %v6337 = vld [vmem:[#allocation4 + $0x950] sm:$0xff]
    %v6338 = vld [vmem:[#allocation4 + $0x958] sm:$0xff]
    %v6339 = vld [vmem:[#allocation4 + $0x960] sm:$0xff]
    %v6340 = vld [vmem:[#allocation4 + $0x968] sm:$0xff]
    %v6341 = vld [vmem:[#allocation4 + $0x970] sm:$0xff]
    %v6342 = vld [vmem:[#allocation4 + $0x978] sm:$0xff]
    %v6343 = vld [vmem:[#allocation4 + $0x980] sm:$0xff]
    %v6344 = vld [vmem:[#allocation4 + $0x988] sm:$0xff]
    %v6345 = vld [vmem:[#allocation4 + $0x990] sm:$0xff]
    %v6346 = vld [vmem:[#allocation4 + $0x998] sm:$0xff]
    %v6347 = vld [vmem:[#allocation4 + $0x9a0] sm:$0xff]
    %v6348 = vld [vmem:[#allocation4 + $0x9a8] sm:$0xff]
    %v6349 = vld [vmem:[#allocation4 + $0x9b0] sm:$0xff]
    %v6350 = vld [vmem:[#allocation4 + $0x9b8] sm:$0xff]
    %v6351 = vld [vmem:[#allocation4 + $0x9c0] sm:$0xff]
    %v6352 = vld [vmem:[#allocation4 + $0x9c8] sm:$0xff]
    %v6353 = vld [vmem:[#allocation4 + $0x9d0] sm:$0xff]
    %v6354 = vld [vmem:[#allocation4 + $0x9d8] sm:$0xff]
    %v6355 = vld [vmem:[#allocation4 + $0x9e0] sm:$0xff]
    %v6356 = vld [vmem:[#allocation4 + $0x9e8] sm:$0xff]
    %v6357 = vld [vmem:[#allocation4 + $0x9f0] sm:$0xff]
    %v6358 = vld [vmem:[#allocation4 + $0x9f8] sm:$0xff]
    %v6359 = vld [vmem:[#allocation4 + $0xa00] sm:$0xff]
    %v6360 = vld [vmem:[#allocation4 + $0xa08] sm:$0xff]
    %v6361 = vld [vmem:[#allocation4 + $0xa10] sm:$0xff]
    %v6362 = vld [vmem:[#allocation4 + $0xa18] sm:$0xff]
    %v6363 = vld [vmem:[#allocation4 + $0xa20] sm:$0xff]
    %v6364 = vld [vmem:[#allocation4 + $0xa28] sm:$0xff]
    %v6365 = vld [vmem:[#allocation4 + $0xa30] sm:$0xff]
    %v6366 = vld [vmem:[#allocation4 + $0xa38] sm:$0xff]
    %v6367 = vld [vmem:[#allocation4 + $0xa40] sm:$0xff]
    %v6368 = vld [vmem:[#allocation4 + $0xa48] sm:$0xff]
    %v6369 = vld [vmem:[#allocation4 + $0xa50] sm:$0xff]
    %v6370 = vld [vmem:[#allocation4 + $0xa58] sm:$0xff]
    %v6371 = vld [vmem:[#allocation4 + $0xa60] sm:$0xff]
    %v6372 = vld [vmem:[#allocation4 + $0xa68] sm:$0xff]
    %v6373 = vld [vmem:[#allocation4 + $0xa70] sm:$0xff]
    %v6374 = vld [vmem:[#allocation4 + $0xa78] sm:$0xff]
    %v6375 = vld [vmem:[#allocation4 + $0xa80] sm:$0xff]
    %v6376 = vld [vmem:[#allocation4 + $0xa88] sm:$0xff]
    %v6377 = vld [vmem:[#allocation4 + $0xa90] sm:$0xff]
    %v6378 = vld [vmem:[#allocation4 + $0xa98] sm:$0xff]
    %v6379 = vld [vmem:[#allocation4 + $0xaa0] sm:$0xff]
    %v6380 = vld [vmem:[#allocation4 + $0xaa8] sm:$0xff]
    %v6381 = vld [vmem:[#allocation4 + $0xab0] sm:$0xff]
    %v6382 = vld [vmem:[#allocation4 + $0xab8] sm:$0xff]
    %v6383 = vld [vmem:[#allocation4 + $0xac0] sm:$0xff]
    %v6384 = vld [vmem:[#allocation4 + $0xac8] sm:$0xff]
    %v6385 = vld [vmem:[#allocation4 + $0xad0] sm:$0xff]
    %v6386 = vld [vmem:[#allocation4 + $0xad8] sm:$0xff]
    %v6387 = vld [vmem:[#allocation4 + $0xae0] sm:$0xff]
    %v6388 = vld [vmem:[#allocation4 + $0xae8] sm:$0xff]
    %v6389 = vld [vmem:[#allocation4 + $0xaf0] sm:$0xff]
    %v6390 = vld [vmem:[#allocation4 + $0xaf8] sm:$0xff]
    %v6391 = vld [vmem:[#allocation4 + $0xb00] sm:$0xff]
    %v6392 = vld [vmem:[#allocation4 + $0xb08] sm:$0xff]
    %v6393 = vld [vmem:[#allocation4 + $0xb10] sm:$0xff]
    %v6394 = vld [vmem:[#allocation4 + $0xb18] sm:$0xff]
    %v6395 = vld [vmem:[#allocation4 + $0xb20] sm:$0xff]
    %v6396 = vld [vmem:[#allocation4 + $0xb28] sm:$0xff]
    %v6397 = vld [vmem:[#allocation4 + $0xb30] sm:$0xff]
    %v6398 = vld [vmem:[#allocation4 + $0xb38] sm:$0xff]
    %v6399 = vld [vmem:[#allocation4 + $0xb40] sm:$0xff]
    %v6400 = vld [vmem:[#allocation4 + $0xb48] sm:$0xff]
    %v6401 = vld [vmem:[#allocation4 + $0xb50] sm:$0xff]
    %v6402 = vld [vmem:[#allocation4 + $0xb58] sm:$0xff]
    %v6403 = vld [vmem:[#allocation4 + $0xb60] sm:$0xff]
    %v6404 = vld [vmem:[#allocation4 + $0xb68] sm:$0xff]
    %v6405 = vld [vmem:[#allocation4 + $0xb70] sm:$0xff]
    %v6406 = vld [vmem:[#allocation4 + $0xb78] sm:$0xff]
    %v6407 = vld [vmem:[#allocation4 + $0xb80] sm:$0xff]
    %v6408 = vld [vmem:[#allocation4 + $0xb88] sm:$0xff]
    %v6409 = vld [vmem:[#allocation4 + $0xb90] sm:$0xff]
    %v6410 = vld [vmem:[#allocation4 + $0xb98] sm:$0xff]
    %v6411 = vld [vmem:[#allocation4 + $0xba0] sm:$0xff]
    %v6412 = vld [vmem:[#allocation4 + $0xba8] sm:$0xff]
    %v6413 = vld [vmem:[#allocation4 + $0xbb0] sm:$0xff]
    %v6414 = vld [vmem:[#allocation4 + $0xbb8] sm:$0xff]
    %v6415 = vld [vmem:[#allocation4 + $0xbc0] sm:$0xff]
    %v6416 = vld [vmem:[#allocation4 + $0xbc8] sm:$0xff]
    %v6417 = vld [vmem:[#allocation4 + $0xbd0] sm:$0xff]
    %v6418 = vld [vmem:[#allocation4 + $0xbd8] sm:$0xff]
    %v6419 = vld [vmem:[#allocation4 + $0xbe0] sm:$0xff]
    %v6420 = vld [vmem:[#allocation4 + $0xbe8] sm:$0xff]
    %v6421 = vld [vmem:[#allocation4 + $0xbf0] sm:$0xff]
    %v6422 = vld [vmem:[#allocation4 + $0xbf8] sm:$0xff]
    %v6423 = vld [vmem:[#allocation4 + $0xc00] sm:$0xff]
    %v6424 = vld [vmem:[#allocation4 + $0xc08] sm:$0xff]
    %v6425 = vld [vmem:[#allocation4 + $0xc10] sm:$0xff]
    %v6426 = vld [vmem:[#allocation4 + $0xc18] sm:$0xff]
    %v6427 = vld [vmem:[#allocation4 + $0xc20] sm:$0xff]
    %v6428 = vld [vmem:[#allocation4 + $0xc28] sm:$0xff]
    %v6429 = vld [vmem:[#allocation4 + $0xc30] sm:$0xff]
    %v6430 = vld [vmem:[#allocation4 + $0xc38] sm:$0xff]
    %v6431 = vld [vmem:[#allocation4 + $0xc40] sm:$0xff]
    %v6432 = vld [vmem:[#allocation4 + $0xc48] sm:$0xff]
    %v6433 = vld [vmem:[#allocation4 + $0xc50] sm:$0xff]
    %v6434 = vld [vmem:[#allocation4 + $0xc58] sm:$0xff]
    %v6435 = vld [vmem:[#allocation4 + $0xc60] sm:$0xff]
    %v6436 = vld [vmem:[#allocation4 + $0xc68] sm:$0xff]
    %v6437 = vld [vmem:[#allocation4 + $0xc70] sm:$0xff]
    %v6438 = vld [vmem:[#allocation4 + $0xc78] sm:$0xff]
    %v6439 = vld [vmem:[#allocation4 + $0xc80] sm:$0xff]
    %v6440 = vld [vmem:[#allocation4 + $0xc88] sm:$0xff]
    %v6441 = vld [vmem:[#allocation4 + $0xc90] sm:$0xff]
    %v6442 = vld [vmem:[#allocation4 + $0xc98] sm:$0xff]
    %v6443 = vld [vmem:[#allocation4 + $0xca0] sm:$0xff]
    %v6444 = vld [vmem:[#allocation4 + $0xca8] sm:$0xff]
    %v6445 = vld [vmem:[#allocation4 + $0xcb0] sm:$0xff]
    %v6446 = vld [vmem:[#allocation4 + $0xcb8] sm:$0xff]
    %v6447 = vld [vmem:[#allocation4 + $0xcc0] sm:$0xff]
    %v6448 = vld [vmem:[#allocation4 + $0xcc8] sm:$0xff]
    %v6449 = vld [vmem:[#allocation4 + $0xcd0] sm:$0xff]
    %v6450 = vld [vmem:[#allocation4 + $0xcd8] sm:$0xff]
    %v6451 = vld [vmem:[#allocation4 + $0xce0] sm:$0xff]
    %v6452 = vld [vmem:[#allocation4 + $0xce8] sm:$0xff]
    %v6453 = vld [vmem:[#allocation4 + $0xcf0] sm:$0xff]
    %v6454 = vld [vmem:[#allocation4 + $0xcf8] sm:$0xff]
    %v6455 = vld [vmem:[#allocation4 + $0xd00] sm:$0xff]
    %v6456 = vld [vmem:[#allocation4 + $0xd08] sm:$0xff]
    %v6457 = vld [vmem:[#allocation4 + $0xd10] sm:$0xff]
    %v6458 = vld [vmem:[#allocation4 + $0xd18] sm:$0xff]
    %v6459 = vld [vmem:[#allocation4 + $0xd20] sm:$0xff]
    %v6460 = vld [vmem:[#allocation4 + $0xd28] sm:$0xff]
    %v6461 = vld [vmem:[#allocation4 + $0xd30] sm:$0xff]
    %v6462 = vld [vmem:[#allocation4 + $0xd38] sm:$0xff]
    %v6463 = vld [vmem:[#allocation4 + $0xd40] sm:$0xff]
    %v6464 = vld [vmem:[#allocation4 + $0xd48] sm:$0xff]
    %v6465 = vld [vmem:[#allocation4 + $0xd50] sm:$0xff]
    %v6466 = vld [vmem:[#allocation4 + $0xd58] sm:$0xff]
    %v6467 = vld [vmem:[#allocation4 + $0xd60] sm:$0xff]
    %v6468 = vld [vmem:[#allocation4 + $0xd68] sm:$0xff]
    %v6469 = vld [vmem:[#allocation4 + $0xd70] sm:$0xff]
    %v6470 = vld [vmem:[#allocation4 + $0xd78] sm:$0xff]
    %v6471 = vld [vmem:[#allocation4 + $0xd80] sm:$0xff]
    %v6472 = vld [vmem:[#allocation4 + $0xd88] sm:$0xff]
    %v6473 = vld [vmem:[#allocation4 + $0xd90] sm:$0xff]
    %v6474 = vld [vmem:[#allocation4 + $0xd98] sm:$0xff]
    %v6475 = vld [vmem:[#allocation4 + $0xda0] sm:$0xff]
    %v6476 = vld [vmem:[#allocation4 + $0xda8] sm:$0xff]
    %v6477 = vld [vmem:[#allocation4 + $0xdb0] sm:$0xff]
    %v6478 = vld [vmem:[#allocation4 + $0xdb8] sm:$0xff]
    %v6479 = vld [vmem:[#allocation4 + $0xdc0] sm:$0xff]
    %v6480 = vld [vmem:[#allocation4 + $0xdc8] sm:$0xff]
    %v6481 = vld [vmem:[#allocation4 + $0xdd0] sm:$0xff]
    %v6482 = vld [vmem:[#allocation4 + $0xdd8] sm:$0xff]
    %v6483 = vld [vmem:[#allocation4 + $0xde0] sm:$0xff]
    %v6484 = vld [vmem:[#allocation4 + $0xde8] sm:$0xff]
    %v6485 = vld [vmem:[#allocation4 + $0xdf0] sm:$0xff]
    %v6486 = vld [vmem:[#allocation4 + $0xdf8] sm:$0xff]
    %v6487 = vld [vmem:[#allocation4 + $0xe00] sm:$0xff]
    %v6488 = vld [vmem:[#allocation4 + $0xe08] sm:$0xff]
    %v6489 = vld [vmem:[#allocation4 + $0xe10] sm:$0xff]
    %v6490 = vld [vmem:[#allocation4 + $0xe18] sm:$0xff]
    %v6491 = vld [vmem:[#allocation4 + $0xe20] sm:$0xff]
    %v6492 = vld [vmem:[#allocation4 + $0xe28] sm:$0xff]
    %v6493 = vld [vmem:[#allocation4 + $0xe30] sm:$0xff]
    %v6494 = vld [vmem:[#allocation4 + $0xe38] sm:$0xff]
    %v6495 = vld [vmem:[#allocation4 + $0xe40] sm:$0xff]
    %v6496 = vld [vmem:[#allocation4 + $0xe48] sm:$0xff]
    %v6497 = vld [vmem:[#allocation4 + $0xe50] sm:$0xff]
    %v6498 = vld [vmem:[#allocation4 + $0xe58] sm:$0xff]
    %v6499 = vld [vmem:[#allocation4 + $0xe60] sm:$0xff]
    %v6500 = vld [vmem:[#allocation4 + $0xe68] sm:$0xff]
    %v6501 = vld [vmem:[#allocation4 + $0xe70] sm:$0xff]
    %v6502 = vld [vmem:[#allocation4 + $0xe78] sm:$0xff]
    %v6503 = vld [vmem:[#allocation4 + $0xe80] sm:$0xff]
    %v6504 = vld [vmem:[#allocation4 + $0xe88] sm:$0xff]
    %v6505 = vld [vmem:[#allocation4 + $0xe90] sm:$0xff]
    %v6506 = vld [vmem:[#allocation4 + $0xe98] sm:$0xff]
    %v6507 = vld [vmem:[#allocation4 + $0xea0] sm:$0xff]
    %v6508 = vld [vmem:[#allocation4 + $0xea8] sm:$0xff]
    %v6509 = vld [vmem:[#allocation4 + $0xeb0] sm:$0xff]
    %v6510 = vld [vmem:[#allocation4 + $0xeb8] sm:$0xff]
    %v6511 = vld [vmem:[#allocation4 + $0xec0] sm:$0xff]
    %v6512 = vld [vmem:[#allocation4 + $0xec8] sm:$0xff]
    %v6513 = vld [vmem:[#allocation4 + $0xed0] sm:$0xff]
    %v6514 = vld [vmem:[#allocation4 + $0xed8] sm:$0xff]
    %v6515 = vld [vmem:[#allocation4 + $0xee0] sm:$0xff]
    %v6516 = vld [vmem:[#allocation4 + $0xee8] sm:$0xff]
    %v6517 = vld [vmem:[#allocation4 + $0xef0] sm:$0xff]
    %v6518 = vld [vmem:[#allocation4 + $0xef8] sm:$0xff]
    %v6519 = vld [vmem:[#allocation4 + $0xf00] sm:$0xff]
    %v6520 = vld [vmem:[#allocation4 + $0xf08] sm:$0xff]
    %v6521 = vld [vmem:[#allocation4 + $0xf10] sm:$0xff]
    %v6522 = vld [vmem:[#allocation4 + $0xf18] sm:$0xff]
    %v6523 = vld [vmem:[#allocation4 + $0xf20] sm:$0xff]
    %v6524 = vld [vmem:[#allocation4 + $0xf28] sm:$0xff]
    %v6525 = vld [vmem:[#allocation4 + $0xf30] sm:$0xff]
    %v6526 = vld [vmem:[#allocation4 + $0xf38] sm:$0xff]
    %v6527 = vld [vmem:[#allocation4 + $0xf40] sm:$0xff]
    %v6528 = vld [vmem:[#allocation4 + $0xf48] sm:$0xff]
    %v6529 = vld [vmem:[#allocation4 + $0xf50] sm:$0xff]
    %v6530 = vld [vmem:[#allocation4 + $0xf58] sm:$0xff]
    %v6531 = vld [vmem:[#allocation4 + $0xf60] sm:$0xff]
    %v6532 = vld [vmem:[#allocation4 + $0xf68] sm:$0xff]
    %v6533 = vld [vmem:[#allocation4 + $0xf70] sm:$0xff]
    %v6534 = vld [vmem:[#allocation4 + $0xf78] sm:$0xff]
    %v6535 = vld [vmem:[#allocation4 + $0xf80] sm:$0xff]
    %v6536 = vld [vmem:[#allocation4 + $0xf88] sm:$0xff]
    %v6537 = vld [vmem:[#allocation4 + $0xf90] sm:$0xff]
    %v6538 = vld [vmem:[#allocation4 + $0xf98] sm:$0xff]
    %v6539 = vld [vmem:[#allocation4 + $0xfa0] sm:$0xff]
    %v6540 = vld [vmem:[#allocation4 + $0xfa8] sm:$0xff]
    %v6541 = vld [vmem:[#allocation4 + $0xfb0] sm:$0xff]
    %v6542 = vld [vmem:[#allocation4 + $0xfb8] sm:$0xff]
    %v6543 = vld [vmem:[#allocation4 + $0xfc0] sm:$0xff]
    %v6544 = vld [vmem:[#allocation4 + $0xfc8] sm:$0xff]
    %v6545 = vld [vmem:[#allocation4 + $0xfd0] sm:$0xff]
    %v6546 = vld [vmem:[#allocation4 + $0xfd8] sm:$0xff]
    %v6547 = vld [vmem:[#allocation4 + $0xfe0] sm:$0xff]
    %v6548 = vld [vmem:[#allocation4 + $0xfe8] sm:$0xff]
    %v6549 = vld [vmem:[#allocation4 + $0xff0] sm:$0xff]
    %v6550 = vld [vmem:[#allocation4 + $0xff8] sm:$0xff]
    %v7063 = vunpack.c.l.b16 %v6039
    %v7064 = vunpack.c.h.b16 %v6039
    %v7065 = vunpack.c.l.b16 %v6040
    %v7066 = vunpack.c.h.b16 %v6040
    %v7067 = vunpack.c.l.b16 %v6041
    %v7068 = vunpack.c.h.b16 %v6041
    %v7069 = vunpack.c.l.b16 %v6042
    %v7070 = vunpack.c.h.b16 %v6042
    %v7071 = vunpack.c.l.b16 %v6043
    %v7072 = vunpack.c.h.b16 %v6043
    %v7073 = vunpack.c.l.b16 %v6044
    %v7074 = vunpack.c.h.b16 %v6044
    %v7075 = vunpack.c.l.b16 %v6045
    %v7076 = vunpack.c.h.b16 %v6045
    %v7077 = vunpack.c.l.b16 %v6046
    %v7078 = vunpack.c.h.b16 %v6046
    %v7079 = vunpack.c.l.b16 %v6047
    %v7080 = vunpack.c.h.b16 %v6047
    %v7081 = vunpack.c.l.b16 %v6048
    %v7082 = vunpack.c.h.b16 %v6048
    %v7083 = vunpack.c.l.b16 %v6049
    %v7084 = vunpack.c.h.b16 %v6049
    %v7085 = vunpack.c.l.b16 %v6050
    %v7086 = vunpack.c.h.b16 %v6050
    %v7087 = vunpack.c.l.b16 %v6051
    %v7088 = vunpack.c.h.b16 %v6051
    %v7089 = vunpack.c.l.b16 %v6052
    %v7090 = vunpack.c.h.b16 %v6052
    %v7091 = vunpack.c.l.b16 %v6053
    %v7092 = vunpack.c.h.b16 %v6053
    %v7093 = vunpack.c.l.b16 %v6054
    %v7094 = vunpack.c.h.b16 %v6054
    %v7095 = vunpack.c.l.b16 %v6055
    %v7096 = vunpack.c.h.b16 %v6055
    %v7097 = vunpack.c.l.b16 %v6056
    %v7098 = vunpack.c.h.b16 %v6056
    %v7099 = vunpack.c.l.b16 %v6057
    %v7100 = vunpack.c.h.b16 %v6057
    %v7101 = vunpack.c.l.b16 %v6058
    %v7102 = vunpack.c.h.b16 %v6058
    %v7103 = vunpack.c.l.b16 %v6059
    %v7104 = vunpack.c.h.b16 %v6059
    %v7105 = vunpack.c.l.b16 %v6060
    %v7106 = vunpack.c.h.b16 %v6060
    %v7107 = vunpack.c.l.b16 %v6061
    %v7108 = vunpack.c.h.b16 %v6061
    %v7109 = vunpack.c.l.b16 %v6062
    %v7110 = vunpack.c.h.b16 %v6062
    %v7111 = vunpack.c.l.b16 %v6063
    %v7112 = vunpack.c.h.b16 %v6063
    %v7113 = vunpack.c.l.b16 %v6064
    %v7114 = vunpack.c.h.b16 %v6064
    %v7115 = vunpack.c.l.b16 %v6065
    %v7116 = vunpack.c.h.b16 %v6065
    %v7117 = vunpack.c.l.b16 %v6066
    %v7118 = vunpack.c.h.b16 %v6066
    %v7119 = vunpack.c.l.b16 %v6067
    %v7120 = vunpack.c.h.b16 %v6067
    %v7121 = vunpack.c.l.b16 %v6068
    %v7122 = vunpack.c.h.b16 %v6068
    %v7123 = vunpack.c.l.b16 %v6069
    %v7124 = vunpack.c.h.b16 %v6069
    %v7125 = vunpack.c.l.b16 %v6070
    %v7126 = vunpack.c.h.b16 %v6070
    %v7127 = vunpack.c.l.b16 %v6071
    %v7128 = vunpack.c.h.b16 %v6071
    %v7129 = vunpack.c.l.b16 %v6072
    %v7130 = vunpack.c.h.b16 %v6072
    %v7131 = vunpack.c.l.b16 %v6073
    %v7132 = vunpack.c.h.b16 %v6073
    %v7133 = vunpack.c.l.b16 %v6074
    %v7134 = vunpack.c.h.b16 %v6074
    %v7135 = vunpack.c.l.b16 %v6075
    %v7136 = vunpack.c.h.b16 %v6075
    %v7137 = vunpack.c.l.b16 %v6076
    %v7138 = vunpack.c.h.b16 %v6076
    %v7139 = vunpack.c.l.b16 %v6077
    %v7140 = vunpack.c.h.b16 %v6077
    %v7141 = vunpack.c.l.b16 %v6078
    %v7142 = vunpack.c.h.b16 %v6078
    %v7143 = vunpack.c.l.b16 %v6079
    %v7144 = vunpack.c.h.b16 %v6079
    %v7145 = vunpack.c.l.b16 %v6080
    %v7146 = vunpack.c.h.b16 %v6080
    %v7147 = vunpack.c.l.b16 %v6081
    %v7148 = vunpack.c.h.b16 %v6081
    %v7149 = vunpack.c.l.b16 %v6082
    %v7150 = vunpack.c.h.b16 %v6082
    %v7151 = vunpack.c.l.b16 %v6083
    %v7152 = vunpack.c.h.b16 %v6083
    %v7153 = vunpack.c.l.b16 %v6084
    %v7154 = vunpack.c.h.b16 %v6084
    %v7155 = vunpack.c.l.b16 %v6085
    %v7156 = vunpack.c.h.b16 %v6085
    %v7157 = vunpack.c.l.b16 %v6086
    %v7158 = vunpack.c.h.b16 %v6086
    %v7159 = vunpack.c.l.b16 %v6087
    %v7160 = vunpack.c.h.b16 %v6087
    %v7161 = vunpack.c.l.b16 %v6088
    %v7162 = vunpack.c.h.b16 %v6088
    %v7163 = vunpack.c.l.b16 %v6089
    %v7164 = vunpack.c.h.b16 %v6089
    %v7165 = vunpack.c.l.b16 %v6090
    %v7166 = vunpack.c.h.b16 %v6090
    %v7167 = vunpack.c.l.b16 %v6091
    %v7168 = vunpack.c.h.b16 %v6091
    %v7169 = vunpack.c.l.b16 %v6092
    %v7170 = vunpack.c.h.b16 %v6092
    %v7171 = vunpack.c.l.b16 %v6093
    %v7172 = vunpack.c.h.b16 %v6093
    %v7173 = vunpack.c.l.b16 %v6094
    %v7174 = vunpack.c.h.b16 %v6094
    %v7175 = vunpack.c.l.b16 %v6095
    %v7176 = vunpack.c.h.b16 %v6095
    %v7177 = vunpack.c.l.b16 %v6096
    %v7178 = vunpack.c.h.b16 %v6096
    %v7179 = vunpack.c.l.b16 %v6097
    %v7180 = vunpack.c.h.b16 %v6097
    %v7181 = vunpack.c.l.b16 %v6098
    %v7182 = vunpack.c.h.b16 %v6098
    %v7183 = vunpack.c.l.b16 %v6099
    %v7184 = vunpack.c.h.b16 %v6099
    %v7185 = vunpack.c.l.b16 %v6100
    %v7186 = vunpack.c.h.b16 %v6100
    %v7187 = vunpack.c.l.b16 %v6101
    %v7188 = vunpack.c.h.b16 %v6101
    %v7189 = vunpack.c.l.b16 %v6102
    %v7190 = vunpack.c.h.b16 %v6102
    %v7191 = vunpack.c.l.b16 %v6103
    %v7192 = vunpack.c.h.b16 %v6103
    %v7193 = vunpack.c.l.b16 %v6104
    %v7194 = vunpack.c.h.b16 %v6104
    %v7195 = vunpack.c.l.b16 %v6105
    %v7196 = vunpack.c.h.b16 %v6105
    %v7197 = vunpack.c.l.b16 %v6106
    %v7198 = vunpack.c.h.b16 %v6106
    %v7199 = vunpack.c.l.b16 %v6107
    %v7200 = vunpack.c.h.b16 %v6107
    %v7201 = vunpack.c.l.b16 %v6108
    %v7202 = vunpack.c.h.b16 %v6108
    %v7203 = vunpack.c.l.b16 %v6109
    %v7204 = vunpack.c.h.b16 %v6109
    %v7205 = vunpack.c.l.b16 %v6110
    %v7206 = vunpack.c.h.b16 %v6110
    %v7207 = vunpack.c.l.b16 %v6111
    %v7208 = vunpack.c.h.b16 %v6111
    %v7209 = vunpack.c.l.b16 %v6112
    %v7210 = vunpack.c.h.b16 %v6112
    %v7211 = vunpack.c.l.b16 %v6113
    %v7212 = vunpack.c.h.b16 %v6113
    %v7213 = vunpack.c.l.b16 %v6114
    %v7214 = vunpack.c.h.b16 %v6114
    %v7215 = vunpack.c.l.b16 %v6115
    %v7216 = vunpack.c.h.b16 %v6115
    %v7217 = vunpack.c.l.b16 %v6116
    %v7218 = vunpack.c.h.b16 %v6116
    %v7219 = vunpack.c.l.b16 %v6117
    %v7220 = vunpack.c.h.b16 %v6117
    %v7221 = vunpack.c.l.b16 %v6118
    %v7222 = vunpack.c.h.b16 %v6118
    %v7223 = vunpack.c.l.b16 %v6119
    %v7224 = vunpack.c.h.b16 %v6119
    %v7225 = vunpack.c.l.b16 %v6120
    %v7226 = vunpack.c.h.b16 %v6120
    %v7227 = vunpack.c.l.b16 %v6121
    %v7228 = vunpack.c.h.b16 %v6121
    %v7229 = vunpack.c.l.b16 %v6122
    %v7230 = vunpack.c.h.b16 %v6122
    %v7231 = vunpack.c.l.b16 %v6123
    %v7232 = vunpack.c.h.b16 %v6123
    %v7233 = vunpack.c.l.b16 %v6124
    %v7234 = vunpack.c.h.b16 %v6124
    %v7235 = vunpack.c.l.b16 %v6125
    %v7236 = vunpack.c.h.b16 %v6125
    %v7237 = vunpack.c.l.b16 %v6126
    %v7238 = vunpack.c.h.b16 %v6126
    %v7239 = vunpack.c.l.b16 %v6127
    %v7240 = vunpack.c.h.b16 %v6127
    %v7241 = vunpack.c.l.b16 %v6128
    %v7242 = vunpack.c.h.b16 %v6128
    %v7243 = vunpack.c.l.b16 %v6129
    %v7244 = vunpack.c.h.b16 %v6129
    %v7245 = vunpack.c.l.b16 %v6130
    %v7246 = vunpack.c.h.b16 %v6130
    %v7247 = vunpack.c.l.b16 %v6131
    %v7248 = vunpack.c.h.b16 %v6131
    %v7249 = vunpack.c.l.b16 %v6132
    %v7250 = vunpack.c.h.b16 %v6132
    %v7251 = vunpack.c.l.b16 %v6133
    %v7252 = vunpack.c.h.b16 %v6133
    %v7253 = vunpack.c.l.b16 %v6134
    %v7254 = vunpack.c.h.b16 %v6134
    %v7255 = vunpack.c.l.b16 %v6135
    %v7256 = vunpack.c.h.b16 %v6135
    %v7257 = vunpack.c.l.b16 %v6136
    %v7258 = vunpack.c.h.b16 %v6136
    %v7259 = vunpack.c.l.b16 %v6137
    %v7260 = vunpack.c.h.b16 %v6137
    %v7261 = vunpack.c.l.b16 %v6138
    %v7262 = vunpack.c.h.b16 %v6138
    %v7263 = vunpack.c.l.b16 %v6139
    %v7264 = vunpack.c.h.b16 %v6139
    %v7265 = vunpack.c.l.b16 %v6140
    %v7266 = vunpack.c.h.b16 %v6140
    %v7267 = vunpack.c.l.b16 %v6141
    %v7268 = vunpack.c.h.b16 %v6141
    %v7269 = vunpack.c.l.b16 %v6142
    %v7270 = vunpack.c.h.b16 %v6142
    %v7271 = vunpack.c.l.b16 %v6143
    %v7272 = vunpack.c.h.b16 %v6143
    %v7273 = vunpack.c.l.b16 %v6144
    %v7274 = vunpack.c.h.b16 %v6144
    %v7275 = vunpack.c.l.b16 %v6145
    %v7276 = vunpack.c.h.b16 %v6145
    %v7277 = vunpack.c.l.b16 %v6146
    %v7278 = vunpack.c.h.b16 %v6146
    %v7279 = vunpack.c.l.b16 %v6147
    %v7280 = vunpack.c.h.b16 %v6147
    %v7281 = vunpack.c.l.b16 %v6148
    %v7282 = vunpack.c.h.b16 %v6148
    %v7283 = vunpack.c.l.b16 %v6149
    %v7284 = vunpack.c.h.b16 %v6149
    %v7285 = vunpack.c.l.b16 %v6150
    %v7286 = vunpack.c.h.b16 %v6150
    %v7287 = vunpack.c.l.b16 %v6151
    %v7288 = vunpack.c.h.b16 %v6151
    %v7289 = vunpack.c.l.b16 %v6152
    %v7290 = vunpack.c.h.b16 %v6152
    %v7291 = vunpack.c.l.b16 %v6153
    %v7292 = vunpack.c.h.b16 %v6153
    %v7293 = vunpack.c.l.b16 %v6154
    %v7294 = vunpack.c.h.b16 %v6154
    %v7295 = vunpack.c.l.b16 %v6155
    %v7296 = vunpack.c.h.b16 %v6155
    %v7297 = vunpack.c.l.b16 %v6156
    %v7298 = vunpack.c.h.b16 %v6156
    %v7299 = vunpack.c.l.b16 %v6157
    %v7300 = vunpack.c.h.b16 %v6157
    %v7301 = vunpack.c.l.b16 %v6158
    %v7302 = vunpack.c.h.b16 %v6158
    %v7303 = vunpack.c.l.b16 %v6159
    %v7304 = vunpack.c.h.b16 %v6159
    %v7305 = vunpack.c.l.b16 %v6160
    %v7306 = vunpack.c.h.b16 %v6160
    %v7307 = vunpack.c.l.b16 %v6161
    %v7308 = vunpack.c.h.b16 %v6161
    %v7309 = vunpack.c.l.b16 %v6162
    %v7310 = vunpack.c.h.b16 %v6162
    %v7311 = vunpack.c.l.b16 %v6163
    %v7312 = vunpack.c.h.b16 %v6163
    %v7313 = vunpack.c.l.b16 %v6164
    %v7314 = vunpack.c.h.b16 %v6164
    %v7315 = vunpack.c.l.b16 %v6165
    %v7316 = vunpack.c.h.b16 %v6165
    %v7317 = vunpack.c.l.b16 %v6166
    %v7318 = vunpack.c.h.b16 %v6166
    %v7319 = vunpack.c.l.b16 %v6167
    %v7320 = vunpack.c.h.b16 %v6167
    %v7321 = vunpack.c.l.b16 %v6168
    %v7322 = vunpack.c.h.b16 %v6168
    %v7323 = vunpack.c.l.b16 %v6169
    %v7324 = vunpack.c.h.b16 %v6169
    %v7325 = vunpack.c.l.b16 %v6170
    %v7326 = vunpack.c.h.b16 %v6170
    %v7327 = vunpack.c.l.b16 %v6171
    %v7328 = vunpack.c.h.b16 %v6171
    %v7329 = vunpack.c.l.b16 %v6172
    %v7330 = vunpack.c.h.b16 %v6172
    %v7331 = vunpack.c.l.b16 %v6173
    %v7332 = vunpack.c.h.b16 %v6173
    %v7333 = vunpack.c.l.b16 %v6174
    %v7334 = vunpack.c.h.b16 %v6174
    %v7335 = vunpack.c.l.b16 %v6175
    %v7336 = vunpack.c.h.b16 %v6175
    %v7337 = vunpack.c.l.b16 %v6176
    %v7338 = vunpack.c.h.b16 %v6176
    %v7339 = vunpack.c.l.b16 %v6177
    %v7340 = vunpack.c.h.b16 %v6177
    %v7341 = vunpack.c.l.b16 %v6178
    %v7342 = vunpack.c.h.b16 %v6178
    %v7343 = vunpack.c.l.b16 %v6179
    %v7344 = vunpack.c.h.b16 %v6179
    %v7345 = vunpack.c.l.b16 %v6180
    %v7346 = vunpack.c.h.b16 %v6180
    %v7347 = vunpack.c.l.b16 %v6181
    %v7348 = vunpack.c.h.b16 %v6181
    %v7349 = vunpack.c.l.b16 %v6182
    %v7350 = vunpack.c.h.b16 %v6182
    %v7351 = vunpack.c.l.b16 %v6183
    %v7352 = vunpack.c.h.b16 %v6183
    %v7353 = vunpack.c.l.b16 %v6184
    %v7354 = vunpack.c.h.b16 %v6184
    %v7355 = vunpack.c.l.b16 %v6185
    %v7356 = vunpack.c.h.b16 %v6185
    %v7357 = vunpack.c.l.b16 %v6186
    %v7358 = vunpack.c.h.b16 %v6186
    %v7359 = vunpack.c.l.b16 %v6187
    %v7360 = vunpack.c.h.b16 %v6187
    %v7361 = vunpack.c.l.b16 %v6188
    %v7362 = vunpack.c.h.b16 %v6188
    %v7363 = vunpack.c.l.b16 %v6189
    %v7364 = vunpack.c.h.b16 %v6189
    %v7365 = vunpack.c.l.b16 %v6190
    %v7366 = vunpack.c.h.b16 %v6190
    %v7367 = vunpack.c.l.b16 %v6191
    %v7368 = vunpack.c.h.b16 %v6191
    %v7369 = vunpack.c.l.b16 %v6192
    %v7370 = vunpack.c.h.b16 %v6192
    %v7371 = vunpack.c.l.b16 %v6193
    %v7372 = vunpack.c.h.b16 %v6193
    %v7373 = vunpack.c.l.b16 %v6194
    %v7374 = vunpack.c.h.b16 %v6194
    %v7375 = vunpack.c.l.b16 %v6195
    %v7376 = vunpack.c.h.b16 %v6195
    %v7377 = vunpack.c.l.b16 %v6196
    %v7378 = vunpack.c.h.b16 %v6196
    %v7379 = vunpack.c.l.b16 %v6197
    %v7380 = vunpack.c.h.b16 %v6197
    %v7381 = vunpack.c.l.b16 %v6198
    %v7382 = vunpack.c.h.b16 %v6198
    %v7383 = vunpack.c.l.b16 %v6199
    %v7384 = vunpack.c.h.b16 %v6199
    %v7385 = vunpack.c.l.b16 %v6200
    %v7386 = vunpack.c.h.b16 %v6200
    %v7387 = vunpack.c.l.b16 %v6201
    %v7388 = vunpack.c.h.b16 %v6201
    %v7389 = vunpack.c.l.b16 %v6202
    %v7390 = vunpack.c.h.b16 %v6202
    %v7391 = vunpack.c.l.b16 %v6203
    %v7392 = vunpack.c.h.b16 %v6203
    %v7393 = vunpack.c.l.b16 %v6204
    %v7394 = vunpack.c.h.b16 %v6204
    %v7395 = vunpack.c.l.b16 %v6205
    %v7396 = vunpack.c.h.b16 %v6205
    %v7397 = vunpack.c.l.b16 %v6206
    %v7398 = vunpack.c.h.b16 %v6206
    %v7399 = vunpack.c.l.b16 %v6207
    %v7400 = vunpack.c.h.b16 %v6207
    %v7401 = vunpack.c.l.b16 %v6208
    %v7402 = vunpack.c.h.b16 %v6208
    %v7403 = vunpack.c.l.b16 %v6209
    %v7404 = vunpack.c.h.b16 %v6209
    %v7405 = vunpack.c.l.b16 %v6210
    %v7406 = vunpack.c.h.b16 %v6210
    %v7407 = vunpack.c.l.b16 %v6211
    %v7408 = vunpack.c.h.b16 %v6211
    %v7409 = vunpack.c.l.b16 %v6212
    %v7410 = vunpack.c.h.b16 %v6212
    %v7411 = vunpack.c.l.b16 %v6213
    %v7412 = vunpack.c.h.b16 %v6213
    %v7413 = vunpack.c.l.b16 %v6214
    %v7414 = vunpack.c.h.b16 %v6214
    %v7415 = vunpack.c.l.b16 %v6215
    %v7416 = vunpack.c.h.b16 %v6215
    %v7417 = vunpack.c.l.b16 %v6216
    %v7418 = vunpack.c.h.b16 %v6216
    %v7419 = vunpack.c.l.b16 %v6217
    %v7420 = vunpack.c.h.b16 %v6217
    %v7421 = vunpack.c.l.b16 %v6218
    %v7422 = vunpack.c.h.b16 %v6218
    %v7423 = vunpack.c.l.b16 %v6219
    %v7424 = vunpack.c.h.b16 %v6219
    %v7425 = vunpack.c.l.b16 %v6220
    %v7426 = vunpack.c.h.b16 %v6220
    %v7427 = vunpack.c.l.b16 %v6221
    %v7428 = vunpack.c.h.b16 %v6221
    %v7429 = vunpack.c.l.b16 %v6222
    %v7430 = vunpack.c.h.b16 %v6222
    %v7431 = vunpack.c.l.b16 %v6223
    %v7432 = vunpack.c.h.b16 %v6223
    %v7433 = vunpack.c.l.b16 %v6224
    %v7434 = vunpack.c.h.b16 %v6224
    %v7435 = vunpack.c.l.b16 %v6225
    %v7436 = vunpack.c.h.b16 %v6225
    %v7437 = vunpack.c.l.b16 %v6226
    %v7438 = vunpack.c.h.b16 %v6226
    %v7439 = vunpack.c.l.b16 %v6227
    %v7440 = vunpack.c.h.b16 %v6227
    %v7441 = vunpack.c.l.b16 %v6228
    %v7442 = vunpack.c.h.b16 %v6228
    %v7443 = vunpack.c.l.b16 %v6229
    %v7444 = vunpack.c.h.b16 %v6229
    %v7445 = vunpack.c.l.b16 %v6230
    %v7446 = vunpack.c.h.b16 %v6230
    %v7447 = vunpack.c.l.b16 %v6231
    %v7448 = vunpack.c.h.b16 %v6231
    %v7449 = vunpack.c.l.b16 %v6232
    %v7450 = vunpack.c.h.b16 %v6232
    %v7451 = vunpack.c.l.b16 %v6233
    %v7452 = vunpack.c.h.b16 %v6233
    %v7453 = vunpack.c.l.b16 %v6234
    %v7454 = vunpack.c.h.b16 %v6234
    %v7455 = vunpack.c.l.b16 %v6235
    %v7456 = vunpack.c.h.b16 %v6235
    %v7457 = vunpack.c.l.b16 %v6236
    %v7458 = vunpack.c.h.b16 %v6236
    %v7459 = vunpack.c.l.b16 %v6237
    %v7460 = vunpack.c.h.b16 %v6237
    %v7461 = vunpack.c.l.b16 %v6238
    %v7462 = vunpack.c.h.b16 %v6238
    %v7463 = vunpack.c.l.b16 %v6239
    %v7464 = vunpack.c.h.b16 %v6239
    %v7465 = vunpack.c.l.b16 %v6240
    %v7466 = vunpack.c.h.b16 %v6240
    %v7467 = vunpack.c.l.b16 %v6241
    %v7468 = vunpack.c.h.b16 %v6241
    %v7469 = vunpack.c.l.b16 %v6242
    %v7470 = vunpack.c.h.b16 %v6242
    %v7471 = vunpack.c.l.b16 %v6243
    %v7472 = vunpack.c.h.b16 %v6243
    %v7473 = vunpack.c.l.b16 %v6244
    %v7474 = vunpack.c.h.b16 %v6244
    %v7475 = vunpack.c.l.b16 %v6245
    %v7476 = vunpack.c.h.b16 %v6245
    %v7477 = vunpack.c.l.b16 %v6246
    %v7478 = vunpack.c.h.b16 %v6246
    %v7479 = vunpack.c.l.b16 %v6247
    %v7480 = vunpack.c.h.b16 %v6247
    %v7481 = vunpack.c.l.b16 %v6248
    %v7482 = vunpack.c.h.b16 %v6248
    %v7483 = vunpack.c.l.b16 %v6249
    %v7484 = vunpack.c.h.b16 %v6249
    %v7485 = vunpack.c.l.b16 %v6250
    %v7486 = vunpack.c.h.b16 %v6250
    %v7487 = vunpack.c.l.b16 %v6251
    %v7488 = vunpack.c.h.b16 %v6251
    %v7489 = vunpack.c.l.b16 %v6252
    %v7490 = vunpack.c.h.b16 %v6252
    %v7491 = vunpack.c.l.b16 %v6253
    %v7492 = vunpack.c.h.b16 %v6253
    %v7493 = vunpack.c.l.b16 %v6254
    %v7494 = vunpack.c.h.b16 %v6254
    %v7495 = vunpack.c.l.b16 %v6255
    %v7496 = vunpack.c.h.b16 %v6255
    %v7497 = vunpack.c.l.b16 %v6256
    %v7498 = vunpack.c.h.b16 %v6256
    %v7499 = vunpack.c.l.b16 %v6257
    %v7500 = vunpack.c.h.b16 %v6257
    %v7501 = vunpack.c.l.b16 %v6258
    %v7502 = vunpack.c.h.b16 %v6258
    %v7503 = vunpack.c.l.b16 %v6259
    %v7504 = vunpack.c.h.b16 %v6259
    %v7505 = vunpack.c.l.b16 %v6260
    %v7506 = vunpack.c.h.b16 %v6260
    %v7507 = vunpack.c.l.b16 %v6261
    %v7508 = vunpack.c.h.b16 %v6261
    %v7509 = vunpack.c.l.b16 %v6262
    %v7510 = vunpack.c.h.b16 %v6262
    %v7511 = vunpack.c.l.b16 %v6263
    %v7512 = vunpack.c.h.b16 %v6263
    %v7513 = vunpack.c.l.b16 %v6264
    %v7514 = vunpack.c.h.b16 %v6264
    %v7515 = vunpack.c.l.b16 %v6265
    %v7516 = vunpack.c.h.b16 %v6265
    %v7517 = vunpack.c.l.b16 %v6266
    %v7518 = vunpack.c.h.b16 %v6266
    %v7519 = vunpack.c.l.b16 %v6267
    %v7520 = vunpack.c.h.b16 %v6267
    %v7521 = vunpack.c.l.b16 %v6268
    %v7522 = vunpack.c.h.b16 %v6268
    %v7523 = vunpack.c.l.b16 %v6269
    %v7524 = vunpack.c.h.b16 %v6269
    %v7525 = vunpack.c.l.b16 %v6270
    %v7526 = vunpack.c.h.b16 %v6270
    %v7527 = vunpack.c.l.b16 %v6271
    %v7528 = vunpack.c.h.b16 %v6271
    %v7529 = vunpack.c.l.b16 %v6272
    %v7530 = vunpack.c.h.b16 %v6272
    %v7531 = vunpack.c.l.b16 %v6273
    %v7532 = vunpack.c.h.b16 %v6273
    %v7533 = vunpack.c.l.b16 %v6274
    %v7534 = vunpack.c.h.b16 %v6274
    %v7535 = vunpack.c.l.b16 %v6275
    %v7536 = vunpack.c.h.b16 %v6275
    %v7537 = vunpack.c.l.b16 %v6276
    %v7538 = vunpack.c.h.b16 %v6276
    %v7539 = vunpack.c.l.b16 %v6277
    %v7540 = vunpack.c.h.b16 %v6277
    %v7541 = vunpack.c.l.b16 %v6278
    %v7542 = vunpack.c.h.b16 %v6278
    %v7543 = vunpack.c.l.b16 %v6279
    %v7544 = vunpack.c.h.b16 %v6279
    %v7545 = vunpack.c.l.b16 %v6280
    %v7546 = vunpack.c.h.b16 %v6280
    %v7547 = vunpack.c.l.b16 %v6281
    %v7548 = vunpack.c.h.b16 %v6281
    %v7549 = vunpack.c.l.b16 %v6282
    %v7550 = vunpack.c.h.b16 %v6282
    %v7551 = vunpack.c.l.b16 %v6283
    %v7552 = vunpack.c.h.b16 %v6283
    %v7553 = vunpack.c.l.b16 %v6284
    %v7554 = vunpack.c.h.b16 %v6284
    %v7555 = vunpack.c.l.b16 %v6285
    %v7556 = vunpack.c.h.b16 %v6285
    %v7557 = vunpack.c.l.b16 %v6286
    %v7558 = vunpack.c.h.b16 %v6286
    %v7559 = vunpack.c.l.b16 %v6287
    %v7560 = vunpack.c.h.b16 %v6287
    %v7561 = vunpack.c.l.b16 %v6288
    %v7562 = vunpack.c.h.b16 %v6288
    %v7563 = vunpack.c.l.b16 %v6289
    %v7564 = vunpack.c.h.b16 %v6289
    %v7565 = vunpack.c.l.b16 %v6290
    %v7566 = vunpack.c.h.b16 %v6290
    %v7567 = vunpack.c.l.b16 %v6291
    %v7568 = vunpack.c.h.b16 %v6291
    %v7569 = vunpack.c.l.b16 %v6292
    %v7570 = vunpack.c.h.b16 %v6292
    %v7571 = vunpack.c.l.b16 %v6293
    %v7572 = vunpack.c.h.b16 %v6293
    %v7573 = vunpack.c.l.b16 %v6294
    %v7574 = vunpack.c.h.b16 %v6294
    %v7575 = vunpack.c.l.b16 %v6295
    %v7576 = vunpack.c.h.b16 %v6295
    %v7577 = vunpack.c.l.b16 %v6296
    %v7578 = vunpack.c.h.b16 %v6296
    %v7579 = vunpack.c.l.b16 %v6297
    %v7580 = vunpack.c.h.b16 %v6297
    %v7581 = vunpack.c.l.b16 %v6298
    %v7582 = vunpack.c.h.b16 %v6298
    %v7583 = vunpack.c.l.b16 %v6299
    %v7584 = vunpack.c.h.b16 %v6299
    %v7585 = vunpack.c.l.b16 %v6300
    %v7586 = vunpack.c.h.b16 %v6300
    %v7587 = vunpack.c.l.b16 %v6301
    %v7588 = vunpack.c.h.b16 %v6301
    %v7589 = vunpack.c.l.b16 %v6302
    %v7590 = vunpack.c.h.b16 %v6302
    %v7591 = vunpack.c.l.b16 %v6303
    %v7592 = vunpack.c.h.b16 %v6303
    %v7593 = vunpack.c.l.b16 %v6304
    %v7594 = vunpack.c.h.b16 %v6304
    %v7595 = vunpack.c.l.b16 %v6305
    %v7596 = vunpack.c.h.b16 %v6305
    %v7597 = vunpack.c.l.b16 %v6306
    %v7598 = vunpack.c.h.b16 %v6306
    %v7599 = vunpack.c.l.b16 %v6307
    %v7600 = vunpack.c.h.b16 %v6307
    %v7601 = vunpack.c.l.b16 %v6308
    %v7602 = vunpack.c.h.b16 %v6308
    %v7603 = vunpack.c.l.b16 %v6309
    %v7604 = vunpack.c.h.b16 %v6309
    %v7605 = vunpack.c.l.b16 %v6310
    %v7606 = vunpack.c.h.b16 %v6310
    %v7607 = vunpack.c.l.b16 %v6311
    %v7608 = vunpack.c.h.b16 %v6311
    %v7609 = vunpack.c.l.b16 %v6312
    %v7610 = vunpack.c.h.b16 %v6312
    %v7611 = vunpack.c.l.b16 %v6313
    %v7612 = vunpack.c.h.b16 %v6313
    %v7613 = vunpack.c.l.b16 %v6314
    %v7614 = vunpack.c.h.b16 %v6314
    %v7615 = vunpack.c.l.b16 %v6315
    %v7616 = vunpack.c.h.b16 %v6315
    %v7617 = vunpack.c.l.b16 %v6316
    %v7618 = vunpack.c.h.b16 %v6316
    %v7619 = vunpack.c.l.b16 %v6317
    %v7620 = vunpack.c.h.b16 %v6317
    %v7621 = vunpack.c.l.b16 %v6318
    %v7622 = vunpack.c.h.b16 %v6318
    %v7623 = vunpack.c.l.b16 %v6319
    %v7624 = vunpack.c.h.b16 %v6319
    %v7625 = vunpack.c.l.b16 %v6320
    %v7626 = vunpack.c.h.b16 %v6320
    %v7627 = vunpack.c.l.b16 %v6321
    %v7628 = vunpack.c.h.b16 %v6321
    %v7629 = vunpack.c.l.b16 %v6322
    %v7630 = vunpack.c.h.b16 %v6322
    %v7631 = vunpack.c.l.b16 %v6323
    %v7632 = vunpack.c.h.b16 %v6323
    %v7633 = vunpack.c.l.b16 %v6324
    %v7634 = vunpack.c.h.b16 %v6324
    %v7635 = vunpack.c.l.b16 %v6325
    %v7636 = vunpack.c.h.b16 %v6325
    %v7637 = vunpack.c.l.b16 %v6326
    %v7638 = vunpack.c.h.b16 %v6326
    %v7639 = vunpack.c.l.b16 %v6327
    %v7640 = vunpack.c.h.b16 %v6327
    %v7641 = vunpack.c.l.b16 %v6328
    %v7642 = vunpack.c.h.b16 %v6328
    %v7643 = vunpack.c.l.b16 %v6329
    %v7644 = vunpack.c.h.b16 %v6329
    %v7645 = vunpack.c.l.b16 %v6330
    %v7646 = vunpack.c.h.b16 %v6330
    %v7647 = vunpack.c.l.b16 %v6331
    %v7648 = vunpack.c.h.b16 %v6331
    %v7649 = vunpack.c.l.b16 %v6332
    %v7650 = vunpack.c.h.b16 %v6332
    %v7651 = vunpack.c.l.b16 %v6333
    %v7652 = vunpack.c.h.b16 %v6333
    %v7653 = vunpack.c.l.b16 %v6334
    %v7654 = vunpack.c.h.b16 %v6334
    %v7655 = vunpack.c.l.b16 %v6335
    %v7656 = vunpack.c.h.b16 %v6335
    %v7657 = vunpack.c.l.b16 %v6336
    %v7658 = vunpack.c.h.b16 %v6336
    %v7659 = vunpack.c.l.b16 %v6337
    %v7660 = vunpack.c.h.b16 %v6337
    %v7661 = vunpack.c.l.b16 %v6338
    %v7662 = vunpack.c.h.b16 %v6338
    %v7663 = vunpack.c.l.b16 %v6339
    %v7664 = vunpack.c.h.b16 %v6339
    %v7665 = vunpack.c.l.b16 %v6340
    %v7666 = vunpack.c.h.b16 %v6340
    %v7667 = vunpack.c.l.b16 %v6341
    %v7668 = vunpack.c.h.b16 %v6341
    %v7669 = vunpack.c.l.b16 %v6342
    %v7670 = vunpack.c.h.b16 %v6342
    %v7671 = vunpack.c.l.b16 %v6343
    %v7672 = vunpack.c.h.b16 %v6343
    %v7673 = vunpack.c.l.b16 %v6344
    %v7674 = vunpack.c.h.b16 %v6344
    %v7675 = vunpack.c.l.b16 %v6345
    %v7676 = vunpack.c.h.b16 %v6345
    %v7677 = vunpack.c.l.b16 %v6346
    %v7678 = vunpack.c.h.b16 %v6346
    %v7679 = vunpack.c.l.b16 %v6347
    %v7680 = vunpack.c.h.b16 %v6347
    %v7681 = vunpack.c.l.b16 %v6348
    %v7682 = vunpack.c.h.b16 %v6348
    %v7683 = vunpack.c.l.b16 %v6349
    %v7684 = vunpack.c.h.b16 %v6349
    %v7685 = vunpack.c.l.b16 %v6350
    %v7686 = vunpack.c.h.b16 %v6350
    %v7687 = vunpack.c.l.b16 %v6351
    %v7688 = vunpack.c.h.b16 %v6351
    %v7689 = vunpack.c.l.b16 %v6352
    %v7690 = vunpack.c.h.b16 %v6352
    %v7691 = vunpack.c.l.b16 %v6353
    %v7692 = vunpack.c.h.b16 %v6353
    %v7693 = vunpack.c.l.b16 %v6354
    %v7694 = vunpack.c.h.b16 %v6354
    %v7695 = vunpack.c.l.b16 %v6355
    %v7696 = vunpack.c.h.b16 %v6355
    %v7697 = vunpack.c.l.b16 %v6356
    %v7698 = vunpack.c.h.b16 %v6356
    %v7699 = vunpack.c.l.b16 %v6357
    %v7700 = vunpack.c.h.b16 %v6357
    %v7701 = vunpack.c.l.b16 %v6358
    %v7702 = vunpack.c.h.b16 %v6358
    %v7703 = vunpack.c.l.b16 %v6359
    %v7704 = vunpack.c.h.b16 %v6359
    %v7705 = vunpack.c.l.b16 %v6360
    %v7706 = vunpack.c.h.b16 %v6360
    %v7707 = vunpack.c.l.b16 %v6361
    %v7708 = vunpack.c.h.b16 %v6361
    %v7709 = vunpack.c.l.b16 %v6362
    %v7710 = vunpack.c.h.b16 %v6362
    %v7711 = vunpack.c.l.b16 %v6363
    %v7712 = vunpack.c.h.b16 %v6363
    %v7713 = vunpack.c.l.b16 %v6364
    %v7714 = vunpack.c.h.b16 %v6364
    %v7715 = vunpack.c.l.b16 %v6365
    %v7716 = vunpack.c.h.b16 %v6365
    %v7717 = vunpack.c.l.b16 %v6366
    %v7718 = vunpack.c.h.b16 %v6366
    %v7719 = vunpack.c.l.b16 %v6367
    %v7720 = vunpack.c.h.b16 %v6367
    %v7721 = vunpack.c.l.b16 %v6368
    %v7722 = vunpack.c.h.b16 %v6368
    %v7723 = vunpack.c.l.b16 %v6369
    %v7724 = vunpack.c.h.b16 %v6369
    %v7725 = vunpack.c.l.b16 %v6370
    %v7726 = vunpack.c.h.b16 %v6370
    %v7727 = vunpack.c.l.b16 %v6371
    %v7728 = vunpack.c.h.b16 %v6371
    %v7729 = vunpack.c.l.b16 %v6372
    %v7730 = vunpack.c.h.b16 %v6372
    %v7731 = vunpack.c.l.b16 %v6373
    %v7732 = vunpack.c.h.b16 %v6373
    %v7733 = vunpack.c.l.b16 %v6374
    %v7734 = vunpack.c.h.b16 %v6374
    %v7735 = vunpack.c.l.b16 %v6375
    %v7736 = vunpack.c.h.b16 %v6375
    %v7737 = vunpack.c.l.b16 %v6376
    %v7738 = vunpack.c.h.b16 %v6376
    %v7739 = vunpack.c.l.b16 %v6377
    %v7740 = vunpack.c.h.b16 %v6377
    %v7741 = vunpack.c.l.b16 %v6378
    %v7742 = vunpack.c.h.b16 %v6378
    %v7743 = vunpack.c.l.b16 %v6379
    %v7744 = vunpack.c.h.b16 %v6379
    %v7745 = vunpack.c.l.b16 %v6380
    %v7746 = vunpack.c.h.b16 %v6380
    %v7747 = vunpack.c.l.b16 %v6381
    %v7748 = vunpack.c.h.b16 %v6381
    %v7749 = vunpack.c.l.b16 %v6382
    %v7750 = vunpack.c.h.b16 %v6382
    %v7751 = vunpack.c.l.b16 %v6383
    %v7752 = vunpack.c.h.b16 %v6383
    %v7753 = vunpack.c.l.b16 %v6384
    %v7754 = vunpack.c.h.b16 %v6384
    %v7755 = vunpack.c.l.b16 %v6385
    %v7756 = vunpack.c.h.b16 %v6385
    %v7757 = vunpack.c.l.b16 %v6386
    %v7758 = vunpack.c.h.b16 %v6386
    %v7759 = vunpack.c.l.b16 %v6387
    %v7760 = vunpack.c.h.b16 %v6387
    %v7761 = vunpack.c.l.b16 %v6388
    %v7762 = vunpack.c.h.b16 %v6388
    %v7763 = vunpack.c.l.b16 %v6389
    %v7764 = vunpack.c.h.b16 %v6389
    %v7765 = vunpack.c.l.b16 %v6390
    %v7766 = vunpack.c.h.b16 %v6390
    %v7767 = vunpack.c.l.b16 %v6391
    %v7768 = vunpack.c.h.b16 %v6391
    %v7769 = vunpack.c.l.b16 %v6392
    %v7770 = vunpack.c.h.b16 %v6392
    %v7771 = vunpack.c.l.b16 %v6393
    %v7772 = vunpack.c.h.b16 %v6393
    %v7773 = vunpack.c.l.b16 %v6394
    %v7774 = vunpack.c.h.b16 %v6394
    %v7775 = vunpack.c.l.b16 %v6395
    %v7776 = vunpack.c.h.b16 %v6395
    %v7777 = vunpack.c.l.b16 %v6396
    %v7778 = vunpack.c.h.b16 %v6396
    %v7779 = vunpack.c.l.b16 %v6397
    %v7780 = vunpack.c.h.b16 %v6397
    %v7781 = vunpack.c.l.b16 %v6398
    %v7782 = vunpack.c.h.b16 %v6398
    %v7783 = vunpack.c.l.b16 %v6399
    %v7784 = vunpack.c.h.b16 %v6399
    %v7785 = vunpack.c.l.b16 %v6400
    %v7786 = vunpack.c.h.b16 %v6400
    %v7787 = vunpack.c.l.b16 %v6401
    %v7788 = vunpack.c.h.b16 %v6401
    %v7789 = vunpack.c.l.b16 %v6402
    %v7790 = vunpack.c.h.b16 %v6402
    %v7791 = vunpack.c.l.b16 %v6403
    %v7792 = vunpack.c.h.b16 %v6403
    %v7793 = vunpack.c.l.b16 %v6404
    %v7794 = vunpack.c.h.b16 %v6404
    %v7795 = vunpack.c.l.b16 %v6405
    %v7796 = vunpack.c.h.b16 %v6405
    %v7797 = vunpack.c.l.b16 %v6406
    %v7798 = vunpack.c.h.b16 %v6406
    %v7799 = vunpack.c.l.b16 %v6407
    %v7800 = vunpack.c.h.b16 %v6407
    %v7801 = vunpack.c.l.b16 %v6408
    %v7802 = vunpack.c.h.b16 %v6408
    %v7803 = vunpack.c.l.b16 %v6409
    %v7804 = vunpack.c.h.b16 %v6409
    %v7805 = vunpack.c.l.b16 %v6410
    %v7806 = vunpack.c.h.b16 %v6410
    %v7807 = vunpack.c.l.b16 %v6411
    %v7808 = vunpack.c.h.b16 %v6411
    %v7809 = vunpack.c.l.b16 %v6412
    %v7810 = vunpack.c.h.b16 %v6412
    %v7811 = vunpack.c.l.b16 %v6413
    %v7812 = vunpack.c.h.b16 %v6413
    %v7813 = vunpack.c.l.b16 %v6414
    %v7814 = vunpack.c.h.b16 %v6414
    %v7815 = vunpack.c.l.b16 %v6415
    %v7816 = vunpack.c.h.b16 %v6415
    %v7817 = vunpack.c.l.b16 %v6416
    %v7818 = vunpack.c.h.b16 %v6416
    %v7819 = vunpack.c.l.b16 %v6417
    %v7820 = vunpack.c.h.b16 %v6417
    %v7821 = vunpack.c.l.b16 %v6418
    %v7822 = vunpack.c.h.b16 %v6418
    %v7823 = vunpack.c.l.b16 %v6419
    %v7824 = vunpack.c.h.b16 %v6419
    %v7825 = vunpack.c.l.b16 %v6420
    %v7826 = vunpack.c.h.b16 %v6420
    %v7827 = vunpack.c.l.b16 %v6421
    %v7828 = vunpack.c.h.b16 %v6421
    %v7829 = vunpack.c.l.b16 %v6422
    %v7830 = vunpack.c.h.b16 %v6422
    %v7831 = vunpack.c.l.b16 %v6423
    %v7832 = vunpack.c.h.b16 %v6423
    %v7833 = vunpack.c.l.b16 %v6424
    %v7834 = vunpack.c.h.b16 %v6424
    %v7835 = vunpack.c.l.b16 %v6425
    %v7836 = vunpack.c.h.b16 %v6425
    %v7837 = vunpack.c.l.b16 %v6426
    %v7838 = vunpack.c.h.b16 %v6426
    %v7839 = vunpack.c.l.b16 %v6427
    %v7840 = vunpack.c.h.b16 %v6427
    %v7841 = vunpack.c.l.b16 %v6428
    %v7842 = vunpack.c.h.b16 %v6428
    %v7843 = vunpack.c.l.b16 %v6429
    %v7844 = vunpack.c.h.b16 %v6429
    %v7845 = vunpack.c.l.b16 %v6430
    %v7846 = vunpack.c.h.b16 %v6430
    %v7847 = vunpack.c.l.b16 %v6431
    %v7848 = vunpack.c.h.b16 %v6431
    %v7849 = vunpack.c.l.b16 %v6432
    %v7850 = vunpack.c.h.b16 %v6432
    %v7851 = vunpack.c.l.b16 %v6433
    %v7852 = vunpack.c.h.b16 %v6433
    %v7853 = vunpack.c.l.b16 %v6434
    %v7854 = vunpack.c.h.b16 %v6434
    %v7855 = vunpack.c.l.b16 %v6435
    %v7856 = vunpack.c.h.b16 %v6435
    %v7857 = vunpack.c.l.b16 %v6436
    %v7858 = vunpack.c.h.b16 %v6436
    %v7859 = vunpack.c.l.b16 %v6437
    %v7860 = vunpack.c.h.b16 %v6437
    %v7861 = vunpack.c.l.b16 %v6438
    %v7862 = vunpack.c.h.b16 %v6438
    %v7863 = vunpack.c.l.b16 %v6439
    %v7864 = vunpack.c.h.b16 %v6439
    %v7865 = vunpack.c.l.b16 %v6440
    %v7866 = vunpack.c.h.b16 %v6440
    %v7867 = vunpack.c.l.b16 %v6441
    %v7868 = vunpack.c.h.b16 %v6441
    %v7869 = vunpack.c.l.b16 %v6442
    %v7870 = vunpack.c.h.b16 %v6442
    %v7871 = vunpack.c.l.b16 %v6443
    %v7872 = vunpack.c.h.b16 %v6443
    %v7873 = vunpack.c.l.b16 %v6444
    %v7874 = vunpack.c.h.b16 %v6444
    %v7875 = vunpack.c.l.b16 %v6445
    %v7876 = vunpack.c.h.b16 %v6445
    %v7877 = vunpack.c.l.b16 %v6446
    %v7878 = vunpack.c.h.b16 %v6446
    %v7879 = vunpack.c.l.b16 %v6447
    %v7880 = vunpack.c.h.b16 %v6447
    %v7881 = vunpack.c.l.b16 %v6448
    %v7882 = vunpack.c.h.b16 %v6448
    %v7883 = vunpack.c.l.b16 %v6449
    %v7884 = vunpack.c.h.b16 %v6449
    %v7885 = vunpack.c.l.b16 %v6450
    %v7886 = vunpack.c.h.b16 %v6450
    %v7887 = vunpack.c.l.b16 %v6451
    %v7888 = vunpack.c.h.b16 %v6451
    %v7889 = vunpack.c.l.b16 %v6452
    %v7890 = vunpack.c.h.b16 %v6452
    %v7891 = vunpack.c.l.b16 %v6453
    %v7892 = vunpack.c.h.b16 %v6453
    %v7893 = vunpack.c.l.b16 %v6454
    %v7894 = vunpack.c.h.b16 %v6454
    %v7895 = vunpack.c.l.b16 %v6455
    %v7896 = vunpack.c.h.b16 %v6455
    %v7897 = vunpack.c.l.b16 %v6456
    %v7898 = vunpack.c.h.b16 %v6456
    %v7899 = vunpack.c.l.b16 %v6457
    %v7900 = vunpack.c.h.b16 %v6457
    %v7901 = vunpack.c.l.b16 %v6458
    %v7902 = vunpack.c.h.b16 %v6458
    %v7903 = vunpack.c.l.b16 %v6459
    %v7904 = vunpack.c.h.b16 %v6459
    %v7905 = vunpack.c.l.b16 %v6460
    %v7906 = vunpack.c.h.b16 %v6460
    %v7907 = vunpack.c.l.b16 %v6461
    %v7908 = vunpack.c.h.b16 %v6461
    %v7909 = vunpack.c.l.b16 %v6462
    %v7910 = vunpack.c.h.b16 %v6462
    %v7911 = vunpack.c.l.b16 %v6463
    %v7912 = vunpack.c.h.b16 %v6463
    %v7913 = vunpack.c.l.b16 %v6464
    %v7914 = vunpack.c.h.b16 %v6464
    %v7915 = vunpack.c.l.b16 %v6465
    %v7916 = vunpack.c.h.b16 %v6465
    %v7917 = vunpack.c.l.b16 %v6466
    %v7918 = vunpack.c.h.b16 %v6466
    %v7919 = vunpack.c.l.b16 %v6467
    %v7920 = vunpack.c.h.b16 %v6467
    %v7921 = vunpack.c.l.b16 %v6468
    %v7922 = vunpack.c.h.b16 %v6468
    %v7923 = vunpack.c.l.b16 %v6469
    %v7924 = vunpack.c.h.b16 %v6469
    %v7925 = vunpack.c.l.b16 %v6470
    %v7926 = vunpack.c.h.b16 %v6470
    %v7927 = vunpack.c.l.b16 %v6471
    %v7928 = vunpack.c.h.b16 %v6471
    %v7929 = vunpack.c.l.b16 %v6472
    %v7930 = vunpack.c.h.b16 %v6472
    %v7931 = vunpack.c.l.b16 %v6473
    %v7932 = vunpack.c.h.b16 %v6473
    %v7933 = vunpack.c.l.b16 %v6474
    %v7934 = vunpack.c.h.b16 %v6474
    %v7935 = vunpack.c.l.b16 %v6475
    %v7936 = vunpack.c.h.b16 %v6475
    %v7937 = vunpack.c.l.b16 %v6476
    %v7938 = vunpack.c.h.b16 %v6476
    %v7939 = vunpack.c.l.b16 %v6477
    %v7940 = vunpack.c.h.b16 %v6477
    %v7941 = vunpack.c.l.b16 %v6478
    %v7942 = vunpack.c.h.b16 %v6478
    %v7943 = vunpack.c.l.b16 %v6479
    %v7944 = vunpack.c.h.b16 %v6479
    %v7945 = vunpack.c.l.b16 %v6480
    %v7946 = vunpack.c.h.b16 %v6480
    %v7947 = vunpack.c.l.b16 %v6481
    %v7948 = vunpack.c.h.b16 %v6481
    %v7949 = vunpack.c.l.b16 %v6482
    %v7950 = vunpack.c.h.b16 %v6482
    %v7951 = vunpack.c.l.b16 %v6483
    %v7952 = vunpack.c.h.b16 %v6483
    %v7953 = vunpack.c.l.b16 %v6484
    %v7954 = vunpack.c.h.b16 %v6484
    %v7955 = vunpack.c.l.b16 %v6485
    %v7956 = vunpack.c.h.b16 %v6485
    %v7957 = vunpack.c.l.b16 %v6486
    %v7958 = vunpack.c.h.b16 %v6486
    %v7959 = vunpack.c.l.b16 %v6487
    %v7960 = vunpack.c.h.b16 %v6487
    %v7961 = vunpack.c.l.b16 %v6488
    %v7962 = vunpack.c.h.b16 %v6488
    %v7963 = vunpack.c.l.b16 %v6489
    %v7964 = vunpack.c.h.b16 %v6489
    %v7965 = vunpack.c.l.b16 %v6490
    %v7966 = vunpack.c.h.b16 %v6490
    %v7967 = vunpack.c.l.b16 %v6491
    %v7968 = vunpack.c.h.b16 %v6491
    %v7969 = vunpack.c.l.b16 %v6492
    %v7970 = vunpack.c.h.b16 %v6492
    %v7971 = vunpack.c.l.b16 %v6493
    %v7972 = vunpack.c.h.b16 %v6493
    %v7973 = vunpack.c.l.b16 %v6494
    %v7974 = vunpack.c.h.b16 %v6494
    %v7975 = vunpack.c.l.b16 %v6495
    %v7976 = vunpack.c.h.b16 %v6495
    %v7977 = vunpack.c.l.b16 %v6496
    %v7978 = vunpack.c.h.b16 %v6496
    %v7979 = vunpack.c.l.b16 %v6497
    %v7980 = vunpack.c.h.b16 %v6497
    %v7981 = vunpack.c.l.b16 %v6498
    %v7982 = vunpack.c.h.b16 %v6498
    %v7983 = vunpack.c.l.b16 %v6499
    %v7984 = vunpack.c.h.b16 %v6499
    %v7985 = vunpack.c.l.b16 %v6500
    %v7986 = vunpack.c.h.b16 %v6500
    %v7987 = vunpack.c.l.b16 %v6501
    %v7988 = vunpack.c.h.b16 %v6501
    %v7989 = vunpack.c.l.b16 %v6502
    %v7990 = vunpack.c.h.b16 %v6502
    %v7991 = vunpack.c.l.b16 %v6503
    %v7992 = vunpack.c.h.b16 %v6503
    %v7993 = vunpack.c.l.b16 %v6504
    %v7994 = vunpack.c.h.b16 %v6504
    %v7995 = vunpack.c.l.b16 %v6505
    %v7996 = vunpack.c.h.b16 %v6505
    %v7997 = vunpack.c.l.b16 %v6506
    %v7998 = vunpack.c.h.b16 %v6506
    %v7999 = vunpack.c.l.b16 %v6507
    %v8000 = vunpack.c.h.b16 %v6507
    %v8001 = vunpack.c.l.b16 %v6508
    %v8002 = vunpack.c.h.b16 %v6508
    %v8003 = vunpack.c.l.b16 %v6509
    %v8004 = vunpack.c.h.b16 %v6509
    %v8005 = vunpack.c.l.b16 %v6510
    %v8006 = vunpack.c.h.b16 %v6510
    %v8007 = vunpack.c.l.b16 %v6511
    %v8008 = vunpack.c.h.b16 %v6511
    %v8009 = vunpack.c.l.b16 %v6512
    %v8010 = vunpack.c.h.b16 %v6512
    %v8011 = vunpack.c.l.b16 %v6513
    %v8012 = vunpack.c.h.b16 %v6513
    %v8013 = vunpack.c.l.b16 %v6514
    %v8014 = vunpack.c.h.b16 %v6514
    %v8015 = vunpack.c.l.b16 %v6515
    %v8016 = vunpack.c.h.b16 %v6515
    %v8017 = vunpack.c.l.b16 %v6516
    %v8018 = vunpack.c.h.b16 %v6516
    %v8019 = vunpack.c.l.b16 %v6517
    %v8020 = vunpack.c.h.b16 %v6517
    %v8021 = vunpack.c.l.b16 %v6518
    %v8022 = vunpack.c.h.b16 %v6518
    %v8023 = vunpack.c.l.b16 %v6519
    %v8024 = vunpack.c.h.b16 %v6519
    %v8025 = vunpack.c.l.b16 %v6520
    %v8026 = vunpack.c.h.b16 %v6520
    %v8027 = vunpack.c.l.b16 %v6521
    %v8028 = vunpack.c.h.b16 %v6521
    %v8029 = vunpack.c.l.b16 %v6522
    %v8030 = vunpack.c.h.b16 %v6522
    %v8031 = vunpack.c.l.b16 %v6523
    %v8032 = vunpack.c.h.b16 %v6523
    %v8033 = vunpack.c.l.b16 %v6524
    %v8034 = vunpack.c.h.b16 %v6524
    %v8035 = vunpack.c.l.b16 %v6525
    %v8036 = vunpack.c.h.b16 %v6525
    %v8037 = vunpack.c.l.b16 %v6526
    %v8038 = vunpack.c.h.b16 %v6526
    %v8039 = vunpack.c.l.b16 %v6527
    %v8040 = vunpack.c.h.b16 %v6527
    %v8041 = vunpack.c.l.b16 %v6528
    %v8042 = vunpack.c.h.b16 %v6528
    %v8043 = vunpack.c.l.b16 %v6529
    %v8044 = vunpack.c.h.b16 %v6529
    %v8045 = vunpack.c.l.b16 %v6530
    %v8046 = vunpack.c.h.b16 %v6530
    %v8047 = vunpack.c.l.b16 %v6531
    %v8048 = vunpack.c.h.b16 %v6531
    %v8049 = vunpack.c.l.b16 %v6532
    %v8050 = vunpack.c.h.b16 %v6532
    %v8051 = vunpack.c.l.b16 %v6533
    %v8052 = vunpack.c.h.b16 %v6533
    %v8053 = vunpack.c.l.b16 %v6534
    %v8054 = vunpack.c.h.b16 %v6534
    %v8055 = vunpack.c.l.b16 %v6535
    %v8056 = vunpack.c.h.b16 %v6535
    %v8057 = vunpack.c.l.b16 %v6536
    %v8058 = vunpack.c.h.b16 %v6536
    %v8059 = vunpack.c.l.b16 %v6537
    %v8060 = vunpack.c.h.b16 %v6537
    %v8061 = vunpack.c.l.b16 %v6538
    %v8062 = vunpack.c.h.b16 %v6538
    %v8063 = vunpack.c.l.b16 %v6539
    %v8064 = vunpack.c.h.b16 %v6539
    %v8065 = vunpack.c.l.b16 %v6540
    %v8066 = vunpack.c.h.b16 %v6540
    %v8067 = vunpack.c.l.b16 %v6541
    %v8068 = vunpack.c.h.b16 %v6541
    %v8069 = vunpack.c.l.b16 %v6542
    %v8070 = vunpack.c.h.b16 %v6542
    %v8071 = vunpack.c.l.b16 %v6543
    %v8072 = vunpack.c.h.b16 %v6543
    %v8073 = vunpack.c.l.b16 %v6544
    %v8074 = vunpack.c.h.b16 %v6544
    %v8075 = vunpack.c.l.b16 %v6545
    %v8076 = vunpack.c.h.b16 %v6545
    %v8077 = vunpack.c.l.b16 %v6546
    %v8078 = vunpack.c.h.b16 %v6546
    %v8079 = vunpack.c.l.b16 %v6547
    %v8080 = vunpack.c.h.b16 %v6547
    %v8081 = vunpack.c.l.b16 %v6548
    %v8082 = vunpack.c.h.b16 %v6548
    %v8083 = vunpack.c.l.b16 %v6549
    %v8084 = vunpack.c.h.b16 %v6549
    %v8085 = vunpack.c.l.b16 %v6550
    %v8086 = vunpack.c.h.b16 %v6550
    %v8087 = vpack.c.b16 %v7067, %v7063
    %v8088 = vpack.c.b16 %v7068, %v7064
    %v8089 = vpack.c.b16 %v7069, %v7065
    %v8090 = vpack.c.b16 %v7070, %v7066
    %v8091 = vpack.c.b16 %v7075, %v7071
    %v8092 = vpack.c.b16 %v7076, %v7072
    %v8093 = vpack.c.b16 %v7077, %v7073
    %v8094 = vpack.c.b16 %v7078, %v7074
    %v8095 = vpack.c.b16 %v7083, %v7079
    %v8096 = vpack.c.b16 %v7084, %v7080
    %v8097 = vpack.c.b16 %v7085, %v7081
    %v8098 = vpack.c.b16 %v7086, %v7082
    %v8099 = vpack.c.b16 %v7091, %v7087
    %v8100 = vpack.c.b16 %v7092, %v7088
    %v8101 = vpack.c.b16 %v7093, %v7089
    %v8102 = vpack.c.b16 %v7094, %v7090
    %v8103 = vpack.c.b16 %v7099, %v7095
    %v8104 = vpack.c.b16 %v7100, %v7096
    %v8105 = vpack.c.b16 %v7101, %v7097
    %v8106 = vpack.c.b16 %v7102, %v7098
    %v8107 = vpack.c.b16 %v7107, %v7103
    %v8108 = vpack.c.b16 %v7108, %v7104
    %v8109 = vpack.c.b16 %v7109, %v7105
    %v8110 = vpack.c.b16 %v7110, %v7106
    %v8111 = vpack.c.b16 %v7115, %v7111
    %v8112 = vpack.c.b16 %v7116, %v7112
    %v8113 = vpack.c.b16 %v7117, %v7113
    %v8114 = vpack.c.b16 %v7118, %v7114
    %v8115 = vpack.c.b16 %v7123, %v7119
    %v8116 = vpack.c.b16 %v7124, %v7120
    %v8117 = vpack.c.b16 %v7125, %v7121
    %v8118 = vpack.c.b16 %v7126, %v7122
    %v8119 = vpack.c.b16 %v7131, %v7127
    %v8120 = vpack.c.b16 %v7132, %v7128
    %v8121 = vpack.c.b16 %v7133, %v7129
    %v8122 = vpack.c.b16 %v7134, %v7130
    %v8123 = vpack.c.b16 %v7139, %v7135
    %v8124 = vpack.c.b16 %v7140, %v7136
    %v8125 = vpack.c.b16 %v7141, %v7137
    %v8126 = vpack.c.b16 %v7142, %v7138
    %v8127 = vpack.c.b16 %v7147, %v7143
    %v8128 = vpack.c.b16 %v7148, %v7144
    %v8129 = vpack.c.b16 %v7149, %v7145
    %v8130 = vpack.c.b16 %v7150, %v7146
    %v8131 = vpack.c.b16 %v7155, %v7151
    %v8132 = vpack.c.b16 %v7156, %v7152
    %v8133 = vpack.c.b16 %v7157, %v7153
    %v8134 = vpack.c.b16 %v7158, %v7154
    %v8135 = vpack.c.b16 %v7163, %v7159
    %v8136 = vpack.c.b16 %v7164, %v7160
    %v8137 = vpack.c.b16 %v7165, %v7161
    %v8138 = vpack.c.b16 %v7166, %v7162
    %v8139 = vpack.c.b16 %v7171, %v7167
    %v8140 = vpack.c.b16 %v7172, %v7168
    %v8141 = vpack.c.b16 %v7173, %v7169
    %v8142 = vpack.c.b16 %v7174, %v7170
    %v8143 = vpack.c.b16 %v7179, %v7175
    %v8144 = vpack.c.b16 %v7180, %v7176
    %v8145 = vpack.c.b16 %v7181, %v7177
    %v8146 = vpack.c.b16 %v7182, %v7178
    %v8147 = vpack.c.b16 %v7187, %v7183
    %v8148 = vpack.c.b16 %v7188, %v7184
    %v8149 = vpack.c.b16 %v7189, %v7185
    %v8150 = vpack.c.b16 %v7190, %v7186
    %v8151 = vpack.c.b16 %v7195, %v7191
    %v8152 = vpack.c.b16 %v7196, %v7192
    %v8153 = vpack.c.b16 %v7197, %v7193
    %v8154 = vpack.c.b16 %v7198, %v7194
    %v8155 = vpack.c.b16 %v7203, %v7199
    %v8156 = vpack.c.b16 %v7204, %v7200
    %v8157 = vpack.c.b16 %v7205, %v7201
    %v8158 = vpack.c.b16 %v7206, %v7202
    %v8159 = vpack.c.b16 %v7211, %v7207
    %v8160 = vpack.c.b16 %v7212, %v7208
    %v8161 = vpack.c.b16 %v7213, %v7209
    %v8162 = vpack.c.b16 %v7214, %v7210
    %v8163 = vpack.c.b16 %v7219, %v7215
    %v8164 = vpack.c.b16 %v7220, %v7216
    %v8165 = vpack.c.b16 %v7221, %v7217
    %v8166 = vpack.c.b16 %v7222, %v7218
    %v8167 = vpack.c.b16 %v7227, %v7223
    %v8168 = vpack.c.b16 %v7228, %v7224
    %v8169 = vpack.c.b16 %v7229, %v7225
    %v8170 = vpack.c.b16 %v7230, %v7226
    %v8171 = vpack.c.b16 %v7235, %v7231
    %v8172 = vpack.c.b16 %v7236, %v7232
    %v8173 = vpack.c.b16 %v7237, %v7233
    %v8174 = vpack.c.b16 %v7238, %v7234
    %v8175 = vpack.c.b16 %v7243, %v7239
    %v8176 = vpack.c.b16 %v7244, %v7240
    %v8177 = vpack.c.b16 %v7245, %v7241
    %v8178 = vpack.c.b16 %v7246, %v7242
    %v8179 = vpack.c.b16 %v7251, %v7247
    %v8180 = vpack.c.b16 %v7252, %v7248
    %v8181 = vpack.c.b16 %v7253, %v7249
    %v8182 = vpack.c.b16 %v7254, %v7250
    %v8183 = vpack.c.b16 %v7259, %v7255
    %v8184 = vpack.c.b16 %v7260, %v7256
    %v8185 = vpack.c.b16 %v7261, %v7257
    %v8186 = vpack.c.b16 %v7262, %v7258
    %v8187 = vpack.c.b16 %v7267, %v7263
    %v8188 = vpack.c.b16 %v7268, %v7264
    %v8189 = vpack.c.b16 %v7269, %v7265
    %v8190 = vpack.c.b16 %v7270, %v7266
    %v8191 = vpack.c.b16 %v7275, %v7271
    %v8192 = vpack.c.b16 %v7276, %v7272
    %v8193 = vpack.c.b16 %v7277, %v7273
    %v8194 = vpack.c.b16 %v7278, %v7274
    %v8195 = vpack.c.b16 %v7283, %v7279
    %v8196 = vpack.c.b16 %v7284, %v7280
    %v8197 = vpack.c.b16 %v7285, %v7281
    %v8198 = vpack.c.b16 %v7286, %v7282
    %v8199 = vpack.c.b16 %v7291, %v7287
    %v8200 = vpack.c.b16 %v7292, %v7288
    %v8201 = vpack.c.b16 %v7293, %v7289
    %v8202 = vpack.c.b16 %v7294, %v7290
    %v8203 = vpack.c.b16 %v7299, %v7295
    %v8204 = vpack.c.b16 %v7300, %v7296
    %v8205 = vpack.c.b16 %v7301, %v7297
    %v8206 = vpack.c.b16 %v7302, %v7298
    %v8207 = vpack.c.b16 %v7307, %v7303
    %v8208 = vpack.c.b16 %v7308, %v7304
    %v8209 = vpack.c.b16 %v7309, %v7305
    %v8210 = vpack.c.b16 %v7310, %v7306
    %v8211 = vpack.c.b16 %v7315, %v7311
    %v8212 = vpack.c.b16 %v7316, %v7312
    %v8213 = vpack.c.b16 %v7317, %v7313
    %v8214 = vpack.c.b16 %v7318, %v7314
    %v8215 = vpack.c.b16 %v7323, %v7319
    %v8216 = vpack.c.b16 %v7324, %v7320
    %v8217 = vpack.c.b16 %v7325, %v7321
    %v8218 = vpack.c.b16 %v7326, %v7322
    %v8219 = vpack.c.b16 %v7331, %v7327
    %v8220 = vpack.c.b16 %v7332, %v7328
    %v8221 = vpack.c.b16 %v7333, %v7329
    %v8222 = vpack.c.b16 %v7334, %v7330
    %v8223 = vpack.c.b16 %v7339, %v7335
    %v8224 = vpack.c.b16 %v7340, %v7336
    %v8225 = vpack.c.b16 %v7341, %v7337
    %v8226 = vpack.c.b16 %v7342, %v7338
    %v8227 = vpack.c.b16 %v7347, %v7343
    %v8228 = vpack.c.b16 %v7348, %v7344
    %v8229 = vpack.c.b16 %v7349, %v7345
    %v8230 = vpack.c.b16 %v7350, %v7346
    %v8231 = vpack.c.b16 %v7355, %v7351
    %v8232 = vpack.c.b16 %v7356, %v7352
    %v8233 = vpack.c.b16 %v7357, %v7353
    %v8234 = vpack.c.b16 %v7358, %v7354
    %v8235 = vpack.c.b16 %v7363, %v7359
    %v8236 = vpack.c.b16 %v7364, %v7360
    %v8237 = vpack.c.b16 %v7365, %v7361
    %v8238 = vpack.c.b16 %v7366, %v7362
    %v8239 = vpack.c.b16 %v7371, %v7367
    %v8240 = vpack.c.b16 %v7372, %v7368
    %v8241 = vpack.c.b16 %v7373, %v7369
    %v8242 = vpack.c.b16 %v7374, %v7370
    %v8243 = vpack.c.b16 %v7379, %v7375
    %v8244 = vpack.c.b16 %v7380, %v7376
    %v8245 = vpack.c.b16 %v7381, %v7377
    %v8246 = vpack.c.b16 %v7382, %v7378
    %v8247 = vpack.c.b16 %v7387, %v7383
    %v8248 = vpack.c.b16 %v7388, %v7384
    %v8249 = vpack.c.b16 %v7389, %v7385
    %v8250 = vpack.c.b16 %v7390, %v7386
    %v8251 = vpack.c.b16 %v7395, %v7391
    %v8252 = vpack.c.b16 %v7396, %v7392
    %v8253 = vpack.c.b16 %v7397, %v7393
    %v8254 = vpack.c.b16 %v7398, %v7394
    %v8255 = vpack.c.b16 %v7403, %v7399
    %v8256 = vpack.c.b16 %v7404, %v7400
    %v8257 = vpack.c.b16 %v7405, %v7401
    %v8258 = vpack.c.b16 %v7406, %v7402
    %v8259 = vpack.c.b16 %v7411, %v7407
    %v8260 = vpack.c.b16 %v7412, %v7408
    %v8261 = vpack.c.b16 %v7413, %v7409
    %v8262 = vpack.c.b16 %v7414, %v7410
    %v8263 = vpack.c.b16 %v7419, %v7415
    %v8264 = vpack.c.b16 %v7420, %v7416
    %v8265 = vpack.c.b16 %v7421, %v7417
    %v8266 = vpack.c.b16 %v7422, %v7418
    %v8267 = vpack.c.b16 %v7427, %v7423
    %v8268 = vpack.c.b16 %v7428, %v7424
    %v8269 = vpack.c.b16 %v7429, %v7425
    %v8270 = vpack.c.b16 %v7430, %v7426
    %v8271 = vpack.c.b16 %v7435, %v7431
    %v8272 = vpack.c.b16 %v7436, %v7432
    %v8273 = vpack.c.b16 %v7437, %v7433
    %v8274 = vpack.c.b16 %v7438, %v7434
    %v8275 = vpack.c.b16 %v7443, %v7439
    %v8276 = vpack.c.b16 %v7444, %v7440
    %v8277 = vpack.c.b16 %v7445, %v7441
    %v8278 = vpack.c.b16 %v7446, %v7442
    %v8279 = vpack.c.b16 %v7451, %v7447
    %v8280 = vpack.c.b16 %v7452, %v7448
    %v8281 = vpack.c.b16 %v7453, %v7449
    %v8282 = vpack.c.b16 %v7454, %v7450
    %v8283 = vpack.c.b16 %v7459, %v7455
    %v8284 = vpack.c.b16 %v7460, %v7456
    %v8285 = vpack.c.b16 %v7461, %v7457
    %v8286 = vpack.c.b16 %v7462, %v7458
    %v8287 = vpack.c.b16 %v7467, %v7463
    %v8288 = vpack.c.b16 %v7468, %v7464
    %v8289 = vpack.c.b16 %v7469, %v7465
    %v8290 = vpack.c.b16 %v7470, %v7466
    %v8291 = vpack.c.b16 %v7475, %v7471
    %v8292 = vpack.c.b16 %v7476, %v7472
    %v8293 = vpack.c.b16 %v7477, %v7473
    %v8294 = vpack.c.b16 %v7478, %v7474
    %v8295 = vpack.c.b16 %v7483, %v7479
    %v8296 = vpack.c.b16 %v7484, %v7480
    %v8297 = vpack.c.b16 %v7485, %v7481
    %v8298 = vpack.c.b16 %v7486, %v7482
    %v8299 = vpack.c.b16 %v7491, %v7487
    %v8300 = vpack.c.b16 %v7492, %v7488
    %v8301 = vpack.c.b16 %v7493, %v7489
    %v8302 = vpack.c.b16 %v7494, %v7490
    %v8303 = vpack.c.b16 %v7499, %v7495
    %v8304 = vpack.c.b16 %v7500, %v7496
    %v8305 = vpack.c.b16 %v7501, %v7497
    %v8306 = vpack.c.b16 %v7502, %v7498
    %v8307 = vpack.c.b16 %v7507, %v7503
    %v8308 = vpack.c.b16 %v7508, %v7504
    %v8309 = vpack.c.b16 %v7509, %v7505
    %v8310 = vpack.c.b16 %v7510, %v7506
    %v8311 = vpack.c.b16 %v7515, %v7511
    %v8312 = vpack.c.b16 %v7516, %v7512
    %v8313 = vpack.c.b16 %v7517, %v7513
    %v8314 = vpack.c.b16 %v7518, %v7514
    %v8315 = vpack.c.b16 %v7523, %v7519
    %v8316 = vpack.c.b16 %v7524, %v7520
    %v8317 = vpack.c.b16 %v7525, %v7521
    %v8318 = vpack.c.b16 %v7526, %v7522
    %v8319 = vpack.c.b16 %v7531, %v7527
    %v8320 = vpack.c.b16 %v7532, %v7528
    %v8321 = vpack.c.b16 %v7533, %v7529
    %v8322 = vpack.c.b16 %v7534, %v7530
    %v8323 = vpack.c.b16 %v7539, %v7535
    %v8324 = vpack.c.b16 %v7540, %v7536
    %v8325 = vpack.c.b16 %v7541, %v7537
    %v8326 = vpack.c.b16 %v7542, %v7538
    %v8327 = vpack.c.b16 %v7547, %v7543
    %v8328 = vpack.c.b16 %v7548, %v7544
    %v8329 = vpack.c.b16 %v7549, %v7545
    %v8330 = vpack.c.b16 %v7550, %v7546
    %v8331 = vpack.c.b16 %v7555, %v7551
    %v8332 = vpack.c.b16 %v7556, %v7552
    %v8333 = vpack.c.b16 %v7557, %v7553
    %v8334 = vpack.c.b16 %v7558, %v7554
    %v8335 = vpack.c.b16 %v7563, %v7559
    %v8336 = vpack.c.b16 %v7564, %v7560
    %v8337 = vpack.c.b16 %v7565, %v7561
    %v8338 = vpack.c.b16 %v7566, %v7562
    %v8339 = vpack.c.b16 %v7571, %v7567
    %v8340 = vpack.c.b16 %v7572, %v7568
    %v8341 = vpack.c.b16 %v7573, %v7569
    %v8342 = vpack.c.b16 %v7574, %v7570
    %v8343 = vpack.c.b16 %v7579, %v7575
    %v8344 = vpack.c.b16 %v7580, %v7576
    %v8345 = vpack.c.b16 %v7581, %v7577
    %v8346 = vpack.c.b16 %v7582, %v7578
    %v8347 = vpack.c.b16 %v7587, %v7583
    %v8348 = vpack.c.b16 %v7588, %v7584
    %v8349 = vpack.c.b16 %v7589, %v7585
    %v8350 = vpack.c.b16 %v7590, %v7586
    %v8351 = vpack.c.b16 %v7595, %v7591
    %v8352 = vpack.c.b16 %v7596, %v7592
    %v8353 = vpack.c.b16 %v7597, %v7593
    %v8354 = vpack.c.b16 %v7598, %v7594
    %v8355 = vpack.c.b16 %v7603, %v7599
    %v8356 = vpack.c.b16 %v7604, %v7600
    %v8357 = vpack.c.b16 %v7605, %v7601
    %v8358 = vpack.c.b16 %v7606, %v7602
    %v8359 = vpack.c.b16 %v7611, %v7607
    %v8360 = vpack.c.b16 %v7612, %v7608
    %v8361 = vpack.c.b16 %v7613, %v7609
    %v8362 = vpack.c.b16 %v7614, %v7610
    %v8363 = vpack.c.b16 %v7619, %v7615
    %v8364 = vpack.c.b16 %v7620, %v7616
    %v8365 = vpack.c.b16 %v7621, %v7617
    %v8366 = vpack.c.b16 %v7622, %v7618
    %v8367 = vpack.c.b16 %v7627, %v7623
    %v8368 = vpack.c.b16 %v7628, %v7624
    %v8369 = vpack.c.b16 %v7629, %v7625
    %v8370 = vpack.c.b16 %v7630, %v7626
    %v8371 = vpack.c.b16 %v7635, %v7631
    %v8372 = vpack.c.b16 %v7636, %v7632
    %v8373 = vpack.c.b16 %v7637, %v7633
    %v8374 = vpack.c.b16 %v7638, %v7634
    %v8375 = vpack.c.b16 %v7643, %v7639
    %v8376 = vpack.c.b16 %v7644, %v7640
    %v8377 = vpack.c.b16 %v7645, %v7641
    %v8378 = vpack.c.b16 %v7646, %v7642
    %v8379 = vpack.c.b16 %v7651, %v7647
    %v8380 = vpack.c.b16 %v7652, %v7648
    %v8381 = vpack.c.b16 %v7653, %v7649
    %v8382 = vpack.c.b16 %v7654, %v7650
    %v8383 = vpack.c.b16 %v7659, %v7655
    %v8384 = vpack.c.b16 %v7660, %v7656
    %v8385 = vpack.c.b16 %v7661, %v7657
    %v8386 = vpack.c.b16 %v7662, %v7658
    %v8387 = vpack.c.b16 %v7667, %v7663
    %v8388 = vpack.c.b16 %v7668, %v7664
    %v8389 = vpack.c.b16 %v7669, %v7665
    %v8390 = vpack.c.b16 %v7670, %v7666
    %v8391 = vpack.c.b16 %v7675, %v7671
    %v8392 = vpack.c.b16 %v7676, %v7672
    %v8393 = vpack.c.b16 %v7677, %v7673
    %v8394 = vpack.c.b16 %v7678, %v7674
    %v8395 = vpack.c.b16 %v7683, %v7679
    %v8396 = vpack.c.b16 %v7684, %v7680
    %v8397 = vpack.c.b16 %v7685, %v7681
    %v8398 = vpack.c.b16 %v7686, %v7682
    %v8399 = vpack.c.b16 %v7691, %v7687
    %v8400 = vpack.c.b16 %v7692, %v7688
    %v8401 = vpack.c.b16 %v7693, %v7689
    %v8402 = vpack.c.b16 %v7694, %v7690
    %v8403 = vpack.c.b16 %v7699, %v7695
    %v8404 = vpack.c.b16 %v7700, %v7696
    %v8405 = vpack.c.b16 %v7701, %v7697
    %v8406 = vpack.c.b16 %v7702, %v7698
    %v8407 = vpack.c.b16 %v7707, %v7703
    %v8408 = vpack.c.b16 %v7708, %v7704
    %v8409 = vpack.c.b16 %v7709, %v7705
    %v8410 = vpack.c.b16 %v7710, %v7706
    %v8411 = vpack.c.b16 %v7715, %v7711
    %v8412 = vpack.c.b16 %v7716, %v7712
    %v8413 = vpack.c.b16 %v7717, %v7713
    %v8414 = vpack.c.b16 %v7718, %v7714
    %v8415 = vpack.c.b16 %v7723, %v7719
    %v8416 = vpack.c.b16 %v7724, %v7720
    %v8417 = vpack.c.b16 %v7725, %v7721
    %v8418 = vpack.c.b16 %v7726, %v7722
    %v8419 = vpack.c.b16 %v7731, %v7727
    %v8420 = vpack.c.b16 %v7732, %v7728
    %v8421 = vpack.c.b16 %v7733, %v7729
    %v8422 = vpack.c.b16 %v7734, %v7730
    %v8423 = vpack.c.b16 %v7739, %v7735
    %v8424 = vpack.c.b16 %v7740, %v7736
    %v8425 = vpack.c.b16 %v7741, %v7737
    %v8426 = vpack.c.b16 %v7742, %v7738
    %v8427 = vpack.c.b16 %v7747, %v7743
    %v8428 = vpack.c.b16 %v7748, %v7744
    %v8429 = vpack.c.b16 %v7749, %v7745
    %v8430 = vpack.c.b16 %v7750, %v7746
    %v8431 = vpack.c.b16 %v7755, %v7751
    %v8432 = vpack.c.b16 %v7756, %v7752
    %v8433 = vpack.c.b16 %v7757, %v7753
    %v8434 = vpack.c.b16 %v7758, %v7754
    %v8435 = vpack.c.b16 %v7763, %v7759
    %v8436 = vpack.c.b16 %v7764, %v7760
    %v8437 = vpack.c.b16 %v7765, %v7761
    %v8438 = vpack.c.b16 %v7766, %v7762
    %v8439 = vpack.c.b16 %v7771, %v7767
    %v8440 = vpack.c.b16 %v7772, %v7768
    %v8441 = vpack.c.b16 %v7773, %v7769
    %v8442 = vpack.c.b16 %v7774, %v7770
    %v8443 = vpack.c.b16 %v7779, %v7775
    %v8444 = vpack.c.b16 %v7780, %v7776
    %v8445 = vpack.c.b16 %v7781, %v7777
    %v8446 = vpack.c.b16 %v7782, %v7778
    %v8447 = vpack.c.b16 %v7787, %v7783
    %v8448 = vpack.c.b16 %v7788, %v7784
    %v8449 = vpack.c.b16 %v7789, %v7785
    %v8450 = vpack.c.b16 %v7790, %v7786
    %v8451 = vpack.c.b16 %v7795, %v7791
    %v8452 = vpack.c.b16 %v7796, %v7792
    %v8453 = vpack.c.b16 %v7797, %v7793
    %v8454 = vpack.c.b16 %v7798, %v7794
    %v8455 = vpack.c.b16 %v7803, %v7799
    %v8456 = vpack.c.b16 %v7804, %v7800
    %v8457 = vpack.c.b16 %v7805, %v7801
    %v8458 = vpack.c.b16 %v7806, %v7802
    %v8459 = vpack.c.b16 %v7811, %v7807
    %v8460 = vpack.c.b16 %v7812, %v7808
    %v8461 = vpack.c.b16 %v7813, %v7809
    %v8462 = vpack.c.b16 %v7814, %v7810
    %v8463 = vpack.c.b16 %v7819, %v7815
    %v8464 = vpack.c.b16 %v7820, %v7816
    %v8465 = vpack.c.b16 %v7821, %v7817
    %v8466 = vpack.c.b16 %v7822, %v7818
    %v8467 = vpack.c.b16 %v7827, %v7823
    %v8468 = vpack.c.b16 %v7828, %v7824
    %v8469 = vpack.c.b16 %v7829, %v7825
    %v8470 = vpack.c.b16 %v7830, %v7826
    %v8471 = vpack.c.b16 %v7835, %v7831
    %v8472 = vpack.c.b16 %v7836, %v7832
    %v8473 = vpack.c.b16 %v7837, %v7833
    %v8474 = vpack.c.b16 %v7838, %v7834
    %v8475 = vpack.c.b16 %v7843, %v7839
    %v8476 = vpack.c.b16 %v7844, %v7840
    %v8477 = vpack.c.b16 %v7845, %v7841
    %v8478 = vpack.c.b16 %v7846, %v7842
    %v8479 = vpack.c.b16 %v7851, %v7847
    %v8480 = vpack.c.b16 %v7852, %v7848
    %v8481 = vpack.c.b16 %v7853, %v7849
    %v8482 = vpack.c.b16 %v7854, %v7850
    %v8483 = vpack.c.b16 %v7859, %v7855
    %v8484 = vpack.c.b16 %v7860, %v7856
    %v8485 = vpack.c.b16 %v7861, %v7857
    %v8486 = vpack.c.b16 %v7862, %v7858
    %v8487 = vpack.c.b16 %v7867, %v7863
    %v8488 = vpack.c.b16 %v7868, %v7864
    %v8489 = vpack.c.b16 %v7869, %v7865
    %v8490 = vpack.c.b16 %v7870, %v7866
    %v8491 = vpack.c.b16 %v7875, %v7871
    %v8492 = vpack.c.b16 %v7876, %v7872
    %v8493 = vpack.c.b16 %v7877, %v7873
    %v8494 = vpack.c.b16 %v7878, %v7874
    %v8495 = vpack.c.b16 %v7883, %v7879
    %v8496 = vpack.c.b16 %v7884, %v7880
    %v8497 = vpack.c.b16 %v7885, %v7881
    %v8498 = vpack.c.b16 %v7886, %v7882
    %v8499 = vpack.c.b16 %v7891, %v7887
    %v8500 = vpack.c.b16 %v7892, %v7888
    %v8501 = vpack.c.b16 %v7893, %v7889
    %v8502 = vpack.c.b16 %v7894, %v7890
    %v8503 = vpack.c.b16 %v7899, %v7895
    %v8504 = vpack.c.b16 %v7900, %v7896
    %v8505 = vpack.c.b16 %v7901, %v7897
    %v8506 = vpack.c.b16 %v7902, %v7898
    %v8507 = vpack.c.b16 %v7907, %v7903
    %v8508 = vpack.c.b16 %v7908, %v7904
    %v8509 = vpack.c.b16 %v7909, %v7905
    %v8510 = vpack.c.b16 %v7910, %v7906
    %v8511 = vpack.c.b16 %v7915, %v7911
    %v8512 = vpack.c.b16 %v7916, %v7912
    %v8513 = vpack.c.b16 %v7917, %v7913
    %v8514 = vpack.c.b16 %v7918, %v7914
    %v8515 = vpack.c.b16 %v7923, %v7919
    %v8516 = vpack.c.b16 %v7924, %v7920
    %v8517 = vpack.c.b16 %v7925, %v7921
    %v8518 = vpack.c.b16 %v7926, %v7922
    %v8519 = vpack.c.b16 %v7931, %v7927
    %v8520 = vpack.c.b16 %v7932, %v7928
    %v8521 = vpack.c.b16 %v7933, %v7929
    %v8522 = vpack.c.b16 %v7934, %v7930
    %v8523 = vpack.c.b16 %v7939, %v7935
    %v8524 = vpack.c.b16 %v7940, %v7936
    %v8525 = vpack.c.b16 %v7941, %v7937
    %v8526 = vpack.c.b16 %v7942, %v7938
    %v8527 = vpack.c.b16 %v7947, %v7943
    %v8528 = vpack.c.b16 %v7948, %v7944
    %v8529 = vpack.c.b16 %v7949, %v7945
    %v8530 = vpack.c.b16 %v7950, %v7946
    %v8531 = vpack.c.b16 %v7955, %v7951
    %v8532 = vpack.c.b16 %v7956, %v7952
    %v8533 = vpack.c.b16 %v7957, %v7953
    %v8534 = vpack.c.b16 %v7958, %v7954
    %v8535 = vpack.c.b16 %v7963, %v7959
    %v8536 = vpack.c.b16 %v7964, %v7960
    %v8537 = vpack.c.b16 %v7965, %v7961
    %v8538 = vpack.c.b16 %v7966, %v7962
    %v8539 = vpack.c.b16 %v7971, %v7967
    %v8540 = vpack.c.b16 %v7972, %v7968
    %v8541 = vpack.c.b16 %v7973, %v7969
    %v8542 = vpack.c.b16 %v7974, %v7970
    %v8543 = vpack.c.b16 %v7979, %v7975
    %v8544 = vpack.c.b16 %v7980, %v7976
    %v8545 = vpack.c.b16 %v7981, %v7977
    %v8546 = vpack.c.b16 %v7982, %v7978
    %v8547 = vpack.c.b16 %v7987, %v7983
    %v8548 = vpack.c.b16 %v7988, %v7984
    %v8549 = vpack.c.b16 %v7989, %v7985
    %v8550 = vpack.c.b16 %v7990, %v7986
    %v8551 = vpack.c.b16 %v7995, %v7991
    %v8552 = vpack.c.b16 %v7996, %v7992
    %v8553 = vpack.c.b16 %v7997, %v7993
    %v8554 = vpack.c.b16 %v7998, %v7994
    %v8555 = vpack.c.b16 %v8003, %v7999
    %v8556 = vpack.c.b16 %v8004, %v8000
    %v8557 = vpack.c.b16 %v8005, %v8001
    %v8558 = vpack.c.b16 %v8006, %v8002
    %v8559 = vpack.c.b16 %v8011, %v8007
    %v8560 = vpack.c.b16 %v8012, %v8008
    %v8561 = vpack.c.b16 %v8013, %v8009
    %v8562 = vpack.c.b16 %v8014, %v8010
    %v8563 = vpack.c.b16 %v8019, %v8015
    %v8564 = vpack.c.b16 %v8020, %v8016
    %v8565 = vpack.c.b16 %v8021, %v8017
    %v8566 = vpack.c.b16 %v8022, %v8018
    %v8567 = vpack.c.b16 %v8027, %v8023
    %v8568 = vpack.c.b16 %v8028, %v8024
    %v8569 = vpack.c.b16 %v8029, %v8025
    %v8570 = vpack.c.b16 %v8030, %v8026
    %v8571 = vpack.c.b16 %v8035, %v8031
    %v8572 = vpack.c.b16 %v8036, %v8032
    %v8573 = vpack.c.b16 %v8037, %v8033
    %v8574 = vpack.c.b16 %v8038, %v8034
    %v8575 = vpack.c.b16 %v8043, %v8039
    %v8576 = vpack.c.b16 %v8044, %v8040
    %v8577 = vpack.c.b16 %v8045, %v8041
    %v8578 = vpack.c.b16 %v8046, %v8042
    %v8579 = vpack.c.b16 %v8051, %v8047
    %v8580 = vpack.c.b16 %v8052, %v8048
    %v8581 = vpack.c.b16 %v8053, %v8049
    %v8582 = vpack.c.b16 %v8054, %v8050
    %v8583 = vpack.c.b16 %v8059, %v8055
    %v8584 = vpack.c.b16 %v8060, %v8056
    %v8585 = vpack.c.b16 %v8061, %v8057
    %v8586 = vpack.c.b16 %v8062, %v8058
    %v8587 = vpack.c.b16 %v8067, %v8063
    %v8588 = vpack.c.b16 %v8068, %v8064
    %v8589 = vpack.c.b16 %v8069, %v8065
    %v8590 = vpack.c.b16 %v8070, %v8066
    %v8591 = vpack.c.b16 %v8075, %v8071
    %v8592 = vpack.c.b16 %v8076, %v8072
    %v8593 = vpack.c.b16 %v8077, %v8073
    %v8594 = vpack.c.b16 %v8078, %v8074
    %v8595 = vpack.c.b16 %v8083, %v8079
    %v8596 = vpack.c.b16 %v8084, %v8080
    %v8597 = vpack.c.b16 %v8085, %v8081
    %v8598 = vpack.c.b16 %v8086, %v8082
    %9111 = vmatprep.subr.bf16.mxu0 %v8116
    %9112 = vmatpush1.bf16.msra.mxu0 %v8115
    %9113 = vmatprep.subr.bf16.mxu0 %v8112
    %9114 = vmatpush1.bf16.msra.mxu0 %v8111
    %9115 = vmatprep.subr.bf16.mxu0 %v8108
    %9116 = vmatpush1.bf16.msra.mxu0 %v8107
    %9117 = vmatprep.subr.bf16.mxu0 %v8104
    %9118 = vmatpush1.bf16.msra.mxu0 %v8103
    %9119 = vmatprep.subr.bf16.mxu0 %v8100
    %9120 = vmatpush1.bf16.msra.mxu0 %v8099
    %9121 = vmatprep.subr.bf16.mxu0 %v8096
    %9122 = vmatpush1.bf16.msra.mxu0 %v8095
    %9123 = vmatprep.subr.bf16.mxu0 %v8092
    %9124 = vmatpush1.bf16.msra.mxu0 %v8091
    %9125 = vmatprep.subr.bf16.mxu0 %v8088
    %9126 = vmatpush1.bf16.msra.mxu0 %v8087
    %9127 = vmatprep.subr.bf16.mxu0 %v8148
    %9128 = vmatpush2.bf16.msra.mxu0 %v8147
    %9129 = vmatprep.subr.bf16.mxu0 %v8144
    %9130 = vmatpush2.bf16.msra.mxu0 %v8143
    %9131 = vmatprep.subr.bf16.mxu0 %v8140
    %9132 = vmatpush2.bf16.msra.mxu0 %v8139
    %9133 = vmatprep.subr.bf16.mxu0 %v8136
    %9134 = vmatpush2.bf16.msra.mxu0 %v8135
    %9135 = vmatprep.subr.bf16.mxu0 %v8132
    %9136 = vmatpush2.bf16.msra.mxu0 %v8131
    %9137 = vmatprep.subr.bf16.mxu0 %v8128
    %9138 = vmatpush2.bf16.msra.mxu0 %v8127
    %9139 = vmatprep.subr.bf16.mxu0 %v8124
    %9140 = vmatpush2.bf16.msra.mxu0 %v8123
    %9141 = vmatprep.subr.bf16.mxu0 %v8120
    %9142 = vmatpush2.bf16.msra.mxu0 %v8119
    %9143 = vmatprep.mubr.bf16.mxu0 %v5864
    %9144 = vmatmul.mubr.bf16.gmra.mxu0 %v5863
    %v9145 = vpop.f32.mrf.mxu0
    %v9146 = vadd.f32 %v71, %v9145
    %v9147 = vpop.f32.mrf.mxu0
    %v9148 = vadd.f32 %v72, %v9147
    %v9149 = vpop.f32.mrf.mxu0
    %v9150 = vadd.f32 %v75, %v9149
    %v9151 = vpop.f32.mrf.mxu0
    %v9152 = vadd.f32 %v76, %v9151
    %9153 = vmatprep.mubr.bf16.mxu0 %v5880
    %9154 = vmatmul.mubr.bf16.gmra.mxu0 %v5879
    %v9155 = vpop.f32.mrf.mxu0
    %v9156 = vadd.f32 %v79, %v9155
    %v9157 = vpop.f32.mrf.mxu0
    %v9158 = vadd.f32 %v80, %v9157
    %v9159 = vpop.f32.mrf.mxu0
    %v9160 = vadd.f32 %v83, %v9159
    %v9161 = vpop.f32.mrf.mxu0
    %v9162 = vadd.f32 %v84, %v9161
    %9163 = vmatprep.mubr.bf16.mxu0 %v5896
    %9164 = vmatmul.mubr.bf16.gmra.mxu0 %v5895
    %v9165 = vpop.f32.mrf.mxu0
    %v9166 = vadd.f32 %v87, %v9165
    %v9167 = vpop.f32.mrf.mxu0
    %v9168 = vadd.f32 %v88, %v9167
    %v9169 = vpop.f32.mrf.mxu0
    %v9170 = vadd.f32 %v91, %v9169
    %v9171 = vpop.f32.mrf.mxu0
    %v9172 = vadd.f32 %v92, %v9171
    %9173 = vmatprep.mubr.bf16.mxu0 %v5912
    %9174 = vmatmul.mubr.bf16.gmra.mxu0 %v5911
    %v9175 = vpop.f32.mrf.mxu0
    %v9176 = vadd.f32 %v95, %v9175
    %v9177 = vpop.f32.mrf.mxu0
    %v9178 = vadd.f32 %v96, %v9177
    %v9179 = vpop.f32.mrf.mxu0
    %v9180 = vadd.f32 %v99, %v9179
    %v9181 = vpop.f32.mrf.mxu0
    %v9182 = vadd.f32 %v100, %v9181
    %9183 = vmatprep.mubr.bf16.mxu0 %v5928
    %9184 = vmatmul.mubr.bf16.gmra.mxu0 %v5927
    %v9185 = vpop.f32.mrf.mxu0
    %v9186 = vadd.f32 %v103, %v9185
    %v9187 = vpop.f32.mrf.mxu0
    %v9188 = vadd.f32 %v104, %v9187
    %v9189 = vpop.f32.mrf.mxu0
    %v9190 = vadd.f32 %v107, %v9189
    %v9191 = vpop.f32.mrf.mxu0
    %v9192 = vadd.f32 %v108, %v9191
    %9193 = vmatprep.mubr.bf16.mxu0 %v5944
    %9194 = vmatmul.mubr.bf16.gmra.mxu0 %v5943
    %v9195 = vpop.f32.mrf.mxu0
    %v9196 = vadd.f32 %v111, %v9195
    %v9197 = vpop.f32.mrf.mxu0
    %v9198 = vadd.f32 %v112, %v9197
    %v9199 = vpop.f32.mrf.mxu0
    %v9200 = vadd.f32 %v115, %v9199
    %v9201 = vpop.f32.mrf.mxu0
    %v9202 = vadd.f32 %v116, %v9201
    %9203 = vmatprep.mubr.bf16.mxu0 %v5960
    %9204 = vmatmul.mubr.bf16.gmra.mxu0 %v5959
    %v9205 = vpop.f32.mrf.mxu0
    %v9206 = vadd.f32 %v119, %v9205
    %v9207 = vpop.f32.mrf.mxu0
    %v9208 = vadd.f32 %v120, %v9207
    %v9209 = vpop.f32.mrf.mxu0
    %v9210 = vadd.f32 %v123, %v9209
    %v9211 = vpop.f32.mrf.mxu0
    %v9212 = vadd.f32 %v124, %v9211
    %9213 = vmatprep.mubr.bf16.mxu0 %v5976
    %9214 = vmatmul.mubr.bf16.gmra.mxu0 %v5975
    %v9215 = vpop.f32.mrf.mxu0
    %v9216 = vadd.f32 %v127, %v9215
    %v9217 = vpop.f32.mrf.mxu0
    %v9218 = vadd.f32 %v128, %v9217
    %v9219 = vpop.f32.mrf.mxu0
    %v9220 = vadd.f32 %v131, %v9219
    %v9221 = vpop.f32.mrf.mxu0
    %v9222 = vadd.f32 %v132, %v9221
    %9223 = vmatprep.mubr.bf16.mxu0 %v5992
    %9224 = vmatmul.mubr.bf16.gmra.mxu0 %v5991
    %v9225 = vpop.f32.mrf.mxu0
    %v9226 = vadd.f32 %v135, %v9225
    %v9227 = vpop.f32.mrf.mxu0
    %v9228 = vadd.f32 %v136, %v9227
    %v9229 = vpop.f32.mrf.mxu0
    %v9230 = vadd.f32 %v139, %v9229
    %v9231 = vpop.f32.mrf.mxu0
    %v9232 = vadd.f32 %v140, %v9231
    %9233 = vmatprep.mubr.bf16.mxu0 %v6008
    %9234 = vmatmul.mubr.bf16.gmra.mxu0 %v6007
    %v9235 = vpop.f32.mrf.mxu0
    %v9236 = vadd.f32 %v143, %v9235
    %v9237 = vpop.f32.mrf.mxu0
    %v9238 = vadd.f32 %v144, %v9237
    %v9239 = vpop.f32.mrf.mxu0
    %v9240 = vadd.f32 %v147, %v9239
    %v9241 = vpop.f32.mrf.mxu0
    %v9242 = vadd.f32 %v148, %v9241
    %9243 = vmatprep.mubr.bf16.mxu0 %v6024
    %9244 = vmatmul.mubr.bf16.gmra.mxu0 %v6023
    %v9245 = vpop.f32.mrf.mxu0
    %v9246 = vadd.f32 %v151, %v9245
    %v9247 = vpop.f32.mrf.mxu0
    %v9248 = vadd.f32 %v152, %v9247
    %v9249 = vpop.f32.mrf.mxu0
    %v9250 = vpop.f32.mrf.mxu0
    %9251 = vdwg.mxu0
    %9252 = vmatprep.subr.bf16.mxu0 %v8180
    %9253 = vmatpush1.bf16.msra.mxu0 %v8179
    %9254 = vmatprep.subr.bf16.mxu0 %v8176
    %9255 = vmatpush1.bf16.msra.mxu0 %v8175
    %9256 = vmatprep.subr.bf16.mxu0 %v8172
    %9257 = vmatpush1.bf16.msra.mxu0 %v8171
    %9258 = vmatprep.subr.bf16.mxu0 %v8168
    %9259 = vmatpush1.bf16.msra.mxu0 %v8167
    %9260 = vmatprep.subr.bf16.mxu0 %v8164
    %9261 = vmatpush1.bf16.msra.mxu0 %v8163
    %9262 = vmatprep.subr.bf16.mxu0 %v8160
    %9263 = vmatpush1.bf16.msra.mxu0 %v8159
    %9264 = vmatprep.subr.bf16.mxu0 %v8156
    %9265 = vmatpush1.bf16.msra.mxu0 %v8155
    %9266 = vmatprep.subr.bf16.mxu0 %v8152
    %9267 = vmatpush1.bf16.msra.mxu0 %v8151
    %9268 = vmatprep.subr.bf16.mxu0 %v8212
    %9269 = vmatpush2.bf16.msra.mxu0 %v8211
    %9270 = vmatprep.subr.bf16.mxu0 %v8208
    %9271 = vmatpush2.bf16.msra.mxu0 %v8207
    %9272 = vmatprep.subr.bf16.mxu0 %v8204
    %9273 = vmatpush2.bf16.msra.mxu0 %v8203
    %9274 = vmatprep.subr.bf16.mxu0 %v8200
    %9275 = vmatpush2.bf16.msra.mxu0 %v8199
    %9276 = vmatprep.subr.bf16.mxu0 %v8196
    %9277 = vmatpush2.bf16.msra.mxu0 %v8195
    %9278 = vmatprep.subr.bf16.mxu0 %v8192
    %9279 = vmatpush2.bf16.msra.mxu0 %v8191
    %9280 = vmatprep.subr.bf16.mxu0 %v8188
    %9281 = vmatpush2.bf16.msra.mxu0 %v8187
    %9282 = vmatprep.subr.bf16.mxu0 %v8184
    %9283 = vmatpush2.bf16.msra.mxu0 %v8183
    %9284 = vmatprep.mubr.bf16.mxu0 %v5866
    %9285 = vmatmul.mubr.bf16.gmra.mxu0 %v5865
    %v9286 = vpop.f32.mrf.mxu0
    %v9287 = vadd.f32 %v9146, %v9286
    %v9288 = vpop.f32.mrf.mxu0
    %v9289 = vadd.f32 %v9148, %v9288
    %v9290 = vpop.f32.mrf.mxu0
    %v9291 = vadd.f32 %v9150, %v9290
    %v9292 = vpop.f32.mrf.mxu0
    %v9293 = vadd.f32 %v9152, %v9292
    %9294 = vmatprep.mubr.bf16.mxu0 %v5882
    %9295 = vmatmul.mubr.bf16.gmra.mxu0 %v5881
    %v9296 = vpop.f32.mrf.mxu0
    %v9297 = vadd.f32 %v9156, %v9296
    %v9298 = vpop.f32.mrf.mxu0
    %v9299 = vadd.f32 %v9158, %v9298
    %v9300 = vpop.f32.mrf.mxu0
    %v9301 = vadd.f32 %v9160, %v9300
    %v9302 = vpop.f32.mrf.mxu0
    %v9303 = vadd.f32 %v9162, %v9302
    %9304 = vmatprep.mubr.bf16.mxu0 %v5898
    %9305 = vmatmul.mubr.bf16.gmra.mxu0 %v5897
    %v9306 = vpop.f32.mrf.mxu0
    %v9307 = vadd.f32 %v9166, %v9306
    %v9308 = vpop.f32.mrf.mxu0
    %v9309 = vadd.f32 %v9168, %v9308
    %v9310 = vpop.f32.mrf.mxu0
    %v9311 = vadd.f32 %v9170, %v9310
    %v9312 = vpop.f32.mrf.mxu0
    %v9313 = vadd.f32 %v9172, %v9312
    %9314 = vmatprep.mubr.bf16.mxu0 %v5914
    %9315 = vmatmul.mubr.bf16.gmra.mxu0 %v5913
    %v9316 = vpop.f32.mrf.mxu0
    %v9317 = vadd.f32 %v9176, %v9316
    %v9318 = vpop.f32.mrf.mxu0
    %v9319 = vadd.f32 %v9178, %v9318
    %v9320 = vpop.f32.mrf.mxu0
    %v9321 = vadd.f32 %v9180, %v9320
    %v9322 = vpop.f32.mrf.mxu0
    %v9323 = vadd.f32 %v9182, %v9322
    %9324 = vmatprep.mubr.bf16.mxu0 %v5930
    %9325 = vmatmul.mubr.bf16.gmra.mxu0 %v5929
    %v9326 = vpop.f32.mrf.mxu0
    %v9327 = vadd.f32 %v9186, %v9326
    %v9328 = vpop.f32.mrf.mxu0
    %v9329 = vadd.f32 %v9188, %v9328
    %v9330 = vpop.f32.mrf.mxu0
    %v9331 = vadd.f32 %v9190, %v9330
    %v9332 = vpop.f32.mrf.mxu0
    %v9333 = vadd.f32 %v9192, %v9332
    %9334 = vmatprep.mubr.bf16.mxu0 %v5946
    %9335 = vmatmul.mubr.bf16.gmra.mxu0 %v5945
    %v9336 = vpop.f32.mrf.mxu0
    %v9337 = vadd.f32 %v9196, %v9336
    %v9338 = vpop.f32.mrf.mxu0
    %v9339 = vadd.f32 %v9198, %v9338
    %v9340 = vpop.f32.mrf.mxu0
    %v9341 = vadd.f32 %v9200, %v9340
    %v9342 = vpop.f32.mrf.mxu0
    %v9343 = vadd.f32 %v9202, %v9342
    %9344 = vmatprep.mubr.bf16.mxu0 %v5962
    %9345 = vmatmul.mubr.bf16.gmra.mxu0 %v5961
    %v9346 = vpop.f32.mrf.mxu0
    %v9347 = vadd.f32 %v9206, %v9346
    %v9348 = vpop.f32.mrf.mxu0
    %v9349 = vadd.f32 %v9208, %v9348
    %v9350 = vpop.f32.mrf.mxu0
    %v9351 = vadd.f32 %v9210, %v9350
    %v9352 = vpop.f32.mrf.mxu0
    %v9353 = vadd.f32 %v9212, %v9352
    %9354 = vmatprep.mubr.bf16.mxu0 %v5978
    %9355 = vmatmul.mubr.bf16.gmra.mxu0 %v5977
    %v9356 = vpop.f32.mrf.mxu0
    %v9357 = vadd.f32 %v9216, %v9356
    %v9358 = vpop.f32.mrf.mxu0
    %v9359 = vadd.f32 %v9218, %v9358
    %v9360 = vpop.f32.mrf.mxu0
    %v9361 = vadd.f32 %v9220, %v9360
    %v9362 = vpop.f32.mrf.mxu0
    %v9363 = vadd.f32 %v9222, %v9362
    %9364 = vmatprep.mubr.bf16.mxu0 %v5994
    %9365 = vmatmul.mubr.bf16.gmra.mxu0 %v5993
    %v9366 = vpop.f32.mrf.mxu0
    %v9367 = vadd.f32 %v9226, %v9366
    %v9368 = vpop.f32.mrf.mxu0
    %v9369 = vadd.f32 %v9228, %v9368
    %v9370 = vpop.f32.mrf.mxu0
    %v9371 = vadd.f32 %v9230, %v9370
    %v9372 = vpop.f32.mrf.mxu0
    %v9373 = vadd.f32 %v9232, %v9372
    %9374 = vmatprep.mubr.bf16.mxu0 %v6010
    %9375 = vmatmul.mubr.bf16.gmra.mxu0 %v6009
    %v9376 = vpop.f32.mrf.mxu0
    %v9377 = vadd.f32 %v9236, %v9376
    %v9378 = vpop.f32.mrf.mxu0
    %v9379 = vadd.f32 %v9238, %v9378
    %v9380 = vpop.f32.mrf.mxu0
    %v9381 = vadd.f32 %v9240, %v9380
    %v9382 = vpop.f32.mrf.mxu0
    %v9383 = vadd.f32 %v9242, %v9382
    %9384 = vmatprep.mubr.bf16.mxu0 %v6026
    %9385 = vmatmul.mubr.bf16.gmra.mxu0 %v6025
    %v9386 = vpop.f32.mrf.mxu0
    %v9387 = vadd.f32 %v9246, %v9386
    %v9388 = vpop.f32.mrf.mxu0
    %v9389 = vadd.f32 %v9248, %v9388
    %v9390 = vpop.f32.mrf.mxu0
    %v9391 = vpop.f32.mrf.mxu0
    %9392 = vdwg.mxu0
    %9393 = vmatprep.subr.bf16.mxu0 %v8244
    %9394 = vmatpush1.bf16.msra.mxu0 %v8243
    %9395 = vmatprep.subr.bf16.mxu0 %v8240
    %9396 = vmatpush1.bf16.msra.mxu0 %v8239
    %9397 = vmatprep.subr.bf16.mxu0 %v8236
    %9398 = vmatpush1.bf16.msra.mxu0 %v8235
    %9399 = vmatprep.subr.bf16.mxu0 %v8232
    %9400 = vmatpush1.bf16.msra.mxu0 %v8231
    %9401 = vmatprep.subr.bf16.mxu0 %v8228
    %9402 = vmatpush1.bf16.msra.mxu0 %v8227
    %9403 = vmatprep.subr.bf16.mxu0 %v8224
    %9404 = vmatpush1.bf16.msra.mxu0 %v8223
    %9405 = vmatprep.subr.bf16.mxu0 %v8220
    %9406 = vmatpush1.bf16.msra.mxu0 %v8219
    %9407 = vmatprep.subr.bf16.mxu0 %v8216
    %9408 = vmatpush1.bf16.msra.mxu0 %v8215
    %9409 = vmatprep.subr.bf16.mxu0 %v8276
    %9410 = vmatpush2.bf16.msra.mxu0 %v8275
    %9411 = vmatprep.subr.bf16.mxu0 %v8272
    %9412 = vmatpush2.bf16.msra.mxu0 %v8271
    %9413 = vmatprep.subr.bf16.mxu0 %v8268
    %9414 = vmatpush2.bf16.msra.mxu0 %v8267
    %9415 = vmatprep.subr.bf16.mxu0 %v8264
    %9416 = vmatpush2.bf16.msra.mxu0 %v8263
    %9417 = vmatprep.subr.bf16.mxu0 %v8260
    %9418 = vmatpush2.bf16.msra.mxu0 %v8259
    %9419 = vmatprep.subr.bf16.mxu0 %v8256
    %9420 = vmatpush2.bf16.msra.mxu0 %v8255
    %9421 = vmatprep.subr.bf16.mxu0 %v8252
    %9422 = vmatpush2.bf16.msra.mxu0 %v8251
    %9423 = vmatprep.subr.bf16.mxu0 %v8248
    %9424 = vmatpush2.bf16.msra.mxu0 %v8247
    %9425 = vmatprep.mubr.bf16.mxu0 %v5868
    %9426 = vmatmul.mubr.bf16.gmra.mxu0 %v5867
    %v9427 = vpop.f32.mrf.mxu0
    %v9428 = vadd.f32 %v9287, %v9427
    %v9429 = vpop.f32.mrf.mxu0
    %v9430 = vadd.f32 %v9289, %v9429
    %v9431 = vpop.f32.mrf.mxu0
    %v9432 = vadd.f32 %v9291, %v9431
    %v9433 = vpop.f32.mrf.mxu0
    %v9434 = vadd.f32 %v9293, %v9433
    %9435 = vmatprep.mubr.bf16.mxu0 %v5884
    %9436 = vmatmul.mubr.bf16.gmra.mxu0 %v5883
    %v9437 = vpop.f32.mrf.mxu0
    %v9438 = vadd.f32 %v9297, %v9437
    %v9439 = vpop.f32.mrf.mxu0
    %v9440 = vadd.f32 %v9299, %v9439
    %v9441 = vpop.f32.mrf.mxu0
    %v9442 = vadd.f32 %v9301, %v9441
    %v9443 = vpop.f32.mrf.mxu0
    %v9444 = vadd.f32 %v9303, %v9443
    %9445 = vmatprep.mubr.bf16.mxu0 %v5900
    %9446 = vmatmul.mubr.bf16.gmra.mxu0 %v5899
    %v9447 = vpop.f32.mrf.mxu0
    %v9448 = vadd.f32 %v9307, %v9447
    %v9449 = vpop.f32.mrf.mxu0
    %v9450 = vadd.f32 %v9309, %v9449
    %v9451 = vpop.f32.mrf.mxu0
    %v9452 = vadd.f32 %v9311, %v9451
    %v9453 = vpop.f32.mrf.mxu0
    %v9454 = vadd.f32 %v9313, %v9453
    %9455 = vmatprep.mubr.bf16.mxu0 %v5916
    %9456 = vmatmul.mubr.bf16.gmra.mxu0 %v5915
    %v9457 = vpop.f32.mrf.mxu0
    %v9458 = vadd.f32 %v9317, %v9457
    %v9459 = vpop.f32.mrf.mxu0
    %v9460 = vadd.f32 %v9319, %v9459
    %v9461 = vpop.f32.mrf.mxu0
    %v9462 = vadd.f32 %v9321, %v9461
    %v9463 = vpop.f32.mrf.mxu0
    %v9464 = vadd.f32 %v9323, %v9463
    %9465 = vmatprep.mubr.bf16.mxu0 %v5932
    %9466 = vmatmul.mubr.bf16.gmra.mxu0 %v5931
    %v9467 = vpop.f32.mrf.mxu0
    %v9468 = vadd.f32 %v9327, %v9467
    %v9469 = vpop.f32.mrf.mxu0
    %v9470 = vadd.f32 %v9329, %v9469
    %v9471 = vpop.f32.mrf.mxu0
    %v9472 = vadd.f32 %v9331, %v9471
    %v9473 = vpop.f32.mrf.mxu0
    %v9474 = vadd.f32 %v9333, %v9473
    %9475 = vmatprep.mubr.bf16.mxu0 %v5948
    %9476 = vmatmul.mubr.bf16.gmra.mxu0 %v5947
    %v9477 = vpop.f32.mrf.mxu0
    %v9478 = vadd.f32 %v9337, %v9477
    %v9479 = vpop.f32.mrf.mxu0
    %v9480 = vadd.f32 %v9339, %v9479
    %v9481 = vpop.f32.mrf.mxu0
    %v9482 = vadd.f32 %v9341, %v9481
    %v9483 = vpop.f32.mrf.mxu0
    %v9484 = vadd.f32 %v9343, %v9483
    %9485 = vmatprep.mubr.bf16.mxu0 %v5964
    %9486 = vmatmul.mubr.bf16.gmra.mxu0 %v5963
    %v9487 = vpop.f32.mrf.mxu0
    %v9488 = vadd.f32 %v9347, %v9487
    %v9489 = vpop.f32.mrf.mxu0
    %v9490 = vadd.f32 %v9349, %v9489
    %v9491 = vpop.f32.mrf.mxu0
    %v9492 = vadd.f32 %v9351, %v9491
    %v9493 = vpop.f32.mrf.mxu0
    %v9494 = vadd.f32 %v9353, %v9493
    %9495 = vmatprep.mubr.bf16.mxu0 %v5980
    %9496 = vmatmul.mubr.bf16.gmra.mxu0 %v5979
    %v9497 = vpop.f32.mrf.mxu0
    %v9498 = vadd.f32 %v9357, %v9497
    %v9499 = vpop.f32.mrf.mxu0
    %v9500 = vadd.f32 %v9359, %v9499
    %v9501 = vpop.f32.mrf.mxu0
    %v9502 = vadd.f32 %v9361, %v9501
    %v9503 = vpop.f32.mrf.mxu0
    %v9504 = vadd.f32 %v9363, %v9503
    %9505 = vmatprep.mubr.bf16.mxu0 %v5996
    %9506 = vmatmul.mubr.bf16.gmra.mxu0 %v5995
    %v9507 = vpop.f32.mrf.mxu0
    %v9508 = vadd.f32 %v9367, %v9507
    %v9509 = vpop.f32.mrf.mxu0
    %v9510 = vadd.f32 %v9369, %v9509
    %v9511 = vpop.f32.mrf.mxu0
    %v9512 = vadd.f32 %v9371, %v9511
    %v9513 = vpop.f32.mrf.mxu0
    %v9514 = vadd.f32 %v9373, %v9513
    %9515 = vmatprep.mubr.bf16.mxu0 %v6012
    %9516 = vmatmul.mubr.bf16.gmra.mxu0 %v6011
    %v9517 = vpop.f32.mrf.mxu0
    %v9518 = vadd.f32 %v9377, %v9517
    %v9519 = vpop.f32.mrf.mxu0
    %v9520 = vadd.f32 %v9379, %v9519
    %v9521 = vpop.f32.mrf.mxu0
    %v9522 = vadd.f32 %v9381, %v9521
    %v9523 = vpop.f32.mrf.mxu0
    %v9524 = vadd.f32 %v9383, %v9523
    %9525 = vmatprep.mubr.bf16.mxu0 %v6028
    %9526 = vmatmul.mubr.bf16.gmra.mxu0 %v6027
    %v9527 = vpop.f32.mrf.mxu0
    %v9528 = vadd.f32 %v9387, %v9527
    %v9529 = vpop.f32.mrf.mxu0
    %v9530 = vadd.f32 %v9389, %v9529
    %v9531 = vpop.f32.mrf.mxu0
    %v9532 = vpop.f32.mrf.mxu0
    %9533 = vdwg.mxu0
    %9534 = vmatprep.subr.bf16.mxu0 %v8308
    %9535 = vmatpush1.bf16.msra.mxu0 %v8307
    %9536 = vmatprep.subr.bf16.mxu0 %v8304
    %9537 = vmatpush1.bf16.msra.mxu0 %v8303
    %9538 = vmatprep.subr.bf16.mxu0 %v8300
    %9539 = vmatpush1.bf16.msra.mxu0 %v8299
    %9540 = vmatprep.subr.bf16.mxu0 %v8296
    %9541 = vmatpush1.bf16.msra.mxu0 %v8295
    %9542 = vmatprep.subr.bf16.mxu0 %v8292
    %9543 = vmatpush1.bf16.msra.mxu0 %v8291
    %9544 = vmatprep.subr.bf16.mxu0 %v8288
    %9545 = vmatpush1.bf16.msra.mxu0 %v8287
    %9546 = vmatprep.subr.bf16.mxu0 %v8284
    %9547 = vmatpush1.bf16.msra.mxu0 %v8283
    %9548 = vmatprep.subr.bf16.mxu0 %v8280
    %9549 = vmatpush1.bf16.msra.mxu0 %v8279
    %9550 = vmatprep.subr.bf16.mxu0 %v8340
    %9551 = vmatpush2.bf16.msra.mxu0 %v8339
    %9552 = vmatprep.subr.bf16.mxu0 %v8336
    %9553 = vmatpush2.bf16.msra.mxu0 %v8335
    %9554 = vmatprep.subr.bf16.mxu0 %v8332
    %9555 = vmatpush2.bf16.msra.mxu0 %v8331
    %9556 = vmatprep.subr.bf16.mxu0 %v8328
    %9557 = vmatpush2.bf16.msra.mxu0 %v8327
    %9558 = vmatprep.subr.bf16.mxu0 %v8324
    %9559 = vmatpush2.bf16.msra.mxu0 %v8323
    %9560 = vmatprep.subr.bf16.mxu0 %v8320
    %9561 = vmatpush2.bf16.msra.mxu0 %v8319
    %9562 = vmatprep.subr.bf16.mxu0 %v8316
    %9563 = vmatpush2.bf16.msra.mxu0 %v8315
    %9564 = vmatprep.subr.bf16.mxu0 %v8312
    %9565 = vmatpush2.bf16.msra.mxu0 %v8311
    %9566 = vmatprep.mubr.bf16.mxu0 %v5870
    %9567 = vmatmul.mubr.bf16.gmra.mxu0 %v5869
    %v9568 = vpop.f32.mrf.mxu0
    %v9569 = vadd.f32 %v9428, %v9568
    %v9570 = vpop.f32.mrf.mxu0
    %v9571 = vadd.f32 %v9430, %v9570
    %v9572 = vpop.f32.mrf.mxu0
    %v9573 = vadd.f32 %v9432, %v9572
    %v9574 = vpop.f32.mrf.mxu0
    %v9575 = vadd.f32 %v9434, %v9574
    %9576 = vmatprep.mubr.bf16.mxu0 %v5886
    %9577 = vmatmul.mubr.bf16.gmra.mxu0 %v5885
    %v9578 = vpop.f32.mrf.mxu0
    %v9579 = vadd.f32 %v9438, %v9578
    %v9580 = vpop.f32.mrf.mxu0
    %v9581 = vadd.f32 %v9440, %v9580
    %v9582 = vpop.f32.mrf.mxu0
    %v9583 = vadd.f32 %v9442, %v9582
    %v9584 = vpop.f32.mrf.mxu0
    %v9585 = vadd.f32 %v9444, %v9584
    %9586 = vmatprep.mubr.bf16.mxu0 %v5902
    %9587 = vmatmul.mubr.bf16.gmra.mxu0 %v5901
    %v9588 = vpop.f32.mrf.mxu0
    %v9589 = vadd.f32 %v9448, %v9588
    %v9590 = vpop.f32.mrf.mxu0
    %v9591 = vadd.f32 %v9450, %v9590
    %v9592 = vpop.f32.mrf.mxu0
    %v9593 = vadd.f32 %v9452, %v9592
    %v9594 = vpop.f32.mrf.mxu0
    %v9595 = vadd.f32 %v9454, %v9594
    %9596 = vmatprep.mubr.bf16.mxu0 %v5918
    %9597 = vmatmul.mubr.bf16.gmra.mxu0 %v5917
    %v9598 = vpop.f32.mrf.mxu0
    %v9599 = vadd.f32 %v9458, %v9598
    %v9600 = vpop.f32.mrf.mxu0
    %v9601 = vadd.f32 %v9460, %v9600
    %v9602 = vpop.f32.mrf.mxu0
    %v9603 = vadd.f32 %v9462, %v9602
    %v9604 = vpop.f32.mrf.mxu0
    %v9605 = vadd.f32 %v9464, %v9604
    %9606 = vmatprep.mubr.bf16.mxu0 %v5934
    %9607 = vmatmul.mubr.bf16.gmra.mxu0 %v5933
    %v9608 = vpop.f32.mrf.mxu0
    %v9609 = vadd.f32 %v9468, %v9608
    %v9610 = vpop.f32.mrf.mxu0
    %v9611 = vadd.f32 %v9470, %v9610
    %v9612 = vpop.f32.mrf.mxu0
    %v9613 = vadd.f32 %v9472, %v9612
    %v9614 = vpop.f32.mrf.mxu0
    %v9615 = vadd.f32 %v9474, %v9614
    %9616 = vmatprep.mubr.bf16.mxu0 %v5950
    %9617 = vmatmul.mubr.bf16.gmra.mxu0 %v5949
    %v9618 = vpop.f32.mrf.mxu0
    %v9619 = vadd.f32 %v9478, %v9618
    %v9620 = vpop.f32.mrf.mxu0
    %v9621 = vadd.f32 %v9480, %v9620
    %v9622 = vpop.f32.mrf.mxu0
    %v9623 = vadd.f32 %v9482, %v9622
    %v9624 = vpop.f32.mrf.mxu0
    %v9625 = vadd.f32 %v9484, %v9624
    %9626 = vmatprep.mubr.bf16.mxu0 %v5966
    %9627 = vmatmul.mubr.bf16.gmra.mxu0 %v5965
    %v9628 = vpop.f32.mrf.mxu0
    %v9629 = vadd.f32 %v9488, %v9628
    %v9630 = vpop.f32.mrf.mxu0
    %v9631 = vadd.f32 %v9490, %v9630
    %v9632 = vpop.f32.mrf.mxu0
    %v9633 = vadd.f32 %v9492, %v9632
    %v9634 = vpop.f32.mrf.mxu0
    %v9635 = vadd.f32 %v9494, %v9634
    %9636 = vmatprep.mubr.bf16.mxu0 %v5982
    %9637 = vmatmul.mubr.bf16.gmra.mxu0 %v5981
    %v9638 = vpop.f32.mrf.mxu0
    %v9639 = vadd.f32 %v9498, %v9638
    %v9640 = vpop.f32.mrf.mxu0
    %v9641 = vadd.f32 %v9500, %v9640
    %v9642 = vpop.f32.mrf.mxu0
    %v9643 = vadd.f32 %v9502, %v9642
    %v9644 = vpop.f32.mrf.mxu0
    %v9645 = vadd.f32 %v9504, %v9644
    %9646 = vmatprep.mubr.bf16.mxu0 %v5998
    %9647 = vmatmul.mubr.bf16.gmra.mxu0 %v5997
    %v9648 = vpop.f32.mrf.mxu0
    %v9649 = vadd.f32 %v9508, %v9648
    %v9650 = vpop.f32.mrf.mxu0
    %v9651 = vadd.f32 %v9510, %v9650
    %v9652 = vpop.f32.mrf.mxu0
    %v9653 = vadd.f32 %v9512, %v9652
    %v9654 = vpop.f32.mrf.mxu0
    %v9655 = vadd.f32 %v9514, %v9654
    %9656 = vmatprep.mubr.bf16.mxu0 %v6014
    %9657 = vmatmul.mubr.bf16.gmra.mxu0 %v6013
    %v9658 = vpop.f32.mrf.mxu0
    %v9659 = vadd.f32 %v9518, %v9658
    %v9660 = vpop.f32.mrf.mxu0
    %v9661 = vadd.f32 %v9520, %v9660
    %v9662 = vpop.f32.mrf.mxu0
    %v9663 = vadd.f32 %v9522, %v9662
    %v9664 = vpop.f32.mrf.mxu0
    %v9665 = vadd.f32 %v9524, %v9664
    %9666 = vmatprep.mubr.bf16.mxu0 %v6030
    %9667 = vmatmul.mubr.bf16.gmra.mxu0 %v6029
    %v9668 = vpop.f32.mrf.mxu0
    %v9669 = vadd.f32 %v9528, %v9668
    %v9670 = vpop.f32.mrf.mxu0
    %v9671 = vadd.f32 %v9530, %v9670
    %v9672 = vpop.f32.mrf.mxu0
    %v9673 = vpop.f32.mrf.mxu0
    %9674 = vdwg.mxu0
    %9675 = vmatprep.subr.bf16.mxu0 %v8372
    %9676 = vmatpush1.bf16.msra.mxu0 %v8371
    %9677 = vmatprep.subr.bf16.mxu0 %v8368
    %9678 = vmatpush1.bf16.msra.mxu0 %v8367
    %9679 = vmatprep.subr.bf16.mxu0 %v8364
    %9680 = vmatpush1.bf16.msra.mxu0 %v8363
    %9681 = vmatprep.subr.bf16.mxu0 %v8360
    %9682 = vmatpush1.bf16.msra.mxu0 %v8359
    %9683 = vmatprep.subr.bf16.mxu0 %v8356
    %9684 = vmatpush1.bf16.msra.mxu0 %v8355
    %9685 = vmatprep.subr.bf16.mxu0 %v8352
    %9686 = vmatpush1.bf16.msra.mxu0 %v8351
    %9687 = vmatprep.subr.bf16.mxu0 %v8348
    %9688 = vmatpush1.bf16.msra.mxu0 %v8347
    %9689 = vmatprep.subr.bf16.mxu0 %v8344
    %9690 = vmatpush1.bf16.msra.mxu0 %v8343
    %9691 = vmatprep.subr.bf16.mxu0 %v8404
    %9692 = vmatpush2.bf16.msra.mxu0 %v8403
    %9693 = vmatprep.subr.bf16.mxu0 %v8400
    %9694 = vmatpush2.bf16.msra.mxu0 %v8399
    %9695 = vmatprep.subr.bf16.mxu0 %v8396
    %9696 = vmatpush2.bf16.msra.mxu0 %v8395
    %9697 = vmatprep.subr.bf16.mxu0 %v8392
    %9698 = vmatpush2.bf16.msra.mxu0 %v8391
    %9699 = vmatprep.subr.bf16.mxu0 %v8388
    %9700 = vmatpush2.bf16.msra.mxu0 %v8387
    %9701 = vmatprep.subr.bf16.mxu0 %v8384
    %9702 = vmatpush2.bf16.msra.mxu0 %v8383
    %9703 = vmatprep.subr.bf16.mxu0 %v8380
    %9704 = vmatpush2.bf16.msra.mxu0 %v8379
    %9705 = vmatprep.subr.bf16.mxu0 %v8376
    %9706 = vmatpush2.bf16.msra.mxu0 %v8375
    %9707 = vmatprep.mubr.bf16.mxu0 %v5872
    %9708 = vmatmul.mubr.bf16.gmra.mxu0 %v5871
    %v9709 = vpop.f32.mrf.mxu0
    %v9710 = vadd.f32 %v9569, %v9709
    %v9711 = vpop.f32.mrf.mxu0
    %v9712 = vadd.f32 %v9571, %v9711
    %v9713 = vpop.f32.mrf.mxu0
    %v9714 = vadd.f32 %v9573, %v9713
    %v9715 = vpop.f32.mrf.mxu0
    %v9716 = vadd.f32 %v9575, %v9715
    %9717 = vmatprep.mubr.bf16.mxu0 %v5888
    %9718 = vmatmul.mubr.bf16.gmra.mxu0 %v5887
    %v9719 = vpop.f32.mrf.mxu0
    %v9720 = vadd.f32 %v9579, %v9719
    %v9721 = vpop.f32.mrf.mxu0
    %v9722 = vadd.f32 %v9581, %v9721
    %v9723 = vpop.f32.mrf.mxu0
    %v9724 = vadd.f32 %v9583, %v9723
    %v9725 = vpop.f32.mrf.mxu0
    %v9726 = vadd.f32 %v9585, %v9725
    %9727 = vmatprep.mubr.bf16.mxu0 %v5904
    %9728 = vmatmul.mubr.bf16.gmra.mxu0 %v5903
    %v9729 = vpop.f32.mrf.mxu0
    %v9730 = vadd.f32 %v9589, %v9729
    %v9731 = vpop.f32.mrf.mxu0
    %v9732 = vadd.f32 %v9591, %v9731
    %v9733 = vpop.f32.mrf.mxu0
    %v9734 = vadd.f32 %v9593, %v9733
    %v9735 = vpop.f32.mrf.mxu0
    %v9736 = vadd.f32 %v9595, %v9735
    %9737 = vmatprep.mubr.bf16.mxu0 %v5920
    %9738 = vmatmul.mubr.bf16.gmra.mxu0 %v5919
    %v9739 = vpop.f32.mrf.mxu0
    %v9740 = vadd.f32 %v9599, %v9739
    %v9741 = vpop.f32.mrf.mxu0
    %v9742 = vadd.f32 %v9601, %v9741
    %v9743 = vpop.f32.mrf.mxu0
    %v9744 = vadd.f32 %v9603, %v9743
    %v9745 = vpop.f32.mrf.mxu0
    %v9746 = vadd.f32 %v9605, %v9745
    %9747 = vmatprep.mubr.bf16.mxu0 %v5936
    %9748 = vmatmul.mubr.bf16.gmra.mxu0 %v5935
    %v9749 = vpop.f32.mrf.mxu0
    %v9750 = vadd.f32 %v9609, %v9749
    %v9751 = vpop.f32.mrf.mxu0
    %v9752 = vadd.f32 %v9611, %v9751
    %v9753 = vpop.f32.mrf.mxu0
    %v9754 = vadd.f32 %v9613, %v9753
    %v9755 = vpop.f32.mrf.mxu0
    %v9756 = vadd.f32 %v9615, %v9755
    %9757 = vmatprep.mubr.bf16.mxu0 %v5952
    %9758 = vmatmul.mubr.bf16.gmra.mxu0 %v5951
    %v9759 = vpop.f32.mrf.mxu0
    %v9760 = vadd.f32 %v9619, %v9759
    %v9761 = vpop.f32.mrf.mxu0
    %v9762 = vadd.f32 %v9621, %v9761
    %v9763 = vpop.f32.mrf.mxu0
    %v9764 = vadd.f32 %v9623, %v9763
    %v9765 = vpop.f32.mrf.mxu0
    %v9766 = vadd.f32 %v9625, %v9765
    %9767 = vmatprep.mubr.bf16.mxu0 %v5968
    %9768 = vmatmul.mubr.bf16.gmra.mxu0 %v5967
    %v9769 = vpop.f32.mrf.mxu0
    %v9770 = vadd.f32 %v9629, %v9769
    %v9771 = vpop.f32.mrf.mxu0
    %v9772 = vadd.f32 %v9631, %v9771
    %v9773 = vpop.f32.mrf.mxu0
    %v9774 = vadd.f32 %v9633, %v9773
    %v9775 = vpop.f32.mrf.mxu0
    %v9776 = vadd.f32 %v9635, %v9775
    %9777 = vmatprep.mubr.bf16.mxu0 %v5984
    %9778 = vmatmul.mubr.bf16.gmra.mxu0 %v5983
    %v9779 = vpop.f32.mrf.mxu0
    %v9780 = vadd.f32 %v9639, %v9779
    %v9781 = vpop.f32.mrf.mxu0
    %v9782 = vadd.f32 %v9641, %v9781
    %v9783 = vpop.f32.mrf.mxu0
    %v9784 = vadd.f32 %v9643, %v9783
    %v9785 = vpop.f32.mrf.mxu0
    %v9786 = vadd.f32 %v9645, %v9785
    %9787 = vmatprep.mubr.bf16.mxu0 %v6000
    %9788 = vmatmul.mubr.bf16.gmra.mxu0 %v5999
    %v9789 = vpop.f32.mrf.mxu0
    %v9790 = vadd.f32 %v9649, %v9789
    %v9791 = vpop.f32.mrf.mxu0
    %v9792 = vadd.f32 %v9651, %v9791
    %v9793 = vpop.f32.mrf.mxu0
    %v9794 = vadd.f32 %v9653, %v9793
    %v9795 = vpop.f32.mrf.mxu0
    %v9796 = vadd.f32 %v9655, %v9795
    %9797 = vmatprep.mubr.bf16.mxu0 %v6016
    %9798 = vmatmul.mubr.bf16.gmra.mxu0 %v6015
    %v9799 = vpop.f32.mrf.mxu0
    %v9800 = vadd.f32 %v9659, %v9799
    %v9801 = vpop.f32.mrf.mxu0
    %v9802 = vadd.f32 %v9661, %v9801
    %v9803 = vpop.f32.mrf.mxu0
    %v9804 = vadd.f32 %v9663, %v9803
    %v9805 = vpop.f32.mrf.mxu0
    %v9806 = vadd.f32 %v9665, %v9805
    %9807 = vmatprep.mubr.bf16.mxu0 %v6032
    %9808 = vmatmul.mubr.bf16.gmra.mxu0 %v6031
    %v9809 = vpop.f32.mrf.mxu0
    %v9810 = vadd.f32 %v9669, %v9809
    %v9811 = vpop.f32.mrf.mxu0
    %v9812 = vadd.f32 %v9671, %v9811
    %v9813 = vpop.f32.mrf.mxu0
    %v9814 = vpop.f32.mrf.mxu0
    %9815 = vdwg.mxu0
    %9816 = vmatprep.subr.bf16.mxu0 %v8436
    %9817 = vmatpush1.bf16.msra.mxu0 %v8435
    %9818 = vmatprep.subr.bf16.mxu0 %v8432
    %9819 = vmatpush1.bf16.msra.mxu0 %v8431
    %9820 = vmatprep.subr.bf16.mxu0 %v8428
    %9821 = vmatpush1.bf16.msra.mxu0 %v8427
    %9822 = vmatprep.subr.bf16.mxu0 %v8424
    %9823 = vmatpush1.bf16.msra.mxu0 %v8423
    %9824 = vmatprep.subr.bf16.mxu0 %v8420
    %9825 = vmatpush1.bf16.msra.mxu0 %v8419
    %9826 = vmatprep.subr.bf16.mxu0 %v8416
    %9827 = vmatpush1.bf16.msra.mxu0 %v8415
    %9828 = vmatprep.subr.bf16.mxu0 %v8412
    %9829 = vmatpush1.bf16.msra.mxu0 %v8411
    %9830 = vmatprep.subr.bf16.mxu0 %v8408
    %9831 = vmatpush1.bf16.msra.mxu0 %v8407
    %9832 = vmatprep.subr.bf16.mxu0 %v8468
    %9833 = vmatpush2.bf16.msra.mxu0 %v8467
    %9834 = vmatprep.subr.bf16.mxu0 %v8464
    %9835 = vmatpush2.bf16.msra.mxu0 %v8463
    %9836 = vmatprep.subr.bf16.mxu0 %v8460
    %9837 = vmatpush2.bf16.msra.mxu0 %v8459
    %9838 = vmatprep.subr.bf16.mxu0 %v8456
    %9839 = vmatpush2.bf16.msra.mxu0 %v8455
    %9840 = vmatprep.subr.bf16.mxu0 %v8452
    %9841 = vmatpush2.bf16.msra.mxu0 %v8451
    %9842 = vmatprep.subr.bf16.mxu0 %v8448
    %9843 = vmatpush2.bf16.msra.mxu0 %v8447
    %9844 = vmatprep.subr.bf16.mxu0 %v8444
    %9845 = vmatpush2.bf16.msra.mxu0 %v8443
    %9846 = vmatprep.subr.bf16.mxu0 %v8440
    %9847 = vmatpush2.bf16.msra.mxu0 %v8439
    %9848 = vmatprep.mubr.bf16.mxu0 %v5874
    %9849 = vmatmul.mubr.bf16.gmra.mxu0 %v5873
    %v9850 = vpop.f32.mrf.mxu0
    %v9851 = vadd.f32 %v9710, %v9850
    %v9852 = vpop.f32.mrf.mxu0
    %v9853 = vadd.f32 %v9712, %v9852
    %v9854 = vpop.f32.mrf.mxu0
    %v9855 = vadd.f32 %v9714, %v9854
    %v9856 = vpop.f32.mrf.mxu0
    %v9857 = vadd.f32 %v9716, %v9856
    %9858 = vmatprep.mubr.bf16.mxu0 %v5890
    %9859 = vmatmul.mubr.bf16.gmra.mxu0 %v5889
    %v9860 = vpop.f32.mrf.mxu0
    %v9861 = vadd.f32 %v9720, %v9860
    %v9862 = vpop.f32.mrf.mxu0
    %v9863 = vadd.f32 %v9722, %v9862
    %v9864 = vpop.f32.mrf.mxu0
    %v9865 = vadd.f32 %v9724, %v9864
    %v9866 = vpop.f32.mrf.mxu0
    %v9867 = vadd.f32 %v9726, %v9866
    %9868 = vmatprep.mubr.bf16.mxu0 %v5906
    %9869 = vmatmul.mubr.bf16.gmra.mxu0 %v5905
    %v9870 = vpop.f32.mrf.mxu0
    %v9871 = vadd.f32 %v9730, %v9870
    %v9872 = vpop.f32.mrf.mxu0
    %v9873 = vadd.f32 %v9732, %v9872
    %v9874 = vpop.f32.mrf.mxu0
    %v9875 = vadd.f32 %v9734, %v9874
    %v9876 = vpop.f32.mrf.mxu0
    %v9877 = vadd.f32 %v9736, %v9876
    %9878 = vmatprep.mubr.bf16.mxu0 %v5922
    %9879 = vmatmul.mubr.bf16.gmra.mxu0 %v5921
    %v9880 = vpop.f32.mrf.mxu0
    %v9881 = vadd.f32 %v9740, %v9880
    %v9882 = vpop.f32.mrf.mxu0
    %v9883 = vadd.f32 %v9742, %v9882
    %v9884 = vpop.f32.mrf.mxu0
    %v9885 = vadd.f32 %v9744, %v9884
    %v9886 = vpop.f32.mrf.mxu0
    %v9887 = vadd.f32 %v9746, %v9886
    %9888 = vmatprep.mubr.bf16.mxu0 %v5938
    %9889 = vmatmul.mubr.bf16.gmra.mxu0 %v5937
    %v9890 = vpop.f32.mrf.mxu0
    %v9891 = vadd.f32 %v9750, %v9890
    %v9892 = vpop.f32.mrf.mxu0
    %v9893 = vadd.f32 %v9752, %v9892
    %v9894 = vpop.f32.mrf.mxu0
    %v9895 = vadd.f32 %v9754, %v9894
    %v9896 = vpop.f32.mrf.mxu0
    %v9897 = vadd.f32 %v9756, %v9896
    %9898 = vmatprep.mubr.bf16.mxu0 %v5954
    %9899 = vmatmul.mubr.bf16.gmra.mxu0 %v5953
    %v9900 = vpop.f32.mrf.mxu0
    %v9901 = vadd.f32 %v9760, %v9900
    %v9902 = vpop.f32.mrf.mxu0
    %v9903 = vadd.f32 %v9762, %v9902
    %v9904 = vpop.f32.mrf.mxu0
    %v9905 = vadd.f32 %v9764, %v9904
    %v9906 = vpop.f32.mrf.mxu0
    %v9907 = vadd.f32 %v9766, %v9906
    %9908 = vmatprep.mubr.bf16.mxu0 %v5970
    %9909 = vmatmul.mubr.bf16.gmra.mxu0 %v5969
    %v9910 = vpop.f32.mrf.mxu0
    %v9911 = vadd.f32 %v9770, %v9910
    %v9912 = vpop.f32.mrf.mxu0
    %v9913 = vadd.f32 %v9772, %v9912
    %v9914 = vpop.f32.mrf.mxu0
    %v9915 = vadd.f32 %v9774, %v9914
    %v9916 = vpop.f32.mrf.mxu0
    %v9917 = vadd.f32 %v9776, %v9916
    %9918 = vmatprep.mubr.bf16.mxu0 %v5986
    %9919 = vmatmul.mubr.bf16.gmra.mxu0 %v5985
    %v9920 = vpop.f32.mrf.mxu0
    %v9921 = vadd.f32 %v9780, %v9920
    %v9922 = vpop.f32.mrf.mxu0
    %v9923 = vadd.f32 %v9782, %v9922
    %v9924 = vpop.f32.mrf.mxu0
    %v9925 = vadd.f32 %v9784, %v9924
    %v9926 = vpop.f32.mrf.mxu0
    %v9927 = vadd.f32 %v9786, %v9926
    %9928 = vmatprep.mubr.bf16.mxu0 %v6002
    %9929 = vmatmul.mubr.bf16.gmra.mxu0 %v6001
    %v9930 = vpop.f32.mrf.mxu0
    %v9931 = vadd.f32 %v9790, %v9930
    %v9932 = vpop.f32.mrf.mxu0
    %v9933 = vadd.f32 %v9792, %v9932
    %v9934 = vpop.f32.mrf.mxu0
    %v9935 = vadd.f32 %v9794, %v9934
    %v9936 = vpop.f32.mrf.mxu0
    %v9937 = vadd.f32 %v9796, %v9936
    %9938 = vmatprep.mubr.bf16.mxu0 %v6018
    %9939 = vmatmul.mubr.bf16.gmra.mxu0 %v6017
    %v9940 = vpop.f32.mrf.mxu0
    %v9941 = vadd.f32 %v9800, %v9940
    %v9942 = vpop.f32.mrf.mxu0
    %v9943 = vadd.f32 %v9802, %v9942
    %v9944 = vpop.f32.mrf.mxu0
    %v9945 = vadd.f32 %v9804, %v9944
    %v9946 = vpop.f32.mrf.mxu0
    %v9947 = vadd.f32 %v9806, %v9946
    %9948 = vmatprep.mubr.bf16.mxu0 %v6034
    %9949 = vmatmul.mubr.bf16.gmra.mxu0 %v6033
    %v9950 = vpop.f32.mrf.mxu0
    %v9951 = vadd.f32 %v9810, %v9950
    %v9952 = vpop.f32.mrf.mxu0
    %v9953 = vadd.f32 %v9812, %v9952
    %v9954 = vpop.f32.mrf.mxu0
    %v9955 = vpop.f32.mrf.mxu0
    %9956 = vdwg.mxu0
    %9957 = vmatprep.subr.bf16.mxu0 %v8500
    %9958 = vmatpush1.bf16.msra.mxu0 %v8499
    %9959 = vmatprep.subr.bf16.mxu0 %v8496
    %9960 = vmatpush1.bf16.msra.mxu0 %v8495
    %9961 = vmatprep.subr.bf16.mxu0 %v8492
    %9962 = vmatpush1.bf16.msra.mxu0 %v8491
    %9963 = vmatprep.subr.bf16.mxu0 %v8488
    %9964 = vmatpush1.bf16.msra.mxu0 %v8487
    %9965 = vmatprep.subr.bf16.mxu0 %v8484
    %9966 = vmatpush1.bf16.msra.mxu0 %v8483
    %9967 = vmatprep.subr.bf16.mxu0 %v8480
    %9968 = vmatpush1.bf16.msra.mxu0 %v8479
    %9969 = vmatprep.subr.bf16.mxu0 %v8476
    %9970 = vmatpush1.bf16.msra.mxu0 %v8475
    %9971 = vmatprep.subr.bf16.mxu0 %v8472
    %9972 = vmatpush1.bf16.msra.mxu0 %v8471
    %9973 = vmatprep.subr.bf16.mxu0 %v8532
    %9974 = vmatpush2.bf16.msra.mxu0 %v8531
    %9975 = vmatprep.subr.bf16.mxu0 %v8528
    %9976 = vmatpush2.bf16.msra.mxu0 %v8527
    %9977 = vmatprep.subr.bf16.mxu0 %v8524
    %9978 = vmatpush2.bf16.msra.mxu0 %v8523
    %9979 = vmatprep.subr.bf16.mxu0 %v8520
    %9980 = vmatpush2.bf16.msra.mxu0 %v8519
    %9981 = vmatprep.subr.bf16.mxu0 %v8516
    %9982 = vmatpush2.bf16.msra.mxu0 %v8515
    %9983 = vmatprep.subr.bf16.mxu0 %v8512
    %9984 = vmatpush2.bf16.msra.mxu0 %v8511
    %9985 = vmatprep.subr.bf16.mxu0 %v8508
    %9986 = vmatpush2.bf16.msra.mxu0 %v8507
    %9987 = vmatprep.subr.bf16.mxu0 %v8504
    %9988 = vmatpush2.bf16.msra.mxu0 %v8503
    %9989 = vmatprep.mubr.bf16.mxu0 %v5876
    %9990 = vmatmul.mubr.bf16.gmra.mxu0 %v5875
    %v9991 = vpop.f32.mrf.mxu0
    %v9992 = vadd.f32 %v9851, %v9991
    %v9993 = vpop.f32.mrf.mxu0
    %v9994 = vadd.f32 %v9853, %v9993
    %v9995 = vpop.f32.mrf.mxu0
    %v9996 = vadd.f32 %v9855, %v9995
    %v9997 = vpop.f32.mrf.mxu0
    %v9998 = vadd.f32 %v9857, %v9997
    %9999 = vmatprep.mubr.bf16.mxu0 %v5892
    %10000 = vmatmul.mubr.bf16.gmra.mxu0 %v5891
    %v10001 = vpop.f32.mrf.mxu0
    %v10002 = vadd.f32 %v9861, %v10001
    %v10003 = vpop.f32.mrf.mxu0
    %v10004 = vadd.f32 %v9863, %v10003
    %v10005 = vpop.f32.mrf.mxu0
    %v10006 = vadd.f32 %v9865, %v10005
    %v10007 = vpop.f32.mrf.mxu0
    %v10008 = vadd.f32 %v9867, %v10007
    %10009 = vmatprep.mubr.bf16.mxu0 %v5908
    %10010 = vmatmul.mubr.bf16.gmra.mxu0 %v5907
    %v10011 = vpop.f32.mrf.mxu0
    %v10012 = vadd.f32 %v9871, %v10011
    %v10013 = vpop.f32.mrf.mxu0
    %v10014 = vadd.f32 %v9873, %v10013
    %v10015 = vpop.f32.mrf.mxu0
    %v10016 = vadd.f32 %v9875, %v10015
    %v10017 = vpop.f32.mrf.mxu0
    %v10018 = vadd.f32 %v9877, %v10017
    %10019 = vmatprep.mubr.bf16.mxu0 %v5924
    %10020 = vmatmul.mubr.bf16.gmra.mxu0 %v5923
    %v10021 = vpop.f32.mrf.mxu0
    %v10022 = vadd.f32 %v9881, %v10021
    %v10023 = vpop.f32.mrf.mxu0
    %v10024 = vadd.f32 %v9883, %v10023
    %v10025 = vpop.f32.mrf.mxu0
    %v10026 = vadd.f32 %v9885, %v10025
    %v10027 = vpop.f32.mrf.mxu0
    %v10028 = vadd.f32 %v9887, %v10027
    %10029 = vmatprep.mubr.bf16.mxu0 %v5940
    %10030 = vmatmul.mubr.bf16.gmra.mxu0 %v5939
    %v10031 = vpop.f32.mrf.mxu0
    %v10032 = vadd.f32 %v9891, %v10031
    %v10033 = vpop.f32.mrf.mxu0
    %v10034 = vadd.f32 %v9893, %v10033
    %v10035 = vpop.f32.mrf.mxu0
    %v10036 = vadd.f32 %v9895, %v10035
    %v10037 = vpop.f32.mrf.mxu0
    %v10038 = vadd.f32 %v9897, %v10037
    %10039 = vmatprep.mubr.bf16.mxu0 %v5956
    %10040 = vmatmul.mubr.bf16.gmra.mxu0 %v5955
    %v10041 = vpop.f32.mrf.mxu0
    %v10042 = vadd.f32 %v9901, %v10041
    %v10043 = vpop.f32.mrf.mxu0
    %v10044 = vadd.f32 %v9903, %v10043
    %v10045 = vpop.f32.mrf.mxu0
    %v10046 = vadd.f32 %v9905, %v10045
    %v10047 = vpop.f32.mrf.mxu0
    %v10048 = vadd.f32 %v9907, %v10047
    %10049 = vmatprep.mubr.bf16.mxu0 %v5972
    %10050 = vmatmul.mubr.bf16.gmra.mxu0 %v5971
    %v10051 = vpop.f32.mrf.mxu0
    %v10052 = vadd.f32 %v9911, %v10051
    %v10053 = vpop.f32.mrf.mxu0
    %v10054 = vadd.f32 %v9913, %v10053
    %v10055 = vpop.f32.mrf.mxu0
    %v10056 = vadd.f32 %v9915, %v10055
    %v10057 = vpop.f32.mrf.mxu0
    %v10058 = vadd.f32 %v9917, %v10057
    %10059 = vmatprep.mubr.bf16.mxu0 %v5988
    %10060 = vmatmul.mubr.bf16.gmra.mxu0 %v5987
    %v10061 = vpop.f32.mrf.mxu0
    %v10062 = vadd.f32 %v9921, %v10061
    %v10063 = vpop.f32.mrf.mxu0
    %v10064 = vadd.f32 %v9923, %v10063
    %v10065 = vpop.f32.mrf.mxu0
    %v10066 = vadd.f32 %v9925, %v10065
    %v10067 = vpop.f32.mrf.mxu0
    %v10068 = vadd.f32 %v9927, %v10067
    %10069 = vmatprep.mubr.bf16.mxu0 %v6004
    %10070 = vmatmul.mubr.bf16.gmra.mxu0 %v6003
    %v10071 = vpop.f32.mrf.mxu0
    %v10072 = vadd.f32 %v9931, %v10071
    %v10073 = vpop.f32.mrf.mxu0
    %v10074 = vadd.f32 %v9933, %v10073
    %v10075 = vpop.f32.mrf.mxu0
    %v10076 = vadd.f32 %v9935, %v10075
    %v10077 = vpop.f32.mrf.mxu0
    %v10078 = vadd.f32 %v9937, %v10077
    %10079 = vmatprep.mubr.bf16.mxu0 %v6020
    %10080 = vmatmul.mubr.bf16.gmra.mxu0 %v6019
    %v10081 = vpop.f32.mrf.mxu0
    %v10082 = vadd.f32 %v9941, %v10081
    %v10083 = vpop.f32.mrf.mxu0
    %v10084 = vadd.f32 %v9943, %v10083
    %v10085 = vpop.f32.mrf.mxu0
    %v10086 = vadd.f32 %v9945, %v10085
    %v10087 = vpop.f32.mrf.mxu0
    %v10088 = vadd.f32 %v9947, %v10087
    %10089 = vmatprep.mubr.bf16.mxu0 %v6036
    %10090 = vmatmul.mubr.bf16.gmra.mxu0 %v6035
    %v10091 = vpop.f32.mrf.mxu0
    %v10092 = vadd.f32 %v9951, %v10091
    %v10093 = vpop.f32.mrf.mxu0
    %v10094 = vadd.f32 %v9953, %v10093
    %v10095 = vpop.f32.mrf.mxu0
    %v10096 = vpop.f32.mrf.mxu0
    %10097 = vdwg.mxu0
    %10098 = vmatprep.subr.bf16.mxu0 %v8564
    %10099 = vmatpush1.bf16.msra.mxu0 %v8563
    %10100 = vmatprep.subr.bf16.mxu0 %v8560
    %10101 = vmatpush1.bf16.msra.mxu0 %v8559
    %10102 = vmatprep.subr.bf16.mxu0 %v8556
    %10103 = vmatpush1.bf16.msra.mxu0 %v8555
    %10104 = vmatprep.subr.bf16.mxu0 %v8552
    %10105 = vmatpush1.bf16.msra.mxu0 %v8551
    %10106 = vmatprep.subr.bf16.mxu0 %v8548
    %10107 = vmatpush1.bf16.msra.mxu0 %v8547
    %10108 = vmatprep.subr.bf16.mxu0 %v8544
    %10109 = vmatpush1.bf16.msra.mxu0 %v8543
    %10110 = vmatprep.subr.bf16.mxu0 %v8540
    %10111 = vmatpush1.bf16.msra.mxu0 %v8539
    %10112 = vmatprep.subr.bf16.mxu0 %v8536
    %10113 = vmatpush1.bf16.msra.mxu0 %v8535
    %10114 = vmatprep.subr.bf16.mxu0 %v8596
    %10115 = vmatpush2.bf16.msra.mxu0 %v8595
    %10116 = vmatprep.subr.bf16.mxu0 %v8592
    %10117 = vmatpush2.bf16.msra.mxu0 %v8591
    %10118 = vmatprep.subr.bf16.mxu0 %v8588
    %10119 = vmatpush2.bf16.msra.mxu0 %v8587
    %10120 = vmatprep.subr.bf16.mxu0 %v8584
    %10121 = vmatpush2.bf16.msra.mxu0 %v8583
    %10122 = vmatprep.subr.bf16.mxu0 %v8580
    %10123 = vmatpush2.bf16.msra.mxu0 %v8579
    %10124 = vmatprep.subr.bf16.mxu0 %v8576
    %10125 = vmatpush2.bf16.msra.mxu0 %v8575
    %10126 = vmatprep.subr.bf16.mxu0 %v8572
    %10127 = vmatpush2.bf16.msra.mxu0 %v8571
    %10128 = vmatprep.subr.bf16.mxu0 %v8568
    %10129 = vmatpush2.bf16.msra.mxu0 %v8567
    %10130 = vmatprep.mubr.bf16.mxu0 %v5878
    %10131 = vmatmul.mubr.bf16.gmra.mxu0 %v5877
    %v10132 = vpop.f32.mrf.mxu0
    %v10133 = vadd.f32 %v9992, %v10132
    %v10134 = vpop.f32.mrf.mxu0
    %v10135 = vadd.f32 %v9994, %v10134
    %v10136 = vpop.f32.mrf.mxu0
    %v10137 = vadd.f32 %v9996, %v10136
    %v10138 = vpop.f32.mrf.mxu0
    %v10139 = vadd.f32 %v9998, %v10138
    %10140 = vmatprep.mubr.bf16.mxu0 %v5894
    %10141 = vmatmul.mubr.bf16.gmra.mxu0 %v5893
    %v10142 = vpop.f32.mrf.mxu0
    %v10143 = vadd.f32 %v10002, %v10142
    %v10144 = vpop.f32.mrf.mxu0
    %v10145 = vadd.f32 %v10004, %v10144
    %v10146 = vpop.f32.mrf.mxu0
    %v10147 = vadd.f32 %v10006, %v10146
    %v10148 = vpop.f32.mrf.mxu0
    %v10149 = vadd.f32 %v10008, %v10148
    %10150 = vmatprep.mubr.bf16.mxu0 %v5910
    %10151 = vmatmul.mubr.bf16.gmra.mxu0 %v5909
    %v10152 = vpop.f32.mrf.mxu0
    %v10153 = vadd.f32 %v10012, %v10152
    %v10154 = vpop.f32.mrf.mxu0
    %v10155 = vadd.f32 %v10014, %v10154
    %v10156 = vpop.f32.mrf.mxu0
    %v10157 = vadd.f32 %v10016, %v10156
    %v10158 = vpop.f32.mrf.mxu0
    %v10159 = vadd.f32 %v10018, %v10158
    %10160 = vmatprep.mubr.bf16.mxu0 %v5926
    %10161 = vmatmul.mubr.bf16.gmra.mxu0 %v5925
    %v10162 = vpop.f32.mrf.mxu0
    %v10163 = vadd.f32 %v10022, %v10162
    %v10164 = vpop.f32.mrf.mxu0
    %v10165 = vadd.f32 %v10024, %v10164
    %v10166 = vpop.f32.mrf.mxu0
    %v10167 = vadd.f32 %v10026, %v10166
    %v10168 = vpop.f32.mrf.mxu0
    %v10169 = vadd.f32 %v10028, %v10168
    %10170 = vmatprep.mubr.bf16.mxu0 %v5942
    %10171 = vmatmul.mubr.bf16.gmra.mxu0 %v5941
    %v10172 = vpop.f32.mrf.mxu0
    %v10173 = vadd.f32 %v10032, %v10172
    %v10174 = vpop.f32.mrf.mxu0
    %v10175 = vadd.f32 %v10034, %v10174
    %v10176 = vpop.f32.mrf.mxu0
    %v10177 = vadd.f32 %v10036, %v10176
    %v10178 = vpop.f32.mrf.mxu0
    %v10179 = vadd.f32 %v10038, %v10178
    %10180 = vmatprep.mubr.bf16.mxu0 %v5958
    %10181 = vmatmul.mubr.bf16.gmra.mxu0 %v5957
    %v10182 = vpop.f32.mrf.mxu0
    %v10183 = vadd.f32 %v10042, %v10182
    %v10184 = vpop.f32.mrf.mxu0
    %v10185 = vadd.f32 %v10044, %v10184
    %v10186 = vpop.f32.mrf.mxu0
    %v10187 = vadd.f32 %v10046, %v10186
    %v10188 = vpop.f32.mrf.mxu0
    %v10189 = vadd.f32 %v10048, %v10188
    %10190 = vmatprep.mubr.bf16.mxu0 %v5974
    %10191 = vmatmul.mubr.bf16.gmra.mxu0 %v5973
    %v10192 = vpop.f32.mrf.mxu0
    %v10193 = vadd.f32 %v10052, %v10192
    %v10194 = vpop.f32.mrf.mxu0
    %v10195 = vadd.f32 %v10054, %v10194
    %v10196 = vpop.f32.mrf.mxu0
    %v10197 = vadd.f32 %v10056, %v10196
    %v10198 = vpop.f32.mrf.mxu0
    %v10199 = vadd.f32 %v10058, %v10198
    %10200 = vmatprep.mubr.bf16.mxu0 %v5990
    %10201 = vmatmul.mubr.bf16.gmra.mxu0 %v5989
    %v10202 = vpop.f32.mrf.mxu0
    %v10203 = vadd.f32 %v10062, %v10202
    %v10204 = vpop.f32.mrf.mxu0
    %v10205 = vadd.f32 %v10064, %v10204
    %v10206 = vpop.f32.mrf.mxu0
    %v10207 = vadd.f32 %v10066, %v10206
    %v10208 = vpop.f32.mrf.mxu0
    %v10209 = vadd.f32 %v10068, %v10208
    %10210 = vmatprep.mubr.bf16.mxu0 %v6006
    %10211 = vmatmul.mubr.bf16.gmra.mxu0 %v6005
    %v10212 = vpop.f32.mrf.mxu0
    %v10213 = vadd.f32 %v10072, %v10212
    %v10214 = vpop.f32.mrf.mxu0
    %v10215 = vadd.f32 %v10074, %v10214
    %v10216 = vpop.f32.mrf.mxu0
    %v10217 = vadd.f32 %v10076, %v10216
    %v10218 = vpop.f32.mrf.mxu0
    %v10219 = vadd.f32 %v10078, %v10218
    %10220 = vmatprep.mubr.bf16.mxu0 %v6022
    %10221 = vmatmul.mubr.bf16.gmra.mxu0 %v6021
    %v10222 = vpop.f32.mrf.mxu0
    %v10223 = vadd.f32 %v10082, %v10222
    %v10224 = vpop.f32.mrf.mxu0
    %v10225 = vadd.f32 %v10084, %v10224
    %v10226 = vpop.f32.mrf.mxu0
    %v10227 = vadd.f32 %v10086, %v10226
    %v10228 = vpop.f32.mrf.mxu0
    %v10229 = vadd.f32 %v10088, %v10228
    %10230 = vmatprep.mubr.bf16.mxu0 %v6038
    %10231 = vmatmul.mubr.bf16.gmra.mxu0 %v6037
    %v10232 = vpop.f32.mrf.mxu0
    %v10233 = vadd.f32 %v10092, %v10232
    %v10234 = vpop.f32.mrf.mxu0
    %v10235 = vadd.f32 %v10094, %v10234
    %v10236 = vpop.f32.mrf.mxu0
    %v10237 = vpop.f32.mrf.mxu0
    %10238 = vdwg.mxu0
    %10239 = vmatprep.subr.bf16.mxu0 %v8118
    %10240 = vmatpush1.bf16.msra.mxu0 %v8117
    %10241 = vmatprep.subr.bf16.mxu0 %v8114
    %10242 = vmatpush1.bf16.msra.mxu0 %v8113
    %10243 = vmatprep.subr.bf16.mxu0 %v8110
    %10244 = vmatpush1.bf16.msra.mxu0 %v8109
    %10245 = vmatprep.subr.bf16.mxu0 %v8106
    %10246 = vmatpush1.bf16.msra.mxu0 %v8105
    %10247 = vmatprep.subr.bf16.mxu0 %v8102
    %10248 = vmatpush1.bf16.msra.mxu0 %v8101
    %10249 = vmatprep.subr.bf16.mxu0 %v8098
    %10250 = vmatpush1.bf16.msra.mxu0 %v8097
    %10251 = vmatprep.subr.bf16.mxu0 %v8094
    %10252 = vmatpush1.bf16.msra.mxu0 %v8093
    %10253 = vmatprep.subr.bf16.mxu0 %v8090
    %10254 = vmatpush1.bf16.msra.mxu0 %v8089
    %10255 = vmatprep.subr.bf16.mxu0 %v8150
    %10256 = vmatpush2.bf16.msra.mxu0 %v8149
    %10257 = vmatprep.subr.bf16.mxu0 %v8146
    %10258 = vmatpush2.bf16.msra.mxu0 %v8145
    %10259 = vmatprep.subr.bf16.mxu0 %v8142
    %10260 = vmatpush2.bf16.msra.mxu0 %v8141
    %10261 = vmatprep.subr.bf16.mxu0 %v8138
    %10262 = vmatpush2.bf16.msra.mxu0 %v8137
    %10263 = vmatprep.subr.bf16.mxu0 %v8134
    %10264 = vmatpush2.bf16.msra.mxu0 %v8133
    %10265 = vmatprep.subr.bf16.mxu0 %v8130
    %10266 = vmatpush2.bf16.msra.mxu0 %v8129
    %10267 = vmatprep.subr.bf16.mxu0 %v8126
    %10268 = vmatpush2.bf16.msra.mxu0 %v8125
    %10269 = vmatprep.subr.bf16.mxu0 %v8122
    %10270 = vmatpush2.bf16.msra.mxu0 %v8121
    %10271 = vmatprep.mubr.bf16.mxu0 %v5864
    %10272 = vmatmul.mubr.bf16.gmra.mxu0 %v5863
    %v10273 = vpop.f32.mrf.mxu0
    %v10274 = vadd.f32 %v73, %v10273
    %v10275 = vpop.f32.mrf.mxu0
    %v10276 = vadd.f32 %v74, %v10275
    %v10277 = vpop.f32.mrf.mxu0
    %v10278 = vadd.f32 %v77, %v10277
    %v10279 = vpop.f32.mrf.mxu0
    %v10280 = vadd.f32 %v78, %v10279
    %10281 = vmatprep.mubr.bf16.mxu0 %v5880
    %10282 = vmatmul.mubr.bf16.gmra.mxu0 %v5879
    %v10283 = vpop.f32.mrf.mxu0
    %v10284 = vadd.f32 %v81, %v10283
    %v10285 = vpop.f32.mrf.mxu0
    %v10286 = vadd.f32 %v82, %v10285
    %v10287 = vpop.f32.mrf.mxu0
    %v10288 = vadd.f32 %v85, %v10287
    %v10289 = vpop.f32.mrf.mxu0
    %v10290 = vadd.f32 %v86, %v10289
    %10291 = vmatprep.mubr.bf16.mxu0 %v5896
    %10292 = vmatmul.mubr.bf16.gmra.mxu0 %v5895
    %v10293 = vpop.f32.mrf.mxu0
    %v10294 = vadd.f32 %v89, %v10293
    %v10295 = vpop.f32.mrf.mxu0
    %v10296 = vadd.f32 %v90, %v10295
    %v10297 = vpop.f32.mrf.mxu0
    %v10298 = vadd.f32 %v93, %v10297
    %v10299 = vpop.f32.mrf.mxu0
    %v10300 = vadd.f32 %v94, %v10299
    %10301 = vmatprep.mubr.bf16.mxu0 %v5912
    %10302 = vmatmul.mubr.bf16.gmra.mxu0 %v5911
    %v10303 = vpop.f32.mrf.mxu0
    %v10304 = vadd.f32 %v97, %v10303
    %v10305 = vpop.f32.mrf.mxu0
    %v10306 = vadd.f32 %v98, %v10305
    %v10307 = vpop.f32.mrf.mxu0
    %v10308 = vadd.f32 %v101, %v10307
    %v10309 = vpop.f32.mrf.mxu0
    %v10310 = vadd.f32 %v102, %v10309
    %10311 = vmatprep.mubr.bf16.mxu0 %v5928
    %10312 = vmatmul.mubr.bf16.gmra.mxu0 %v5927
    %v10313 = vpop.f32.mrf.mxu0
    %v10314 = vadd.f32 %v105, %v10313
    %v10315 = vpop.f32.mrf.mxu0
    %v10316 = vadd.f32 %v106, %v10315
    %v10317 = vpop.f32.mrf.mxu0
    %v10318 = vadd.f32 %v109, %v10317
    %v10319 = vpop.f32.mrf.mxu0
    %v10320 = vadd.f32 %v110, %v10319
    %10321 = vmatprep.mubr.bf16.mxu0 %v5944
    %10322 = vmatmul.mubr.bf16.gmra.mxu0 %v5943
    %v10323 = vpop.f32.mrf.mxu0
    %v10324 = vadd.f32 %v113, %v10323
    %v10325 = vpop.f32.mrf.mxu0
    %v10326 = vadd.f32 %v114, %v10325
    %v10327 = vpop.f32.mrf.mxu0
    %v10328 = vadd.f32 %v117, %v10327
    %v10329 = vpop.f32.mrf.mxu0
    %v10330 = vadd.f32 %v118, %v10329
    %10331 = vmatprep.mubr.bf16.mxu0 %v5960
    %10332 = vmatmul.mubr.bf16.gmra.mxu0 %v5959
    %v10333 = vpop.f32.mrf.mxu0
    %v10334 = vadd.f32 %v121, %v10333
    %v10335 = vpop.f32.mrf.mxu0
    %v10336 = vadd.f32 %v122, %v10335
    %v10337 = vpop.f32.mrf.mxu0
    %v10338 = vadd.f32 %v125, %v10337
    %v10339 = vpop.f32.mrf.mxu0
    %v10340 = vadd.f32 %v126, %v10339
    %10341 = vmatprep.mubr.bf16.mxu0 %v5976
    %10342 = vmatmul.mubr.bf16.gmra.mxu0 %v5975
    %v10343 = vpop.f32.mrf.mxu0
    %v10344 = vadd.f32 %v129, %v10343
    %v10345 = vpop.f32.mrf.mxu0
    %v10346 = vadd.f32 %v130, %v10345
    %v10347 = vpop.f32.mrf.mxu0
    %v10348 = vadd.f32 %v133, %v10347
    %v10349 = vpop.f32.mrf.mxu0
    %v10350 = vadd.f32 %v134, %v10349
    %10351 = vmatprep.mubr.bf16.mxu0 %v5992
    %10352 = vmatmul.mubr.bf16.gmra.mxu0 %v5991
    %v10353 = vpop.f32.mrf.mxu0
    %v10354 = vadd.f32 %v137, %v10353
    %v10355 = vpop.f32.mrf.mxu0
    %v10356 = vadd.f32 %v138, %v10355
    %v10357 = vpop.f32.mrf.mxu0
    %v10358 = vadd.f32 %v141, %v10357
    %v10359 = vpop.f32.mrf.mxu0
    %v10360 = vadd.f32 %v142, %v10359
    %10361 = vmatprep.mubr.bf16.mxu0 %v6008
    %10362 = vmatmul.mubr.bf16.gmra.mxu0 %v6007
    %v10363 = vpop.f32.mrf.mxu0
    %v10364 = vadd.f32 %v145, %v10363
    %v10365 = vpop.f32.mrf.mxu0
    %v10366 = vadd.f32 %v146, %v10365
    %v10367 = vpop.f32.mrf.mxu0
    %v10368 = vadd.f32 %v149, %v10367
    %v10369 = vpop.f32.mrf.mxu0
    %v10370 = vadd.f32 %v150, %v10369
    %10371 = vmatprep.mubr.bf16.mxu0 %v6024
    %10372 = vmatmul.mubr.bf16.gmra.mxu0 %v6023
    %v10373 = vpop.f32.mrf.mxu0
    %v10374 = vadd.f32 %v153, %v10373
    %v10375 = vpop.f32.mrf.mxu0
    %v10376 = vadd.f32 %v154, %v10375
    %v10377 = vpop.f32.mrf.mxu0
    %v10378 = vpop.f32.mrf.mxu0
    %10379 = vdwg.mxu0
    %10380 = vmatprep.subr.bf16.mxu0 %v8182
    %10381 = vmatpush1.bf16.msra.mxu0 %v8181
    %10382 = vmatprep.subr.bf16.mxu0 %v8178
    %10383 = vmatpush1.bf16.msra.mxu0 %v8177
    %10384 = vmatprep.subr.bf16.mxu0 %v8174
    %10385 = vmatpush1.bf16.msra.mxu0 %v8173
    %10386 = vmatprep.subr.bf16.mxu0 %v8170
    %10387 = vmatpush1.bf16.msra.mxu0 %v8169
    %10388 = vmatprep.subr.bf16.mxu0 %v8166
    %10389 = vmatpush1.bf16.msra.mxu0 %v8165
    %10390 = vmatprep.subr.bf16.mxu0 %v8162
    %10391 = vmatpush1.bf16.msra.mxu0 %v8161
    %10392 = vmatprep.subr.bf16.mxu0 %v8158
    %10393 = vmatpush1.bf16.msra.mxu0 %v8157
    %10394 = vmatprep.subr.bf16.mxu0 %v8154
    %10395 = vmatpush1.bf16.msra.mxu0 %v8153
    %10396 = vmatprep.subr.bf16.mxu0 %v8214
    %10397 = vmatpush2.bf16.msra.mxu0 %v8213
    %10398 = vmatprep.subr.bf16.mxu0 %v8210
    %10399 = vmatpush2.bf16.msra.mxu0 %v8209
    %10400 = vmatprep.subr.bf16.mxu0 %v8206
    %10401 = vmatpush2.bf16.msra.mxu0 %v8205
    %10402 = vmatprep.subr.bf16.mxu0 %v8202
    %10403 = vmatpush2.bf16.msra.mxu0 %v8201
    %10404 = vmatprep.subr.bf16.mxu0 %v8198
    %10405 = vmatpush2.bf16.msra.mxu0 %v8197
    %10406 = vmatprep.subr.bf16.mxu0 %v8194
    %10407 = vmatpush2.bf16.msra.mxu0 %v8193
    %10408 = vmatprep.subr.bf16.mxu0 %v8190
    %10409 = vmatpush2.bf16.msra.mxu0 %v8189
    %10410 = vmatprep.subr.bf16.mxu0 %v8186
    %10411 = vmatpush2.bf16.msra.mxu0 %v8185
    %10412 = vmatprep.mubr.bf16.mxu0 %v5866
    %10413 = vmatmul.mubr.bf16.gmra.mxu0 %v5865
    %v10414 = vpop.f32.mrf.mxu0
    %v10415 = vadd.f32 %v10274, %v10414
    %v10416 = vpop.f32.mrf.mxu0
    %v10417 = vadd.f32 %v10276, %v10416
    %v10418 = vpop.f32.mrf.mxu0
    %v10419 = vadd.f32 %v10278, %v10418
    %v10420 = vpop.f32.mrf.mxu0
    %v10421 = vadd.f32 %v10280, %v10420
    %10422 = vmatprep.mubr.bf16.mxu0 %v5882
    %10423 = vmatmul.mubr.bf16.gmra.mxu0 %v5881
    %v10424 = vpop.f32.mrf.mxu0
    %v10425 = vadd.f32 %v10284, %v10424
    %v10426 = vpop.f32.mrf.mxu0
    %v10427 = vadd.f32 %v10286, %v10426
    %v10428 = vpop.f32.mrf.mxu0
    %v10429 = vadd.f32 %v10288, %v10428
    %v10430 = vpop.f32.mrf.mxu0
    %v10431 = vadd.f32 %v10290, %v10430
    %10432 = vmatprep.mubr.bf16.mxu0 %v5898
    %10433 = vmatmul.mubr.bf16.gmra.mxu0 %v5897
    %v10434 = vpop.f32.mrf.mxu0
    %v10435 = vadd.f32 %v10294, %v10434
    %v10436 = vpop.f32.mrf.mxu0
    %v10437 = vadd.f32 %v10296, %v10436
    %v10438 = vpop.f32.mrf.mxu0
    %v10439 = vadd.f32 %v10298, %v10438
    %v10440 = vpop.f32.mrf.mxu0
    %v10441 = vadd.f32 %v10300, %v10440
    %10442 = vmatprep.mubr.bf16.mxu0 %v5914
    %10443 = vmatmul.mubr.bf16.gmra.mxu0 %v5913
    %v10444 = vpop.f32.mrf.mxu0
    %v10445 = vadd.f32 %v10304, %v10444
    %v10446 = vpop.f32.mrf.mxu0
    %v10447 = vadd.f32 %v10306, %v10446
    %v10448 = vpop.f32.mrf.mxu0
    %v10449 = vadd.f32 %v10308, %v10448
    %v10450 = vpop.f32.mrf.mxu0
    %v10451 = vadd.f32 %v10310, %v10450
    %10452 = vmatprep.mubr.bf16.mxu0 %v5930
    %10453 = vmatmul.mubr.bf16.gmra.mxu0 %v5929
    %v10454 = vpop.f32.mrf.mxu0
    %v10455 = vadd.f32 %v10314, %v10454
    %v10456 = vpop.f32.mrf.mxu0
    %v10457 = vadd.f32 %v10316, %v10456
    %v10458 = vpop.f32.mrf.mxu0
    %v10459 = vadd.f32 %v10318, %v10458
    %v10460 = vpop.f32.mrf.mxu0
    %v10461 = vadd.f32 %v10320, %v10460
    %10462 = vmatprep.mubr.bf16.mxu0 %v5946
    %10463 = vmatmul.mubr.bf16.gmra.mxu0 %v5945
    %v10464 = vpop.f32.mrf.mxu0
    %v10465 = vadd.f32 %v10324, %v10464
    %v10466 = vpop.f32.mrf.mxu0
    %v10467 = vadd.f32 %v10326, %v10466
    %v10468 = vpop.f32.mrf.mxu0
    %v10469 = vadd.f32 %v10328, %v10468
    %v10470 = vpop.f32.mrf.mxu0
    %v10471 = vadd.f32 %v10330, %v10470
    %10472 = vmatprep.mubr.bf16.mxu0 %v5962
    %10473 = vmatmul.mubr.bf16.gmra.mxu0 %v5961
    %v10474 = vpop.f32.mrf.mxu0
    %v10475 = vadd.f32 %v10334, %v10474
    %v10476 = vpop.f32.mrf.mxu0
    %v10477 = vadd.f32 %v10336, %v10476
    %v10478 = vpop.f32.mrf.mxu0
    %v10479 = vadd.f32 %v10338, %v10478
    %v10480 = vpop.f32.mrf.mxu0
    %v10481 = vadd.f32 %v10340, %v10480
    %10482 = vmatprep.mubr.bf16.mxu0 %v5978
    %10483 = vmatmul.mubr.bf16.gmra.mxu0 %v5977
    %v10484 = vpop.f32.mrf.mxu0
    %v10485 = vadd.f32 %v10344, %v10484
    %v10486 = vpop.f32.mrf.mxu0
    %v10487 = vadd.f32 %v10346, %v10486
    %v10488 = vpop.f32.mrf.mxu0
    %v10489 = vadd.f32 %v10348, %v10488
    %v10490 = vpop.f32.mrf.mxu0
    %v10491 = vadd.f32 %v10350, %v10490
    %10492 = vmatprep.mubr.bf16.mxu0 %v5994
    %10493 = vmatmul.mubr.bf16.gmra.mxu0 %v5993
    %v10494 = vpop.f32.mrf.mxu0
    %v10495 = vadd.f32 %v10354, %v10494
    %v10496 = vpop.f32.mrf.mxu0
    %v10497 = vadd.f32 %v10356, %v10496
    %v10498 = vpop.f32.mrf.mxu0
    %v10499 = vadd.f32 %v10358, %v10498
    %v10500 = vpop.f32.mrf.mxu0
    %v10501 = vadd.f32 %v10360, %v10500
    %10502 = vmatprep.mubr.bf16.mxu0 %v6010
    %10503 = vmatmul.mubr.bf16.gmra.mxu0 %v6009
    %v10504 = vpop.f32.mrf.mxu0
    %v10505 = vadd.f32 %v10364, %v10504
    %v10506 = vpop.f32.mrf.mxu0
    %v10507 = vadd.f32 %v10366, %v10506
    %v10508 = vpop.f32.mrf.mxu0
    %v10509 = vadd.f32 %v10368, %v10508
    %v10510 = vpop.f32.mrf.mxu0
    %v10511 = vadd.f32 %v10370, %v10510
    %10512 = vmatprep.mubr.bf16.mxu0 %v6026
    %10513 = vmatmul.mubr.bf16.gmra.mxu0 %v6025
    %v10514 = vpop.f32.mrf.mxu0
    %v10515 = vadd.f32 %v10374, %v10514
    %v10516 = vpop.f32.mrf.mxu0
    %v10517 = vadd.f32 %v10376, %v10516
    %v10518 = vpop.f32.mrf.mxu0
    %v10519 = vpop.f32.mrf.mxu0
    %10520 = vdwg.mxu0
    %10521 = vmatprep.subr.bf16.mxu0 %v8246
    %10522 = vmatpush1.bf16.msra.mxu0 %v8245
    %10523 = vmatprep.subr.bf16.mxu0 %v8242
    %10524 = vmatpush1.bf16.msra.mxu0 %v8241
    %10525 = vmatprep.subr.bf16.mxu0 %v8238
    %10526 = vmatpush1.bf16.msra.mxu0 %v8237
    %10527 = vmatprep.subr.bf16.mxu0 %v8234
    %10528 = vmatpush1.bf16.msra.mxu0 %v8233
    %10529 = vmatprep.subr.bf16.mxu0 %v8230
    %10530 = vmatpush1.bf16.msra.mxu0 %v8229
    %10531 = vmatprep.subr.bf16.mxu0 %v8226
    %10532 = vmatpush1.bf16.msra.mxu0 %v8225
    %10533 = vmatprep.subr.bf16.mxu0 %v8222
    %10534 = vmatpush1.bf16.msra.mxu0 %v8221
    %10535 = vmatprep.subr.bf16.mxu0 %v8218
    %10536 = vmatpush1.bf16.msra.mxu0 %v8217
    %10537 = vmatprep.subr.bf16.mxu0 %v8278
    %10538 = vmatpush2.bf16.msra.mxu0 %v8277
    %10539 = vmatprep.subr.bf16.mxu0 %v8274
    %10540 = vmatpush2.bf16.msra.mxu0 %v8273
    %10541 = vmatprep.subr.bf16.mxu0 %v8270
    %10542 = vmatpush2.bf16.msra.mxu0 %v8269
    %10543 = vmatprep.subr.bf16.mxu0 %v8266
    %10544 = vmatpush2.bf16.msra.mxu0 %v8265
    %10545 = vmatprep.subr.bf16.mxu0 %v8262
    %10546 = vmatpush2.bf16.msra.mxu0 %v8261
    %10547 = vmatprep.subr.bf16.mxu0 %v8258
    %10548 = vmatpush2.bf16.msra.mxu0 %v8257
    %10549 = vmatprep.subr.bf16.mxu0 %v8254
    %10550 = vmatpush2.bf16.msra.mxu0 %v8253
    %10551 = vmatprep.subr.bf16.mxu0 %v8250
    %10552 = vmatpush2.bf16.msra.mxu0 %v8249
    %10553 = vmatprep.mubr.bf16.mxu0 %v5868
    %10554 = vmatmul.mubr.bf16.gmra.mxu0 %v5867
    %v10555 = vpop.f32.mrf.mxu0
    %v10556 = vadd.f32 %v10415, %v10555
    %v10557 = vpop.f32.mrf.mxu0
    %v10558 = vadd.f32 %v10417, %v10557
    %v10559 = vpop.f32.mrf.mxu0
    %v10560 = vadd.f32 %v10419, %v10559
    %v10561 = vpop.f32.mrf.mxu0
    %v10562 = vadd.f32 %v10421, %v10561
    %10563 = vmatprep.mubr.bf16.mxu0 %v5884
    %10564 = vmatmul.mubr.bf16.gmra.mxu0 %v5883
    %v10565 = vpop.f32.mrf.mxu0
    %v10566 = vadd.f32 %v10425, %v10565
    %v10567 = vpop.f32.mrf.mxu0
    %v10568 = vadd.f32 %v10427, %v10567
    %v10569 = vpop.f32.mrf.mxu0
    %v10570 = vadd.f32 %v10429, %v10569
    %v10571 = vpop.f32.mrf.mxu0
    %v10572 = vadd.f32 %v10431, %v10571
    %10573 = vmatprep.mubr.bf16.mxu0 %v5900
    %10574 = vmatmul.mubr.bf16.gmra.mxu0 %v5899
    %v10575 = vpop.f32.mrf.mxu0
    %v10576 = vadd.f32 %v10435, %v10575
    %v10577 = vpop.f32.mrf.mxu0
    %v10578 = vadd.f32 %v10437, %v10577
    %v10579 = vpop.f32.mrf.mxu0
    %v10580 = vadd.f32 %v10439, %v10579
    %v10581 = vpop.f32.mrf.mxu0
    %v10582 = vadd.f32 %v10441, %v10581
    %10583 = vmatprep.mubr.bf16.mxu0 %v5916
    %10584 = vmatmul.mubr.bf16.gmra.mxu0 %v5915
    %v10585 = vpop.f32.mrf.mxu0
    %v10586 = vadd.f32 %v10445, %v10585
    %v10587 = vpop.f32.mrf.mxu0
    %v10588 = vadd.f32 %v10447, %v10587
    %v10589 = vpop.f32.mrf.mxu0
    %v10590 = vadd.f32 %v10449, %v10589
    %v10591 = vpop.f32.mrf.mxu0
    %v10592 = vadd.f32 %v10451, %v10591
    %10593 = vmatprep.mubr.bf16.mxu0 %v5932
    %10594 = vmatmul.mubr.bf16.gmra.mxu0 %v5931
    %v10595 = vpop.f32.mrf.mxu0
    %v10596 = vadd.f32 %v10455, %v10595
    %v10597 = vpop.f32.mrf.mxu0
    %v10598 = vadd.f32 %v10457, %v10597
    %v10599 = vpop.f32.mrf.mxu0
    %v10600 = vadd.f32 %v10459, %v10599
    %v10601 = vpop.f32.mrf.mxu0
    %v10602 = vadd.f32 %v10461, %v10601
    %10603 = vmatprep.mubr.bf16.mxu0 %v5948
    %10604 = vmatmul.mubr.bf16.gmra.mxu0 %v5947
    %v10605 = vpop.f32.mrf.mxu0
    %v10606 = vadd.f32 %v10465, %v10605
    %v10607 = vpop.f32.mrf.mxu0
    %v10608 = vadd.f32 %v10467, %v10607
    %v10609 = vpop.f32.mrf.mxu0
    %v10610 = vadd.f32 %v10469, %v10609
    %v10611 = vpop.f32.mrf.mxu0
    %v10612 = vadd.f32 %v10471, %v10611
    %10613 = vmatprep.mubr.bf16.mxu0 %v5964
    %10614 = vmatmul.mubr.bf16.gmra.mxu0 %v5963
    %v10615 = vpop.f32.mrf.mxu0
    %v10616 = vadd.f32 %v10475, %v10615
    %v10617 = vpop.f32.mrf.mxu0
    %v10618 = vadd.f32 %v10477, %v10617
    %v10619 = vpop.f32.mrf.mxu0
    %v10620 = vadd.f32 %v10479, %v10619
    %v10621 = vpop.f32.mrf.mxu0
    %v10622 = vadd.f32 %v10481, %v10621
    %10623 = vmatprep.mubr.bf16.mxu0 %v5980
    %10624 = vmatmul.mubr.bf16.gmra.mxu0 %v5979
    %v10625 = vpop.f32.mrf.mxu0
    %v10626 = vadd.f32 %v10485, %v10625
    %v10627 = vpop.f32.mrf.mxu0
    %v10628 = vadd.f32 %v10487, %v10627
    %v10629 = vpop.f32.mrf.mxu0
    %v10630 = vadd.f32 %v10489, %v10629
    %v10631 = vpop.f32.mrf.mxu0
    %v10632 = vadd.f32 %v10491, %v10631
    %10633 = vmatprep.mubr.bf16.mxu0 %v5996
    %10634 = vmatmul.mubr.bf16.gmra.mxu0 %v5995
    %v10635 = vpop.f32.mrf.mxu0
    %v10636 = vadd.f32 %v10495, %v10635
    %v10637 = vpop.f32.mrf.mxu0
    %v10638 = vadd.f32 %v10497, %v10637
    %v10639 = vpop.f32.mrf.mxu0
    %v10640 = vadd.f32 %v10499, %v10639
    %v10641 = vpop.f32.mrf.mxu0
    %v10642 = vadd.f32 %v10501, %v10641
    %10643 = vmatprep.mubr.bf16.mxu0 %v6012
    %10644 = vmatmul.mubr.bf16.gmra.mxu0 %v6011
    %v10645 = vpop.f32.mrf.mxu0
    %v10646 = vadd.f32 %v10505, %v10645
    %v10647 = vpop.f32.mrf.mxu0
    %v10648 = vadd.f32 %v10507, %v10647
    %v10649 = vpop.f32.mrf.mxu0
    %v10650 = vadd.f32 %v10509, %v10649
    %v10651 = vpop.f32.mrf.mxu0
    %v10652 = vadd.f32 %v10511, %v10651
    %10653 = vmatprep.mubr.bf16.mxu0 %v6028
    %10654 = vmatmul.mubr.bf16.gmra.mxu0 %v6027
    %v10655 = vpop.f32.mrf.mxu0
    %v10656 = vadd.f32 %v10515, %v10655
    %v10657 = vpop.f32.mrf.mxu0
    %v10658 = vadd.f32 %v10517, %v10657
    %v10659 = vpop.f32.mrf.mxu0
    %v10660 = vpop.f32.mrf.mxu0
    %10661 = vdwg.mxu0
    %10662 = vmatprep.subr.bf16.mxu0 %v8310
    %10663 = vmatpush1.bf16.msra.mxu0 %v8309
    %10664 = vmatprep.subr.bf16.mxu0 %v8306
    %10665 = vmatpush1.bf16.msra.mxu0 %v8305
    %10666 = vmatprep.subr.bf16.mxu0 %v8302
    %10667 = vmatpush1.bf16.msra.mxu0 %v8301
    %10668 = vmatprep.subr.bf16.mxu0 %v8298
    %10669 = vmatpush1.bf16.msra.mxu0 %v8297
    %10670 = vmatprep.subr.bf16.mxu0 %v8294
    %10671 = vmatpush1.bf16.msra.mxu0 %v8293
    %10672 = vmatprep.subr.bf16.mxu0 %v8290
    %10673 = vmatpush1.bf16.msra.mxu0 %v8289
    %10674 = vmatprep.subr.bf16.mxu0 %v8286
    %10675 = vmatpush1.bf16.msra.mxu0 %v8285
    %10676 = vmatprep.subr.bf16.mxu0 %v8282
    %10677 = vmatpush1.bf16.msra.mxu0 %v8281
    %10678 = vmatprep.subr.bf16.mxu0 %v8342
    %10679 = vmatpush2.bf16.msra.mxu0 %v8341
    %10680 = vmatprep.subr.bf16.mxu0 %v8338
    %10681 = vmatpush2.bf16.msra.mxu0 %v8337
    %10682 = vmatprep.subr.bf16.mxu0 %v8334
    %10683 = vmatpush2.bf16.msra.mxu0 %v8333
    %10684 = vmatprep.subr.bf16.mxu0 %v8330
    %10685 = vmatpush2.bf16.msra.mxu0 %v8329
    %10686 = vmatprep.subr.bf16.mxu0 %v8326
    %10687 = vmatpush2.bf16.msra.mxu0 %v8325
    %10688 = vmatprep.subr.bf16.mxu0 %v8322
    %10689 = vmatpush2.bf16.msra.mxu0 %v8321
    %10690 = vmatprep.subr.bf16.mxu0 %v8318
    %10691 = vmatpush2.bf16.msra.mxu0 %v8317
    %10692 = vmatprep.subr.bf16.mxu0 %v8314
    %10693 = vmatpush2.bf16.msra.mxu0 %v8313
    %10694 = vmatprep.mubr.bf16.mxu0 %v5870
    %10695 = vmatmul.mubr.bf16.gmra.mxu0 %v5869
    %v10696 = vpop.f32.mrf.mxu0
    %v10697 = vadd.f32 %v10556, %v10696
    %v10698 = vpop.f32.mrf.mxu0
    %v10699 = vadd.f32 %v10558, %v10698
    %v10700 = vpop.f32.mrf.mxu0
    %v10701 = vadd.f32 %v10560, %v10700
    %v10702 = vpop.f32.mrf.mxu0
    %v10703 = vadd.f32 %v10562, %v10702
    %10704 = vmatprep.mubr.bf16.mxu0 %v5886
    %10705 = vmatmul.mubr.bf16.gmra.mxu0 %v5885
    %v10706 = vpop.f32.mrf.mxu0
    %v10707 = vadd.f32 %v10566, %v10706
    %v10708 = vpop.f32.mrf.mxu0
    %v10709 = vadd.f32 %v10568, %v10708
    %v10710 = vpop.f32.mrf.mxu0
    %v10711 = vadd.f32 %v10570, %v10710
    %v10712 = vpop.f32.mrf.mxu0
    %v10713 = vadd.f32 %v10572, %v10712
    %10714 = vmatprep.mubr.bf16.mxu0 %v5902
    %10715 = vmatmul.mubr.bf16.gmra.mxu0 %v5901
    %v10716 = vpop.f32.mrf.mxu0
    %v10717 = vadd.f32 %v10576, %v10716
    %v10718 = vpop.f32.mrf.mxu0
    %v10719 = vadd.f32 %v10578, %v10718
    %v10720 = vpop.f32.mrf.mxu0
    %v10721 = vadd.f32 %v10580, %v10720
    %v10722 = vpop.f32.mrf.mxu0
    %v10723 = vadd.f32 %v10582, %v10722
    %10724 = vmatprep.mubr.bf16.mxu0 %v5918
    %10725 = vmatmul.mubr.bf16.gmra.mxu0 %v5917
    %v10726 = vpop.f32.mrf.mxu0
    %v10727 = vadd.f32 %v10586, %v10726
    %v10728 = vpop.f32.mrf.mxu0
    %v10729 = vadd.f32 %v10588, %v10728
    %v10730 = vpop.f32.mrf.mxu0
    %v10731 = vadd.f32 %v10590, %v10730
    %v10732 = vpop.f32.mrf.mxu0
    %v10733 = vadd.f32 %v10592, %v10732
    %10734 = vmatprep.mubr.bf16.mxu0 %v5934
    %10735 = vmatmul.mubr.bf16.gmra.mxu0 %v5933
    %v10736 = vpop.f32.mrf.mxu0
    %v10737 = vadd.f32 %v10596, %v10736
    %v10738 = vpop.f32.mrf.mxu0
    %v10739 = vadd.f32 %v10598, %v10738
    %v10740 = vpop.f32.mrf.mxu0
    %v10741 = vadd.f32 %v10600, %v10740
    %v10742 = vpop.f32.mrf.mxu0
    %v10743 = vadd.f32 %v10602, %v10742
    %10744 = vmatprep.mubr.bf16.mxu0 %v5950
    %10745 = vmatmul.mubr.bf16.gmra.mxu0 %v5949
    %v10746 = vpop.f32.mrf.mxu0
    %v10747 = vadd.f32 %v10606, %v10746
    %v10748 = vpop.f32.mrf.mxu0
    %v10749 = vadd.f32 %v10608, %v10748
    %v10750 = vpop.f32.mrf.mxu0
    %v10751 = vadd.f32 %v10610, %v10750
    %v10752 = vpop.f32.mrf.mxu0
    %v10753 = vadd.f32 %v10612, %v10752
    %10754 = vmatprep.mubr.bf16.mxu0 %v5966
    %10755 = vmatmul.mubr.bf16.gmra.mxu0 %v5965
    %v10756 = vpop.f32.mrf.mxu0
    %v10757 = vadd.f32 %v10616, %v10756
    %v10758 = vpop.f32.mrf.mxu0
    %v10759 = vadd.f32 %v10618, %v10758
    %v10760 = vpop.f32.mrf.mxu0
    %v10761 = vadd.f32 %v10620, %v10760
    %v10762 = vpop.f32.mrf.mxu0
    %v10763 = vadd.f32 %v10622, %v10762
    %10764 = vmatprep.mubr.bf16.mxu0 %v5982
    %10765 = vmatmul.mubr.bf16.gmra.mxu0 %v5981
    %v10766 = vpop.f32.mrf.mxu0
    %v10767 = vadd.f32 %v10626, %v10766
    %v10768 = vpop.f32.mrf.mxu0
    %v10769 = vadd.f32 %v10628, %v10768
    %v10770 = vpop.f32.mrf.mxu0
    %v10771 = vadd.f32 %v10630, %v10770
    %v10772 = vpop.f32.mrf.mxu0
    %v10773 = vadd.f32 %v10632, %v10772
    %10774 = vmatprep.mubr.bf16.mxu0 %v5998
    %10775 = vmatmul.mubr.bf16.gmra.mxu0 %v5997
    %v10776 = vpop.f32.mrf.mxu0
    %v10777 = vadd.f32 %v10636, %v10776
    %v10778 = vpop.f32.mrf.mxu0
    %v10779 = vadd.f32 %v10638, %v10778
    %v10780 = vpop.f32.mrf.mxu0
    %v10781 = vadd.f32 %v10640, %v10780
    %v10782 = vpop.f32.mrf.mxu0
    %v10783 = vadd.f32 %v10642, %v10782
    %10784 = vmatprep.mubr.bf16.mxu0 %v6014
    %10785 = vmatmul.mubr.bf16.gmra.mxu0 %v6013
    %v10786 = vpop.f32.mrf.mxu0
    %v10787 = vadd.f32 %v10646, %v10786
    %v10788 = vpop.f32.mrf.mxu0
    %v10789 = vadd.f32 %v10648, %v10788
    %v10790 = vpop.f32.mrf.mxu0
    %v10791 = vadd.f32 %v10650, %v10790
    %v10792 = vpop.f32.mrf.mxu0
    %v10793 = vadd.f32 %v10652, %v10792
    %10794 = vmatprep.mubr.bf16.mxu0 %v6030
    %10795 = vmatmul.mubr.bf16.gmra.mxu0 %v6029
    %v10796 = vpop.f32.mrf.mxu0
    %v10797 = vadd.f32 %v10656, %v10796
    %v10798 = vpop.f32.mrf.mxu0
    %v10799 = vadd.f32 %v10658, %v10798
    %v10800 = vpop.f32.mrf.mxu0
    %v10801 = vpop.f32.mrf.mxu0
    %10802 = vdwg.mxu0
    %10803 = vmatprep.subr.bf16.mxu0 %v8374
    %10804 = vmatpush1.bf16.msra.mxu0 %v8373
    %10805 = vmatprep.subr.bf16.mxu0 %v8370
    %10806 = vmatpush1.bf16.msra.mxu0 %v8369
    %10807 = vmatprep.subr.bf16.mxu0 %v8366
    %10808 = vmatpush1.bf16.msra.mxu0 %v8365
    %10809 = vmatprep.subr.bf16.mxu0 %v8362
    %10810 = vmatpush1.bf16.msra.mxu0 %v8361
    %10811 = vmatprep.subr.bf16.mxu0 %v8358
    %10812 = vmatpush1.bf16.msra.mxu0 %v8357
    %10813 = vmatprep.subr.bf16.mxu0 %v8354
    %10814 = vmatpush1.bf16.msra.mxu0 %v8353
    %10815 = vmatprep.subr.bf16.mxu0 %v8350
    %10816 = vmatpush1.bf16.msra.mxu0 %v8349
    %10817 = vmatprep.subr.bf16.mxu0 %v8346
    %10818 = vmatpush1.bf16.msra.mxu0 %v8345
    %10819 = vmatprep.subr.bf16.mxu0 %v8406
    %10820 = vmatpush2.bf16.msra.mxu0 %v8405
    %10821 = vmatprep.subr.bf16.mxu0 %v8402
    %10822 = vmatpush2.bf16.msra.mxu0 %v8401
    %10823 = vmatprep.subr.bf16.mxu0 %v8398
    %10824 = vmatpush2.bf16.msra.mxu0 %v8397
    %10825 = vmatprep.subr.bf16.mxu0 %v8394
    %10826 = vmatpush2.bf16.msra.mxu0 %v8393
    %10827 = vmatprep.subr.bf16.mxu0 %v8390
    %10828 = vmatpush2.bf16.msra.mxu0 %v8389
    %10829 = vmatprep.subr.bf16.mxu0 %v8386
    %10830 = vmatpush2.bf16.msra.mxu0 %v8385
    %10831 = vmatprep.subr.bf16.mxu0 %v8382
    %10832 = vmatpush2.bf16.msra.mxu0 %v8381
    %10833 = vmatprep.subr.bf16.mxu0 %v8378
    %10834 = vmatpush2.bf16.msra.mxu0 %v8377
    %10835 = vmatprep.mubr.bf16.mxu0 %v5872
    %10836 = vmatmul.mubr.bf16.gmra.mxu0 %v5871
    %v10837 = vpop.f32.mrf.mxu0
    %v10838 = vadd.f32 %v10697, %v10837
    %v10839 = vpop.f32.mrf.mxu0
    %v10840 = vadd.f32 %v10699, %v10839
    %v10841 = vpop.f32.mrf.mxu0
    %v10842 = vadd.f32 %v10701, %v10841
    %v10843 = vpop.f32.mrf.mxu0
    %v10844 = vadd.f32 %v10703, %v10843
    %10845 = vmatprep.mubr.bf16.mxu0 %v5888
    %10846 = vmatmul.mubr.bf16.gmra.mxu0 %v5887
    %v10847 = vpop.f32.mrf.mxu0
    %v10848 = vadd.f32 %v10707, %v10847
    %v10849 = vpop.f32.mrf.mxu0
    %v10850 = vadd.f32 %v10709, %v10849
    %v10851 = vpop.f32.mrf.mxu0
    %v10852 = vadd.f32 %v10711, %v10851
    %v10853 = vpop.f32.mrf.mxu0
    %v10854 = vadd.f32 %v10713, %v10853
    %10855 = vmatprep.mubr.bf16.mxu0 %v5904
    %10856 = vmatmul.mubr.bf16.gmra.mxu0 %v5903
    %v10857 = vpop.f32.mrf.mxu0
    %v10858 = vadd.f32 %v10717, %v10857
    %v10859 = vpop.f32.mrf.mxu0
    %v10860 = vadd.f32 %v10719, %v10859
    %v10861 = vpop.f32.mrf.mxu0
    %v10862 = vadd.f32 %v10721, %v10861
    %v10863 = vpop.f32.mrf.mxu0
    %v10864 = vadd.f32 %v10723, %v10863
    %10865 = vmatprep.mubr.bf16.mxu0 %v5920
    %10866 = vmatmul.mubr.bf16.gmra.mxu0 %v5919
    %v10867 = vpop.f32.mrf.mxu0
    %v10868 = vadd.f32 %v10727, %v10867
    %v10869 = vpop.f32.mrf.mxu0
    %v10870 = vadd.f32 %v10729, %v10869
    %v10871 = vpop.f32.mrf.mxu0
    %v10872 = vadd.f32 %v10731, %v10871
    %v10873 = vpop.f32.mrf.mxu0
    %v10874 = vadd.f32 %v10733, %v10873
    %10875 = vmatprep.mubr.bf16.mxu0 %v5936
    %10876 = vmatmul.mubr.bf16.gmra.mxu0 %v5935
    %v10877 = vpop.f32.mrf.mxu0
    %v10878 = vadd.f32 %v10737, %v10877
    %v10879 = vpop.f32.mrf.mxu0
    %v10880 = vadd.f32 %v10739, %v10879
    %v10881 = vpop.f32.mrf.mxu0
    %v10882 = vadd.f32 %v10741, %v10881
    %v10883 = vpop.f32.mrf.mxu0
    %v10884 = vadd.f32 %v10743, %v10883
    %10885 = vmatprep.mubr.bf16.mxu0 %v5952
    %10886 = vmatmul.mubr.bf16.gmra.mxu0 %v5951
    %v10887 = vpop.f32.mrf.mxu0
    %v10888 = vadd.f32 %v10747, %v10887
    %v10889 = vpop.f32.mrf.mxu0
    %v10890 = vadd.f32 %v10749, %v10889
    %v10891 = vpop.f32.mrf.mxu0
    %v10892 = vadd.f32 %v10751, %v10891
    %v10893 = vpop.f32.mrf.mxu0
    %v10894 = vadd.f32 %v10753, %v10893
    %10895 = vmatprep.mubr.bf16.mxu0 %v5968
    %10896 = vmatmul.mubr.bf16.gmra.mxu0 %v5967
    %v10897 = vpop.f32.mrf.mxu0
    %v10898 = vadd.f32 %v10757, %v10897
    %v10899 = vpop.f32.mrf.mxu0
    %v10900 = vadd.f32 %v10759, %v10899
    %v10901 = vpop.f32.mrf.mxu0
    %v10902 = vadd.f32 %v10761, %v10901
    %v10903 = vpop.f32.mrf.mxu0
    %v10904 = vadd.f32 %v10763, %v10903
    %10905 = vmatprep.mubr.bf16.mxu0 %v5984
    %10906 = vmatmul.mubr.bf16.gmra.mxu0 %v5983
    %v10907 = vpop.f32.mrf.mxu0
    %v10908 = vadd.f32 %v10767, %v10907
    %v10909 = vpop.f32.mrf.mxu0
    %v10910 = vadd.f32 %v10769, %v10909
    %v10911 = vpop.f32.mrf.mxu0
    %v10912 = vadd.f32 %v10771, %v10911
    %v10913 = vpop.f32.mrf.mxu0
    %v10914 = vadd.f32 %v10773, %v10913
    %10915 = vmatprep.mubr.bf16.mxu0 %v6000
    %10916 = vmatmul.mubr.bf16.gmra.mxu0 %v5999
    %v10917 = vpop.f32.mrf.mxu0
    %v10918 = vadd.f32 %v10777, %v10917
    %v10919 = vpop.f32.mrf.mxu0
    %v10920 = vadd.f32 %v10779, %v10919
    %v10921 = vpop.f32.mrf.mxu0
    %v10922 = vadd.f32 %v10781, %v10921
    %v10923 = vpop.f32.mrf.mxu0
    %v10924 = vadd.f32 %v10783, %v10923
    %10925 = vmatprep.mubr.bf16.mxu0 %v6016
    %10926 = vmatmul.mubr.bf16.gmra.mxu0 %v6015
    %v10927 = vpop.f32.mrf.mxu0
    %v10928 = vadd.f32 %v10787, %v10927
    %v10929 = vpop.f32.mrf.mxu0
    %v10930 = vadd.f32 %v10789, %v10929
    %v10931 = vpop.f32.mrf.mxu0
    %v10932 = vadd.f32 %v10791, %v10931
    %v10933 = vpop.f32.mrf.mxu0
    %v10934 = vadd.f32 %v10793, %v10933
    %10935 = vmatprep.mubr.bf16.mxu0 %v6032
    %10936 = vmatmul.mubr.bf16.gmra.mxu0 %v6031
    %v10937 = vpop.f32.mrf.mxu0
    %v10938 = vadd.f32 %v10797, %v10937
    %v10939 = vpop.f32.mrf.mxu0
    %v10940 = vadd.f32 %v10799, %v10939
    %v10941 = vpop.f32.mrf.mxu0
    %v10942 = vpop.f32.mrf.mxu0
    %10943 = vdwg.mxu0
    %10944 = vmatprep.subr.bf16.mxu0 %v8438
    %10945 = vmatpush1.bf16.msra.mxu0 %v8437
    %10946 = vmatprep.subr.bf16.mxu0 %v8434
    %10947 = vmatpush1.bf16.msra.mxu0 %v8433
    %10948 = vmatprep.subr.bf16.mxu0 %v8430
    %10949 = vmatpush1.bf16.msra.mxu0 %v8429
    %10950 = vmatprep.subr.bf16.mxu0 %v8426
    %10951 = vmatpush1.bf16.msra.mxu0 %v8425
    %10952 = vmatprep.subr.bf16.mxu0 %v8422
    %10953 = vmatpush1.bf16.msra.mxu0 %v8421
    %10954 = vmatprep.subr.bf16.mxu0 %v8418
    %10955 = vmatpush1.bf16.msra.mxu0 %v8417
    %10956 = vmatprep.subr.bf16.mxu0 %v8414
    %10957 = vmatpush1.bf16.msra.mxu0 %v8413
    %10958 = vmatprep.subr.bf16.mxu0 %v8410
    %10959 = vmatpush1.bf16.msra.mxu0 %v8409
    %10960 = vmatprep.subr.bf16.mxu0 %v8470
    %10961 = vmatpush2.bf16.msra.mxu0 %v8469
    %10962 = vmatprep.subr.bf16.mxu0 %v8466
    %10963 = vmatpush2.bf16.msra.mxu0 %v8465
    %10964 = vmatprep.subr.bf16.mxu0 %v8462
    %10965 = vmatpush2.bf16.msra.mxu0 %v8461
    %10966 = vmatprep.subr.bf16.mxu0 %v8458
    %10967 = vmatpush2.bf16.msra.mxu0 %v8457
    %10968 = vmatprep.subr.bf16.mxu0 %v8454
    %10969 = vmatpush2.bf16.msra.mxu0 %v8453
    %10970 = vmatprep.subr.bf16.mxu0 %v8450
    %10971 = vmatpush2.bf16.msra.mxu0 %v8449
    %10972 = vmatprep.subr.bf16.mxu0 %v8446
    %10973 = vmatpush2.bf16.msra.mxu0 %v8445
    %10974 = vmatprep.subr.bf16.mxu0 %v8442
    %10975 = vmatpush2.bf16.msra.mxu0 %v8441
    %10976 = vmatprep.mubr.bf16.mxu0 %v5874
    %10977 = vmatmul.mubr.bf16.gmra.mxu0 %v5873
    %v10978 = vpop.f32.mrf.mxu0
    %v10979 = vadd.f32 %v10838, %v10978
    %v10980 = vpop.f32.mrf.mxu0
    %v10981 = vadd.f32 %v10840, %v10980
    %v10982 = vpop.f32.mrf.mxu0
    %v10983 = vadd.f32 %v10842, %v10982
    %v10984 = vpop.f32.mrf.mxu0
    %v10985 = vadd.f32 %v10844, %v10984
    %10986 = vmatprep.mubr.bf16.mxu0 %v5890
    %10987 = vmatmul.mubr.bf16.gmra.mxu0 %v5889
    %v10988 = vpop.f32.mrf.mxu0
    %v10989 = vadd.f32 %v10848, %v10988
    %v10990 = vpop.f32.mrf.mxu0
    %v10991 = vadd.f32 %v10850, %v10990
    %v10992 = vpop.f32.mrf.mxu0
    %v10993 = vadd.f32 %v10852, %v10992
    %v10994 = vpop.f32.mrf.mxu0
    %v10995 = vadd.f32 %v10854, %v10994
    %10996 = vmatprep.mubr.bf16.mxu0 %v5906
    %10997 = vmatmul.mubr.bf16.gmra.mxu0 %v5905
    %v10998 = vpop.f32.mrf.mxu0
    %v10999 = vadd.f32 %v10858, %v10998
    %v11000 = vpop.f32.mrf.mxu0
    %v11001 = vadd.f32 %v10860, %v11000
    %v11002 = vpop.f32.mrf.mxu0
    %v11003 = vadd.f32 %v10862, %v11002
    %v11004 = vpop.f32.mrf.mxu0
    %v11005 = vadd.f32 %v10864, %v11004
    %11006 = vmatprep.mubr.bf16.mxu0 %v5922
    %11007 = vmatmul.mubr.bf16.gmra.mxu0 %v5921
    %v11008 = vpop.f32.mrf.mxu0
    %v11009 = vadd.f32 %v10868, %v11008
    %v11010 = vpop.f32.mrf.mxu0
    %v11011 = vadd.f32 %v10870, %v11010
    %v11012 = vpop.f32.mrf.mxu0
    %v11013 = vadd.f32 %v10872, %v11012
    %v11014 = vpop.f32.mrf.mxu0
    %v11015 = vadd.f32 %v10874, %v11014
    %11016 = vmatprep.mubr.bf16.mxu0 %v5938
    %11017 = vmatmul.mubr.bf16.gmra.mxu0 %v5937
    %v11018 = vpop.f32.mrf.mxu0
    %v11019 = vadd.f32 %v10878, %v11018
    %v11020 = vpop.f32.mrf.mxu0
    %v11021 = vadd.f32 %v10880, %v11020
    %v11022 = vpop.f32.mrf.mxu0
    %v11023 = vadd.f32 %v10882, %v11022
    %v11024 = vpop.f32.mrf.mxu0
    %v11025 = vadd.f32 %v10884, %v11024
    %11026 = vmatprep.mubr.bf16.mxu0 %v5954
    %11027 = vmatmul.mubr.bf16.gmra.mxu0 %v5953
    %v11028 = vpop.f32.mrf.mxu0
    %v11029 = vadd.f32 %v10888, %v11028
    %v11030 = vpop.f32.mrf.mxu0
    %v11031 = vadd.f32 %v10890, %v11030
    %v11032 = vpop.f32.mrf.mxu0
    %v11033 = vadd.f32 %v10892, %v11032
    %v11034 = vpop.f32.mrf.mxu0
    %v11035 = vadd.f32 %v10894, %v11034
    %11036 = vmatprep.mubr.bf16.mxu0 %v5970
    %11037 = vmatmul.mubr.bf16.gmra.mxu0 %v5969
    %v11038 = vpop.f32.mrf.mxu0
    %v11039 = vadd.f32 %v10898, %v11038
    %v11040 = vpop.f32.mrf.mxu0
    %v11041 = vadd.f32 %v10900, %v11040
    %v11042 = vpop.f32.mrf.mxu0
    %v11043 = vadd.f32 %v10902, %v11042
    %v11044 = vpop.f32.mrf.mxu0
    %v11045 = vadd.f32 %v10904, %v11044
    %11046 = vmatprep.mubr.bf16.mxu0 %v5986
    %11047 = vmatmul.mubr.bf16.gmra.mxu0 %v5985
    %v11048 = vpop.f32.mrf.mxu0
    %v11049 = vadd.f32 %v10908, %v11048
    %v11050 = vpop.f32.mrf.mxu0
    %v11051 = vadd.f32 %v10910, %v11050
    %v11052 = vpop.f32.mrf.mxu0
    %v11053 = vadd.f32 %v10912, %v11052
    %v11054 = vpop.f32.mrf.mxu0
    %v11055 = vadd.f32 %v10914, %v11054
    %11056 = vmatprep.mubr.bf16.mxu0 %v6002
    %11057 = vmatmul.mubr.bf16.gmra.mxu0 %v6001
    %v11058 = vpop.f32.mrf.mxu0
    %v11059 = vadd.f32 %v10918, %v11058
    %v11060 = vpop.f32.mrf.mxu0
    %v11061 = vadd.f32 %v10920, %v11060
    %v11062 = vpop.f32.mrf.mxu0
    %v11063 = vadd.f32 %v10922, %v11062
    %v11064 = vpop.f32.mrf.mxu0
    %v11065 = vadd.f32 %v10924, %v11064
    %11066 = vmatprep.mubr.bf16.mxu0 %v6018
    %11067 = vmatmul.mubr.bf16.gmra.mxu0 %v6017
    %v11068 = vpop.f32.mrf.mxu0
    %v11069 = vadd.f32 %v10928, %v11068
    %v11070 = vpop.f32.mrf.mxu0
    %v11071 = vadd.f32 %v10930, %v11070
    %v11072 = vpop.f32.mrf.mxu0
    %v11073 = vadd.f32 %v10932, %v11072
    %v11074 = vpop.f32.mrf.mxu0
    %v11075 = vadd.f32 %v10934, %v11074
    %11076 = vmatprep.mubr.bf16.mxu0 %v6034
    %11077 = vmatmul.mubr.bf16.gmra.mxu0 %v6033
    %v11078 = vpop.f32.mrf.mxu0
    %v11079 = vadd.f32 %v10938, %v11078
    %v11080 = vpop.f32.mrf.mxu0
    %v11081 = vadd.f32 %v10940, %v11080
    %v11082 = vpop.f32.mrf.mxu0
    %v11083 = vpop.f32.mrf.mxu0
    %11084 = vdwg.mxu0
    %11085 = vmatprep.subr.bf16.mxu0 %v8502
    %11086 = vmatpush1.bf16.msra.mxu0 %v8501
    %11087 = vmatprep.subr.bf16.mxu0 %v8498
    %11088 = vmatpush1.bf16.msra.mxu0 %v8497
    %11089 = vmatprep.subr.bf16.mxu0 %v8494
    %11090 = vmatpush1.bf16.msra.mxu0 %v8493
    %11091 = vmatprep.subr.bf16.mxu0 %v8490
    %11092 = vmatpush1.bf16.msra.mxu0 %v8489
    %11093 = vmatprep.subr.bf16.mxu0 %v8486
    %11094 = vmatpush1.bf16.msra.mxu0 %v8485
    %11095 = vmatprep.subr.bf16.mxu0 %v8482
    %11096 = vmatpush1.bf16.msra.mxu0 %v8481
    %11097 = vmatprep.subr.bf16.mxu0 %v8478
    %11098 = vmatpush1.bf16.msra.mxu0 %v8477
    %11099 = vmatprep.subr.bf16.mxu0 %v8474
    %11100 = vmatpush1.bf16.msra.mxu0 %v8473
    %11101 = vmatprep.subr.bf16.mxu0 %v8534
    %11102 = vmatpush2.bf16.msra.mxu0 %v8533
    %11103 = vmatprep.subr.bf16.mxu0 %v8530
    %11104 = vmatpush2.bf16.msra.mxu0 %v8529
    %11105 = vmatprep.subr.bf16.mxu0 %v8526
    %11106 = vmatpush2.bf16.msra.mxu0 %v8525
    %11107 = vmatprep.subr.bf16.mxu0 %v8522
    %11108 = vmatpush2.bf16.msra.mxu0 %v8521
    %11109 = vmatprep.subr.bf16.mxu0 %v8518
    %11110 = vmatpush2.bf16.msra.mxu0 %v8517
    %11111 = vmatprep.subr.bf16.mxu0 %v8514
    %11112 = vmatpush2.bf16.msra.mxu0 %v8513
    %11113 = vmatprep.subr.bf16.mxu0 %v8510
    %11114 = vmatpush2.bf16.msra.mxu0 %v8509
    %11115 = vmatprep.subr.bf16.mxu0 %v8506
    %11116 = vmatpush2.bf16.msra.mxu0 %v8505
    %11117 = vmatprep.mubr.bf16.mxu0 %v5876
    %11118 = vmatmul.mubr.bf16.gmra.mxu0 %v5875
    %v11119 = vpop.f32.mrf.mxu0
    %v11120 = vadd.f32 %v10979, %v11119
    %v11121 = vpop.f32.mrf.mxu0
    %v11122 = vadd.f32 %v10981, %v11121
    %v11123 = vpop.f32.mrf.mxu0
    %v11124 = vadd.f32 %v10983, %v11123
    %v11125 = vpop.f32.mrf.mxu0
    %v11126 = vadd.f32 %v10985, %v11125
    %11127 = vmatprep.mubr.bf16.mxu0 %v5892
    %11128 = vmatmul.mubr.bf16.gmra.mxu0 %v5891
    %v11129 = vpop.f32.mrf.mxu0
    %v11130 = vadd.f32 %v10989, %v11129
    %v11131 = vpop.f32.mrf.mxu0
    %v11132 = vadd.f32 %v10991, %v11131
    %v11133 = vpop.f32.mrf.mxu0
    %v11134 = vadd.f32 %v10993, %v11133
    %v11135 = vpop.f32.mrf.mxu0
    %v11136 = vadd.f32 %v10995, %v11135
    %11137 = vmatprep.mubr.bf16.mxu0 %v5908
    %11138 = vmatmul.mubr.bf16.gmra.mxu0 %v5907
    %v11139 = vpop.f32.mrf.mxu0
    %v11140 = vadd.f32 %v10999, %v11139
    %v11141 = vpop.f32.mrf.mxu0
    %v11142 = vadd.f32 %v11001, %v11141
    %v11143 = vpop.f32.mrf.mxu0
    %v11144 = vadd.f32 %v11003, %v11143
    %v11145 = vpop.f32.mrf.mxu0
    %v11146 = vadd.f32 %v11005, %v11145
    %11147 = vmatprep.mubr.bf16.mxu0 %v5924
    %11148 = vmatmul.mubr.bf16.gmra.mxu0 %v5923
    %v11149 = vpop.f32.mrf.mxu0
    %v11150 = vadd.f32 %v11009, %v11149
    %v11151 = vpop.f32.mrf.mxu0
    %v11152 = vadd.f32 %v11011, %v11151
    %v11153 = vpop.f32.mrf.mxu0
    %v11154 = vadd.f32 %v11013, %v11153
    %v11155 = vpop.f32.mrf.mxu0
    %v11156 = vadd.f32 %v11015, %v11155
    %11157 = vmatprep.mubr.bf16.mxu0 %v5940
    %11158 = vmatmul.mubr.bf16.gmra.mxu0 %v5939
    %v11159 = vpop.f32.mrf.mxu0
    %v11160 = vadd.f32 %v11019, %v11159
    %v11161 = vpop.f32.mrf.mxu0
    %v11162 = vadd.f32 %v11021, %v11161
    %v11163 = vpop.f32.mrf.mxu0
    %v11164 = vadd.f32 %v11023, %v11163
    %v11165 = vpop.f32.mrf.mxu0
    %v11166 = vadd.f32 %v11025, %v11165
    %11167 = vmatprep.mubr.bf16.mxu0 %v5956
    %11168 = vmatmul.mubr.bf16.gmra.mxu0 %v5955
    %v11169 = vpop.f32.mrf.mxu0
    %v11170 = vadd.f32 %v11029, %v11169
    %v11171 = vpop.f32.mrf.mxu0
    %v11172 = vadd.f32 %v11031, %v11171
    %v11173 = vpop.f32.mrf.mxu0
    %v11174 = vadd.f32 %v11033, %v11173
    %v11175 = vpop.f32.mrf.mxu0
    %v11176 = vadd.f32 %v11035, %v11175
    %11177 = vmatprep.mubr.bf16.mxu0 %v5972
    %11178 = vmatmul.mubr.bf16.gmra.mxu0 %v5971
    %v11179 = vpop.f32.mrf.mxu0
    %v11180 = vadd.f32 %v11039, %v11179
    %v11181 = vpop.f32.mrf.mxu0
    %v11182 = vadd.f32 %v11041, %v11181
    %v11183 = vpop.f32.mrf.mxu0
    %v11184 = vadd.f32 %v11043, %v11183
    %v11185 = vpop.f32.mrf.mxu0
    %v11186 = vadd.f32 %v11045, %v11185
    %11187 = vmatprep.mubr.bf16.mxu0 %v5988
    %11188 = vmatmul.mubr.bf16.gmra.mxu0 %v5987
    %v11189 = vpop.f32.mrf.mxu0
    %v11190 = vadd.f32 %v11049, %v11189
    %v11191 = vpop.f32.mrf.mxu0
    %v11192 = vadd.f32 %v11051, %v11191
    %v11193 = vpop.f32.mrf.mxu0
    %v11194 = vadd.f32 %v11053, %v11193
    %v11195 = vpop.f32.mrf.mxu0
    %v11196 = vadd.f32 %v11055, %v11195
    %11197 = vmatprep.mubr.bf16.mxu0 %v6004
    %11198 = vmatmul.mubr.bf16.gmra.mxu0 %v6003
    %v11199 = vpop.f32.mrf.mxu0
    %v11200 = vadd.f32 %v11059, %v11199
    %v11201 = vpop.f32.mrf.mxu0
    %v11202 = vadd.f32 %v11061, %v11201
    %v11203 = vpop.f32.mrf.mxu0
    %v11204 = vadd.f32 %v11063, %v11203
    %v11205 = vpop.f32.mrf.mxu0
    %v11206 = vadd.f32 %v11065, %v11205
    %11207 = vmatprep.mubr.bf16.mxu0 %v6020
    %11208 = vmatmul.mubr.bf16.gmra.mxu0 %v6019
    %v11209 = vpop.f32.mrf.mxu0
    %v11210 = vadd.f32 %v11069, %v11209
    %v11211 = vpop.f32.mrf.mxu0
    %v11212 = vadd.f32 %v11071, %v11211
    %v11213 = vpop.f32.mrf.mxu0
    %v11214 = vadd.f32 %v11073, %v11213
    %v11215 = vpop.f32.mrf.mxu0
    %v11216 = vadd.f32 %v11075, %v11215
    %11217 = vmatprep.mubr.bf16.mxu0 %v6036
    %11218 = vmatmul.mubr.bf16.gmra.mxu0 %v6035
    %v11219 = vpop.f32.mrf.mxu0
    %v11220 = vadd.f32 %v11079, %v11219
    %v11221 = vpop.f32.mrf.mxu0
    %v11222 = vadd.f32 %v11081, %v11221
    %v11223 = vpop.f32.mrf.mxu0
    %v11224 = vpop.f32.mrf.mxu0
    %11225 = vdwg.mxu0
    %11226 = vmatprep.subr.bf16.mxu0 %v8566
    %11227 = vmatpush1.bf16.msra.mxu0 %v8565
    %11228 = vmatprep.subr.bf16.mxu0 %v8562
    %11229 = vmatpush1.bf16.msra.mxu0 %v8561
    %11230 = vmatprep.subr.bf16.mxu0 %v8558
    %11231 = vmatpush1.bf16.msra.mxu0 %v8557
    %11232 = vmatprep.subr.bf16.mxu0 %v8554
    %11233 = vmatpush1.bf16.msra.mxu0 %v8553
    %11234 = vmatprep.subr.bf16.mxu0 %v8550
    %11235 = vmatpush1.bf16.msra.mxu0 %v8549
    %11236 = vmatprep.subr.bf16.mxu0 %v8546
    %11237 = vmatpush1.bf16.msra.mxu0 %v8545
    %11238 = vmatprep.subr.bf16.mxu0 %v8542
    %11239 = vmatpush1.bf16.msra.mxu0 %v8541
    %11240 = vmatprep.subr.bf16.mxu0 %v8538
    %11241 = vmatpush1.bf16.msra.mxu0 %v8537
    %11242 = vmatprep.subr.bf16.mxu0 %v8598
    %11243 = vmatpush2.bf16.msra.mxu0 %v8597
    %11244 = vmatprep.subr.bf16.mxu0 %v8594
    %11245 = vmatpush2.bf16.msra.mxu0 %v8593
    %11246 = vmatprep.subr.bf16.mxu0 %v8590
    %11247 = vmatpush2.bf16.msra.mxu0 %v8589
    %11248 = vmatprep.subr.bf16.mxu0 %v8586
    %11249 = vmatpush2.bf16.msra.mxu0 %v8585
    %11250 = vmatprep.subr.bf16.mxu0 %v8582
    %11251 = vmatpush2.bf16.msra.mxu0 %v8581
    %11252 = vmatprep.subr.bf16.mxu0 %v8578
    %11253 = vmatpush2.bf16.msra.mxu0 %v8577
    %11254 = vmatprep.subr.bf16.mxu0 %v8574
    %11255 = vmatpush2.bf16.msra.mxu0 %v8573
    %11256 = vmatprep.subr.bf16.mxu0 %v8570
    %11257 = vmatpush2.bf16.msra.mxu0 %v8569
    %11258 = vmatprep.mubr.bf16.mxu0 %v5878
    %11259 = vmatmul.mubr.bf16.gmra.mxu0 %v5877
    %v11260 = vpop.f32.mrf.mxu0
    %v11261 = vadd.f32 %v11120, %v11260
    %v11262 = vpop.f32.mrf.mxu0
    %v11263 = vadd.f32 %v11122, %v11262
    %v11264 = vpop.f32.mrf.mxu0
    %v11265 = vadd.f32 %v11124, %v11264
    %v11266 = vpop.f32.mrf.mxu0
    %v11267 = vadd.f32 %v11126, %v11266
    %11268 = vmatprep.mubr.bf16.mxu0 %v5894
    %11269 = vmatmul.mubr.bf16.gmra.mxu0 %v5893
    %v11270 = vpop.f32.mrf.mxu0
    %v11271 = vadd.f32 %v11130, %v11270
    %v11272 = vpop.f32.mrf.mxu0
    %v11273 = vadd.f32 %v11132, %v11272
    %v11274 = vpop.f32.mrf.mxu0
    %v11275 = vadd.f32 %v11134, %v11274
    %v11276 = vpop.f32.mrf.mxu0
    %v11277 = vadd.f32 %v11136, %v11276
    %11278 = vmatprep.mubr.bf16.mxu0 %v5910
    %11279 = vmatmul.mubr.bf16.gmra.mxu0 %v5909
    %v11280 = vpop.f32.mrf.mxu0
    %v11281 = vadd.f32 %v11140, %v11280
    %v11282 = vpop.f32.mrf.mxu0
    %v11283 = vadd.f32 %v11142, %v11282
    %v11284 = vpop.f32.mrf.mxu0
    %v11285 = vadd.f32 %v11144, %v11284
    %v11286 = vpop.f32.mrf.mxu0
    %v11287 = vadd.f32 %v11146, %v11286
    %11288 = vmatprep.mubr.bf16.mxu0 %v5926
    %11289 = vmatmul.mubr.bf16.gmra.mxu0 %v5925
    %v11290 = vpop.f32.mrf.mxu0
    %v11291 = vadd.f32 %v11150, %v11290
    %v11292 = vpop.f32.mrf.mxu0
    %v11293 = vadd.f32 %v11152, %v11292
    %v11294 = vpop.f32.mrf.mxu0
    %v11295 = vadd.f32 %v11154, %v11294
    %v11296 = vpop.f32.mrf.mxu0
    %v11297 = vadd.f32 %v11156, %v11296
    %11298 = vmatprep.mubr.bf16.mxu0 %v5942
    %11299 = vmatmul.mubr.bf16.gmra.mxu0 %v5941
    %v11300 = vpop.f32.mrf.mxu0
    %v11301 = vadd.f32 %v11160, %v11300
    %v11302 = vpop.f32.mrf.mxu0
    %v11303 = vadd.f32 %v11162, %v11302
    %v11304 = vpop.f32.mrf.mxu0
    %v11305 = vadd.f32 %v11164, %v11304
    %v11306 = vpop.f32.mrf.mxu0
    %v11307 = vadd.f32 %v11166, %v11306
    %11308 = vmatprep.mubr.bf16.mxu0 %v5958
    %11309 = vmatmul.mubr.bf16.gmra.mxu0 %v5957
    %v11310 = vpop.f32.mrf.mxu0
    %v11311 = vadd.f32 %v11170, %v11310
    %v11312 = vpop.f32.mrf.mxu0
    %v11313 = vadd.f32 %v11172, %v11312
    %v11314 = vpop.f32.mrf.mxu0
    %v11315 = vadd.f32 %v11174, %v11314
    %v11316 = vpop.f32.mrf.mxu0
    %v11317 = vadd.f32 %v11176, %v11316
    %11318 = vmatprep.mubr.bf16.mxu0 %v5974
    %11319 = vmatmul.mubr.bf16.gmra.mxu0 %v5973
    %v11320 = vpop.f32.mrf.mxu0
    %v11321 = vadd.f32 %v11180, %v11320
    %v11322 = vpop.f32.mrf.mxu0
    %v11323 = vadd.f32 %v11182, %v11322
    %v11324 = vpop.f32.mrf.mxu0
    %v11325 = vadd.f32 %v11184, %v11324
    %v11326 = vpop.f32.mrf.mxu0
    %v11327 = vadd.f32 %v11186, %v11326
    %11328 = vmatprep.mubr.bf16.mxu0 %v5990
    %11329 = vmatmul.mubr.bf16.gmra.mxu0 %v5989
    %v11330 = vpop.f32.mrf.mxu0
    %v11331 = vadd.f32 %v11190, %v11330
    %v11332 = vpop.f32.mrf.mxu0
    %v11333 = vadd.f32 %v11192, %v11332
    %v11334 = vpop.f32.mrf.mxu0
    %v11335 = vadd.f32 %v11194, %v11334
    %v11336 = vpop.f32.mrf.mxu0
    %v11337 = vadd.f32 %v11196, %v11336
    %11338 = vmatprep.mubr.bf16.mxu0 %v6006
    %11339 = vmatmul.mubr.bf16.gmra.mxu0 %v6005
    %v11340 = vpop.f32.mrf.mxu0
    %v11341 = vadd.f32 %v11200, %v11340
    %v11342 = vpop.f32.mrf.mxu0
    %v11343 = vadd.f32 %v11202, %v11342
    %v11344 = vpop.f32.mrf.mxu0
    %v11345 = vadd.f32 %v11204, %v11344
    %v11346 = vpop.f32.mrf.mxu0
    %v11347 = vadd.f32 %v11206, %v11346
    %11348 = vmatprep.mubr.bf16.mxu0 %v6022
    %11349 = vmatmul.mubr.bf16.gmra.mxu0 %v6021
    %v11350 = vpop.f32.mrf.mxu0
    %v11351 = vadd.f32 %v11210, %v11350
    %v11352 = vpop.f32.mrf.mxu0
    %v11353 = vadd.f32 %v11212, %v11352
    %v11354 = vpop.f32.mrf.mxu0
    %v11355 = vadd.f32 %v11214, %v11354
    %v11356 = vpop.f32.mrf.mxu0
    %v11357 = vadd.f32 %v11216, %v11356
    %11358 = vmatprep.mubr.bf16.mxu0 %v6038
    %11359 = vmatmul.mubr.bf16.gmra.mxu0 %v6037
    %v11360 = vpop.f32.mrf.mxu0
    %v11361 = vadd.f32 %v11220, %v11360
    %v11362 = vpop.f32.mrf.mxu0
    %v11363 = vadd.f32 %v11222, %v11362
    %v11364 = vpop.f32.mrf.mxu0
    %v11365 = vpop.f32.mrf.mxu0
    %11366 = vdwg.mxu0
    %v11367 = vadd.f32 %v10133, %v10135
    %v11368 = vadd.f32 %v11367, %v11261
    %v11369 = vadd.f32 %v11368, %v11263
    %11370 = vadd.xlane.f32.xlu0 %v11369
    %v11371 = vpop.xlane.xlu0 %11370
    %v11372 = vadd.f32 %v10137, %v10139
    %v11373 = vadd.f32 %v11372, %v11265
    %v11374 = vadd.f32 %v11373, %v11267
    %11375 = vadd.xlane.f32.xlu0 %v11374
    %v11376 = vpop.xlane.xlu0 %11375
    %v11377 = vadd.f32 %v10143, %v10145
    %v11378 = vadd.f32 %v11377, %v11271
    %v11379 = vadd.f32 %v11378, %v11273
    %11380 = vadd.xlane.f32.xlu0 %v11379
    %v11381 = vpop.xlane.xlu0 %11380
    %v11382 = vadd.f32 %v10147, %v10149
    %v11383 = vadd.f32 %v11382, %v11275
    %v11384 = vadd.f32 %v11383, %v11277
    %11385 = vadd.xlane.f32.xlu0 %v11384
    %v11386 = vpop.xlane.xlu0 %11385
    %v11387 = vadd.f32 %v10153, %v10155
    %v11388 = vadd.f32 %v11387, %v11281
    %v11389 = vadd.f32 %v11388, %v11283
    %11390 = vadd.xlane.f32.xlu0 %v11389
    %v11391 = vpop.xlane.xlu0 %11390
    %v11392 = vadd.f32 %v10157, %v10159
    %v11393 = vadd.f32 %v11392, %v11285
    %v11394 = vadd.f32 %v11393, %v11287
    %11395 = vadd.xlane.f32.xlu0 %v11394
    %v11396 = vpop.xlane.xlu0 %11395
    %v11397 = vadd.f32 %v10163, %v10165
    %v11398 = vadd.f32 %v11397, %v11291
    %v11399 = vadd.f32 %v11398, %v11293
    %11400 = vadd.xlane.f32.xlu0 %v11399
    %v11401 = vpop.xlane.xlu0 %11400
    %v11402 = vadd.f32 %v10167, %v10169
    %v11403 = vadd.f32 %v11402, %v11295
    %v11404 = vadd.f32 %v11403, %v11297
    %11405 = vadd.xlane.f32.xlu0 %v11404
    %v11406 = vpop.xlane.xlu0 %11405
    %v11407 = vadd.f32 %v10173, %v10175
    %v11408 = vadd.f32 %v11407, %v11301
    %v11409 = vadd.f32 %v11408, %v11303
    %11410 = vadd.xlane.f32.xlu0 %v11409
    %v11411 = vpop.xlane.xlu0 %11410
    %v11412 = vadd.f32 %v10177, %v10179
    %v11413 = vadd.f32 %v11412, %v11305
    %v11414 = vadd.f32 %v11413, %v11307
    %11415 = vadd.xlane.f32.xlu0 %v11414
    %v11416 = vpop.xlane.xlu0 %11415
    %v11417 = vadd.f32 %v10183, %v10185
    %v11418 = vadd.f32 %v11417, %v11311
    %v11419 = vadd.f32 %v11418, %v11313
    %11420 = vadd.xlane.f32.xlu0 %v11419
    %v11421 = vpop.xlane.xlu0 %11420
    %v11422 = vadd.f32 %v10187, %v10189
    %v11423 = vadd.f32 %v11422, %v11315
    %v11424 = vadd.f32 %v11423, %v11317
    %11425 = vadd.xlane.f32.xlu0 %v11424
    %v11426 = vpop.xlane.xlu0 %11425
    %v11427 = vadd.f32 %v10193, %v10195
    %v11428 = vadd.f32 %v11427, %v11321
    %v11429 = vadd.f32 %v11428, %v11323
    %11430 = vadd.xlane.f32.xlu0 %v11429
    %v11431 = vpop.xlane.xlu0 %11430
    %v11432 = vadd.f32 %v10197, %v10199
    %v11433 = vadd.f32 %v11432, %v11325
    %v11434 = vadd.f32 %v11433, %v11327
    %11435 = vadd.xlane.f32.xlu0 %v11434
    %v11436 = vpop.xlane.xlu0 %11435
    %v11437 = vadd.f32 %v10203, %v10205
    %v11438 = vadd.f32 %v11437, %v11331
    %v11439 = vadd.f32 %v11438, %v11333
    %11440 = vadd.xlane.f32.xlu0 %v11439
    %v11441 = vpop.xlane.xlu0 %11440
    %v11442 = vadd.f32 %v10207, %v10209
    %v11443 = vadd.f32 %v11442, %v11335
    %v11444 = vadd.f32 %v11443, %v11337
    %11445 = vadd.xlane.f32.xlu0 %v11444
    %v11446 = vpop.xlane.xlu0 %11445
    %v11447 = vadd.f32 %v10213, %v10215
    %v11448 = vadd.f32 %v11447, %v11341
    %v11449 = vadd.f32 %v11448, %v11343
    %11450 = vadd.xlane.f32.xlu0 %v11449
    %v11451 = vpop.xlane.xlu0 %11450
    %v11452 = vadd.f32 %v10217, %v10219
    %v11453 = vadd.f32 %v11452, %v11345
    %v11454 = vadd.f32 %v11453, %v11347
    %11455 = vadd.xlane.f32.xlu0 %v11454
    %v11456 = vpop.xlane.xlu0 %11455
    %v11457 = vadd.f32 %v10223, %v10225
    %v11458 = vadd.f32 %v11457, %v11351
    %v11459 = vadd.f32 %v11458, %v11353
    %11460 = vadd.xlane.f32.xlu0 %v11459
    %v11461 = vpop.xlane.xlu0 %11460
    %v11462 = vadd.f32 %v10227, %v10229
    %v11463 = vadd.f32 %v11462, %v11355
    %v11464 = vadd.f32 %v11463, %v11357
    %11465 = vadd.xlane.f32.xlu0 %v11464
    %v11466 = vpop.xlane.xlu0 %11465
    %v11467 = vadd.f32 %v10233, %v10235
    %v11468 = vadd.f32 %v11467, %v11361
    %v11469 = vadd.f32 %v11468, %v11363
    %11470 = vadd.xlane.f32.xlu0 %v11469
    %v11471 = vpop.xlane.xlu0 %11470
    %v11472 = vrcp.pop 512.0
    %v11473 = vmul.f32 %v11371, %v11472
    %v11474 = vmul.f32 %v11376, %v11472
    %v11475 = vmul.f32 %v11381, %v11472
    %v11476 = vmul.f32 %v11386, %v11472
    %v11477 = vmul.f32 %v11391, %v11472
    %v11478 = vmul.f32 %v11396, %v11472
    %v11479 = vmul.f32 %v11401, %v11472
    %v11480 = vmul.f32 %v11406, %v11472
    %v11481 = vmul.f32 %v11411, %v11472
    %v11482 = vmul.f32 %v11416, %v11472
    %v11483 = vmul.f32 %v11421, %v11472
    %v11484 = vmul.f32 %v11426, %v11472
    %v11485 = vmul.f32 %v11431, %v11472
    %v11486 = vmul.f32 %v11436, %v11472
    %v11487 = vmul.f32 %v11441, %v11472
    %v11488 = vmul.f32 %v11446, %v11472
    %v11489 = vmul.f32 %v11451, %v11472
    %v11490 = vmul.f32 %v11456, %v11472
    %v11491 = vmul.f32 %v11461, %v11472
    %v11492 = vmul.f32 %v11466, %v11472
    %v11493 = vmul.f32 %v11471, %v11472
    %v11494 = vsub.f32 %v10133, %v11473
    %v11495 = vsub.f32 %v10135, %v11473
    %v11496 = vsub.f32 %v11261, %v11473
    %v11497 = vsub.f32 %v11263, %v11473
    %v11498 = vsub.f32 %v10137, %v11474
    %v11499 = vsub.f32 %v10139, %v11474
    %v11500 = vsub.f32 %v11265, %v11474
    %v11501 = vsub.f32 %v11267, %v11474
    %v11502 = vsub.f32 %v10143, %v11475
    %v11503 = vsub.f32 %v10145, %v11475
    %v11504 = vsub.f32 %v11271, %v11475
    %v11505 = vsub.f32 %v11273, %v11475
    %v11506 = vsub.f32 %v10147, %v11476
    %v11507 = vsub.f32 %v10149, %v11476
    %v11508 = vsub.f32 %v11275, %v11476
    %v11509 = vsub.f32 %v11277, %v11476
    %v11510 = vsub.f32 %v10153, %v11477
    %v11511 = vsub.f32 %v10155, %v11477
    %v11512 = vsub.f32 %v11281, %v11477
    %v11513 = vsub.f32 %v11283, %v11477
    %v11514 = vsub.f32 %v10157, %v11478
    %v11515 = vsub.f32 %v10159, %v11478
    %v11516 = vsub.f32 %v11285, %v11478
    %v11517 = vsub.f32 %v11287, %v11478
    %v11518 = vsub.f32 %v10163, %v11479
    %v11519 = vsub.f32 %v10165, %v11479
    %v11520 = vsub.f32 %v11291, %v11479
    %v11521 = vsub.f32 %v11293, %v11479
    %v11522 = vsub.f32 %v10167, %v11480
    %v11523 = vsub.f32 %v10169, %v11480
    %v11524 = vsub.f32 %v11295, %v11480
    %v11525 = vsub.f32 %v11297, %v11480
    %v11526 = vsub.f32 %v10173, %v11481
    %v11527 = vsub.f32 %v10175, %v11481
    %v11528 = vsub.f32 %v11301, %v11481
    %v11529 = vsub.f32 %v11303, %v11481
    %v11530 = vsub.f32 %v10177, %v11482
    %v11531 = vsub.f32 %v10179, %v11482
    %v11532 = vsub.f32 %v11305, %v11482
    %v11533 = vsub.f32 %v11307, %v11482
    %v11534 = vsub.f32 %v10183, %v11483
    %v11535 = vsub.f32 %v10185, %v11483
    %v11536 = vsub.f32 %v11311, %v11483
    %v11537 = vsub.f32 %v11313, %v11483
    %v11538 = vsub.f32 %v10187, %v11484
    %v11539 = vsub.f32 %v10189, %v11484
    %v11540 = vsub.f32 %v11315, %v11484
    %v11541 = vsub.f32 %v11317, %v11484
    %v11542 = vsub.f32 %v10193, %v11485
    %v11543 = vsub.f32 %v10195, %v11485
    %v11544 = vsub.f32 %v11321, %v11485
    %v11545 = vsub.f32 %v11323, %v11485
    %v11546 = vsub.f32 %v10197, %v11486
    %v11547 = vsub.f32 %v10199, %v11486
    %v11548 = vsub.f32 %v11325, %v11486
    %v11549 = vsub.f32 %v11327, %v11486
    %v11550 = vsub.f32 %v10203, %v11487
    %v11551 = vsub.f32 %v10205, %v11487
    %v11552 = vsub.f32 %v11331, %v11487
    %v11553 = vsub.f32 %v11333, %v11487
    %v11554 = vsub.f32 %v10207, %v11488
    %v11555 = vsub.f32 %v10209, %v11488
    %v11556 = vsub.f32 %v11335, %v11488
    %v11557 = vsub.f32 %v11337, %v11488
    %v11558 = vsub.f32 %v10213, %v11489
    %v11559 = vsub.f32 %v10215, %v11489
    %v11560 = vsub.f32 %v11341, %v11489
    %v11561 = vsub.f32 %v11343, %v11489
    %v11562 = vsub.f32 %v10217, %v11490
    %v11563 = vsub.f32 %v10219, %v11490
    %v11564 = vsub.f32 %v11345, %v11490
    %v11565 = vsub.f32 %v11347, %v11490
    %v11566 = vsub.f32 %v10223, %v11491
    %v11567 = vsub.f32 %v10225, %v11491
    %v11568 = vsub.f32 %v11351, %v11491
    %v11569 = vsub.f32 %v11353, %v11491
    %v11570 = vsub.f32 %v10227, %v11492
    %v11571 = vsub.f32 %v10229, %v11492
    %v11572 = vsub.f32 %v11355, %v11492
    %v11573 = vsub.f32 %v11357, %v11492
    %v11574 = vsub.f32 %v10233, %v11493
    %v11575 = vsub.f32 %v10235, %v11493
    %v11576 = vsub.f32 %v11361, %v11493
    %v11577 = vsub.f32 %v11363, %v11493
    %v11578 = vmul.f32 %v11494, %v11494
    %v11579 = vmul.f32 %v11495, %v11495
    %v11580 = vmul.f32 %v11496, %v11496
    %v11581 = vmul.f32 %v11497, %v11497
    %v11582 = vmul.f32 %v11498, %v11498
    %v11583 = vmul.f32 %v11499, %v11499
    %v11584 = vmul.f32 %v11500, %v11500
    %v11585 = vmul.f32 %v11501, %v11501
    %v11586 = vmul.f32 %v11502, %v11502
    %v11587 = vmul.f32 %v11503, %v11503
    %v11588 = vmul.f32 %v11504, %v11504
    %v11589 = vmul.f32 %v11505, %v11505
    %v11590 = vmul.f32 %v11506, %v11506
    %v11591 = vmul.f32 %v11507, %v11507
    %v11592 = vmul.f32 %v11508, %v11508
    %v11593 = vmul.f32 %v11509, %v11509
    %v11594 = vmul.f32 %v11510, %v11510
    %v11595 = vmul.f32 %v11511, %v11511
    %v11596 = vmul.f32 %v11512, %v11512
    %v11597 = vmul.f32 %v11513, %v11513
    %v11598 = vmul.f32 %v11514, %v11514
    %v11599 = vmul.f32 %v11515, %v11515
    %v11600 = vmul.f32 %v11516, %v11516
    %v11601 = vmul.f32 %v11517, %v11517
    %v11602 = vmul.f32 %v11518, %v11518
    %v11603 = vmul.f32 %v11519, %v11519
    %v11604 = vmul.f32 %v11520, %v11520
    %v11605 = vmul.f32 %v11521, %v11521
    %v11606 = vmul.f32 %v11522, %v11522
    %v11607 = vmul.f32 %v11523, %v11523
    %v11608 = vmul.f32 %v11524, %v11524
    %v11609 = vmul.f32 %v11525, %v11525
    %v11610 = vmul.f32 %v11526, %v11526
    %v11611 = vmul.f32 %v11527, %v11527
    %v11612 = vmul.f32 %v11528, %v11528
    %v11613 = vmul.f32 %v11529, %v11529
    %v11614 = vmul.f32 %v11530, %v11530
    %v11615 = vmul.f32 %v11531, %v11531
    %v11616 = vmul.f32 %v11532, %v11532
    %v11617 = vmul.f32 %v11533, %v11533
    %v11618 = vmul.f32 %v11534, %v11534
    %v11619 = vmul.f32 %v11535, %v11535
    %v11620 = vmul.f32 %v11536, %v11536
    %v11621 = vmul.f32 %v11537, %v11537
    %v11622 = vmul.f32 %v11538, %v11538
    %v11623 = vmul.f32 %v11539, %v11539
    %v11624 = vmul.f32 %v11540, %v11540
    %v11625 = vmul.f32 %v11541, %v11541
    %v11626 = vmul.f32 %v11542, %v11542
    %v11627 = vmul.f32 %v11543, %v11543
    %v11628 = vmul.f32 %v11544, %v11544
    %v11629 = vmul.f32 %v11545, %v11545
    %v11630 = vmul.f32 %v11546, %v11546
    %v11631 = vmul.f32 %v11547, %v11547
    %v11632 = vmul.f32 %v11548, %v11548
    %v11633 = vmul.f32 %v11549, %v11549
    %v11634 = vmul.f32 %v11550, %v11550
    %v11635 = vmul.f32 %v11551, %v11551
    %v11636 = vmul.f32 %v11552, %v11552
    %v11637 = vmul.f32 %v11553, %v11553
    %v11638 = vmul.f32 %v11554, %v11554
    %v11639 = vmul.f32 %v11555, %v11555
    %v11640 = vmul.f32 %v11556, %v11556
    %v11641 = vmul.f32 %v11557, %v11557
    %v11642 = vmul.f32 %v11558, %v11558
    %v11643 = vmul.f32 %v11559, %v11559
    %v11644 = vmul.f32 %v11560, %v11560
    %v11645 = vmul.f32 %v11561, %v11561
    %v11646 = vmul.f32 %v11562, %v11562
    %v11647 = vmul.f32 %v11563, %v11563
    %v11648 = vmul.f32 %v11564, %v11564
    %v11649 = vmul.f32 %v11565, %v11565
    %v11650 = vmul.f32 %v11566, %v11566
    %v11651 = vmul.f32 %v11567, %v11567
    %v11652 = vmul.f32 %v11568, %v11568
    %v11653 = vmul.f32 %v11569, %v11569
    %v11654 = vmul.f32 %v11570, %v11570
    %v11655 = vmul.f32 %v11571, %v11571
    %v11656 = vmul.f32 %v11572, %v11572
    %v11657 = vmul.f32 %v11573, %v11573
    %v11658 = vmul.f32 %v11574, %v11574
    %v11659 = vmul.f32 %v11575, %v11575
    %v11660 = vmul.f32 %v11576, %v11576
    %v11661 = vmul.f32 %v11577, %v11577
    %v11662 = vadd.f32 %v11578, %v11579
    %v11663 = vadd.f32 %v11662, %v11580
    %v11664 = vadd.f32 %v11663, %v11581
    %11665 = vadd.xlane.f32.xlu0 %v11664
    %v11666 = vpop.xlane.xlu0 %11665
    %v11667 = vadd.f32 %v11582, %v11583
    %v11668 = vadd.f32 %v11667, %v11584
    %v11669 = vadd.f32 %v11668, %v11585
    %11670 = vadd.xlane.f32.xlu0 %v11669
    %v11671 = vpop.xlane.xlu0 %11670
    %v11672 = vadd.f32 %v11586, %v11587
    %v11673 = vadd.f32 %v11672, %v11588
    %v11674 = vadd.f32 %v11673, %v11589
    %11675 = vadd.xlane.f32.xlu0 %v11674
    %v11676 = vpop.xlane.xlu0 %11675
    %v11677 = vadd.f32 %v11590, %v11591
    %v11678 = vadd.f32 %v11677, %v11592
    %v11679 = vadd.f32 %v11678, %v11593
    %11680 = vadd.xlane.f32.xlu0 %v11679
    %v11681 = vpop.xlane.xlu0 %11680
    %v11682 = vadd.f32 %v11594, %v11595
    %v11683 = vadd.f32 %v11682, %v11596
    %v11684 = vadd.f32 %v11683, %v11597
    %11685 = vadd.xlane.f32.xlu0 %v11684
    %v11686 = vpop.xlane.xlu0 %11685
    %v11687 = vadd.f32 %v11598, %v11599
    %v11688 = vadd.f32 %v11687, %v11600
    %v11689 = vadd.f32 %v11688, %v11601
    %11690 = vadd.xlane.f32.xlu0 %v11689
    %v11691 = vpop.xlane.xlu0 %11690
    %v11692 = vadd.f32 %v11602, %v11603
    %v11693 = vadd.f32 %v11692, %v11604
    %v11694 = vadd.f32 %v11693, %v11605
    %11695 = vadd.xlane.f32.xlu0 %v11694
    %v11696 = vpop.xlane.xlu0 %11695
    %v11697 = vadd.f32 %v11606, %v11607
    %v11698 = vadd.f32 %v11697, %v11608
    %v11699 = vadd.f32 %v11698, %v11609
    %11700 = vadd.xlane.f32.xlu0 %v11699
    %v11701 = vpop.xlane.xlu0 %11700
    %v11702 = vadd.f32 %v11610, %v11611
    %v11703 = vadd.f32 %v11702, %v11612
    %v11704 = vadd.f32 %v11703, %v11613
    %11705 = vadd.xlane.f32.xlu0 %v11704
    %v11706 = vpop.xlane.xlu0 %11705
    %v11707 = vadd.f32 %v11614, %v11615
    %v11708 = vadd.f32 %v11707, %v11616
    %v11709 = vadd.f32 %v11708, %v11617
    %11710 = vadd.xlane.f32.xlu0 %v11709
    %v11711 = vpop.xlane.xlu0 %11710
    %v11712 = vadd.f32 %v11618, %v11619
    %v11713 = vadd.f32 %v11712, %v11620
    %v11714 = vadd.f32 %v11713, %v11621
    %11715 = vadd.xlane.f32.xlu0 %v11714
    %v11716 = vpop.xlane.xlu0 %11715
    %v11717 = vadd.f32 %v11622, %v11623
    %v11718 = vadd.f32 %v11717, %v11624
    %v11719 = vadd.f32 %v11718, %v11625
    %11720 = vadd.xlane.f32.xlu0 %v11719
    %v11721 = vpop.xlane.xlu0 %11720
    %v11722 = vadd.f32 %v11626, %v11627
    %v11723 = vadd.f32 %v11722, %v11628
    %v11724 = vadd.f32 %v11723, %v11629
    %11725 = vadd.xlane.f32.xlu0 %v11724
    %v11726 = vpop.xlane.xlu0 %11725
    %v11727 = vadd.f32 %v11630, %v11631
    %v11728 = vadd.f32 %v11727, %v11632
    %v11729 = vadd.f32 %v11728, %v11633
    %11730 = vadd.xlane.f32.xlu0 %v11729
    %v11731 = vpop.xlane.xlu0 %11730
    %v11732 = vadd.f32 %v11634, %v11635
    %v11733 = vadd.f32 %v11732, %v11636
    %v11734 = vadd.f32 %v11733, %v11637
    %11735 = vadd.xlane.f32.xlu0 %v11734
    %v11736 = vpop.xlane.xlu0 %11735
    %v11737 = vadd.f32 %v11638, %v11639
    %v11738 = vadd.f32 %v11737, %v11640
    %v11739 = vadd.f32 %v11738, %v11641
    %11740 = vadd.xlane.f32.xlu0 %v11739
    %v11741 = vpop.xlane.xlu0 %11740
    %v11742 = vadd.f32 %v11642, %v11643
    %v11743 = vadd.f32 %v11742, %v11644
    %v11744 = vadd.f32 %v11743, %v11645
    %11745 = vadd.xlane.f32.xlu0 %v11744
    %v11746 = vpop.xlane.xlu0 %11745
    %v11747 = vadd.f32 %v11646, %v11647
    %v11748 = vadd.f32 %v11747, %v11648
    %v11749 = vadd.f32 %v11748, %v11649
    %11750 = vadd.xlane.f32.xlu0 %v11749
    %v11751 = vpop.xlane.xlu0 %11750
    %v11752 = vadd.f32 %v11650, %v11651
    %v11753 = vadd.f32 %v11752, %v11652
    %v11754 = vadd.f32 %v11753, %v11653
    %11755 = vadd.xlane.f32.xlu0 %v11754
    %v11756 = vpop.xlane.xlu0 %11755
    %v11757 = vadd.f32 %v11654, %v11655
    %v11758 = vadd.f32 %v11757, %v11656
    %v11759 = vadd.f32 %v11758, %v11657
    %11760 = vadd.xlane.f32.xlu0 %v11759
    %v11761 = vpop.xlane.xlu0 %11760
    %v11762 = vadd.f32 %v11658, %v11659
    %v11763 = vadd.f32 %v11762, %v11660
    %v11764 = vadd.f32 %v11763, %v11661
    %11765 = vadd.xlane.f32.xlu0 %v11764
    %v11766 = vpop.xlane.xlu0 %11765
    %v11767 = vmul.f32 %v11666, %v11472
    %v11768 = vmul.f32 %v11671, %v11472
    %v11769 = vmul.f32 %v11676, %v11472
    %v11770 = vmul.f32 %v11681, %v11472
    %v11771 = vmul.f32 %v11686, %v11472
    %v11772 = vmul.f32 %v11691, %v11472
    %v11773 = vmul.f32 %v11696, %v11472
    %v11774 = vmul.f32 %v11701, %v11472
    %v11775 = vmul.f32 %v11706, %v11472
    %v11776 = vmul.f32 %v11711, %v11472
    %v11777 = vmul.f32 %v11716, %v11472
    %v11778 = vmul.f32 %v11721, %v11472
    %v11779 = vmul.f32 %v11726, %v11472
    %v11780 = vmul.f32 %v11731, %v11472
    %v11781 = vmul.f32 %v11736, %v11472
    %v11782 = vmul.f32 %v11741, %v11472
    %v11783 = vmul.f32 %v11746, %v11472
    %v11784 = vmul.f32 %v11751, %v11472
    %v11785 = vmul.f32 %v11756, %v11472
    %v11786 = vmul.f32 %v11761, %v11472
    %v11787 = vmul.f32 %v11766, %v11472
    %v11788 = vadd.f32 %v11767, 1e-05
    %v11789 = vadd.f32 %v11768, 1e-05
    %v11790 = vadd.f32 %v11769, 1e-05
    %v11791 = vadd.f32 %v11770, 1e-05
    %v11792 = vadd.f32 %v11771, 1e-05
    %v11793 = vadd.f32 %v11772, 1e-05
    %v11794 = vadd.f32 %v11773, 1e-05
    %v11795 = vadd.f32 %v11774, 1e-05
    %v11796 = vadd.f32 %v11775, 1e-05
    %v11797 = vadd.f32 %v11776, 1e-05
    %v11798 = vadd.f32 %v11777, 1e-05
    %v11799 = vadd.f32 %v11778, 1e-05
    %v11800 = vadd.f32 %v11779, 1e-05
    %v11801 = vadd.f32 %v11780, 1e-05
    %v11802 = vadd.f32 %v11781, 1e-05
    %v11803 = vadd.f32 %v11782, 1e-05
    %v11804 = vadd.f32 %v11783, 1e-05
    %v11805 = vadd.f32 %v11784, 1e-05
    %v11806 = vadd.f32 %v11785, 1e-05
    %v11807 = vadd.f32 %v11786, 1e-05
    %v11808 = vadd.f32 %v11787, 1e-05
    %v11809 = vrsqrt.pop %v11788
    %v11810 = vrsqrt.pop %v11789
    %v11811 = vrsqrt.pop %v11790
    %v11812 = vrsqrt.pop %v11791
    %v11813 = vrsqrt.pop %v11792
    %v11814 = vrsqrt.pop %v11793
    %v11815 = vrsqrt.pop %v11794
    %v11816 = vrsqrt.pop %v11795
    %v11817 = vrsqrt.pop %v11796
    %v11818 = vrsqrt.pop %v11797
    %v11819 = vrsqrt.pop %v11798
    %v11820 = vrsqrt.pop %v11799
    %v11821 = vrsqrt.pop %v11800
    %v11822 = vrsqrt.pop %v11801
    %v11823 = vrsqrt.pop %v11802
    %v11824 = vrsqrt.pop %v11803
    %v11825 = vrsqrt.pop %v11804
    %v11826 = vrsqrt.pop %v11805
    %v11827 = vrsqrt.pop %v11806
    %v11828 = vrsqrt.pop %v11807
    %v11829 = vrsqrt.pop %v11808
    %v11830 = vmul.f32 %v11494, %v11809
    %v11831 = vmul.f32 %v11495, %v11809
    %v11832 = vmul.f32 %v11496, %v11809
    %v11833 = vmul.f32 %v11497, %v11809
    %v11834 = vmul.f32 %v11498, %v11810
    %v11835 = vmul.f32 %v11499, %v11810
    %v11836 = vmul.f32 %v11500, %v11810
    %v11837 = vmul.f32 %v11501, %v11810
    %v11838 = vmul.f32 %v11502, %v11811
    %v11839 = vmul.f32 %v11503, %v11811
    %v11840 = vmul.f32 %v11504, %v11811
    %v11841 = vmul.f32 %v11505, %v11811
    %v11842 = vmul.f32 %v11506, %v11812
    %v11843 = vmul.f32 %v11507, %v11812
    %v11844 = vmul.f32 %v11508, %v11812
    %v11845 = vmul.f32 %v11509, %v11812
    %v11846 = vmul.f32 %v11510, %v11813
    %v11847 = vmul.f32 %v11511, %v11813
    %v11848 = vmul.f32 %v11512, %v11813
    %v11849 = vmul.f32 %v11513, %v11813
    %v11850 = vmul.f32 %v11514, %v11814
    %v11851 = vmul.f32 %v11515, %v11814
    %v11852 = vmul.f32 %v11516, %v11814
    %v11853 = vmul.f32 %v11517, %v11814
    %v11854 = vmul.f32 %v11518, %v11815
    %v11855 = vmul.f32 %v11519, %v11815
    %v11856 = vmul.f32 %v11520, %v11815
    %v11857 = vmul.f32 %v11521, %v11815
    %v11858 = vmul.f32 %v11522, %v11816
    %v11859 = vmul.f32 %v11523, %v11816
    %v11860 = vmul.f32 %v11524, %v11816
    %v11861 = vmul.f32 %v11525, %v11816
    %v11862 = vmul.f32 %v11526, %v11817
    %v11863 = vmul.f32 %v11527, %v11817
    %v11864 = vmul.f32 %v11528, %v11817
    %v11865 = vmul.f32 %v11529, %v11817
    %v11866 = vmul.f32 %v11530, %v11818
    %v11867 = vmul.f32 %v11531, %v11818
    %v11868 = vmul.f32 %v11532, %v11818
    %v11869 = vmul.f32 %v11533, %v11818
    %v11870 = vmul.f32 %v11534, %v11819
    %v11871 = vmul.f32 %v11535, %v11819
    %v11872 = vmul.f32 %v11536, %v11819
    %v11873 = vmul.f32 %v11537, %v11819
    %v11874 = vmul.f32 %v11538, %v11820
    %v11875 = vmul.f32 %v11539, %v11820
    %v11876 = vmul.f32 %v11540, %v11820
    %v11877 = vmul.f32 %v11541, %v11820
    %v11878 = vmul.f32 %v11542, %v11821
    %v11879 = vmul.f32 %v11543, %v11821
    %v11880 = vmul.f32 %v11544, %v11821
    %v11881 = vmul.f32 %v11545, %v11821
    %v11882 = vmul.f32 %v11546, %v11822
    %v11883 = vmul.f32 %v11547, %v11822
    %v11884 = vmul.f32 %v11548, %v11822
    %v11885 = vmul.f32 %v11549, %v11822
    %v11886 = vmul.f32 %v11550, %v11823
    %v11887 = vmul.f32 %v11551, %v11823
    %v11888 = vmul.f32 %v11552, %v11823
    %v11889 = vmul.f32 %v11553, %v11823
    %v11890 = vmul.f32 %v11554, %v11824
    %v11891 = vmul.f32 %v11555, %v11824
    %v11892 = vmul.f32 %v11556, %v11824
    %v11893 = vmul.f32 %v11557, %v11824
    %v11894 = vmul.f32 %v11558, %v11825
    %v11895 = vmul.f32 %v11559, %v11825
    %v11896 = vmul.f32 %v11560, %v11825
    %v11897 = vmul.f32 %v11561, %v11825
    %v11898 = vmul.f32 %v11562, %v11826
    %v11899 = vmul.f32 %v11563, %v11826
    %v11900 = vmul.f32 %v11564, %v11826
    %v11901 = vmul.f32 %v11565, %v11826
    %v11902 = vmul.f32 %v11566, %v11827
    %v11903 = vmul.f32 %v11567, %v11827
    %v11904 = vmul.f32 %v11568, %v11827
    %v11905 = vmul.f32 %v11569, %v11827
    %v11906 = vmul.f32 %v11570, %v11828
    %v11907 = vmul.f32 %v11571, %v11828
    %v11908 = vmul.f32 %v11572, %v11828
    %v11909 = vmul.f32 %v11573, %v11828
    %v11910 = vmul.f32 %v11574, %v11829
    %v11911 = vmul.f32 %v11575, %v11829
    %v11912 = vmul.f32 %v11576, %v11829
    %v11913 = vmul.f32 %v11577, %v11829
    %v11914 = vld [vmem:[#allocation6] sm:$0xf]
    %v11916 = vlaneseq
    %v11917 = vshrl.u32 %v11916, 7
    %v11918 = vsub.s32 0, %v11917
    %v11919 = vrot.slane %v11914, %v11918
    %v11920 = vlaneseq
    %v11921 = vshrl.u32 %v11920, 7
    %v11922 = vsub.s32 1, %v11921
    %v11923 = vrot.slane %v11914, %v11922
    %v11924 = vlaneseq
    %v11925 = vshrl.u32 %v11924, 7
    %v11926 = vsub.s32 2, %v11925
    %v11927 = vrot.slane %v11914, %v11926
    %v11928 = vlaneseq
    %v11929 = vshrl.u32 %v11928, 7
    %v11930 = vsub.s32 3, %v11929
    %v11931 = vrot.slane %v11914, %v11930
    %v11936 = vmul.f32 %v11830, %v11919
    %v11937 = vmul.f32 %v11831, %v11923
    %v11938 = vmul.f32 %v11832, %v11927
    %v11939 = vmul.f32 %v11833, %v11931
    %v11940 = vmul.f32 %v11834, %v11919
    %v11941 = vmul.f32 %v11835, %v11923
    %v11942 = vmul.f32 %v11836, %v11927
    %v11943 = vmul.f32 %v11837, %v11931
    %v11944 = vmul.f32 %v11838, %v11919
    %v11945 = vmul.f32 %v11839, %v11923
    %v11946 = vmul.f32 %v11840, %v11927
    %v11947 = vmul.f32 %v11841, %v11931
    %v11948 = vmul.f32 %v11842, %v11919
    %v11949 = vmul.f32 %v11843, %v11923
    %v11950 = vmul.f32 %v11844, %v11927
    %v11951 = vmul.f32 %v11845, %v11931
    %v11952 = vmul.f32 %v11846, %v11919
    %v11953 = vmul.f32 %v11847, %v11923
    %v11954 = vmul.f32 %v11848, %v11927
    %v11955 = vmul.f32 %v11849, %v11931
    %v11956 = vmul.f32 %v11850, %v11919
    %v11957 = vmul.f32 %v11851, %v11923
    %v11958 = vmul.f32 %v11852, %v11927
    %v11959 = vmul.f32 %v11853, %v11931
    %v11960 = vmul.f32 %v11854, %v11919
    %v11961 = vmul.f32 %v11855, %v11923
    %v11962 = vmul.f32 %v11856, %v11927
    %v11963 = vmul.f32 %v11857, %v11931
    %v11964 = vmul.f32 %v11858, %v11919
    %v11965 = vmul.f32 %v11859, %v11923
    %v11966 = vmul.f32 %v11860, %v11927
    %v11967 = vmul.f32 %v11861, %v11931
    %v11968 = vmul.f32 %v11862, %v11919
    %v11969 = vmul.f32 %v11863, %v11923
    %v11970 = vmul.f32 %v11864, %v11927
    %v11971 = vmul.f32 %v11865, %v11931
    %v11972 = vmul.f32 %v11866, %v11919
    %v11973 = vmul.f32 %v11867, %v11923
    %v11974 = vmul.f32 %v11868, %v11927
    %v11975 = vmul.f32 %v11869, %v11931
    %v11976 = vmul.f32 %v11870, %v11919
    %v11977 = vmul.f32 %v11871, %v11923
    %v11978 = vmul.f32 %v11872, %v11927
    %v11979 = vmul.f32 %v11873, %v11931
    %v11980 = vmul.f32 %v11874, %v11919
    %v11981 = vmul.f32 %v11875, %v11923
    %v11982 = vmul.f32 %v11876, %v11927
    %v11983 = vmul.f32 %v11877, %v11931
    %v11984 = vmul.f32 %v11878, %v11919
    %v11985 = vmul.f32 %v11879, %v11923
    %v11986 = vmul.f32 %v11880, %v11927
    %v11987 = vmul.f32 %v11881, %v11931
    %v11988 = vmul.f32 %v11882, %v11919
    %v11989 = vmul.f32 %v11883, %v11923
    %v11990 = vmul.f32 %v11884, %v11927
    %v11991 = vmul.f32 %v11885, %v11931
    %v11992 = vmul.f32 %v11886, %v11919
    %v11993 = vmul.f32 %v11887, %v11923
    %v11994 = vmul.f32 %v11888, %v11927
    %v11995 = vmul.f32 %v11889, %v11931
    %v11996 = vmul.f32 %v11890, %v11919
    %v11997 = vmul.f32 %v11891, %v11923
    %v11998 = vmul.f32 %v11892, %v11927
    %v11999 = vmul.f32 %v11893, %v11931
    %v12000 = vmul.f32 %v11894, %v11919
    %v12001 = vmul.f32 %v11895, %v11923
    %v12002 = vmul.f32 %v11896, %v11927
    %v12003 = vmul.f32 %v11897, %v11931
    %v12004 = vmul.f32 %v11898, %v11919
    %v12005 = vmul.f32 %v11899, %v11923
    %v12006 = vmul.f32 %v11900, %v11927
    %v12007 = vmul.f32 %v11901, %v11931
    %v12008 = vmul.f32 %v11902, %v11919
    %v12009 = vmul.f32 %v11903, %v11923
    %v12010 = vmul.f32 %v11904, %v11927
    %v12011 = vmul.f32 %v11905, %v11931
    %v12012 = vmul.f32 %v11906, %v11919
    %v12013 = vmul.f32 %v11907, %v11923
    %v12014 = vmul.f32 %v11908, %v11927
    %v12015 = vmul.f32 %v11909, %v11931
    %v12016 = vmul.f32 %v11910, %v11919
    %v12017 = vmul.f32 %v11911, %v11923
    %v12018 = vmul.f32 %v11912, %v11927
    %v12019 = vmul.f32 %v11913, %v11931
    %v12020 = vld [vmem:[#allocation7] sm:$0xf]
    %v12022 = vlaneseq
    %v12023 = vshrl.u32 %v12022, 7
    %v12024 = vsub.s32 0, %v12023
    %v12025 = vrot.slane %v12020, %v12024
    %v12026 = vlaneseq
    %v12027 = vshrl.u32 %v12026, 7
    %v12028 = vsub.s32 1, %v12027
    %v12029 = vrot.slane %v12020, %v12028
    %v12030 = vlaneseq
    %v12031 = vshrl.u32 %v12030, 7
    %v12032 = vsub.s32 2, %v12031
    %v12033 = vrot.slane %v12020, %v12032
    %v12034 = vlaneseq
    %v12035 = vshrl.u32 %v12034, 7
    %v12036 = vsub.s32 3, %v12035
    %v12037 = vrot.slane %v12020, %v12036
    %v12042 = vadd.f32 %v11936, %v12025
    %v12043 = vadd.f32 %v11937, %v12029
    %v12044 = vadd.f32 %v11938, %v12033
    %v12045 = vadd.f32 %v11939, %v12037
    %v12046 = vadd.f32 %v11940, %v12025
    %v12047 = vadd.f32 %v11941, %v12029
    %v12048 = vadd.f32 %v11942, %v12033
    %v12049 = vadd.f32 %v11943, %v12037
    %v12050 = vadd.f32 %v11944, %v12025
    %v12051 = vadd.f32 %v11945, %v12029
    %v12052 = vadd.f32 %v11946, %v12033
    %v12053 = vadd.f32 %v11947, %v12037
    %v12054 = vadd.f32 %v11948, %v12025
    %v12055 = vadd.f32 %v11949, %v12029
    %v12056 = vadd.f32 %v11950, %v12033
    %v12057 = vadd.f32 %v11951, %v12037
    %v12058 = vadd.f32 %v11952, %v12025
    %v12059 = vadd.f32 %v11953, %v12029
    %v12060 = vadd.f32 %v11954, %v12033
    %v12061 = vadd.f32 %v11955, %v12037
    %v12062 = vadd.f32 %v11956, %v12025
    %v12063 = vadd.f32 %v11957, %v12029
    %v12064 = vadd.f32 %v11958, %v12033
    %v12065 = vadd.f32 %v11959, %v12037
    %v12066 = vadd.f32 %v11960, %v12025
    %v12067 = vadd.f32 %v11961, %v12029
    %v12068 = vadd.f32 %v11962, %v12033
    %v12069 = vadd.f32 %v11963, %v12037
    %v12070 = vadd.f32 %v11964, %v12025
    %v12071 = vadd.f32 %v11965, %v12029
    %v12072 = vadd.f32 %v11966, %v12033
    %v12073 = vadd.f32 %v11967, %v12037
    %v12074 = vadd.f32 %v11968, %v12025
    %v12075 = vadd.f32 %v11969, %v12029
    %v12076 = vadd.f32 %v11970, %v12033
    %v12077 = vadd.f32 %v11971, %v12037
    %v12078 = vadd.f32 %v11972, %v12025
    %v12079 = vadd.f32 %v11973, %v12029
    %v12080 = vadd.f32 %v11974, %v12033
    %v12081 = vadd.f32 %v11975, %v12037
    %v12082 = vadd.f32 %v11976, %v12025
    %v12083 = vadd.f32 %v11977, %v12029
    %v12084 = vadd.f32 %v11978, %v12033
    %v12085 = vadd.f32 %v11979, %v12037
    %v12086 = vadd.f32 %v11980, %v12025
    %v12087 = vadd.f32 %v11981, %v12029
    %v12088 = vadd.f32 %v11982, %v12033
    %v12089 = vadd.f32 %v11983, %v12037
    %v12090 = vadd.f32 %v11984, %v12025
    %v12091 = vadd.f32 %v11985, %v12029
    %v12092 = vadd.f32 %v11986, %v12033
    %v12093 = vadd.f32 %v11987, %v12037
    %v12094 = vadd.f32 %v11988, %v12025
    %v12095 = vadd.f32 %v11989, %v12029
    %v12096 = vadd.f32 %v11990, %v12033
    %v12097 = vadd.f32 %v11991, %v12037
    %v12098 = vadd.f32 %v11992, %v12025
    %v12099 = vadd.f32 %v11993, %v12029
    %v12100 = vadd.f32 %v11994, %v12033
    %v12101 = vadd.f32 %v11995, %v12037
    %v12102 = vadd.f32 %v11996, %v12025
    %v12103 = vadd.f32 %v11997, %v12029
    %v12104 = vadd.f32 %v11998, %v12033
    %v12105 = vadd.f32 %v11999, %v12037
    %v12106 = vadd.f32 %v12000, %v12025
    %v12107 = vadd.f32 %v12001, %v12029
    %v12108 = vadd.f32 %v12002, %v12033
    %v12109 = vadd.f32 %v12003, %v12037
    %v12110 = vadd.f32 %v12004, %v12025
    %v12111 = vadd.f32 %v12005, %v12029
    %v12112 = vadd.f32 %v12006, %v12033
    %v12113 = vadd.f32 %v12007, %v12037
    %v12114 = vadd.f32 %v12008, %v12025
    %v12115 = vadd.f32 %v12009, %v12029
    %v12116 = vadd.f32 %v12010, %v12033
    %v12117 = vadd.f32 %v12011, %v12037
    %v12118 = vadd.f32 %v12012, %v12025
    %v12119 = vadd.f32 %v12013, %v12029
    %v12120 = vadd.f32 %v12014, %v12033
    %v12121 = vadd.f32 %v12015, %v12037
    %v12122 = vadd.f32 %v12016, %v12025
    %v12123 = vadd.f32 %v12017, %v12029
    %v12124 = vadd.f32 %v12018, %v12033
    %v12125 = vadd.f32 %v12019, %v12037
    %12126 = vst [vmem:[%s5] sm:$0xff] %v12042
    %12127 = vst [vmem:[%s5 + $0x8] sm:$0xff] %v12043
    %12128 = vst [vmem:[%s5 + $0x10] sm:$0xff] %v12044
    %12129 = vst [vmem:[%s5 + $0x18] sm:$0xff] %v12045
    %12130 = vst [vmem:[%s5 + $0x20] sm:$0xff] %v12046
    %12131 = vst [vmem:[%s5 + $0x28] sm:$0xff] %v12047
    %12132 = vst [vmem:[%s5 + $0x30] sm:$0xff] %v12048
    %12133 = vst [vmem:[%s5 + $0x38] sm:$0xff] %v12049
    %12134 = vst [vmem:[%s5 + $0x40] sm:$0xff] %v12050
    %12135 = vst [vmem:[%s5 + $0x48] sm:$0xff] %v12051
    %12136 = vst [vmem:[%s5 + $0x50] sm:$0xff] %v12052
    %12137 = vst [vmem:[%s5 + $0x58] sm:$0xff] %v12053
    %12138 = vst [vmem:[%s5 + $0x60] sm:$0xff] %v12054
    %12139 = vst [vmem:[%s5 + $0x68] sm:$0xff] %v12055
    %12140 = vst [vmem:[%s5 + $0x70] sm:$0xff] %v12056
    %12141 = vst [vmem:[%s5 + $0x78] sm:$0xff] %v12057
    %12142 = vst [vmem:[%s5 + $0x80] sm:$0xff] %v12058
    %12143 = vst [vmem:[%s5 + $0x88] sm:$0xff] %v12059
    %12144 = vst [vmem:[%s5 + $0x90] sm:$0xff] %v12060
    %12145 = vst [vmem:[%s5 + $0x98] sm:$0xff] %v12061
    %12146 = vst [vmem:[%s5 + $0xa0] sm:$0xff] %v12062
    %12147 = vst [vmem:[%s5 + $0xa8] sm:$0xff] %v12063
    %12148 = vst [vmem:[%s5 + $0xb0] sm:$0xff] %v12064
    %12149 = vst [vmem:[%s5 + $0xb8] sm:$0xff] %v12065
    %12150 = vst [vmem:[%s5 + $0xc0] sm:$0xff] %v12066
    %12151 = vst [vmem:[%s5 + $0xc8] sm:$0xff] %v12067
    %12152 = vst [vmem:[%s5 + $0xd0] sm:$0xff] %v12068
    %12153 = vst [vmem:[%s5 + $0xd8] sm:$0xff] %v12069
    %12154 = vst [vmem:[%s5 + $0xe0] sm:$0xff] %v12070
    %12155 = vst [vmem:[%s5 + $0xe8] sm:$0xff] %v12071
    %12156 = vst [vmem:[%s5 + $0xf0] sm:$0xff] %v12072
    %12157 = vst [vmem:[%s5 + $0xf8] sm:$0xff] %v12073
    %12158 = vst [vmem:[%s5 + $0x100] sm:$0xff] %v12074
    %12159 = vst [vmem:[%s5 + $0x108] sm:$0xff] %v12075
    %12160 = vst [vmem:[%s5 + $0x110] sm:$0xff] %v12076
    %12161 = vst [vmem:[%s5 + $0x118] sm:$0xff] %v12077
    %12162 = vst [vmem:[%s5 + $0x120] sm:$0xff] %v12078
    %12163 = vst [vmem:[%s5 + $0x128] sm:$0xff] %v12079
    %12164 = vst [vmem:[%s5 + $0x130] sm:$0xff] %v12080
    %12165 = vst [vmem:[%s5 + $0x138] sm:$0xff] %v12081
    %12166 = vst [vmem:[%s5 + $0x140] sm:$0xff] %v12082
    %12167 = vst [vmem:[%s5 + $0x148] sm:$0xff] %v12083
    %12168 = vst [vmem:[%s5 + $0x150] sm:$0xff] %v12084
    %12169 = vst [vmem:[%s5 + $0x158] sm:$0xff] %v12085
    %12170 = vst [vmem:[%s5 + $0x160] sm:$0xff] %v12086
    %12171 = vst [vmem:[%s5 + $0x168] sm:$0xff] %v12087
    %12172 = vst [vmem:[%s5 + $0x170] sm:$0xff] %v12088
    %12173 = vst [vmem:[%s5 + $0x178] sm:$0xff] %v12089
    %12174 = vst [vmem:[%s5 + $0x180] sm:$0xff] %v12090
    %12175 = vst [vmem:[%s5 + $0x188] sm:$0xff] %v12091
    %12176 = vst [vmem:[%s5 + $0x190] sm:$0xff] %v12092
    %12177 = vst [vmem:[%s5 + $0x198] sm:$0xff] %v12093
    %12178 = vst [vmem:[%s5 + $0x1a0] sm:$0xff] %v12094
    %12179 = vst [vmem:[%s5 + $0x1a8] sm:$0xff] %v12095
    %12180 = vst [vmem:[%s5 + $0x1b0] sm:$0xff] %v12096
    %12181 = vst [vmem:[%s5 + $0x1b8] sm:$0xff] %v12097
    %12182 = vst [vmem:[%s5 + $0x1c0] sm:$0xff] %v12098
    %12183 = vst [vmem:[%s5 + $0x1c8] sm:$0xff] %v12099
    %12184 = vst [vmem:[%s5 + $0x1d0] sm:$0xff] %v12100
    %12185 = vst [vmem:[%s5 + $0x1d8] sm:$0xff] %v12101
    %12186 = vst [vmem:[%s5 + $0x1e0] sm:$0xff] %v12102
    %12187 = vst [vmem:[%s5 + $0x1e8] sm:$0xff] %v12103
    %12188 = vst [vmem:[%s5 + $0x1f0] sm:$0xff] %v12104
    %12189 = vst [vmem:[%s5 + $0x1f8] sm:$0xff] %v12105
    %12190 = vst [vmem:[%s5 + $0x200] sm:$0xff] %v12106
    %12191 = vst [vmem:[%s5 + $0x208] sm:$0xff] %v12107
    %12192 = vst [vmem:[%s5 + $0x210] sm:$0xff] %v12108
    %12193 = vst [vmem:[%s5 + $0x218] sm:$0xff] %v12109
    %12194 = vst [vmem:[%s5 + $0x220] sm:$0xff] %v12110
    %12195 = vst [vmem:[%s5 + $0x228] sm:$0xff] %v12111
    %12196 = vst [vmem:[%s5 + $0x230] sm:$0xff] %v12112
    %12197 = vst [vmem:[%s5 + $0x238] sm:$0xff] %v12113
    %12198 = vst [vmem:[%s5 + $0x240] sm:$0xff] %v12114
    %12199 = vst [vmem:[%s5 + $0x248] sm:$0xff] %v12115
    %12200 = vst [vmem:[%s5 + $0x250] sm:$0xff] %v12116
    %12201 = vst [vmem:[%s5 + $0x258] sm:$0xff] %v12117
    %12202 = vst [vmem:[%s5 + $0x260] sm:$0xff] %v12118
    %12203 = vst [vmem:[%s5 + $0x268] sm:$0xff] %v12119
    %12204 = vst [vmem:[%s5 + $0x270] sm:$0xff] %v12120
    %12205 = vst [vmem:[%s5 + $0x278] sm:$0xff] %v12121
    %12206 = vst [vmem:[%s5 + $0x280] sm:$0xff] %v12122
    %12207 = vst [vmem:[%s5 + $0x288] sm:$0xff] %v12123
    %12208 = vst [vmem:[%s5 + $0x290] sm:$0xff] %v12124
    %12209 = vst [vmem:[%s5 + $0x298] sm:$0xff] %v12125
    // Predicated region
    $region38: #{poswise_feed_forward.1} parent=1 // pred_check
      _
    $region39: #{poswise_feed_forward.1} parent=1 // pred_check_branch
      %12211 = sbr.rel (0) target = $region41
    $region40: #{poswise_feed_forward.1} parent=1 // pred_region
      _
    $region41: #{poswise_feed_forward.1} parent=1 // pred_fallthru
      _
    // Predicated region
    $region42: #{poswise_feed_forward.1} parent=1 // pred_check
      _
    $region43: #{poswise_feed_forward.1} parent=1 // pred_check_branch
      %12213 = sbr.rel (0) target = $region45
    $region44: #{poswise_feed_forward.1} parent=1 // pred_region
      _
    $region45: #{poswise_feed_forward.1} parent=1 // pred_fallthru
      _
    %12214 = vsyncpa [#allocation3], 1
    %12215 = vsyncpa [#allocation5], 1
    %12216 = vsyncpa [#allocation8], 1

</llo_original>
